<compile_context>
chip_gen: v7x
topology: tpu7x:2x2x1
jax: 0.10.0
libtpu: 0.0.40
codegen_flags: <defaults>
</compile_context>

<pallas_src>
import functools

import jax
import jax.numpy as jnp
import numpy as np
from jax.experimental import pallas as pl
from jax.experimental.pallas import tpu as pltpu

BN_EPS = 1e-5


def _residual_kernel(stride, use_1x1conv, dims,
                     xp_ref, w1_ref, b1_ref, g1_ref, bt1_ref,
                     w2_ref, b2_ref, g2_ref, bt2_ref, w3_ref, b3_ref,
                     out_ref, p1_ref, pad2_ref, p2_ref):
    N, H, W, Cin, Cout, Cp, Ho, Wo = dims
    M = N * Ho * Wo
    inv_m = 1.0 / float(M)
    cdt = xp_ref.dtype                       # MXU-operand dtype (f32 or bf16)

    def tap(ref, kh, kw, ho, wo, s):
        # (ho, wo) output-position gather of one 3x3 tap; for s > 1 only the
        # needed (strided) positions are read -> no wasted conv FLOPs.
        if s == 1:
            v = ref[:, kh:kh + ho, kw:kw + wo, :]
        else:
            v = ref[:, pl.ds(kh, ho, s), pl.ds(kw, wo, s), :]
        return v.reshape(M, ref.shape[-1])

    # ---------------- conv1: im2col + single GEMM ----------------
    for kh in range(3):
        for kw in range(3):
            t = kh * 3 + kw
            p1_ref[:, t * Cin:(t + 1) * Cin] = tap(xp_ref, kh, kw, Ho, Wo, stride)
    y = jnp.dot(p1_ref[...], w1_ref[...],
                preferred_element_type=jnp.float32)          # (M, Cout) f32
    y = y + b1_ref[...]

    # ---------------- bn1 (single-pass batch stats) + relu ----------------
    s1 = jnp.sum(y, axis=0, keepdims=True)
    q1 = jnp.sum(y * y, axis=0, keepdims=True)
    mean1 = s1 * inv_m
    var1 = q1 * inv_m - mean1 * mean1
    y = (y - mean1) * jax.lax.rsqrt(var1 + BN_EPS) * g1_ref[...] + bt1_ref[...]
    y = jnp.maximum(y, 0.0)

    # ---------------- conv2: halo-only padded scratch + im2col + GEMM ------
    pad2_ref[:, 0:1, :, :] = jnp.zeros((N, 1, Wo + 2, Cout), cdt)
    pad2_ref[:, Ho + 1:Ho + 2, :, :] = jnp.zeros((N, 1, Wo + 2, Cout), cdt)
    pad2_ref[:, :, 0:1, :] = jnp.zeros((N, Ho + 2, 1, Cout), cdt)
    pad2_ref[:, :, Wo + 1:Wo + 2, :] = jnp.zeros((N, Ho + 2, 1, Cout), cdt)
    pad2_ref[:, 1:Ho + 1, 1:Wo + 1, :] = y.reshape(N, Ho, Wo, Cout).astype(cdt)

    for kh in range(3):
        for kw in range(3):
            t = kh * 3 + kw
            p2_ref[:, t * Cout:(t + 1) * Cout] = tap(pad2_ref, kh, kw, Ho, Wo, 1)
    z = jnp.dot(p2_ref[...], w2_ref[...],
                preferred_element_type=jnp.float32)          # (M, Cp) f32
    z = z + b2_ref[...]

    # ---------------- bn2 (single pass) ----------------
    s2 = jnp.sum(z, axis=0, keepdims=True)
    q2 = jnp.sum(z * z, axis=0, keepdims=True)
    mean2 = s2 * inv_m
    var2 = q2 * inv_m - mean2 * mean2
    z = (z - mean2) * jax.lax.rsqrt(var2 + BN_EPS) * g2_ref[...] + bt2_ref[...]
    # padded output lanes of z stay exactly 0 (zero weights / bias / gamma).

    # ---------------- skip connection + final relu ----------------
    if stride == 1:
        xs = xp_ref[:, 1:H + 1, 1:W + 1, :]
    else:
        xs = xp_ref[:, pl.ds(1, Ho, stride), pl.ds(1, Wo, stride), :]
    xs = xs.reshape(M, Cin)

    if use_1x1conv:
        skip = jnp.dot(xs, w3_ref[...],
                       preferred_element_type=jnp.float32) + b3_ref[...]
        out_ref[...] = jnp.maximum(z + skip, 0.0)            # lane-dense store
    else:
        # PyTorch identity skip: requires Cin == Cout and stride == 1.
        out_ref[:, :Cout] = jnp.maximum(z[:, :Cout] + xs.astype(jnp.float32), 0.0)
        if Cp > Cout:
            out_ref[:, Cout:] = jnp.zeros((M, Cp - Cout), jnp.float32)


def _pad_cols(a, cp):
    pad = cp - a.shape[-1]
    return a if pad == 0 else jnp.pad(a, ((0, 0), (0, pad)))


def residual_forward(x_nhwc, params, *, stride=1, use_1x1conv=False,
                     mxu_dtype=jnp.bfloat16):
    N, H, W, Cin = x_nhwc.shape
    Cout = params["w1"].shape[-1]
    Ho = (H - 1) // stride + 1
    Wo = (W - 1) // stride + 1
    M = N * Ho * Wo
    Cp = ((Cout + 127) // 128) * 128         # lane-dense width for stage-2/out

    # Layout plumbing outside the kernel (free XLA ops): spatial zero-pad of
    # the input and packing of HWIO conv weights into single GEMM operands.
    xp = jnp.pad(x_nhwc, ((0, 0), (1, 1), (1, 1), (0, 0))).astype(mxu_dtype)
    w1p = params["w1"].reshape(9 * Cin, Cout).astype(mxu_dtype)
    w2p = _pad_cols(params["w2"].reshape(9 * Cout, Cout), Cp).astype(mxu_dtype)
    w3p = _pad_cols(params["w3"].reshape(Cin, Cout), Cp).astype(mxu_dtype)
    b1, g1, bt1 = params["b1"], params["g1"], params["bt1"]          # f32
    b2 = _pad_cols(params["b2"], Cp)
    g2 = _pad_cols(params["g2"], Cp)
    bt2 = _pad_cols(params["bt2"], Cp)
    b3 = _pad_cols(params["b3"], Cp)

    kernel = functools.partial(_residual_kernel, stride, use_1x1conv,
                               (N, H, W, Cin, Cout, Cp, Ho, Wo))
    vmem = pl.BlockSpec(memory_space=pltpu.MemorySpace.VMEM)
    args = (xp, w1p, b1, g1, bt1, w2p, b2, g2, bt2, w3p, b3)

    out = pl.pallas_call(
        kernel,
        out_shape=jax.ShapeDtypeStruct((M, Cp), jnp.float32),
        in_specs=[vmem] * len(args),
        out_specs=vmem,
        scratch_shapes=[
            pltpu.VMEM((M, 9 * Cin), mxu_dtype),               # conv1 im2col
            pltpu.VMEM((N, Ho + 2, Wo + 2, Cout), mxu_dtype),  # conv2 padded act
            pltpu.VMEM((M, 9 * Cout), mxu_dtype),              # conv2 im2col
        ],
        compiler_params=pltpu.CompilerParams(
            vmem_limit_bytes=32 * 1024 * 1024),
    )(*args)

    # drop lane padding + restore NHWC outside the kernel (free reshapes)
    return out[:, :Cout].reshape(N, Ho, Wo, Cout)


def init_params(key, cin, cout, use_1x1conv):
    ks = jax.random.split(key, 6)

    def conv_w(k, kh, kw, ci, co):
        bound = 1.0 / np.sqrt(ci * kh * kw)
        return jax.random.uniform(k, (kh, kw, ci, co), jnp.float32, -bound, bound)

    def conv_b(k, kh, kw, ci, co):
        bound = 1.0 / np.sqrt(ci * kh * kw)
        return jax.random.uniform(k, (1, co), jnp.float32, -bound, bound)

    params = dict(
        w1=conv_w(ks[0], 3, 3, cin, cout), b1=conv_b(ks[1], 3, 3, cin, cout),
        w2=conv_w(ks[2], 3, 3, cout, cout), b2=conv_b(ks[3], 3, 3, cout, cout),
        g1=jnp.ones((1, cout), jnp.float32), bt1=jnp.zeros((1, cout), jnp.float32),
        g2=jnp.ones((1, cout), jnp.float32), bt2=jnp.zeros((1, cout), jnp.float32),
    )
    if use_1x1conv:
        params["w3"] = conv_w(ks[4], 1, 1, cin, cout)
        params["b3"] = conv_b(ks[5], 1, 1, cin, cout)
    else:
        params["w3"] = jnp.zeros((1, 1, cin, cout), jnp.float32)  # unused dummy
        params["b3"] = jnp.zeros((1, cout), jnp.float32)
    return params


def residual_ref(x, p, stride, use_1x1conv):
    """Plain-JAX reference (NHWC/HWIO layout) for correctness checking."""
    dn = ("NHWC", "HWIO", "NHWC")

    def bn(v, g, b):
        m = jnp.mean(v, axis=(0, 1, 2), keepdims=True)
        var = jnp.mean((v - m) ** 2, axis=(0, 1, 2), keepdims=True)
        return (v - m) * jax.lax.rsqrt(var + BN_EPS) * g.reshape(1, 1, 1, -1) \
            + b.reshape(1, 1, 1, -1)

    y = jax.lax.conv_general_dilated(x, p["w1"], (stride, stride),
                                     ((1, 1), (1, 1)), dimension_numbers=dn)
    y = jnp.maximum(bn(y + p["b1"].reshape(1, 1, 1, -1), p["g1"], p["bt1"]), 0.0)
    z = jax.lax.conv_general_dilated(y, p["w2"], (1, 1),
                                     ((1, 1), (1, 1)), dimension_numbers=dn)
    z = bn(z + p["b2"].reshape(1, 1, 1, -1), p["g2"], p["bt2"])
    if use_1x1conv:
        xs = jax.lax.conv_general_dilated(x, p["w3"], (stride, stride),
                                          ((0, 0), (0, 0)), dimension_numbers=dn)
        xs = xs + p["b3"].reshape(1, 1, 1, -1)
    else:
        xs = x
    return jnp.maximum(z + xs, 0.0)


if __name__ == "__main__":
    key = jax.random.PRNGKey(0)
    kx, kp = jax.random.split(key)

    # Matches PyTorch: Residual(input_channels=4, num_channels=8,
    #                           use_1x1conv=True, strides=1), input (2,4,16,16) NCHW
    N, Cin, H, W = 2, 4, 16, 16
    Cout, use_1x1conv, stride = 8, True, 1

    x_nchw = jax.random.normal(kx, (N, Cin, H, W), jnp.float32)   # PyTorch NCHW
    x_nhwc = jnp.transpose(x_nchw, (0, 2, 3, 1))                   # kernel layout

    params = init_params(kp, Cin, Cout, use_1x1conv)
    ref = np.asarray(residual_ref(x_nhwc, params, stride, use_1x1conv))

    # Exact path: f32 MXU operands.
    out_f32 = jax.block_until_ready(residual_forward(
        x_nhwc, params, stride=stride, use_1x1conv=use_1x1conv,
        mxu_dtype=jnp.float32))
    err32 = float(np.max(np.abs(np.asarray(out_f32) - ref)))
    assert np.allclose(np.asarray(out_f32), ref, atol=1e-4, rtol=1e-4), err32

    # Throughput path (v6e/v7x): bf16 MXU operands, f32 accumulation + BN stats.
    out_bf16 = jax.block_until_ready(residual_forward(
        x_nhwc, params, stride=stride, use_1x1conv=use_1x1conv,
        mxu_dtype=jnp.bfloat16))
    errbf = float(np.max(np.abs(np.asarray(out_bf16) - ref)))
    assert np.allclose(np.asarray(out_bf16), ref, atol=5e-2, rtol=5e-2), errbf

    print("KERNEL_OK")
</pallas_src>

<mosaic_0001>
module attributes {stable_mosaic.version = 11 : i64} {
  func.func @_residual_kernel(%arg0: memref<2x18x18x4xf32, #tpu.memory_space<vmem>>, %arg1: memref<36x8xf32, #tpu.memory_space<vmem>>, %arg2: memref<1x8xf32, #tpu.memory_space<vmem>>, %arg3: memref<1x8xf32, #tpu.memory_space<vmem>>, %arg4: memref<1x8xf32, #tpu.memory_space<vmem>>, %arg5: memref<72x128xf32, #tpu.memory_space<vmem>>, %arg6: memref<1x128xf32, #tpu.memory_space<vmem>>, %arg7: memref<1x128xf32, #tpu.memory_space<vmem>>, %arg8: memref<1x128xf32, #tpu.memory_space<vmem>>, %arg9: memref<4x128xf32, #tpu.memory_space<vmem>>, %arg10: memref<1x128xf32, #tpu.memory_space<vmem>>, %arg11: memref<512x128xf32, #tpu.memory_space<vmem>>, %arg12: memref<512x36xf32, #tpu.memory_space<vmem>>, %arg13: memref<2x18x18x8xf32, #tpu.memory_space<vmem>>, %arg14: memref<512x72xf32, #tpu.memory_space<vmem>>) attributes {dimension_semantics = [], scalar_prefetch = 0 : i64, scratch_operands = 3 : i64, tpu.core_type = #tpu.core_type<tc>} {
    %c0 = arith.constant 0 : index
    %c0_0 = arith.constant 0 : index
    %c0_1 = arith.constant 0 : index
    %c0_2 = arith.constant 0 : index
    %0 = vector.load %arg0[%c0, %c0_0, %c0_1, %c0_2] : memref<2x18x18x4xf32, #tpu.memory_space<vmem>>, vector<2x16x16x4xf32>
    %1 = vector.shape_cast %0 : vector<2x16x16x4xf32> to vector<512x4xf32>
    %c0_3 = arith.constant 0 : index
    %c0_4 = arith.constant 0 : index
    %2 = vector.load %arg12[%c0_3, %c0_4] : memref<512x36xf32, #tpu.memory_space<vmem>>, vector<512x4xf32>
    tpu.vector_store %arg12[%c0_3, %c0_4], %1 {strides = array<i32>} : memref<512x36xf32, #tpu.memory_space<vmem>>, vector<512x4xf32>,
    %c0_5 = arith.constant 0 : index
    %c0_6 = arith.constant 0 : index
    %c1 = arith.constant 1 : index
    %c0_7 = arith.constant 0 : index
    %3 = vector.load %arg0[%c0_5, %c0_6, %c1, %c0_7] : memref<2x18x18x4xf32, #tpu.memory_space<vmem>>, vector<2x16x16x4xf32>
    %4 = vector.shape_cast %3 : vector<2x16x16x4xf32> to vector<512x4xf32>
    %c0_8 = arith.constant 0 : index
    %c4 = arith.constant 4 : index
    %5 = vector.load %arg12[%c0_8, %c4] : memref<512x36xf32, #tpu.memory_space<vmem>>, vector<512x4xf32>
    tpu.vector_store %arg12[%c0_8, %c4], %4 {strides = array<i32>} : memref<512x36xf32, #tpu.memory_space<vmem>>, vector<512x4xf32>,
    %c0_9 = arith.constant 0 : index
    %c0_10 = arith.constant 0 : index
    %c2 = arith.constant 2 : index
    %c0_11 = arith.constant 0 : index
    %6 = vector.load %arg0[%c0_9, %c0_10, %c2, %c0_11] : memref<2x18x18x4xf32, #tpu.memory_space<vmem>>, vector<2x16x16x4xf32>
    %7 = vector.shape_cast %6 : vector<2x16x16x4xf32> to vector<512x4xf32>
    %c0_12 = arith.constant 0 : index
    %c8 = arith.constant 8 : index
    %8 = vector.load %arg12[%c0_12, %c8] : memref<512x36xf32, #tpu.memory_space<vmem>>, vector<512x4xf32>
    tpu.vector_store %arg12[%c0_12, %c8], %7 {strides = array<i32>} : memref<512x36xf32, #tpu.memory_space<vmem>>, vector<512x4xf32>,
    %c0_13 = arith.constant 0 : index
    %c1_14 = arith.constant 1 : index
    %c0_15 = arith.constant 0 : index
    %c0_16 = arith.constant 0 : index
    %9 = vector.load %arg0[%c0_13, %c1_14, %c0_15, %c0_16] : memref<2x18x18x4xf32, #tpu.memory_space<vmem>>, vector<2x16x16x4xf32>
    %10 = vector.shape_cast %9 : vector<2x16x16x4xf32> to vector<512x4xf32>
    %c0_17 = arith.constant 0 : index
    %c12 = arith.constant 12 : index
    %11 = vector.load %arg12[%c0_17, %c12] : memref<512x36xf32, #tpu.memory_space<vmem>>, vector<512x4xf32>
    tpu.vector_store %arg12[%c0_17, %c12], %10 {strides = array<i32>} : memref<512x36xf32, #tpu.memory_space<vmem>>, vector<512x4xf32>,
    %c0_18 = arith.constant 0 : index
    %c1_19 = arith.constant 1 : index
    %c1_20 = arith.constant 1 : index
    %c0_21 = arith.constant 0 : index
    %12 = vector.load %arg0[%c0_18, %c1_19, %c1_20, %c0_21] : memref<2x18x18x4xf32, #tpu.memory_space<vmem>>, vector<2x16x16x4xf32>
    %13 = vector.shape_cast %12 : vector<2x16x16x4xf32> to vector<512x4xf32>
    %c0_22 = arith.constant 0 : index
    %c16 = arith.constant 16 : index
    %14 = vector.load %arg12[%c0_22, %c16] : memref<512x36xf32, #tpu.memory_space<vmem>>, vector<512x4xf32>
    tpu.vector_store %arg12[%c0_22, %c16], %13 {strides = array<i32>} : memref<512x36xf32, #tpu.memory_space<vmem>>, vector<512x4xf32>,
    %c0_23 = arith.constant 0 : index
    %c1_24 = arith.constant 1 : index
    %c2_25 = arith.constant 2 : index
    %c0_26 = arith.constant 0 : index
    %15 = vector.load %arg0[%c0_23, %c1_24, %c2_25, %c0_26] : memref<2x18x18x4xf32, #tpu.memory_space<vmem>>, vector<2x16x16x4xf32>
    %16 = vector.shape_cast %15 : vector<2x16x16x4xf32> to vector<512x4xf32>
    %c0_27 = arith.constant 0 : index
    %c20 = arith.constant 20 : index
    %17 = vector.load %arg12[%c0_27, %c20] : memref<512x36xf32, #tpu.memory_space<vmem>>, vector<512x4xf32>
    tpu.vector_store %arg12[%c0_27, %c20], %16 {strides = array<i32>} : memref<512x36xf32, #tpu.memory_space<vmem>>, vector<512x4xf32>,
    %c0_28 = arith.constant 0 : index
    %c2_29 = arith.constant 2 : index
    %c0_30 = arith.constant 0 : index
    %c0_31 = arith.constant 0 : index
    %18 = vector.load %arg0[%c0_28, %c2_29, %c0_30, %c0_31] : memref<2x18x18x4xf32, #tpu.memory_space<vmem>>, vector<2x16x16x4xf32>
    %19 = vector.shape_cast %18 : vector<2x16x16x4xf32> to vector<512x4xf32>
    %c0_32 = arith.constant 0 : index
    %c24 = arith.constant 24 : index
    %20 = vector.load %arg12[%c0_32, %c24] : memref<512x36xf32, #tpu.memory_space<vmem>>, vector<512x4xf32>
    tpu.vector_store %arg12[%c0_32, %c24], %19 {strides = array<i32>} : memref<512x36xf32, #tpu.memory_space<vmem>>, vector<512x4xf32>,
    %c0_33 = arith.constant 0 : index
    %c2_34 = arith.constant 2 : index
    %c1_35 = arith.constant 1 : index
    %c0_36 = arith.constant 0 : index
    %21 = vector.load %arg0[%c0_33, %c2_34, %c1_35, %c0_36] : memref<2x18x18x4xf32, #tpu.memory_space<vmem>>, vector<2x16x16x4xf32>
    %22 = vector.shape_cast %21 : vector<2x16x16x4xf32> to vector<512x4xf32>
    %c0_37 = arith.constant 0 : index
    %c28 = arith.constant 28 : index
    %23 = vector.load %arg12[%c0_37, %c28] : memref<512x36xf32, #tpu.memory_space<vmem>>, vector<512x4xf32>
    tpu.vector_store %arg12[%c0_37, %c28], %22 {strides = array<i32>} : memref<512x36xf32, #tpu.memory_space<vmem>>, vector<512x4xf32>,
    %c0_38 = arith.constant 0 : index
    %c2_39 = arith.constant 2 : index
    %c2_40 = arith.constant 2 : index
    %c0_41 = arith.constant 0 : index
    %24 = vector.load %arg0[%c0_38, %c2_39, %c2_40, %c0_41] : memref<2x18x18x4xf32, #tpu.memory_space<vmem>>, vector<2x16x16x4xf32>
    %25 = vector.shape_cast %24 : vector<2x16x16x4xf32> to vector<512x4xf32>
    %c0_42 = arith.constant 0 : index
    %c32 = arith.constant 32 : index
    %26 = vector.load %arg12[%c0_42, %c32] : memref<512x36xf32, #tpu.memory_space<vmem>>, vector<512x4xf32>
    tpu.vector_store %arg12[%c0_42, %c32], %25 {strides = array<i32>} : memref<512x36xf32, #tpu.memory_space<vmem>>, vector<512x4xf32>,
    %c0_43 = arith.constant 0 : index
    %c0_44 = arith.constant 0 : index
    %27 = vector.load %arg12[%c0_43, %c0_44] : memref<512x36xf32, #tpu.memory_space<vmem>>, vector<512x36xf32>
    %c0_45 = arith.constant 0 : index
    %c0_46 = arith.constant 0 : index
    %28 = vector.load %arg1[%c0_45, %c0_46] : memref<36x8xf32, #tpu.memory_space<vmem>>, vector<36x8xf32>
    %cst = arith.constant dense<0.000000e+00> : vector<512x8xf32>
    %29 = tpu.matmul %27, %28, %cst {dimension_numbers = #tpu.dot_dimension_numbers<[1], [0], [0], [1], [0, 0, 1, 1], [], []>} : vector<512x36xf32>, vector<36x8xf32>, vector<512x8xf32> -> vector<512x8xf32>
    %c0_47 = arith.constant 0 : index
    %c0_48 = arith.constant 0 : index
    %30 = vector.load %arg2[%c0_47, %c0_48] : memref<1x8xf32, #tpu.memory_space<vmem>>, vector<1x8xf32>
    %31 = vector.broadcast %30 : vector<1x8xf32> to vector<512x8xf32>
    %32 = arith.addf %29, %31 : vector<512x8xf32>
    %cst_49 = arith.constant dense<0.000000e+00> : vector<8xf32>
    %33 = vector.multi_reduction <add>, %32, %cst_49 [0] : vector<512x8xf32> to vector<8xf32>
    %34 = vector.shape_cast %33 : vector<8xf32> to vector<1x8xf32>
    %35 = arith.mulf %32, %32 : vector<512x8xf32>
    %cst_50 = arith.constant dense<0.000000e+00> : vector<8xf32>
    %36 = vector.multi_reduction <add>, %35, %cst_50 [0] : vector<512x8xf32> to vector<8xf32>
    %37 = vector.shape_cast %36 : vector<8xf32> to vector<1x8xf32>
    %cst_51 = arith.constant 0.001953125 : f32
    %38 = vector.broadcast %cst_51 : f32 to vector<1x8xf32>
    %39 = arith.mulf %34, %38 : vector<1x8xf32>
    %cst_52 = arith.constant 0.001953125 : f32
    %40 = vector.broadcast %cst_52 : f32 to vector<1x8xf32>
    %41 = arith.mulf %37, %40 : vector<1x8xf32>
    %42 = arith.mulf %39, %39 : vector<1x8xf32>
    %43 = arith.subf %41, %42 : vector<1x8xf32>
    %44 = vector.broadcast %39 : vector<1x8xf32> to vector<512x8xf32>
    %45 = arith.subf %32, %44 : vector<512x8xf32>
    %cst_53 = arith.constant 9.99999974E-6 : f32
    %46 = vector.broadcast %cst_53 : f32 to vector<1x8xf32>
    %47 = arith.addf %43, %46 : vector<1x8xf32>
    %48 = math.rsqrt %47 : vector<1x8xf32>
    %49 = vector.broadcast %48 : vector<1x8xf32> to vector<512x8xf32>
    %50 = arith.mulf %45, %49 : vector<512x8xf32>
    %c0_54 = arith.constant 0 : index
    %c0_55 = arith.constant 0 : index
    %51 = vector.load %arg3[%c0_54, %c0_55] : memref<1x8xf32, #tpu.memory_space<vmem>>, vector<1x8xf32>
    %52 = vector.broadcast %51 : vector<1x8xf32> to vector<512x8xf32>
    %53 = arith.mulf %50, %52 : vector<512x8xf32>
    %c0_56 = arith.constant 0 : index
    %c0_57 = arith.constant 0 : index
    %54 = vector.load %arg4[%c0_56, %c0_57] : memref<1x8xf32, #tpu.memory_space<vmem>>, vector<1x8xf32>
    %55 = vector.broadcast %54 : vector<1x8xf32> to vector<512x8xf32>
    %56 = arith.addf %53, %55 : vector<512x8xf32>
    %cst_58 = arith.constant 0.000000e+00 : f32
    %57 = vector.broadcast %cst_58 : f32 to vector<512x8xf32>
    %58 = arith.maximumf %56, %57 : vector<512x8xf32>
    %cst_59 = arith.constant 0.000000e+00 : f32
    %59 = vector.broadcast %cst_59 : f32 to vector<2x1x18x8xf32>
    %c0_60 = arith.constant 0 : index
    %c0_61 = arith.constant 0 : index
    %c0_62 = arith.constant 0 : index
    %c0_63 = arith.constant 0 : index
    %60 = vector.load %arg13[%c0_60, %c0_61, %c0_62, %c0_63] : memref<2x18x18x8xf32, #tpu.memory_space<vmem>>, vector<2x1x18x8xf32>
    tpu.vector_store %arg13[%c0_60, %c0_61, %c0_62, %c0_63], %59 {strides = array<i32>} : memref<2x18x18x8xf32, #tpu.memory_space<vmem>>, vector<2x1x18x8xf32>,
    %cst_64 = arith.constant 0.000000e+00 : f32
    %61 = vector.broadcast %cst_64 : f32 to vector<2x1x18x8xf32>
    %c0_65 = arith.constant 0 : index
    %c17 = arith.constant 17 : index
    %c0_66 = arith.constant 0 : index
    %c0_67 = arith.constant 0 : index
    %62 = vector.load %arg13[%c0_65, %c17, %c0_66, %c0_67] : memref<2x18x18x8xf32, #tpu.memory_space<vmem>>, vector<2x1x18x8xf32>
    tpu.vector_store %arg13[%c0_65, %c17, %c0_66, %c0_67], %61 {strides = array<i32>} : memref<2x18x18x8xf32, #tpu.memory_space<vmem>>, vector<2x1x18x8xf32>,
    %cst_68 = arith.constant 0.000000e+00 : f32
    %63 = vector.broadcast %cst_68 : f32 to vector<2x18x1x8xf32>
    %c0_69 = arith.constant 0 : index
    %c0_70 = arith.constant 0 : index
    %c0_71 = arith.constant 0 : index
    %c0_72 = arith.constant 0 : index
    %64 = vector.load %arg13[%c0_69, %c0_70, %c0_71, %c0_72] : memref<2x18x18x8xf32, #tpu.memory_space<vmem>>, vector<2x18x1x8xf32>
    tpu.vector_store %arg13[%c0_69, %c0_70, %c0_71, %c0_72], %63 {strides = array<i32>} : memref<2x18x18x8xf32, #tpu.memory_space<vmem>>, vector<2x18x1x8xf32>,
    %cst_73 = arith.constant 0.000000e+00 : f32
    %65 = vector.broadcast %cst_73 : f32 to vector<2x18x1x8xf32>
    %c0_74 = arith.constant 0 : index
    %c0_75 = arith.constant 0 : index
    %c17_76 = arith.constant 17 : index
    %c0_77 = arith.constant 0 : index
    %66 = vector.load %arg13[%c0_74, %c0_75, %c17_76, %c0_77] : memref<2x18x18x8xf32, #tpu.memory_space<vmem>>, vector<2x18x1x8xf32>
    tpu.vector_store %arg13[%c0_74, %c0_75, %c17_76, %c0_77], %65 {strides = array<i32>} : memref<2x18x18x8xf32, #tpu.memory_space<vmem>>, vector<2x18x1x8xf32>,
    %67 = vector.shape_cast %58 : vector<512x8xf32> to vector<2x16x16x8xf32>
    %c0_78 = arith.constant 0 : index
    %c1_79 = arith.constant 1 : index
    %c1_80 = arith.constant 1 : index
    %c0_81 = arith.constant 0 : index
    %68 = vector.load %arg13[%c0_78, %c1_79, %c1_80, %c0_81] : memref<2x18x18x8xf32, #tpu.memory_space<vmem>>, vector<2x16x16x8xf32>
    tpu.vector_store %arg13[%c0_78, %c1_79, %c1_80, %c0_81], %67 {strides = array<i32>} : memref<2x18x18x8xf32, #tpu.memory_space<vmem>>, vector<2x16x16x8xf32>,
    %c0_82 = arith.constant 0 : index
    %c0_83 = arith.constant 0 : index
    %c0_84 = arith.constant 0 : index
    %c0_85 = arith.constant 0 : index
    %69 = vector.load %arg13[%c0_82, %c0_83, %c0_84, %c0_85] : memref<2x18x18x8xf32, #tpu.memory_space<vmem>>, vector<2x16x16x8xf32>
    %70 = vector.shape_cast %69 : vector<2x16x16x8xf32> to vector<512x8xf32>
    %c0_86 = arith.constant 0 : index
    %c0_87 = arith.constant 0 : index
    %71 = vector.load %arg14[%c0_86, %c0_87] : memref<512x72xf32, #tpu.memory_space<vmem>>, vector<512x8xf32>
    tpu.vector_store %arg14[%c0_86, %c0_87], %70 {strides = array<i32>} : memref<512x72xf32, #tpu.memory_space<vmem>>, vector<512x8xf32>,
    %c0_88 = arith.constant 0 : index
    %c0_89 = arith.constant 0 : index
    %c1_90 = arith.constant 1 : index
    %c0_91 = arith.constant 0 : index
    %72 = vector.load %arg13[%c0_88, %c0_89, %c1_90, %c0_91] : memref<2x18x18x8xf32, #tpu.memory_space<vmem>>, vector<2x16x16x8xf32>
    %73 = vector.shape_cast %72 : vector<2x16x16x8xf32> to vector<512x8xf32>
    %c0_92 = arith.constant 0 : index
    %c8_93 = arith.constant 8 : index
    %74 = vector.load %arg14[%c0_92, %c8_93] : memref<512x72xf32, #tpu.memory_space<vmem>>, vector<512x8xf32>
    tpu.vector_store %arg14[%c0_92, %c8_93], %73 {strides = array<i32>} : memref<512x72xf32, #tpu.memory_space<vmem>>, vector<512x8xf32>,
    %c0_94 = arith.constant 0 : index
    %c0_95 = arith.constant 0 : index
    %c2_96 = arith.constant 2 : index
    %c0_97 = arith.constant 0 : index
    %75 = vector.load %arg13[%c0_94, %c0_95, %c2_96, %c0_97] : memref<2x18x18x8xf32, #tpu.memory_space<vmem>>, vector<2x16x16x8xf32>
    %76 = vector.shape_cast %75 : vector<2x16x16x8xf32> to vector<512x8xf32>
    %c0_98 = arith.constant 0 : index
    %c16_99 = arith.constant 16 : index
    %77 = vector.load %arg14[%c0_98, %c16_99] : memref<512x72xf32, #tpu.memory_space<vmem>>, vector<512x8xf32>
    tpu.vector_store %arg14[%c0_98, %c16_99], %76 {strides = array<i32>} : memref<512x72xf32, #tpu.memory_space<vmem>>, vector<512x8xf32>,
    %c0_100 = arith.constant 0 : index
    %c1_101 = arith.constant 1 : index
    %c0_102 = arith.constant 0 : index
    %c0_103 = arith.constant 0 : index
    %78 = vector.load %arg13[%c0_100, %c1_101, %c0_102, %c0_103] : memref<2x18x18x8xf32, #tpu.memory_space<vmem>>, vector<2x16x16x8xf32>
    %79 = vector.shape_cast %78 : vector<2x16x16x8xf32> to vector<512x8xf32>
    %c0_104 = arith.constant 0 : index
    %c24_105 = arith.constant 24 : index
    %80 = vector.load %arg14[%c0_104, %c24_105] : memref<512x72xf32, #tpu.memory_space<vmem>>, vector<512x8xf32>
    tpu.vector_store %arg14[%c0_104, %c24_105], %79 {strides = array<i32>} : memref<512x72xf32, #tpu.memory_space<vmem>>, vector<512x8xf32>,
    %c0_106 = arith.constant 0 : index
    %c1_107 = arith.constant 1 : index
    %c1_108 = arith.constant 1 : index
    %c0_109 = arith.constant 0 : index
    %81 = vector.load %arg13[%c0_106, %c1_107, %c1_108, %c0_109] : memref<2x18x18x8xf32, #tpu.memory_space<vmem>>, vector<2x16x16x8xf32>
    %82 = vector.shape_cast %81 : vector<2x16x16x8xf32> to vector<512x8xf32>
    %c0_110 = arith.constant 0 : index
    %c32_111 = arith.constant 32 : index
    %83 = vector.load %arg14[%c0_110, %c32_111] : memref<512x72xf32, #tpu.memory_space<vmem>>, vector<512x8xf32>
    tpu.vector_store %arg14[%c0_110, %c32_111], %82 {strides = array<i32>} : memref<512x72xf32, #tpu.memory_space<vmem>>, vector<512x8xf32>,
    %c0_112 = arith.constant 0 : index
    %c1_113 = arith.constant 1 : index
    %c2_114 = arith.constant 2 : index
    %c0_115 = arith.constant 0 : index
    %84 = vector.load %arg13[%c0_112, %c1_113, %c2_114, %c0_115] : memref<2x18x18x8xf32, #tpu.memory_space<vmem>>, vector<2x16x16x8xf32>
    %85 = vector.shape_cast %84 : vector<2x16x16x8xf32> to vector<512x8xf32>
    %c0_116 = arith.constant 0 : index
    %c40 = arith.constant 40 : index
    %86 = vector.load %arg14[%c0_116, %c40] : memref<512x72xf32, #tpu.memory_space<vmem>>, vector<512x8xf32>
    tpu.vector_store %arg14[%c0_116, %c40], %85 {strides = array<i32>} : memref<512x72xf32, #tpu.memory_space<vmem>>, vector<512x8xf32>,
    %c0_117 = arith.constant 0 : index
    %c2_118 = arith.constant 2 : index
    %c0_119 = arith.constant 0 : index
    %c0_120 = arith.constant 0 : index
    %87 = vector.load %arg13[%c0_117, %c2_118, %c0_119, %c0_120] : memref<2x18x18x8xf32, #tpu.memory_space<vmem>>, vector<2x16x16x8xf32>
    %88 = vector.shape_cast %87 : vector<2x16x16x8xf32> to vector<512x8xf32>
    %c0_121 = arith.constant 0 : index
    %c48 = arith.constant 48 : index
    %89 = vector.load %arg14[%c0_121, %c48] : memref<512x72xf32, #tpu.memory_space<vmem>>, vector<512x8xf32>
    tpu.vector_store %arg14[%c0_121, %c48], %88 {strides = array<i32>} : memref<512x72xf32, #tpu.memory_space<vmem>>, vector<512x8xf32>,
    %c0_122 = arith.constant 0 : index
    %c2_123 = arith.constant 2 : index
    %c1_124 = arith.constant 1 : index
    %c0_125 = arith.constant 0 : index
    %90 = vector.load %arg13[%c0_122, %c2_123, %c1_124, %c0_125] : memref<2x18x18x8xf32, #tpu.memory_space<vmem>>, vector<2x16x16x8xf32>
    %91 = vector.shape_cast %90 : vector<2x16x16x8xf32> to vector<512x8xf32>
    %c0_126 = arith.constant 0 : index
    %c56 = arith.constant 56 : index
    %92 = vector.load %arg14[%c0_126, %c56] : memref<512x72xf32, #tpu.memory_space<vmem>>, vector<512x8xf32>
    tpu.vector_store %arg14[%c0_126, %c56], %91 {strides = array<i32>} : memref<512x72xf32, #tpu.memory_space<vmem>>, vector<512x8xf32>,
    %c0_127 = arith.constant 0 : index
    %c2_128 = arith.constant 2 : index
    %c2_129 = arith.constant 2 : index
    %c0_130 = arith.constant 0 : index
    %93 = vector.load %arg13[%c0_127, %c2_128, %c2_129, %c0_130] : memref<2x18x18x8xf32, #tpu.memory_space<vmem>>, vector<2x16x16x8xf32>
    %94 = vector.shape_cast %93 : vector<2x16x16x8xf32> to vector<512x8xf32>
    %c0_131 = arith.constant 0 : index
    %c64 = arith.constant 64 : index
    %95 = vector.load %arg14[%c0_131, %c64] : memref<512x72xf32, #tpu.memory_space<vmem>>, vector<512x8xf32>
    tpu.vector_store %arg14[%c0_131, %c64], %94 {strides = array<i32>} : memref<512x72xf32, #tpu.memory_space<vmem>>, vector<512x8xf32>,
    %c0_132 = arith.constant 0 : index
    %c0_133 = arith.constant 0 : index
    %96 = vector.load %arg14[%c0_132, %c0_133] : memref<512x72xf32, #tpu.memory_space<vmem>>, vector<512x72xf32>
    %c0_134 = arith.constant 0 : index
    %c0_135 = arith.constant 0 : index
    %97 = vector.load %arg5[%c0_134, %c0_135] : memref<72x128xf32, #tpu.memory_space<vmem>>, vector<72x128xf32>
    %cst_136 = arith.constant dense<0.000000e+00> : vector<512x128xf32>
    %98 = tpu.matmul %96, %97, %cst_136 {dimension_numbers = #tpu.dot_dimension_numbers<[1], [0], [0], [1], [0, 0, 1, 1], [], []>} : vector<512x72xf32>, vector<72x128xf32>, vector<512x128xf32> -> vector<512x128xf32>
    %c0_137 = arith.constant 0 : index
    %c0_138 = arith.constant 0 : index
    %99 = vector.load %arg6[%c0_137, %c0_138] : memref<1x128xf32, #tpu.memory_space<vmem>>, vector<1x128xf32>
    %100 = vector.broadcast %99 : vector<1x128xf32> to vector<512x128xf32>
    %101 = arith.addf %98, %100 : vector<512x128xf32>
    %cst_139 = arith.constant dense<0.000000e+00> : vector<128xf32>
    %102 = vector.multi_reduction <add>, %101, %cst_139 [0] : vector<512x128xf32> to vector<128xf32>
    %103 = vector.shape_cast %102 : vector<128xf32> to vector<1x128xf32>
    %104 = arith.mulf %101, %101 : vector<512x128xf32>
    %cst_140 = arith.constant dense<0.000000e+00> : vector<128xf32>
    %105 = vector.multi_reduction <add>, %104, %cst_140 [0] : vector<512x128xf32> to vector<128xf32>
    %106 = vector.shape_cast %105 : vector<128xf32> to vector<1x128xf32>
    %cst_141 = arith.constant 0.001953125 : f32
    %107 = vector.broadcast %cst_141 : f32 to vector<1x128xf32>
    %108 = arith.mulf %103, %107 : vector<1x128xf32>
    %cst_142 = arith.constant 0.001953125 : f32
    %109 = vector.broadcast %cst_142 : f32 to vector<1x128xf32>
    %110 = arith.mulf %106, %109 : vector<1x128xf32>
    %111 = arith.mulf %108, %108 : vector<1x128xf32>
    %112 = arith.subf %110, %111 : vector<1x128xf32>
    %113 = vector.broadcast %108 : vector<1x128xf32> to vector<512x128xf32>
    %114 = arith.subf %101, %113 : vector<512x128xf32>
    %cst_143 = arith.constant 9.99999974E-6 : f32
    %115 = vector.broadcast %cst_143 : f32 to vector<1x128xf32>
    %116 = arith.addf %112, %115 : vector<1x128xf32>
    %117 = math.rsqrt %116 : vector<1x128xf32>
    %118 = vector.broadcast %117 : vector<1x128xf32> to vector<512x128xf32>
    %119 = arith.mulf %114, %118 : vector<512x128xf32>
    %c0_144 = arith.constant 0 : index
    %c0_145 = arith.constant 0 : index
    %120 = vector.load %arg7[%c0_144, %c0_145] : memref<1x128xf32, #tpu.memory_space<vmem>>, vector<1x128xf32>
    %121 = vector.broadcast %120 : vector<1x128xf32> to vector<512x128xf32>
    %122 = arith.mulf %119, %121 : vector<512x128xf32>
    %c0_146 = arith.constant 0 : index
    %c0_147 = arith.constant 0 : index
    %123 = vector.load %arg8[%c0_146, %c0_147] : memref<1x128xf32, #tpu.memory_space<vmem>>, vector<1x128xf32>
    %124 = vector.broadcast %123 : vector<1x128xf32> to vector<512x128xf32>
    %125 = arith.addf %122, %124 : vector<512x128xf32>
    %c0_148 = arith.constant 0 : index
    %c1_149 = arith.constant 1 : index
    %c1_150 = arith.constant 1 : index
    %c0_151 = arith.constant 0 : index
    %126 = vector.load %arg0[%c0_148, %c1_149, %c1_150, %c0_151] : memref<2x18x18x4xf32, #tpu.memory_space<vmem>>, vector<2x16x16x4xf32>
    %127 = vector.shape_cast %126 : vector<2x16x16x4xf32> to vector<512x4xf32>
    %c0_152 = arith.constant 0 : index
    %c0_153 = arith.constant 0 : index
    %128 = vector.load %arg9[%c0_152, %c0_153] : memref<4x128xf32, #tpu.memory_space<vmem>>, vector<4x128xf32>
    %cst_154 = arith.constant dense<0.000000e+00> : vector<512x128xf32>
    %129 = tpu.matmul %127, %128, %cst_154 {dimension_numbers = #tpu.dot_dimension_numbers<[1], [0], [0], [1], [0, 0, 1, 1], [], []>} : vector<512x4xf32>, vector<4x128xf32>, vector<512x128xf32> -> vector<512x128xf32>
    %c0_155 = arith.constant 0 : index
    %c0_156 = arith.constant 0 : index
    %130 = vector.load %arg10[%c0_155, %c0_156] : memref<1x128xf32, #tpu.memory_space<vmem>>, vector<1x128xf32>
    %131 = vector.broadcast %130 : vector<1x128xf32> to vector<512x128xf32>
    %132 = arith.addf %129, %131 : vector<512x128xf32>
    %133 = arith.addf %125, %132 : vector<512x128xf32>
    %cst_157 = arith.constant 0.000000e+00 : f32
    %134 = vector.broadcast %cst_157 : f32 to vector<512x128xf32>
    %135 = arith.maximumf %133, %134 : vector<512x128xf32>
    %c0_158 = arith.constant 0 : index
    %c0_159 = arith.constant 0 : index
    %136 = vector.load %arg11[%c0_158, %c0_159] : memref<512x128xf32, #tpu.memory_space<vmem>>, vector<512x128xf32>
    tpu.vector_store %arg11[%c0_158, %c0_159], %135 {strides = array<i32>} : memref<512x128xf32, #tpu.memory_space<vmem>>, vector<512x128xf32>,
    return
  }
}

</mosaic_0001>

<llo_original>
// kernel: tpu_custom_call.1
$region0: #{tpu_custom_call.1}
  #allocation0 [shape = 'u32[]', space=smem, size = 0x4, offset = 0x4, fixed_abs, tag = 'smem constant byte address 0x4 - core index']
  #allocation1 [shape = 'u32[144,128]{1,0:T(1,128)}', space=vmem, size = 0x12000, scoped, tag = 'internal scratch']
  #allocation2 [shape = 'f32[512,36]{1,0:T(8,128)}', space=vmem, size = 0x40000, scoped, tag = 'scratch operand']
  #allocation3 [shape = 'f32[2,18,18,8]{3,2,1,0:T(8,128)}', space=vmem, size = 0x6c000, scoped, tag = 'scratch operand']
  #allocation4 [shape = 'f32[512,72]{1,0:T(8,128)}', space=vmem, size = 0x40000, scoped, tag = 'scratch operand']
  %s0 = inlined_call_operand.vmem [shape: f32[2,18,18,4], index: 0, kind: input, shape index: {}]
  %s1 = inlined_call_operand.vmem [shape: f32[36,8], index: 1, kind: input, shape index: {}]
  %s2 = inlined_call_operand.vmem [shape: f32[1,8], index: 2, kind: input, shape index: {}]
  %s3 = inlined_call_operand.vmem [shape: f32[1,8], index: 3, kind: input, shape index: {}]
  %s4 = inlined_call_operand.vmem [shape: f32[1,8], index: 4, kind: input, shape index: {}]
  %s5 = inlined_call_operand.vmem [shape: f32[72,128], index: 5, kind: input, shape index: {}]
  %s6 = inlined_call_operand.vmem [shape: f32[1,128], index: 6, kind: input, shape index: {}]
  %s7 = inlined_call_operand.vmem [shape: f32[1,128], index: 7, kind: input, shape index: {}]
  %s8 = inlined_call_operand.vmem [shape: f32[1,128], index: 8, kind: input, shape index: {}]
  %s9 = inlined_call_operand.vmem [shape: f32[4,128], index: 9, kind: input, shape index: {}]
  %s10 = inlined_call_operand.vmem [shape: f32[1,128], index: 10, kind: input, shape index: {}]
  %s11 = inlined_call_operand.hbm [shape: f32[512,128], index: 11, kind: output, shape index: {}]
  %s12 = sld [smem:[#allocation0]]
  $region54: #{tpu_custom_call.1} parent=0
    _
  %s14 = ssub.s32 1, %s12
  %s15 = scalar_select 0, %s14, %s12
  $region1: #{tpu_custom_call.1} parent=0
    #allocation5 [shape = 'u8[262144]{0}', space=vmem, size = 0x40000, scoped, tag = 'output window, operand 0, single buffered']
    #allocation6 [shape = 's32[1]{0}', space=sflag, size = 0x4, scoped, tag = 'scoped memory for tpu_custom_call.1']
    %16 = vsyncpa [#allocation6], 0
    // Predicated region
    $region2: #{tpu_custom_call.1} parent=1 // pred_check
      _
    $region3: #{tpu_custom_call.1} parent=1 // pred_check_branch
      %18 = sbr.rel (0) target = $region5
    $region4: #{tpu_custom_call.1} parent=1 // pred_region
      _
    $region5: #{tpu_custom_call.1} parent=1 // pred_fallthru
      _
    // Predicated region
    $region6: #{tpu_custom_call.1} parent=1 // pred_check
      _
    $region7: #{tpu_custom_call.1} parent=1 // pred_check_branch
      %20 = sbr.rel (0) target = $region9
    $region8: #{tpu_custom_call.1} parent=1 // pred_region
      _
    $region9: #{tpu_custom_call.1} parent=1 // pred_fallthru
      _
    // Predicated region
    $region10: #{tpu_custom_call.1} parent=1 // pred_check
      _
    $region11: #{tpu_custom_call.1} parent=1 // pred_check_branch
      %22 = sbr.rel (0) target = $region13
    $region12: #{tpu_custom_call.1} parent=1 // pred_region
      _
    $region13: #{tpu_custom_call.1} parent=1 // pred_fallthru
      _
    // Predicated region
    $region14: #{tpu_custom_call.1} parent=1 // pred_check
      _
    $region15: #{tpu_custom_call.1} parent=1 // pred_check_branch
      %24 = sbr.rel (0) target = $region17
    $region16: #{tpu_custom_call.1} parent=1 // pred_region
      _
    $region17: #{tpu_custom_call.1} parent=1 // pred_fallthru
      _
    // Predicated region
    $region18: #{tpu_custom_call.1} parent=1 // pred_check
      _
    $region19: #{tpu_custom_call.1} parent=1 // pred_check_branch
      %26 = sbr.rel (0) target = $region21
    $region20: #{tpu_custom_call.1} parent=1 // pred_region
      _
    $region21: #{tpu_custom_call.1} parent=1 // pred_fallthru
      _
    // Predicated region
    $region22: #{tpu_custom_call.1} parent=1 // pred_check
      _
    $region23: #{tpu_custom_call.1} parent=1 // pred_check_branch
      %28 = sbr.rel (0) target = $region25
    $region24: #{tpu_custom_call.1} parent=1 // pred_region
      _
    $region25: #{tpu_custom_call.1} parent=1 // pred_fallthru
      _
    // Predicated region
    $region26: #{tpu_custom_call.1} parent=1 // pred_check
      _
    $region27: #{tpu_custom_call.1} parent=1 // pred_check_branch
      %30 = sbr.rel (0) target = $region29
    $region28: #{tpu_custom_call.1} parent=1 // pred_region
      _
    $region29: #{tpu_custom_call.1} parent=1 // pred_fallthru
      _
    // Predicated region
    $region30: #{tpu_custom_call.1} parent=1 // pred_check
      _
    $region31: #{tpu_custom_call.1} parent=1 // pred_check_branch
      %32 = sbr.rel (0) target = $region33
    $region32: #{tpu_custom_call.1} parent=1 // pred_region
      _
    $region33: #{tpu_custom_call.1} parent=1 // pred_fallthru
      _
    // Predicated region
    $region34: #{tpu_custom_call.1} parent=1 // pred_check
      _
    $region35: #{tpu_custom_call.1} parent=1 // pred_check_branch
      %34 = sbr.rel (0) target = $region37
    $region36: #{tpu_custom_call.1} parent=1 // pred_region
      _
    $region37: #{tpu_custom_call.1} parent=1 // pred_fallthru
      _
    // Predicated region
    $region38: #{tpu_custom_call.1} parent=1 // pred_check
      _
    $region39: #{tpu_custom_call.1} parent=1 // pred_check_branch
      %36 = sbr.rel (0) target = $region41
    $region40: #{tpu_custom_call.1} parent=1 // pred_region
      _
    $region41: #{tpu_custom_call.1} parent=1 // pred_fallthru
      _
    // Predicated region
    $region42: #{tpu_custom_call.1} parent=1 // pred_check
      _
    $region43: #{tpu_custom_call.1} parent=1 // pred_check_branch
      %38 = sbr.rel (0) target = $region45
    $region44: #{tpu_custom_call.1} parent=1 // pred_region
      _
    $region45: #{tpu_custom_call.1} parent=1 // pred_fallthru
      _
    %v39 = vld [vmem:[%s0] sm:$0xff]
    %v40 = vld [vmem:[%s0 + $0x8] sm:$0xff]
    %v41 = vld [vmem:[%s0 + $0x18] sm:$0xff]
    %v42 = vld [vmem:[%s0 + $0x20] sm:$0xff]
    %v43 = vld [vmem:[%s0 + $0x30] sm:$0xff]
    %v44 = vld [vmem:[%s0 + $0x38] sm:$0xff]
    %v45 = vld [vmem:[%s0 + $0x48] sm:$0xff]
    %v46 = vld [vmem:[%s0 + $0x50] sm:$0xff]
    %v47 = vld [vmem:[%s0 + $0x60] sm:$0xff]
    %v48 = vld [vmem:[%s0 + $0x68] sm:$0xff]
    %v49 = vld [vmem:[%s0 + $0x78] sm:$0xff]
    %v50 = vld [vmem:[%s0 + $0x80] sm:$0xff]
    %v51 = vld [vmem:[%s0 + $0x90] sm:$0xff]
    %v52 = vld [vmem:[%s0 + $0x98] sm:$0xff]
    %v53 = vld [vmem:[%s0 + $0xa8] sm:$0xff]
    %v54 = vld [vmem:[%s0 + $0xb0] sm:$0xff]
    %v55 = vld [vmem:[%s0 + $0xc0] sm:$0xff]
    %v56 = vld [vmem:[%s0 + $0xc8] sm:$0xff]
    %v57 = vld [vmem:[%s0 + $0xd8] sm:$0xff]
    %v58 = vld [vmem:[%s0 + $0xe0] sm:$0xff]
    %v59 = vld [vmem:[%s0 + $0xf0] sm:$0xff]
    %v60 = vld [vmem:[%s0 + $0xf8] sm:$0xff]
    %v61 = vld [vmem:[%s0 + $0x108] sm:$0xff]
    %v62 = vld [vmem:[%s0 + $0x110] sm:$0xff]
    %v63 = vld [vmem:[%s0 + $0x120] sm:$0xff]
    %v64 = vld [vmem:[%s0 + $0x128] sm:$0xff]
    %v65 = vld [vmem:[%s0 + $0x138] sm:$0xff]
    %v66 = vld [vmem:[%s0 + $0x140] sm:$0xff]
    %v67 = vld [vmem:[%s0 + $0x150] sm:$0xff]
    %v68 = vld [vmem:[%s0 + $0x158] sm:$0xff]
    %v69 = vld [vmem:[%s0 + $0x168] sm:$0xff]
    %v70 = vld [vmem:[%s0 + $0x170] sm:$0xff]
    %v71 = vld [vmem:[%s0 + $0x1b0] sm:$0xff]
    %v72 = vld [vmem:[%s0 + $0x1b8] sm:$0xff]
    %v73 = vld [vmem:[%s0 + $0x1c8] sm:$0xff]
    %v74 = vld [vmem:[%s0 + $0x1d0] sm:$0xff]
    %v75 = vld [vmem:[%s0 + $0x1e0] sm:$0xff]
    %v76 = vld [vmem:[%s0 + $0x1e8] sm:$0xff]
    %v77 = vld [vmem:[%s0 + $0x1f8] sm:$0xff]
    %v78 = vld [vmem:[%s0 + $0x200] sm:$0xff]
    %v79 = vld [vmem:[%s0 + $0x210] sm:$0xff]
    %v80 = vld [vmem:[%s0 + $0x218] sm:$0xff]
    %v81 = vld [vmem:[%s0 + $0x228] sm:$0xff]
    %v82 = vld [vmem:[%s0 + $0x230] sm:$0xff]
    %v83 = vld [vmem:[%s0 + $0x240] sm:$0xff]
    %v84 = vld [vmem:[%s0 + $0x248] sm:$0xff]
    %v85 = vld [vmem:[%s0 + $0x258] sm:$0xff]
    %v86 = vld [vmem:[%s0 + $0x260] sm:$0xff]
    %v87 = vld [vmem:[%s0 + $0x270] sm:$0xff]
    %v88 = vld [vmem:[%s0 + $0x278] sm:$0xff]
    %v89 = vld [vmem:[%s0 + $0x288] sm:$0xff]
    %v90 = vld [vmem:[%s0 + $0x290] sm:$0xff]
    %v91 = vld [vmem:[%s0 + $0x2a0] sm:$0xff]
    %v92 = vld [vmem:[%s0 + $0x2a8] sm:$0xff]
    %v93 = vld [vmem:[%s0 + $0x2b8] sm:$0xff]
    %v94 = vld [vmem:[%s0 + $0x2c0] sm:$0xff]
    %v95 = vld [vmem:[%s0 + $0x2d0] sm:$0xff]
    %v96 = vld [vmem:[%s0 + $0x2d8] sm:$0xff]
    %v97 = vld [vmem:[%s0 + $0x2e8] sm:$0xff]
    %v98 = vld [vmem:[%s0 + $0x2f0] sm:$0xff]
    %v99 = vld [vmem:[%s0 + $0x300] sm:$0xff]
    %v100 = vld [vmem:[%s0 + $0x308] sm:$0xff]
    %v101 = vld [vmem:[%s0 + $0x318] sm:$0xff]
    %v102 = vld [vmem:[%s0 + $0x320] sm:$0xff]
    %vm103 = vcmask 31744
    %104 = vst.msk [vmem:[#allocation2] sm:$0xff] %vm103, %v39
    %105 = vst.msk [vmem:[#allocation2 + $0x8] sm:$0xff] %vm103, %v40
    %106 = vst.msk [vmem:[#allocation2 + $0x10] sm:$0xff] %vm103, %v41
    %107 = vst.msk [vmem:[#allocation2 + $0x18] sm:$0xff] %vm103, %v42
    %108 = vst.msk [vmem:[#allocation2 + $0x20] sm:$0xff] %vm103, %v43
    %109 = vst.msk [vmem:[#allocation2 + $0x28] sm:$0xff] %vm103, %v44
    %110 = vst.msk [vmem:[#allocation2 + $0x30] sm:$0xff] %vm103, %v45
    %111 = vst.msk [vmem:[#allocation2 + $0x38] sm:$0xff] %vm103, %v46
    %112 = vst.msk [vmem:[#allocation2 + $0x40] sm:$0xff] %vm103, %v47
    %113 = vst.msk [vmem:[#allocation2 + $0x48] sm:$0xff] %vm103, %v48
    %114 = vst.msk [vmem:[#allocation2 + $0x50] sm:$0xff] %vm103, %v49
    %115 = vst.msk [vmem:[#allocation2 + $0x58] sm:$0xff] %vm103, %v50
    %116 = vst.msk [vmem:[#allocation2 + $0x60] sm:$0xff] %vm103, %v51
    %117 = vst.msk [vmem:[#allocation2 + $0x68] sm:$0xff] %vm103, %v52
    %118 = vst.msk [vmem:[#allocation2 + $0x70] sm:$0xff] %vm103, %v53
    %119 = vst.msk [vmem:[#allocation2 + $0x78] sm:$0xff] %vm103, %v54
    %120 = vst.msk [vmem:[#allocation2 + $0x80] sm:$0xff] %vm103, %v55
    %121 = vst.msk [vmem:[#allocation2 + $0x88] sm:$0xff] %vm103, %v56
    %122 = vst.msk [vmem:[#allocation2 + $0x90] sm:$0xff] %vm103, %v57
    %123 = vst.msk [vmem:[#allocation2 + $0x98] sm:$0xff] %vm103, %v58
    %124 = vst.msk [vmem:[#allocation2 + $0xa0] sm:$0xff] %vm103, %v59
    %125 = vst.msk [vmem:[#allocation2 + $0xa8] sm:$0xff] %vm103, %v60
    %126 = vst.msk [vmem:[#allocation2 + $0xb0] sm:$0xff] %vm103, %v61
    %127 = vst.msk [vmem:[#allocation2 + $0xb8] sm:$0xff] %vm103, %v62
    %128 = vst.msk [vmem:[#allocation2 + $0xc0] sm:$0xff] %vm103, %v63
    %129 = vst.msk [vmem:[#allocation2 + $0xc8] sm:$0xff] %vm103, %v64
    %130 = vst.msk [vmem:[#allocation2 + $0xd0] sm:$0xff] %vm103, %v65
    %131 = vst.msk [vmem:[#allocation2 + $0xd8] sm:$0xff] %vm103, %v66
    %132 = vst.msk [vmem:[#allocation2 + $0xe0] sm:$0xff] %vm103, %v67
    %133 = vst.msk [vmem:[#allocation2 + $0xe8] sm:$0xff] %vm103, %v68
    %134 = vst.msk [vmem:[#allocation2 + $0xf0] sm:$0xff] %vm103, %v69
    %135 = vst.msk [vmem:[#allocation2 + $0xf8] sm:$0xff] %vm103, %v70
    %136 = vst.msk [vmem:[#allocation2 + $0x100] sm:$0xff] %vm103, %v71
    %137 = vst.msk [vmem:[#allocation2 + $0x108] sm:$0xff] %vm103, %v72
    %138 = vst.msk [vmem:[#allocation2 + $0x110] sm:$0xff] %vm103, %v73
    %139 = vst.msk [vmem:[#allocation2 + $0x118] sm:$0xff] %vm103, %v74
    %140 = vst.msk [vmem:[#allocation2 + $0x120] sm:$0xff] %vm103, %v75
    %141 = vst.msk [vmem:[#allocation2 + $0x128] sm:$0xff] %vm103, %v76
    %142 = vst.msk [vmem:[#allocation2 + $0x130] sm:$0xff] %vm103, %v77
    %143 = vst.msk [vmem:[#allocation2 + $0x138] sm:$0xff] %vm103, %v78
    %144 = vst.msk [vmem:[#allocation2 + $0x140] sm:$0xff] %vm103, %v79
    %145 = vst.msk [vmem:[#allocation2 + $0x148] sm:$0xff] %vm103, %v80
    %146 = vst.msk [vmem:[#allocation2 + $0x150] sm:$0xff] %vm103, %v81
    %147 = vst.msk [vmem:[#allocation2 + $0x158] sm:$0xff] %vm103, %v82
    %148 = vst.msk [vmem:[#allocation2 + $0x160] sm:$0xff] %vm103, %v83
    %149 = vst.msk [vmem:[#allocation2 + $0x168] sm:$0xff] %vm103, %v84
    %150 = vst.msk [vmem:[#allocation2 + $0x170] sm:$0xff] %vm103, %v85
    %151 = vst.msk [vmem:[#allocation2 + $0x178] sm:$0xff] %vm103, %v86
    %152 = vst.msk [vmem:[#allocation2 + $0x180] sm:$0xff] %vm103, %v87
    %153 = vst.msk [vmem:[#allocation2 + $0x188] sm:$0xff] %vm103, %v88
    %154 = vst.msk [vmem:[#allocation2 + $0x190] sm:$0xff] %vm103, %v89
    %155 = vst.msk [vmem:[#allocation2 + $0x198] sm:$0xff] %vm103, %v90
    %156 = vst.msk [vmem:[#allocation2 + $0x1a0] sm:$0xff] %vm103, %v91
    %157 = vst.msk [vmem:[#allocation2 + $0x1a8] sm:$0xff] %vm103, %v92
    %158 = vst.msk [vmem:[#allocation2 + $0x1b0] sm:$0xff] %vm103, %v93
    %159 = vst.msk [vmem:[#allocation2 + $0x1b8] sm:$0xff] %vm103, %v94
    %160 = vst.msk [vmem:[#allocation2 + $0x1c0] sm:$0xff] %vm103, %v95
    %161 = vst.msk [vmem:[#allocation2 + $0x1c8] sm:$0xff] %vm103, %v96
    %162 = vst.msk [vmem:[#allocation2 + $0x1d0] sm:$0xff] %vm103, %v97
    %163 = vst.msk [vmem:[#allocation2 + $0x1d8] sm:$0xff] %vm103, %v98
    %164 = vst.msk [vmem:[#allocation2 + $0x1e0] sm:$0xff] %vm103, %v99
    %165 = vst.msk [vmem:[#allocation2 + $0x1e8] sm:$0xff] %vm103, %v100
    %166 = vst.msk [vmem:[#allocation2 + $0x1f0] sm:$0xff] %vm103, %v101
    %167 = vst.msk [vmem:[#allocation2 + $0x1f8] sm:$0xff] %vm103, %v102
    %v168 = vld [vmem:[%s0 + $0x1] sm:$0xff]
    %v169 = vld [vmem:[%s0 + $0x9] sm:$0xff]
    %v170 = vld [vmem:[%s0 + $0x19] sm:$0xff]
    %v171 = vld [vmem:[%s0 + $0x21] sm:$0xff]
    %v172 = vld [vmem:[%s0 + $0x31] sm:$0xff]
    %v173 = vld [vmem:[%s0 + $0x39] sm:$0xff]
    %v174 = vld [vmem:[%s0 + $0x49] sm:$0xff]
    %v175 = vld [vmem:[%s0 + $0x51] sm:$0xff]
    %v176 = vld [vmem:[%s0 + $0x61] sm:$0xff]
    %v177 = vld [vmem:[%s0 + $0x69] sm:$0xff]
    %v178 = vld [vmem:[%s0 + $0x79] sm:$0xff]
    %v179 = vld [vmem:[%s0 + $0x81] sm:$0xff]
    %v180 = vld [vmem:[%s0 + $0x91] sm:$0xff]
    %v181 = vld [vmem:[%s0 + $0x99] sm:$0xff]
    %v182 = vld [vmem:[%s0 + $0xa9] sm:$0xff]
    %v183 = vld [vmem:[%s0 + $0xb1] sm:$0xff]
    %v184 = vld [vmem:[%s0 + $0xc1] sm:$0xff]
    %v185 = vld [vmem:[%s0 + $0xc9] sm:$0xff]
    %v186 = vld [vmem:[%s0 + $0xd9] sm:$0xff]
    %v187 = vld [vmem:[%s0 + $0xe1] sm:$0xff]
    %v188 = vld [vmem:[%s0 + $0xf1] sm:$0xff]
    %v189 = vld [vmem:[%s0 + $0xf9] sm:$0xff]
    %v190 = vld [vmem:[%s0 + $0x109] sm:$0xff]
    %v191 = vld [vmem:[%s0 + $0x111] sm:$0xff]
    %v192 = vld [vmem:[%s0 + $0x121] sm:$0xff]
    %v193 = vld [vmem:[%s0 + $0x129] sm:$0xff]
    %v194 = vld [vmem:[%s0 + $0x139] sm:$0xff]
    %v195 = vld [vmem:[%s0 + $0x141] sm:$0xff]
    %v196 = vld [vmem:[%s0 + $0x151] sm:$0xff]
    %v197 = vld [vmem:[%s0 + $0x159] sm:$0xff]
    %v198 = vld [vmem:[%s0 + $0x169] sm:$0xff]
    %v199 = vld [vmem:[%s0 + $0x171] sm:$0xff]
    %v200 = vld [vmem:[%s0 + $0x1b1] sm:$0xff]
    %v201 = vld [vmem:[%s0 + $0x1b9] sm:$0xff]
    %v202 = vld [vmem:[%s0 + $0x1c9] sm:$0xff]
    %v203 = vld [vmem:[%s0 + $0x1d1] sm:$0xff]
    %v204 = vld [vmem:[%s0 + $0x1e1] sm:$0xff]
    %v205 = vld [vmem:[%s0 + $0x1e9] sm:$0xff]
    %v206 = vld [vmem:[%s0 + $0x1f9] sm:$0xff]
    %v207 = vld [vmem:[%s0 + $0x201] sm:$0xff]
    %v208 = vld [vmem:[%s0 + $0x211] sm:$0xff]
    %v209 = vld [vmem:[%s0 + $0x219] sm:$0xff]
    %v210 = vld [vmem:[%s0 + $0x229] sm:$0xff]
    %v211 = vld [vmem:[%s0 + $0x231] sm:$0xff]
    %v212 = vld [vmem:[%s0 + $0x241] sm:$0xff]
    %v213 = vld [vmem:[%s0 + $0x249] sm:$0xff]
    %v214 = vld [vmem:[%s0 + $0x259] sm:$0xff]
    %v215 = vld [vmem:[%s0 + $0x261] sm:$0xff]
    %v216 = vld [vmem:[%s0 + $0x271] sm:$0xff]
    %v217 = vld [vmem:[%s0 + $0x279] sm:$0xff]
    %v218 = vld [vmem:[%s0 + $0x289] sm:$0xff]
    %v219 = vld [vmem:[%s0 + $0x291] sm:$0xff]
    %v220 = vld [vmem:[%s0 + $0x2a1] sm:$0xff]
    %v221 = vld [vmem:[%s0 + $0x2a9] sm:$0xff]
    %v222 = vld [vmem:[%s0 + $0x2b9] sm:$0xff]
    %v223 = vld [vmem:[%s0 + $0x2c1] sm:$0xff]
    %v224 = vld [vmem:[%s0 + $0x2d1] sm:$0xff]
    %v225 = vld [vmem:[%s0 + $0x2d9] sm:$0xff]
    %v226 = vld [vmem:[%s0 + $0x2e9] sm:$0xff]
    %v227 = vld [vmem:[%s0 + $0x2f1] sm:$0xff]
    %v228 = vld [vmem:[%s0 + $0x301] sm:$0xff]
    %v229 = vld [vmem:[%s0 + $0x309] sm:$0xff]
    %v230 = vld [vmem:[%s0 + $0x319] sm:$0xff]
    %v231 = vld [vmem:[%s0 + $0x321] sm:$0xff]
    %296 = vrot.lane.b32.xlu0 %v168, 4
    %v297 = vpop.permute.xlu0 %296
    %298 = vrot.lane.b32.xlu0 %v169, 4
    %v299 = vpop.permute.xlu0 %298
    %300 = vrot.lane.b32.xlu0 %v170, 4
    %v301 = vpop.permute.xlu0 %300
    %302 = vrot.lane.b32.xlu0 %v171, 4
    %v303 = vpop.permute.xlu0 %302
    %304 = vrot.lane.b32.xlu0 %v172, 4
    %v305 = vpop.permute.xlu0 %304
    %306 = vrot.lane.b32.xlu0 %v173, 4
    %v307 = vpop.permute.xlu0 %306
    %308 = vrot.lane.b32.xlu0 %v174, 4
    %v309 = vpop.permute.xlu0 %308
    %310 = vrot.lane.b32.xlu0 %v175, 4
    %v311 = vpop.permute.xlu0 %310
    %312 = vrot.lane.b32.xlu0 %v176, 4
    %v313 = vpop.permute.xlu0 %312
    %314 = vrot.lane.b32.xlu0 %v177, 4
    %v315 = vpop.permute.xlu0 %314
    %316 = vrot.lane.b32.xlu0 %v178, 4
    %v317 = vpop.permute.xlu0 %316
    %318 = vrot.lane.b32.xlu0 %v179, 4
    %v319 = vpop.permute.xlu0 %318
    %320 = vrot.lane.b32.xlu0 %v180, 4
    %v321 = vpop.permute.xlu0 %320
    %322 = vrot.lane.b32.xlu0 %v181, 4
    %v323 = vpop.permute.xlu0 %322
    %324 = vrot.lane.b32.xlu0 %v182, 4
    %v325 = vpop.permute.xlu0 %324
    %326 = vrot.lane.b32.xlu0 %v183, 4
    %v327 = vpop.permute.xlu0 %326
    %328 = vrot.lane.b32.xlu0 %v184, 4
    %v329 = vpop.permute.xlu0 %328
    %330 = vrot.lane.b32.xlu0 %v185, 4
    %v331 = vpop.permute.xlu0 %330
    %332 = vrot.lane.b32.xlu0 %v186, 4
    %v333 = vpop.permute.xlu0 %332
    %334 = vrot.lane.b32.xlu0 %v187, 4
    %v335 = vpop.permute.xlu0 %334
    %336 = vrot.lane.b32.xlu0 %v188, 4
    %v337 = vpop.permute.xlu0 %336
    %338 = vrot.lane.b32.xlu0 %v189, 4
    %v339 = vpop.permute.xlu0 %338
    %340 = vrot.lane.b32.xlu0 %v190, 4
    %v341 = vpop.permute.xlu0 %340
    %342 = vrot.lane.b32.xlu0 %v191, 4
    %v343 = vpop.permute.xlu0 %342
    %344 = vrot.lane.b32.xlu0 %v192, 4
    %v345 = vpop.permute.xlu0 %344
    %346 = vrot.lane.b32.xlu0 %v193, 4
    %v347 = vpop.permute.xlu0 %346
    %348 = vrot.lane.b32.xlu0 %v194, 4
    %v349 = vpop.permute.xlu0 %348
    %350 = vrot.lane.b32.xlu0 %v195, 4
    %v351 = vpop.permute.xlu0 %350
    %352 = vrot.lane.b32.xlu0 %v196, 4
    %v353 = vpop.permute.xlu0 %352
    %354 = vrot.lane.b32.xlu0 %v197, 4
    %v355 = vpop.permute.xlu0 %354
    %356 = vrot.lane.b32.xlu0 %v198, 4
    %v357 = vpop.permute.xlu0 %356
    %358 = vrot.lane.b32.xlu0 %v199, 4
    %v359 = vpop.permute.xlu0 %358
    %360 = vrot.lane.b32.xlu0 %v200, 4
    %v361 = vpop.permute.xlu0 %360
    %362 = vrot.lane.b32.xlu0 %v201, 4
    %v363 = vpop.permute.xlu0 %362
    %364 = vrot.lane.b32.xlu0 %v202, 4
    %v365 = vpop.permute.xlu0 %364
    %366 = vrot.lane.b32.xlu0 %v203, 4
    %v367 = vpop.permute.xlu0 %366
    %368 = vrot.lane.b32.xlu0 %v204, 4
    %v369 = vpop.permute.xlu0 %368
    %370 = vrot.lane.b32.xlu0 %v205, 4
    %v371 = vpop.permute.xlu0 %370
    %372 = vrot.lane.b32.xlu0 %v206, 4
    %v373 = vpop.permute.xlu0 %372
    %374 = vrot.lane.b32.xlu0 %v207, 4
    %v375 = vpop.permute.xlu0 %374
    %376 = vrot.lane.b32.xlu0 %v208, 4
    %v377 = vpop.permute.xlu0 %376
    %378 = vrot.lane.b32.xlu0 %v209, 4
    %v379 = vpop.permute.xlu0 %378
    %380 = vrot.lane.b32.xlu0 %v210, 4
    %v381 = vpop.permute.xlu0 %380
    %382 = vrot.lane.b32.xlu0 %v211, 4
    %v383 = vpop.permute.xlu0 %382
    %384 = vrot.lane.b32.xlu0 %v212, 4
    %v385 = vpop.permute.xlu0 %384
    %386 = vrot.lane.b32.xlu0 %v213, 4
    %v387 = vpop.permute.xlu0 %386
    %388 = vrot.lane.b32.xlu0 %v214, 4
    %v389 = vpop.permute.xlu0 %388
    %390 = vrot.lane.b32.xlu0 %v215, 4
    %v391 = vpop.permute.xlu0 %390
    %392 = vrot.lane.b32.xlu0 %v216, 4
    %v393 = vpop.permute.xlu0 %392
    %394 = vrot.lane.b32.xlu0 %v217, 4
    %v395 = vpop.permute.xlu0 %394
    %396 = vrot.lane.b32.xlu0 %v218, 4
    %v397 = vpop.permute.xlu0 %396
    %398 = vrot.lane.b32.xlu0 %v219, 4
    %v399 = vpop.permute.xlu0 %398
    %400 = vrot.lane.b32.xlu0 %v220, 4
    %v401 = vpop.permute.xlu0 %400
    %402 = vrot.lane.b32.xlu0 %v221, 4
    %v403 = vpop.permute.xlu0 %402
    %404 = vrot.lane.b32.xlu0 %v222, 4
    %v405 = vpop.permute.xlu0 %404
    %406 = vrot.lane.b32.xlu0 %v223, 4
    %v407 = vpop.permute.xlu0 %406
    %408 = vrot.lane.b32.xlu0 %v224, 4
    %v409 = vpop.permute.xlu0 %408
    %410 = vrot.lane.b32.xlu0 %v225, 4
    %v411 = vpop.permute.xlu0 %410
    %412 = vrot.lane.b32.xlu0 %v226, 4
    %v413 = vpop.permute.xlu0 %412
    %414 = vrot.lane.b32.xlu0 %v227, 4
    %v415 = vpop.permute.xlu0 %414
    %416 = vrot.lane.b32.xlu0 %v228, 4
    %v417 = vpop.permute.xlu0 %416
    %418 = vrot.lane.b32.xlu0 %v229, 4
    %v419 = vpop.permute.xlu0 %418
    %420 = vrot.lane.b32.xlu0 %v230, 4
    %v421 = vpop.permute.xlu0 %420
    %422 = vrot.lane.b32.xlu0 %v231, 4
    %v423 = vpop.permute.xlu0 %422
    %vm488 = vcmask 64544
    %489 = vst.msk [vmem:[#allocation2] sm:$0xff] %vm488, %v297
    %490 = vst.msk [vmem:[#allocation2 + $0x8] sm:$0xff] %vm488, %v299
    %491 = vst.msk [vmem:[#allocation2 + $0x10] sm:$0xff] %vm488, %v301
    %492 = vst.msk [vmem:[#allocation2 + $0x18] sm:$0xff] %vm488, %v303
    %493 = vst.msk [vmem:[#allocation2 + $0x20] sm:$0xff] %vm488, %v305
    %494 = vst.msk [vmem:[#allocation2 + $0x28] sm:$0xff] %vm488, %v307
    %495 = vst.msk [vmem:[#allocation2 + $0x30] sm:$0xff] %vm488, %v309
    %496 = vst.msk [vmem:[#allocation2 + $0x38] sm:$0xff] %vm488, %v311
    %497 = vst.msk [vmem:[#allocation2 + $0x40] sm:$0xff] %vm488, %v313
    %498 = vst.msk [vmem:[#allocation2 + $0x48] sm:$0xff] %vm488, %v315
    %499 = vst.msk [vmem:[#allocation2 + $0x50] sm:$0xff] %vm488, %v317
    %500 = vst.msk [vmem:[#allocation2 + $0x58] sm:$0xff] %vm488, %v319
    %501 = vst.msk [vmem:[#allocation2 + $0x60] sm:$0xff] %vm488, %v321
    %502 = vst.msk [vmem:[#allocation2 + $0x68] sm:$0xff] %vm488, %v323
    %503 = vst.msk [vmem:[#allocation2 + $0x70] sm:$0xff] %vm488, %v325
    %504 = vst.msk [vmem:[#allocation2 + $0x78] sm:$0xff] %vm488, %v327
    %505 = vst.msk [vmem:[#allocation2 + $0x80] sm:$0xff] %vm488, %v329
    %506 = vst.msk [vmem:[#allocation2 + $0x88] sm:$0xff] %vm488, %v331
    %507 = vst.msk [vmem:[#allocation2 + $0x90] sm:$0xff] %vm488, %v333
    %508 = vst.msk [vmem:[#allocation2 + $0x98] sm:$0xff] %vm488, %v335
    %509 = vst.msk [vmem:[#allocation2 + $0xa0] sm:$0xff] %vm488, %v337
    %510 = vst.msk [vmem:[#allocation2 + $0xa8] sm:$0xff] %vm488, %v339
    %511 = vst.msk [vmem:[#allocation2 + $0xb0] sm:$0xff] %vm488, %v341
    %512 = vst.msk [vmem:[#allocation2 + $0xb8] sm:$0xff] %vm488, %v343
    %513 = vst.msk [vmem:[#allocation2 + $0xc0] sm:$0xff] %vm488, %v345
    %514 = vst.msk [vmem:[#allocation2 + $0xc8] sm:$0xff] %vm488, %v347
    %515 = vst.msk [vmem:[#allocation2 + $0xd0] sm:$0xff] %vm488, %v349
    %516 = vst.msk [vmem:[#allocation2 + $0xd8] sm:$0xff] %vm488, %v351
    %517 = vst.msk [vmem:[#allocation2 + $0xe0] sm:$0xff] %vm488, %v353
    %518 = vst.msk [vmem:[#allocation2 + $0xe8] sm:$0xff] %vm488, %v355
    %519 = vst.msk [vmem:[#allocation2 + $0xf0] sm:$0xff] %vm488, %v357
    %520 = vst.msk [vmem:[#allocation2 + $0xf8] sm:$0xff] %vm488, %v359
    %521 = vst.msk [vmem:[#allocation2 + $0x100] sm:$0xff] %vm488, %v361
    %522 = vst.msk [vmem:[#allocation2 + $0x108] sm:$0xff] %vm488, %v363
    %523 = vst.msk [vmem:[#allocation2 + $0x110] sm:$0xff] %vm488, %v365
    %524 = vst.msk [vmem:[#allocation2 + $0x118] sm:$0xff] %vm488, %v367
    %525 = vst.msk [vmem:[#allocation2 + $0x120] sm:$0xff] %vm488, %v369
    %526 = vst.msk [vmem:[#allocation2 + $0x128] sm:$0xff] %vm488, %v371
    %527 = vst.msk [vmem:[#allocation2 + $0x130] sm:$0xff] %vm488, %v373
    %528 = vst.msk [vmem:[#allocation2 + $0x138] sm:$0xff] %vm488, %v375
    %529 = vst.msk [vmem:[#allocation2 + $0x140] sm:$0xff] %vm488, %v377
    %530 = vst.msk [vmem:[#allocation2 + $0x148] sm:$0xff] %vm488, %v379
    %531 = vst.msk [vmem:[#allocation2 + $0x150] sm:$0xff] %vm488, %v381
    %532 = vst.msk [vmem:[#allocation2 + $0x158] sm:$0xff] %vm488, %v383
    %533 = vst.msk [vmem:[#allocation2 + $0x160] sm:$0xff] %vm488, %v385
    %534 = vst.msk [vmem:[#allocation2 + $0x168] sm:$0xff] %vm488, %v387
    %535 = vst.msk [vmem:[#allocation2 + $0x170] sm:$0xff] %vm488, %v389
    %536 = vst.msk [vmem:[#allocation2 + $0x178] sm:$0xff] %vm488, %v391
    %537 = vst.msk [vmem:[#allocation2 + $0x180] sm:$0xff] %vm488, %v393
    %538 = vst.msk [vmem:[#allocation2 + $0x188] sm:$0xff] %vm488, %v395
    %539 = vst.msk [vmem:[#allocation2 + $0x190] sm:$0xff] %vm488, %v397
    %540 = vst.msk [vmem:[#allocation2 + $0x198] sm:$0xff] %vm488, %v399
    %541 = vst.msk [vmem:[#allocation2 + $0x1a0] sm:$0xff] %vm488, %v401
    %542 = vst.msk [vmem:[#allocation2 + $0x1a8] sm:$0xff] %vm488, %v403
    %543 = vst.msk [vmem:[#allocation2 + $0x1b0] sm:$0xff] %vm488, %v405
    %544 = vst.msk [vmem:[#allocation2 + $0x1b8] sm:$0xff] %vm488, %v407
    %545 = vst.msk [vmem:[#allocation2 + $0x1c0] sm:$0xff] %vm488, %v409
    %546 = vst.msk [vmem:[#allocation2 + $0x1c8] sm:$0xff] %vm488, %v411
    %547 = vst.msk [vmem:[#allocation2 + $0x1d0] sm:$0xff] %vm488, %v413
    %548 = vst.msk [vmem:[#allocation2 + $0x1d8] sm:$0xff] %vm488, %v415
    %549 = vst.msk [vmem:[#allocation2 + $0x1e0] sm:$0xff] %vm488, %v417
    %550 = vst.msk [vmem:[#allocation2 + $0x1e8] sm:$0xff] %vm488, %v419
    %551 = vst.msk [vmem:[#allocation2 + $0x1f0] sm:$0xff] %vm488, %v421
    %552 = vst.msk [vmem:[#allocation2 + $0x1f8] sm:$0xff] %vm488, %v423
    %v553 = vld [vmem:[%s0 + $0x2] sm:$0xff]
    %v554 = vld [vmem:[%s0 + $0xa] sm:$0xff]
    %v555 = vld [vmem:[%s0 + $0x1a] sm:$0xff]
    %v556 = vld [vmem:[%s0 + $0x22] sm:$0xff]
    %v557 = vld [vmem:[%s0 + $0x32] sm:$0xff]
    %v558 = vld [vmem:[%s0 + $0x3a] sm:$0xff]
    %v559 = vld [vmem:[%s0 + $0x4a] sm:$0xff]
    %v560 = vld [vmem:[%s0 + $0x52] sm:$0xff]
    %v561 = vld [vmem:[%s0 + $0x62] sm:$0xff]
    %v562 = vld [vmem:[%s0 + $0x6a] sm:$0xff]
    %v563 = vld [vmem:[%s0 + $0x7a] sm:$0xff]
    %v564 = vld [vmem:[%s0 + $0x82] sm:$0xff]
    %v565 = vld [vmem:[%s0 + $0x92] sm:$0xff]
    %v566 = vld [vmem:[%s0 + $0x9a] sm:$0xff]
    %v567 = vld [vmem:[%s0 + $0xaa] sm:$0xff]
    %v568 = vld [vmem:[%s0 + $0xb2] sm:$0xff]
    %v569 = vld [vmem:[%s0 + $0xc2] sm:$0xff]
    %v570 = vld [vmem:[%s0 + $0xca] sm:$0xff]
    %v571 = vld [vmem:[%s0 + $0xda] sm:$0xff]
    %v572 = vld [vmem:[%s0 + $0xe2] sm:$0xff]
    %v573 = vld [vmem:[%s0 + $0xf2] sm:$0xff]
    %v574 = vld [vmem:[%s0 + $0xfa] sm:$0xff]
    %v575 = vld [vmem:[%s0 + $0x10a] sm:$0xff]
    %v576 = vld [vmem:[%s0 + $0x112] sm:$0xff]
    %v577 = vld [vmem:[%s0 + $0x122] sm:$0xff]
    %v578 = vld [vmem:[%s0 + $0x12a] sm:$0xff]
    %v579 = vld [vmem:[%s0 + $0x13a] sm:$0xff]
    %v580 = vld [vmem:[%s0 + $0x142] sm:$0xff]
    %v581 = vld [vmem:[%s0 + $0x152] sm:$0xff]
    %v582 = vld [vmem:[%s0 + $0x15a] sm:$0xff]
    %v583 = vld [vmem:[%s0 + $0x16a] sm:$0xff]
    %v584 = vld [vmem:[%s0 + $0x172] sm:$0xff]
    %v585 = vld [vmem:[%s0 + $0x1b2] sm:$0xff]
    %v586 = vld [vmem:[%s0 + $0x1ba] sm:$0xff]
    %v587 = vld [vmem:[%s0 + $0x1ca] sm:$0xff]
    %v588 = vld [vmem:[%s0 + $0x1d2] sm:$0xff]
    %v589 = vld [vmem:[%s0 + $0x1e2] sm:$0xff]
    %v590 = vld [vmem:[%s0 + $0x1ea] sm:$0xff]
    %v591 = vld [vmem:[%s0 + $0x1fa] sm:$0xff]
    %v592 = vld [vmem:[%s0 + $0x202] sm:$0xff]
    %v593 = vld [vmem:[%s0 + $0x212] sm:$0xff]
    %v594 = vld [vmem:[%s0 + $0x21a] sm:$0xff]
    %v595 = vld [vmem:[%s0 + $0x22a] sm:$0xff]
    %v596 = vld [vmem:[%s0 + $0x232] sm:$0xff]
    %v597 = vld [vmem:[%s0 + $0x242] sm:$0xff]
    %v598 = vld [vmem:[%s0 + $0x24a] sm:$0xff]
    %v599 = vld [vmem:[%s0 + $0x25a] sm:$0xff]
    %v600 = vld [vmem:[%s0 + $0x262] sm:$0xff]
    %v601 = vld [vmem:[%s0 + $0x272] sm:$0xff]
    %v602 = vld [vmem:[%s0 + $0x27a] sm:$0xff]
    %v603 = vld [vmem:[%s0 + $0x28a] sm:$0xff]
    %v604 = vld [vmem:[%s0 + $0x292] sm:$0xff]
    %v605 = vld [vmem:[%s0 + $0x2a2] sm:$0xff]
    %v606 = vld [vmem:[%s0 + $0x2aa] sm:$0xff]
    %v607 = vld [vmem:[%s0 + $0x2ba] sm:$0xff]
    %v608 = vld [vmem:[%s0 + $0x2c2] sm:$0xff]
    %v609 = vld [vmem:[%s0 + $0x2d2] sm:$0xff]
    %v610 = vld [vmem:[%s0 + $0x2da] sm:$0xff]
    %v611 = vld [vmem:[%s0 + $0x2ea] sm:$0xff]
    %v612 = vld [vmem:[%s0 + $0x2f2] sm:$0xff]
    %v613 = vld [vmem:[%s0 + $0x302] sm:$0xff]
    %v614 = vld [vmem:[%s0 + $0x30a] sm:$0xff]
    %v615 = vld [vmem:[%s0 + $0x31a] sm:$0xff]
    %v616 = vld [vmem:[%s0 + $0x322] sm:$0xff]
    %681 = vrot.lane.b32.xlu0 %v553, 8
    %v682 = vpop.permute.xlu0 %681
    %683 = vrot.lane.b32.xlu0 %v554, 8
    %v684 = vpop.permute.xlu0 %683
    %685 = vrot.lane.b32.xlu0 %v555, 8
    %v686 = vpop.permute.xlu0 %685
    %687 = vrot.lane.b32.xlu0 %v556, 8
    %v688 = vpop.permute.xlu0 %687
    %689 = vrot.lane.b32.xlu0 %v557, 8
    %v690 = vpop.permute.xlu0 %689
    %691 = vrot.lane.b32.xlu0 %v558, 8
    %v692 = vpop.permute.xlu0 %691
    %693 = vrot.lane.b32.xlu0 %v559, 8
    %v694 = vpop.permute.xlu0 %693
    %695 = vrot.lane.b32.xlu0 %v560, 8
    %v696 = vpop.permute.xlu0 %695
    %697 = vrot.lane.b32.xlu0 %v561, 8
    %v698 = vpop.permute.xlu0 %697
    %699 = vrot.lane.b32.xlu0 %v562, 8
    %v700 = vpop.permute.xlu0 %699
    %701 = vrot.lane.b32.xlu0 %v563, 8
    %v702 = vpop.permute.xlu0 %701
    %703 = vrot.lane.b32.xlu0 %v564, 8
    %v704 = vpop.permute.xlu0 %703
    %705 = vrot.lane.b32.xlu0 %v565, 8
    %v706 = vpop.permute.xlu0 %705
    %707 = vrot.lane.b32.xlu0 %v566, 8
    %v708 = vpop.permute.xlu0 %707
    %709 = vrot.lane.b32.xlu0 %v567, 8
    %v710 = vpop.permute.xlu0 %709
    %711 = vrot.lane.b32.xlu0 %v568, 8
    %v712 = vpop.permute.xlu0 %711
    %713 = vrot.lane.b32.xlu0 %v569, 8
    %v714 = vpop.permute.xlu0 %713
    %715 = vrot.lane.b32.xlu0 %v570, 8
    %v716 = vpop.permute.xlu0 %715
    %717 = vrot.lane.b32.xlu0 %v571, 8
    %v718 = vpop.permute.xlu0 %717
    %719 = vrot.lane.b32.xlu0 %v572, 8
    %v720 = vpop.permute.xlu0 %719
    %721 = vrot.lane.b32.xlu0 %v573, 8
    %v722 = vpop.permute.xlu0 %721
    %723 = vrot.lane.b32.xlu0 %v574, 8
    %v724 = vpop.permute.xlu0 %723
    %725 = vrot.lane.b32.xlu0 %v575, 8
    %v726 = vpop.permute.xlu0 %725
    %727 = vrot.lane.b32.xlu0 %v576, 8
    %v728 = vpop.permute.xlu0 %727
    %729 = vrot.lane.b32.xlu0 %v577, 8
    %v730 = vpop.permute.xlu0 %729
    %731 = vrot.lane.b32.xlu0 %v578, 8
    %v732 = vpop.permute.xlu0 %731
    %733 = vrot.lane.b32.xlu0 %v579, 8
    %v734 = vpop.permute.xlu0 %733
    %735 = vrot.lane.b32.xlu0 %v580, 8
    %v736 = vpop.permute.xlu0 %735
    %737 = vrot.lane.b32.xlu0 %v581, 8
    %v738 = vpop.permute.xlu0 %737
    %739 = vrot.lane.b32.xlu0 %v582, 8
    %v740 = vpop.permute.xlu0 %739
    %741 = vrot.lane.b32.xlu0 %v583, 8
    %v742 = vpop.permute.xlu0 %741
    %743 = vrot.lane.b32.xlu0 %v584, 8
    %v744 = vpop.permute.xlu0 %743
    %745 = vrot.lane.b32.xlu0 %v585, 8
    %v746 = vpop.permute.xlu0 %745
    %747 = vrot.lane.b32.xlu0 %v586, 8
    %v748 = vpop.permute.xlu0 %747
    %749 = vrot.lane.b32.xlu0 %v587, 8
    %v750 = vpop.permute.xlu0 %749
    %751 = vrot.lane.b32.xlu0 %v588, 8
    %v752 = vpop.permute.xlu0 %751
    %753 = vrot.lane.b32.xlu0 %v589, 8
    %v754 = vpop.permute.xlu0 %753
    %755 = vrot.lane.b32.xlu0 %v590, 8
    %v756 = vpop.permute.xlu0 %755
    %757 = vrot.lane.b32.xlu0 %v591, 8
    %v758 = vpop.permute.xlu0 %757
    %759 = vrot.lane.b32.xlu0 %v592, 8
    %v760 = vpop.permute.xlu0 %759
    %761 = vrot.lane.b32.xlu0 %v593, 8
    %v762 = vpop.permute.xlu0 %761
    %763 = vrot.lane.b32.xlu0 %v594, 8
    %v764 = vpop.permute.xlu0 %763
    %765 = vrot.lane.b32.xlu0 %v595, 8
    %v766 = vpop.permute.xlu0 %765
    %767 = vrot.lane.b32.xlu0 %v596, 8
    %v768 = vpop.permute.xlu0 %767
    %769 = vrot.lane.b32.xlu0 %v597, 8
    %v770 = vpop.permute.xlu0 %769
    %771 = vrot.lane.b32.xlu0 %v598, 8
    %v772 = vpop.permute.xlu0 %771
    %773 = vrot.lane.b32.xlu0 %v599, 8
    %v774 = vpop.permute.xlu0 %773
    %775 = vrot.lane.b32.xlu0 %v600, 8
    %v776 = vpop.permute.xlu0 %775
    %777 = vrot.lane.b32.xlu0 %v601, 8
    %v778 = vpop.permute.xlu0 %777
    %779 = vrot.lane.b32.xlu0 %v602, 8
    %v780 = vpop.permute.xlu0 %779
    %781 = vrot.lane.b32.xlu0 %v603, 8
    %v782 = vpop.permute.xlu0 %781
    %783 = vrot.lane.b32.xlu0 %v604, 8
    %v784 = vpop.permute.xlu0 %783
    %785 = vrot.lane.b32.xlu0 %v605, 8
    %v786 = vpop.permute.xlu0 %785
    %787 = vrot.lane.b32.xlu0 %v606, 8
    %v788 = vpop.permute.xlu0 %787
    %789 = vrot.lane.b32.xlu0 %v607, 8
    %v790 = vpop.permute.xlu0 %789
    %791 = vrot.lane.b32.xlu0 %v608, 8
    %v792 = vpop.permute.xlu0 %791
    %793 = vrot.lane.b32.xlu0 %v609, 8
    %v794 = vpop.permute.xlu0 %793
    %795 = vrot.lane.b32.xlu0 %v610, 8
    %v796 = vpop.permute.xlu0 %795
    %797 = vrot.lane.b32.xlu0 %v611, 8
    %v798 = vpop.permute.xlu0 %797
    %799 = vrot.lane.b32.xlu0 %v612, 8
    %v800 = vpop.permute.xlu0 %799
    %801 = vrot.lane.b32.xlu0 %v613, 8
    %v802 = vpop.permute.xlu0 %801
    %803 = vrot.lane.b32.xlu0 %v614, 8
    %v804 = vpop.permute.xlu0 %803
    %805 = vrot.lane.b32.xlu0 %v615, 8
    %v806 = vpop.permute.xlu0 %805
    %807 = vrot.lane.b32.xlu0 %v616, 8
    %v808 = vpop.permute.xlu0 %807
    %vm873 = vcmask 97344
    %874 = vst.msk [vmem:[#allocation2] sm:$0xff] %vm873, %v682
    %875 = vst.msk [vmem:[#allocation2 + $0x8] sm:$0xff] %vm873, %v684
    %876 = vst.msk [vmem:[#allocation2 + $0x10] sm:$0xff] %vm873, %v686
    %877 = vst.msk [vmem:[#allocation2 + $0x18] sm:$0xff] %vm873, %v688
    %878 = vst.msk [vmem:[#allocation2 + $0x20] sm:$0xff] %vm873, %v690
    %879 = vst.msk [vmem:[#allocation2 + $0x28] sm:$0xff] %vm873, %v692
    %880 = vst.msk [vmem:[#allocation2 + $0x30] sm:$0xff] %vm873, %v694
    %881 = vst.msk [vmem:[#allocation2 + $0x38] sm:$0xff] %vm873, %v696
    %882 = vst.msk [vmem:[#allocation2 + $0x40] sm:$0xff] %vm873, %v698
    %883 = vst.msk [vmem:[#allocation2 + $0x48] sm:$0xff] %vm873, %v700
    %884 = vst.msk [vmem:[#allocation2 + $0x50] sm:$0xff] %vm873, %v702
    %885 = vst.msk [vmem:[#allocation2 + $0x58] sm:$0xff] %vm873, %v704
    %886 = vst.msk [vmem:[#allocation2 + $0x60] sm:$0xff] %vm873, %v706
    %887 = vst.msk [vmem:[#allocation2 + $0x68] sm:$0xff] %vm873, %v708
    %888 = vst.msk [vmem:[#allocation2 + $0x70] sm:$0xff] %vm873, %v710
    %889 = vst.msk [vmem:[#allocation2 + $0x78] sm:$0xff] %vm873, %v712
    %890 = vst.msk [vmem:[#allocation2 + $0x80] sm:$0xff] %vm873, %v714
    %891 = vst.msk [vmem:[#allocation2 + $0x88] sm:$0xff] %vm873, %v716
    %892 = vst.msk [vmem:[#allocation2 + $0x90] sm:$0xff] %vm873, %v718
    %893 = vst.msk [vmem:[#allocation2 + $0x98] sm:$0xff] %vm873, %v720
    %894 = vst.msk [vmem:[#allocation2 + $0xa0] sm:$0xff] %vm873, %v722
    %895 = vst.msk [vmem:[#allocation2 + $0xa8] sm:$0xff] %vm873, %v724
    %896 = vst.msk [vmem:[#allocation2 + $0xb0] sm:$0xff] %vm873, %v726
    %897 = vst.msk [vmem:[#allocation2 + $0xb8] sm:$0xff] %vm873, %v728
    %898 = vst.msk [vmem:[#allocation2 + $0xc0] sm:$0xff] %vm873, %v730
    %899 = vst.msk [vmem:[#allocation2 + $0xc8] sm:$0xff] %vm873, %v732
    %900 = vst.msk [vmem:[#allocation2 + $0xd0] sm:$0xff] %vm873, %v734
    %901 = vst.msk [vmem:[#allocation2 + $0xd8] sm:$0xff] %vm873, %v736
    %902 = vst.msk [vmem:[#allocation2 + $0xe0] sm:$0xff] %vm873, %v738
    %903 = vst.msk [vmem:[#allocation2 + $0xe8] sm:$0xff] %vm873, %v740
    %904 = vst.msk [vmem:[#allocation2 + $0xf0] sm:$0xff] %vm873, %v742
    %905 = vst.msk [vmem:[#allocation2 + $0xf8] sm:$0xff] %vm873, %v744
    %906 = vst.msk [vmem:[#allocation2 + $0x100] sm:$0xff] %vm873, %v746
    %907 = vst.msk [vmem:[#allocation2 + $0x108] sm:$0xff] %vm873, %v748
    %908 = vst.msk [vmem:[#allocation2 + $0x110] sm:$0xff] %vm873, %v750
    %909 = vst.msk [vmem:[#allocation2 + $0x118] sm:$0xff] %vm873, %v752
    %910 = vst.msk [vmem:[#allocation2 + $0x120] sm:$0xff] %vm873, %v754
    %911 = vst.msk [vmem:[#allocation2 + $0x128] sm:$0xff] %vm873, %v756
    %912 = vst.msk [vmem:[#allocation2 + $0x130] sm:$0xff] %vm873, %v758
    %913 = vst.msk [vmem:[#allocation2 + $0x138] sm:$0xff] %vm873, %v760
    %914 = vst.msk [vmem:[#allocation2 + $0x140] sm:$0xff] %vm873, %v762
    %915 = vst.msk [vmem:[#allocation2 + $0x148] sm:$0xff] %vm873, %v764
    %916 = vst.msk [vmem:[#allocation2 + $0x150] sm:$0xff] %vm873, %v766
    %917 = vst.msk [vmem:[#allocation2 + $0x158] sm:$0xff] %vm873, %v768
    %918 = vst.msk [vmem:[#allocation2 + $0x160] sm:$0xff] %vm873, %v770
    %919 = vst.msk [vmem:[#allocation2 + $0x168] sm:$0xff] %vm873, %v772
    %920 = vst.msk [vmem:[#allocation2 + $0x170] sm:$0xff] %vm873, %v774
    %921 = vst.msk [vmem:[#allocation2 + $0x178] sm:$0xff] %vm873, %v776
    %922 = vst.msk [vmem:[#allocation2 + $0x180] sm:$0xff] %vm873, %v778
    %923 = vst.msk [vmem:[#allocation2 + $0x188] sm:$0xff] %vm873, %v780
    %924 = vst.msk [vmem:[#allocation2 + $0x190] sm:$0xff] %vm873, %v782
    %925 = vst.msk [vmem:[#allocation2 + $0x198] sm:$0xff] %vm873, %v784
    %926 = vst.msk [vmem:[#allocation2 + $0x1a0] sm:$0xff] %vm873, %v786
    %927 = vst.msk [vmem:[#allocation2 + $0x1a8] sm:$0xff] %vm873, %v788
    %928 = vst.msk [vmem:[#allocation2 + $0x1b0] sm:$0xff] %vm873, %v790
    %929 = vst.msk [vmem:[#allocation2 + $0x1b8] sm:$0xff] %vm873, %v792
    %930 = vst.msk [vmem:[#allocation2 + $0x1c0] sm:$0xff] %vm873, %v794
    %931 = vst.msk [vmem:[#allocation2 + $0x1c8] sm:$0xff] %vm873, %v796
    %932 = vst.msk [vmem:[#allocation2 + $0x1d0] sm:$0xff] %vm873, %v798
    %933 = vst.msk [vmem:[#allocation2 + $0x1d8] sm:$0xff] %vm873, %v800
    %934 = vst.msk [vmem:[#allocation2 + $0x1e0] sm:$0xff] %vm873, %v802
    %935 = vst.msk [vmem:[#allocation2 + $0x1e8] sm:$0xff] %vm873, %v804
    %936 = vst.msk [vmem:[#allocation2 + $0x1f0] sm:$0xff] %vm873, %v806
    %937 = vst.msk [vmem:[#allocation2 + $0x1f8] sm:$0xff] %vm873, %v808
    %s938 = scalar_lea.vmem %s0, 24
    %v939 = vld [vmem:[%s938] sm:$0xff]
    %v940 = vld [vmem:[%s938 + $0x8] sm:$0xff]
    %v941 = vld [vmem:[%s938 + $0x18] sm:$0xff]
    %v942 = vld [vmem:[%s938 + $0x20] sm:$0xff]
    %v943 = vld [vmem:[%s938 + $0x30] sm:$0xff]
    %v944 = vld [vmem:[%s938 + $0x38] sm:$0xff]
    %v945 = vld [vmem:[%s938 + $0x48] sm:$0xff]
    %v946 = vld [vmem:[%s938 + $0x50] sm:$0xff]
    %v947 = vld [vmem:[%s938 + $0x60] sm:$0xff]
    %v948 = vld [vmem:[%s938 + $0x68] sm:$0xff]
    %v949 = vld [vmem:[%s938 + $0x78] sm:$0xff]
    %v950 = vld [vmem:[%s938 + $0x80] sm:$0xff]
    %v951 = vld [vmem:[%s938 + $0x90] sm:$0xff]
    %v952 = vld [vmem:[%s938 + $0x98] sm:$0xff]
    %v953 = vld [vmem:[%s938 + $0xa8] sm:$0xff]
    %v954 = vld [vmem:[%s938 + $0xb0] sm:$0xff]
    %v955 = vld [vmem:[%s938 + $0xc0] sm:$0xff]
    %v956 = vld [vmem:[%s938 + $0xc8] sm:$0xff]
    %v957 = vld [vmem:[%s938 + $0xd8] sm:$0xff]
    %v958 = vld [vmem:[%s938 + $0xe0] sm:$0xff]
    %v959 = vld [vmem:[%s938 + $0xf0] sm:$0xff]
    %v960 = vld [vmem:[%s938 + $0xf8] sm:$0xff]
    %v961 = vld [vmem:[%s938 + $0x108] sm:$0xff]
    %v962 = vld [vmem:[%s938 + $0x110] sm:$0xff]
    %v963 = vld [vmem:[%s938 + $0x120] sm:$0xff]
    %v964 = vld [vmem:[%s938 + $0x128] sm:$0xff]
    %v965 = vld [vmem:[%s938 + $0x138] sm:$0xff]
    %v966 = vld [vmem:[%s938 + $0x140] sm:$0xff]
    %v967 = vld [vmem:[%s938 + $0x150] sm:$0xff]
    %v968 = vld [vmem:[%s938 + $0x158] sm:$0xff]
    %v969 = vld [vmem:[%s938 + $0x168] sm:$0xff]
    %v970 = vld [vmem:[%s938 + $0x170] sm:$0xff]
    %v971 = vld [vmem:[%s938 + $0x1b0] sm:$0xff]
    %v972 = vld [vmem:[%s938 + $0x1b8] sm:$0xff]
    %v973 = vld [vmem:[%s938 + $0x1c8] sm:$0xff]
    %v974 = vld [vmem:[%s938 + $0x1d0] sm:$0xff]
    %v975 = vld [vmem:[%s938 + $0x1e0] sm:$0xff]
    %v976 = vld [vmem:[%s938 + $0x1e8] sm:$0xff]
    %v977 = vld [vmem:[%s938 + $0x1f8] sm:$0xff]
    %v978 = vld [vmem:[%s938 + $0x200] sm:$0xff]
    %v979 = vld [vmem:[%s938 + $0x210] sm:$0xff]
    %v980 = vld [vmem:[%s938 + $0x218] sm:$0xff]
    %v981 = vld [vmem:[%s938 + $0x228] sm:$0xff]
    %v982 = vld [vmem:[%s938 + $0x230] sm:$0xff]
    %v983 = vld [vmem:[%s938 + $0x240] sm:$0xff]
    %v984 = vld [vmem:[%s938 + $0x248] sm:$0xff]
    %v985 = vld [vmem:[%s938 + $0x258] sm:$0xff]
    %v986 = vld [vmem:[%s938 + $0x260] sm:$0xff]
    %v987 = vld [vmem:[%s938 + $0x270] sm:$0xff]
    %v988 = vld [vmem:[%s938 + $0x278] sm:$0xff]
    %v989 = vld [vmem:[%s938 + $0x288] sm:$0xff]
    %v990 = vld [vmem:[%s938 + $0x290] sm:$0xff]
    %v991 = vld [vmem:[%s938 + $0x2a0] sm:$0xff]
    %v992 = vld [vmem:[%s938 + $0x2a8] sm:$0xff]
    %v993 = vld [vmem:[%s938 + $0x2b8] sm:$0xff]
    %v994 = vld [vmem:[%s938 + $0x2c0] sm:$0xff]
    %v995 = vld [vmem:[%s938 + $0x2d0] sm:$0xff]
    %v996 = vld [vmem:[%s938 + $0x2d8] sm:$0xff]
    %v997 = vld [vmem:[%s938 + $0x2e8] sm:$0xff]
    %v998 = vld [vmem:[%s938 + $0x2f0] sm:$0xff]
    %v999 = vld [vmem:[%s938 + $0x300] sm:$0xff]
    %v1000 = vld [vmem:[%s938 + $0x308] sm:$0xff]
    %v1001 = vld [vmem:[%s938 + $0x318] sm:$0xff]
    %v1002 = vld [vmem:[%s938 + $0x320] sm:$0xff]
    %1067 = vrot.lane.b32.xlu0 %v939, 12
    %v1068 = vpop.permute.xlu0 %1067
    %1069 = vrot.lane.b32.xlu0 %v940, 12
    %v1070 = vpop.permute.xlu0 %1069
    %1071 = vrot.lane.b32.xlu0 %v941, 12
    %v1072 = vpop.permute.xlu0 %1071
    %1073 = vrot.lane.b32.xlu0 %v942, 12
    %v1074 = vpop.permute.xlu0 %1073
    %1075 = vrot.lane.b32.xlu0 %v943, 12
    %v1076 = vpop.permute.xlu0 %1075
    %1077 = vrot.lane.b32.xlu0 %v944, 12
    %v1078 = vpop.permute.xlu0 %1077
    %1079 = vrot.lane.b32.xlu0 %v945, 12
    %v1080 = vpop.permute.xlu0 %1079
    %1081 = vrot.lane.b32.xlu0 %v946, 12
    %v1082 = vpop.permute.xlu0 %1081
    %1083 = vrot.lane.b32.xlu0 %v947, 12
    %v1084 = vpop.permute.xlu0 %1083
    %1085 = vrot.lane.b32.xlu0 %v948, 12
    %v1086 = vpop.permute.xlu0 %1085
    %1087 = vrot.lane.b32.xlu0 %v949, 12
    %v1088 = vpop.permute.xlu0 %1087
    %1089 = vrot.lane.b32.xlu0 %v950, 12
    %v1090 = vpop.permute.xlu0 %1089
    %1091 = vrot.lane.b32.xlu0 %v951, 12
    %v1092 = vpop.permute.xlu0 %1091
    %1093 = vrot.lane.b32.xlu0 %v952, 12
    %v1094 = vpop.permute.xlu0 %1093
    %1095 = vrot.lane.b32.xlu0 %v953, 12
    %v1096 = vpop.permute.xlu0 %1095
    %1097 = vrot.lane.b32.xlu0 %v954, 12
    %v1098 = vpop.permute.xlu0 %1097
    %1099 = vrot.lane.b32.xlu0 %v955, 12
    %v1100 = vpop.permute.xlu0 %1099
    %1101 = vrot.lane.b32.xlu0 %v956, 12
    %v1102 = vpop.permute.xlu0 %1101
    %1103 = vrot.lane.b32.xlu0 %v957, 12
    %v1104 = vpop.permute.xlu0 %1103
    %1105 = vrot.lane.b32.xlu0 %v958, 12
    %v1106 = vpop.permute.xlu0 %1105
    %1107 = vrot.lane.b32.xlu0 %v959, 12
    %v1108 = vpop.permute.xlu0 %1107
    %1109 = vrot.lane.b32.xlu0 %v960, 12
    %v1110 = vpop.permute.xlu0 %1109
    %1111 = vrot.lane.b32.xlu0 %v961, 12
    %v1112 = vpop.permute.xlu0 %1111
    %1113 = vrot.lane.b32.xlu0 %v962, 12
    %v1114 = vpop.permute.xlu0 %1113
    %1115 = vrot.lane.b32.xlu0 %v963, 12
    %v1116 = vpop.permute.xlu0 %1115
    %1117 = vrot.lane.b32.xlu0 %v964, 12
    %v1118 = vpop.permute.xlu0 %1117
    %1119 = vrot.lane.b32.xlu0 %v965, 12
    %v1120 = vpop.permute.xlu0 %1119
    %1121 = vrot.lane.b32.xlu0 %v966, 12
    %v1122 = vpop.permute.xlu0 %1121
    %1123 = vrot.lane.b32.xlu0 %v967, 12
    %v1124 = vpop.permute.xlu0 %1123
    %1125 = vrot.lane.b32.xlu0 %v968, 12
    %v1126 = vpop.permute.xlu0 %1125
    %1127 = vrot.lane.b32.xlu0 %v969, 12
    %v1128 = vpop.permute.xlu0 %1127
    %1129 = vrot.lane.b32.xlu0 %v970, 12
    %v1130 = vpop.permute.xlu0 %1129
    %1131 = vrot.lane.b32.xlu0 %v971, 12
    %v1132 = vpop.permute.xlu0 %1131
    %1133 = vrot.lane.b32.xlu0 %v972, 12
    %v1134 = vpop.permute.xlu0 %1133
    %1135 = vrot.lane.b32.xlu0 %v973, 12
    %v1136 = vpop.permute.xlu0 %1135
    %1137 = vrot.lane.b32.xlu0 %v974, 12
    %v1138 = vpop.permute.xlu0 %1137
    %1139 = vrot.lane.b32.xlu0 %v975, 12
    %v1140 = vpop.permute.xlu0 %1139
    %1141 = vrot.lane.b32.xlu0 %v976, 12
    %v1142 = vpop.permute.xlu0 %1141
    %1143 = vrot.lane.b32.xlu0 %v977, 12
    %v1144 = vpop.permute.xlu0 %1143
    %1145 = vrot.lane.b32.xlu0 %v978, 12
    %v1146 = vpop.permute.xlu0 %1145
    %1147 = vrot.lane.b32.xlu0 %v979, 12
    %v1148 = vpop.permute.xlu0 %1147
    %1149 = vrot.lane.b32.xlu0 %v980, 12
    %v1150 = vpop.permute.xlu0 %1149
    %1151 = vrot.lane.b32.xlu0 %v981, 12
    %v1152 = vpop.permute.xlu0 %1151
    %1153 = vrot.lane.b32.xlu0 %v982, 12
    %v1154 = vpop.permute.xlu0 %1153
    %1155 = vrot.lane.b32.xlu0 %v983, 12
    %v1156 = vpop.permute.xlu0 %1155
    %1157 = vrot.lane.b32.xlu0 %v984, 12
    %v1158 = vpop.permute.xlu0 %1157
    %1159 = vrot.lane.b32.xlu0 %v985, 12
    %v1160 = vpop.permute.xlu0 %1159
    %1161 = vrot.lane.b32.xlu0 %v986, 12
    %v1162 = vpop.permute.xlu0 %1161
    %1163 = vrot.lane.b32.xlu0 %v987, 12
    %v1164 = vpop.permute.xlu0 %1163
    %1165 = vrot.lane.b32.xlu0 %v988, 12
    %v1166 = vpop.permute.xlu0 %1165
    %1167 = vrot.lane.b32.xlu0 %v989, 12
    %v1168 = vpop.permute.xlu0 %1167
    %1169 = vrot.lane.b32.xlu0 %v990, 12
    %v1170 = vpop.permute.xlu0 %1169
    %1171 = vrot.lane.b32.xlu0 %v991, 12
    %v1172 = vpop.permute.xlu0 %1171
    %1173 = vrot.lane.b32.xlu0 %v992, 12
    %v1174 = vpop.permute.xlu0 %1173
    %1175 = vrot.lane.b32.xlu0 %v993, 12
    %v1176 = vpop.permute.xlu0 %1175
    %1177 = vrot.lane.b32.xlu0 %v994, 12
    %v1178 = vpop.permute.xlu0 %1177
    %1179 = vrot.lane.b32.xlu0 %v995, 12
    %v1180 = vpop.permute.xlu0 %1179
    %1181 = vrot.lane.b32.xlu0 %v996, 12
    %v1182 = vpop.permute.xlu0 %1181
    %1183 = vrot.lane.b32.xlu0 %v997, 12
    %v1184 = vpop.permute.xlu0 %1183
    %1185 = vrot.lane.b32.xlu0 %v998, 12
    %v1186 = vpop.permute.xlu0 %1185
    %1187 = vrot.lane.b32.xlu0 %v999, 12
    %v1188 = vpop.permute.xlu0 %1187
    %1189 = vrot.lane.b32.xlu0 %v1000, 12
    %v1190 = vpop.permute.xlu0 %1189
    %1191 = vrot.lane.b32.xlu0 %v1001, 12
    %v1192 = vpop.permute.xlu0 %1191
    %1193 = vrot.lane.b32.xlu0 %v1002, 12
    %v1194 = vpop.permute.xlu0 %1193
    %vm1259 = vcmask 130144
    %1260 = vst.msk [vmem:[#allocation2] sm:$0xff] %vm1259, %v1068
    %1261 = vst.msk [vmem:[#allocation2 + $0x8] sm:$0xff] %vm1259, %v1070
    %1262 = vst.msk [vmem:[#allocation2 + $0x10] sm:$0xff] %vm1259, %v1072
    %1263 = vst.msk [vmem:[#allocation2 + $0x18] sm:$0xff] %vm1259, %v1074
    %1264 = vst.msk [vmem:[#allocation2 + $0x20] sm:$0xff] %vm1259, %v1076
    %1265 = vst.msk [vmem:[#allocation2 + $0x28] sm:$0xff] %vm1259, %v1078
    %1266 = vst.msk [vmem:[#allocation2 + $0x30] sm:$0xff] %vm1259, %v1080
    %1267 = vst.msk [vmem:[#allocation2 + $0x38] sm:$0xff] %vm1259, %v1082
    %1268 = vst.msk [vmem:[#allocation2 + $0x40] sm:$0xff] %vm1259, %v1084
    %1269 = vst.msk [vmem:[#allocation2 + $0x48] sm:$0xff] %vm1259, %v1086
    %1270 = vst.msk [vmem:[#allocation2 + $0x50] sm:$0xff] %vm1259, %v1088
    %1271 = vst.msk [vmem:[#allocation2 + $0x58] sm:$0xff] %vm1259, %v1090
    %1272 = vst.msk [vmem:[#allocation2 + $0x60] sm:$0xff] %vm1259, %v1092
    %1273 = vst.msk [vmem:[#allocation2 + $0x68] sm:$0xff] %vm1259, %v1094
    %1274 = vst.msk [vmem:[#allocation2 + $0x70] sm:$0xff] %vm1259, %v1096
    %1275 = vst.msk [vmem:[#allocation2 + $0x78] sm:$0xff] %vm1259, %v1098
    %1276 = vst.msk [vmem:[#allocation2 + $0x80] sm:$0xff] %vm1259, %v1100
    %1277 = vst.msk [vmem:[#allocation2 + $0x88] sm:$0xff] %vm1259, %v1102
    %1278 = vst.msk [vmem:[#allocation2 + $0x90] sm:$0xff] %vm1259, %v1104
    %1279 = vst.msk [vmem:[#allocation2 + $0x98] sm:$0xff] %vm1259, %v1106
    %1280 = vst.msk [vmem:[#allocation2 + $0xa0] sm:$0xff] %vm1259, %v1108
    %1281 = vst.msk [vmem:[#allocation2 + $0xa8] sm:$0xff] %vm1259, %v1110
    %1282 = vst.msk [vmem:[#allocation2 + $0xb0] sm:$0xff] %vm1259, %v1112
    %1283 = vst.msk [vmem:[#allocation2 + $0xb8] sm:$0xff] %vm1259, %v1114
    %1284 = vst.msk [vmem:[#allocation2 + $0xc0] sm:$0xff] %vm1259, %v1116
    %1285 = vst.msk [vmem:[#allocation2 + $0xc8] sm:$0xff] %vm1259, %v1118
    %1286 = vst.msk [vmem:[#allocation2 + $0xd0] sm:$0xff] %vm1259, %v1120
    %1287 = vst.msk [vmem:[#allocation2 + $0xd8] sm:$0xff] %vm1259, %v1122
    %1288 = vst.msk [vmem:[#allocation2 + $0xe0] sm:$0xff] %vm1259, %v1124
    %1289 = vst.msk [vmem:[#allocation2 + $0xe8] sm:$0xff] %vm1259, %v1126
    %1290 = vst.msk [vmem:[#allocation2 + $0xf0] sm:$0xff] %vm1259, %v1128
    %1291 = vst.msk [vmem:[#allocation2 + $0xf8] sm:$0xff] %vm1259, %v1130
    %1292 = vst.msk [vmem:[#allocation2 + $0x100] sm:$0xff] %vm1259, %v1132
    %1293 = vst.msk [vmem:[#allocation2 + $0x108] sm:$0xff] %vm1259, %v1134
    %1294 = vst.msk [vmem:[#allocation2 + $0x110] sm:$0xff] %vm1259, %v1136
    %1295 = vst.msk [vmem:[#allocation2 + $0x118] sm:$0xff] %vm1259, %v1138
    %1296 = vst.msk [vmem:[#allocation2 + $0x120] sm:$0xff] %vm1259, %v1140
    %1297 = vst.msk [vmem:[#allocation2 + $0x128] sm:$0xff] %vm1259, %v1142
    %1298 = vst.msk [vmem:[#allocation2 + $0x130] sm:$0xff] %vm1259, %v1144
    %1299 = vst.msk [vmem:[#allocation2 + $0x138] sm:$0xff] %vm1259, %v1146
    %1300 = vst.msk [vmem:[#allocation2 + $0x140] sm:$0xff] %vm1259, %v1148
    %1301 = vst.msk [vmem:[#allocation2 + $0x148] sm:$0xff] %vm1259, %v1150
    %1302 = vst.msk [vmem:[#allocation2 + $0x150] sm:$0xff] %vm1259, %v1152
    %1303 = vst.msk [vmem:[#allocation2 + $0x158] sm:$0xff] %vm1259, %v1154
    %1304 = vst.msk [vmem:[#allocation2 + $0x160] sm:$0xff] %vm1259, %v1156
    %1305 = vst.msk [vmem:[#allocation2 + $0x168] sm:$0xff] %vm1259, %v1158
    %1306 = vst.msk [vmem:[#allocation2 + $0x170] sm:$0xff] %vm1259, %v1160
    %1307 = vst.msk [vmem:[#allocation2 + $0x178] sm:$0xff] %vm1259, %v1162
    %1308 = vst.msk [vmem:[#allocation2 + $0x180] sm:$0xff] %vm1259, %v1164
    %1309 = vst.msk [vmem:[#allocation2 + $0x188] sm:$0xff] %vm1259, %v1166
    %1310 = vst.msk [vmem:[#allocation2 + $0x190] sm:$0xff] %vm1259, %v1168
    %1311 = vst.msk [vmem:[#allocation2 + $0x198] sm:$0xff] %vm1259, %v1170
    %1312 = vst.msk [vmem:[#allocation2 + $0x1a0] sm:$0xff] %vm1259, %v1172
    %1313 = vst.msk [vmem:[#allocation2 + $0x1a8] sm:$0xff] %vm1259, %v1174
    %1314 = vst.msk [vmem:[#allocation2 + $0x1b0] sm:$0xff] %vm1259, %v1176
    %1315 = vst.msk [vmem:[#allocation2 + $0x1b8] sm:$0xff] %vm1259, %v1178
    %1316 = vst.msk [vmem:[#allocation2 + $0x1c0] sm:$0xff] %vm1259, %v1180
    %1317 = vst.msk [vmem:[#allocation2 + $0x1c8] sm:$0xff] %vm1259, %v1182
    %1318 = vst.msk [vmem:[#allocation2 + $0x1d0] sm:$0xff] %vm1259, %v1184
    %1319 = vst.msk [vmem:[#allocation2 + $0x1d8] sm:$0xff] %vm1259, %v1186
    %1320 = vst.msk [vmem:[#allocation2 + $0x1e0] sm:$0xff] %vm1259, %v1188
    %1321 = vst.msk [vmem:[#allocation2 + $0x1e8] sm:$0xff] %vm1259, %v1190
    %1322 = vst.msk [vmem:[#allocation2 + $0x1f0] sm:$0xff] %vm1259, %v1192
    %1323 = vst.msk [vmem:[#allocation2 + $0x1f8] sm:$0xff] %vm1259, %v1194
    %v1324 = vld [vmem:[%s938 + $0x1] sm:$0xff]
    %v1325 = vld [vmem:[%s938 + $0x9] sm:$0xff]
    %v1326 = vld [vmem:[%s938 + $0x19] sm:$0xff]
    %v1327 = vld [vmem:[%s938 + $0x21] sm:$0xff]
    %v1328 = vld [vmem:[%s938 + $0x31] sm:$0xff]
    %v1329 = vld [vmem:[%s938 + $0x39] sm:$0xff]
    %v1330 = vld [vmem:[%s938 + $0x49] sm:$0xff]
    %v1331 = vld [vmem:[%s938 + $0x51] sm:$0xff]
    %v1332 = vld [vmem:[%s938 + $0x61] sm:$0xff]
    %v1333 = vld [vmem:[%s938 + $0x69] sm:$0xff]
    %v1334 = vld [vmem:[%s938 + $0x79] sm:$0xff]
    %v1335 = vld [vmem:[%s938 + $0x81] sm:$0xff]
    %v1336 = vld [vmem:[%s938 + $0x91] sm:$0xff]
    %v1337 = vld [vmem:[%s938 + $0x99] sm:$0xff]
    %v1338 = vld [vmem:[%s938 + $0xa9] sm:$0xff]
    %v1339 = vld [vmem:[%s938 + $0xb1] sm:$0xff]
    %v1340 = vld [vmem:[%s938 + $0xc1] sm:$0xff]
    %v1341 = vld [vmem:[%s938 + $0xc9] sm:$0xff]
    %v1342 = vld [vmem:[%s938 + $0xd9] sm:$0xff]
    %v1343 = vld [vmem:[%s938 + $0xe1] sm:$0xff]
    %v1344 = vld [vmem:[%s938 + $0xf1] sm:$0xff]
    %v1345 = vld [vmem:[%s938 + $0xf9] sm:$0xff]
    %v1346 = vld [vmem:[%s938 + $0x109] sm:$0xff]
    %v1347 = vld [vmem:[%s938 + $0x111] sm:$0xff]
    %v1348 = vld [vmem:[%s938 + $0x121] sm:$0xff]
    %v1349 = vld [vmem:[%s938 + $0x129] sm:$0xff]
    %v1350 = vld [vmem:[%s938 + $0x139] sm:$0xff]
    %v1351 = vld [vmem:[%s938 + $0x141] sm:$0xff]
    %v1352 = vld [vmem:[%s938 + $0x151] sm:$0xff]
    %v1353 = vld [vmem:[%s938 + $0x159] sm:$0xff]
    %v1354 = vld [vmem:[%s938 + $0x169] sm:$0xff]
    %v1355 = vld [vmem:[%s938 + $0x171] sm:$0xff]
    %v1356 = vld [vmem:[%s938 + $0x1b1] sm:$0xff]
    %v1357 = vld [vmem:[%s938 + $0x1b9] sm:$0xff]
    %v1358 = vld [vmem:[%s938 + $0x1c9] sm:$0xff]
    %v1359 = vld [vmem:[%s938 + $0x1d1] sm:$0xff]
    %v1360 = vld [vmem:[%s938 + $0x1e1] sm:$0xff]
    %v1361 = vld [vmem:[%s938 + $0x1e9] sm:$0xff]
    %v1362 = vld [vmem:[%s938 + $0x1f9] sm:$0xff]
    %v1363 = vld [vmem:[%s938 + $0x201] sm:$0xff]
    %v1364 = vld [vmem:[%s938 + $0x211] sm:$0xff]
    %v1365 = vld [vmem:[%s938 + $0x219] sm:$0xff]
    %v1366 = vld [vmem:[%s938 + $0x229] sm:$0xff]
    %v1367 = vld [vmem:[%s938 + $0x231] sm:$0xff]
    %v1368 = vld [vmem:[%s938 + $0x241] sm:$0xff]
    %v1369 = vld [vmem:[%s938 + $0x249] sm:$0xff]
    %v1370 = vld [vmem:[%s938 + $0x259] sm:$0xff]
    %v1371 = vld [vmem:[%s938 + $0x261] sm:$0xff]
    %v1372 = vld [vmem:[%s938 + $0x271] sm:$0xff]
    %v1373 = vld [vmem:[%s938 + $0x279] sm:$0xff]
    %v1374 = vld [vmem:[%s938 + $0x289] sm:$0xff]
    %v1375 = vld [vmem:[%s938 + $0x291] sm:$0xff]
    %v1376 = vld [vmem:[%s938 + $0x2a1] sm:$0xff]
    %v1377 = vld [vmem:[%s938 + $0x2a9] sm:$0xff]
    %v1378 = vld [vmem:[%s938 + $0x2b9] sm:$0xff]
    %v1379 = vld [vmem:[%s938 + $0x2c1] sm:$0xff]
    %v1380 = vld [vmem:[%s938 + $0x2d1] sm:$0xff]
    %v1381 = vld [vmem:[%s938 + $0x2d9] sm:$0xff]
    %v1382 = vld [vmem:[%s938 + $0x2e9] sm:$0xff]
    %v1383 = vld [vmem:[%s938 + $0x2f1] sm:$0xff]
    %v1384 = vld [vmem:[%s938 + $0x301] sm:$0xff]
    %v1385 = vld [vmem:[%s938 + $0x309] sm:$0xff]
    %v1386 = vld [vmem:[%s938 + $0x319] sm:$0xff]
    %v1387 = vld [vmem:[%s938 + $0x321] sm:$0xff]
    %1452 = vrot.lane.b32.xlu0 %v1324, 16
    %v1453 = vpop.permute.xlu0 %1452
    %1454 = vrot.lane.b32.xlu0 %v1325, 16
    %v1455 = vpop.permute.xlu0 %1454
    %1456 = vrot.lane.b32.xlu0 %v1326, 16
    %v1457 = vpop.permute.xlu0 %1456
    %1458 = vrot.lane.b32.xlu0 %v1327, 16
    %v1459 = vpop.permute.xlu0 %1458
    %1460 = vrot.lane.b32.xlu0 %v1328, 16
    %v1461 = vpop.permute.xlu0 %1460
    %1462 = vrot.lane.b32.xlu0 %v1329, 16
    %v1463 = vpop.permute.xlu0 %1462
    %1464 = vrot.lane.b32.xlu0 %v1330, 16
    %v1465 = vpop.permute.xlu0 %1464
    %1466 = vrot.lane.b32.xlu0 %v1331, 16
    %v1467 = vpop.permute.xlu0 %1466
    %1468 = vrot.lane.b32.xlu0 %v1332, 16
    %v1469 = vpop.permute.xlu0 %1468
    %1470 = vrot.lane.b32.xlu0 %v1333, 16
    %v1471 = vpop.permute.xlu0 %1470
    %1472 = vrot.lane.b32.xlu0 %v1334, 16
    %v1473 = vpop.permute.xlu0 %1472
    %1474 = vrot.lane.b32.xlu0 %v1335, 16
    %v1475 = vpop.permute.xlu0 %1474
    %1476 = vrot.lane.b32.xlu0 %v1336, 16
    %v1477 = vpop.permute.xlu0 %1476
    %1478 = vrot.lane.b32.xlu0 %v1337, 16
    %v1479 = vpop.permute.xlu0 %1478
    %1480 = vrot.lane.b32.xlu0 %v1338, 16
    %v1481 = vpop.permute.xlu0 %1480
    %1482 = vrot.lane.b32.xlu0 %v1339, 16
    %v1483 = vpop.permute.xlu0 %1482
    %1484 = vrot.lane.b32.xlu0 %v1340, 16
    %v1485 = vpop.permute.xlu0 %1484
    %1486 = vrot.lane.b32.xlu0 %v1341, 16
    %v1487 = vpop.permute.xlu0 %1486
    %1488 = vrot.lane.b32.xlu0 %v1342, 16
    %v1489 = vpop.permute.xlu0 %1488
    %1490 = vrot.lane.b32.xlu0 %v1343, 16
    %v1491 = vpop.permute.xlu0 %1490
    %1492 = vrot.lane.b32.xlu0 %v1344, 16
    %v1493 = vpop.permute.xlu0 %1492
    %1494 = vrot.lane.b32.xlu0 %v1345, 16
    %v1495 = vpop.permute.xlu0 %1494
    %1496 = vrot.lane.b32.xlu0 %v1346, 16
    %v1497 = vpop.permute.xlu0 %1496
    %1498 = vrot.lane.b32.xlu0 %v1347, 16
    %v1499 = vpop.permute.xlu0 %1498
    %1500 = vrot.lane.b32.xlu0 %v1348, 16
    %v1501 = vpop.permute.xlu0 %1500
    %1502 = vrot.lane.b32.xlu0 %v1349, 16
    %v1503 = vpop.permute.xlu0 %1502
    %1504 = vrot.lane.b32.xlu0 %v1350, 16
    %v1505 = vpop.permute.xlu0 %1504
    %1506 = vrot.lane.b32.xlu0 %v1351, 16
    %v1507 = vpop.permute.xlu0 %1506
    %1508 = vrot.lane.b32.xlu0 %v1352, 16
    %v1509 = vpop.permute.xlu0 %1508
    %1510 = vrot.lane.b32.xlu0 %v1353, 16
    %v1511 = vpop.permute.xlu0 %1510
    %1512 = vrot.lane.b32.xlu0 %v1354, 16
    %v1513 = vpop.permute.xlu0 %1512
    %1514 = vrot.lane.b32.xlu0 %v1355, 16
    %v1515 = vpop.permute.xlu0 %1514
    %1516 = vrot.lane.b32.xlu0 %v1356, 16
    %v1517 = vpop.permute.xlu0 %1516
    %1518 = vrot.lane.b32.xlu0 %v1357, 16
    %v1519 = vpop.permute.xlu0 %1518
    %1520 = vrot.lane.b32.xlu0 %v1358, 16
    %v1521 = vpop.permute.xlu0 %1520
    %1522 = vrot.lane.b32.xlu0 %v1359, 16
    %v1523 = vpop.permute.xlu0 %1522
    %1524 = vrot.lane.b32.xlu0 %v1360, 16
    %v1525 = vpop.permute.xlu0 %1524
    %1526 = vrot.lane.b32.xlu0 %v1361, 16
    %v1527 = vpop.permute.xlu0 %1526
    %1528 = vrot.lane.b32.xlu0 %v1362, 16
    %v1529 = vpop.permute.xlu0 %1528
    %1530 = vrot.lane.b32.xlu0 %v1363, 16
    %v1531 = vpop.permute.xlu0 %1530
    %1532 = vrot.lane.b32.xlu0 %v1364, 16
    %v1533 = vpop.permute.xlu0 %1532
    %1534 = vrot.lane.b32.xlu0 %v1365, 16
    %v1535 = vpop.permute.xlu0 %1534
    %1536 = vrot.lane.b32.xlu0 %v1366, 16
    %v1537 = vpop.permute.xlu0 %1536
    %1538 = vrot.lane.b32.xlu0 %v1367, 16
    %v1539 = vpop.permute.xlu0 %1538
    %1540 = vrot.lane.b32.xlu0 %v1368, 16
    %v1541 = vpop.permute.xlu0 %1540
    %1542 = vrot.lane.b32.xlu0 %v1369, 16
    %v1543 = vpop.permute.xlu0 %1542
    %1544 = vrot.lane.b32.xlu0 %v1370, 16
    %v1545 = vpop.permute.xlu0 %1544
    %1546 = vrot.lane.b32.xlu0 %v1371, 16
    %v1547 = vpop.permute.xlu0 %1546
    %1548 = vrot.lane.b32.xlu0 %v1372, 16
    %v1549 = vpop.permute.xlu0 %1548
    %1550 = vrot.lane.b32.xlu0 %v1373, 16
    %v1551 = vpop.permute.xlu0 %1550
    %1552 = vrot.lane.b32.xlu0 %v1374, 16
    %v1553 = vpop.permute.xlu0 %1552
    %1554 = vrot.lane.b32.xlu0 %v1375, 16
    %v1555 = vpop.permute.xlu0 %1554
    %1556 = vrot.lane.b32.xlu0 %v1376, 16
    %v1557 = vpop.permute.xlu0 %1556
    %1558 = vrot.lane.b32.xlu0 %v1377, 16
    %v1559 = vpop.permute.xlu0 %1558
    %1560 = vrot.lane.b32.xlu0 %v1378, 16
    %v1561 = vpop.permute.xlu0 %1560
    %1562 = vrot.lane.b32.xlu0 %v1379, 16
    %v1563 = vpop.permute.xlu0 %1562
    %1564 = vrot.lane.b32.xlu0 %v1380, 16
    %v1565 = vpop.permute.xlu0 %1564
    %1566 = vrot.lane.b32.xlu0 %v1381, 16
    %v1567 = vpop.permute.xlu0 %1566
    %1568 = vrot.lane.b32.xlu0 %v1382, 16
    %v1569 = vpop.permute.xlu0 %1568
    %1570 = vrot.lane.b32.xlu0 %v1383, 16
    %v1571 = vpop.permute.xlu0 %1570
    %1572 = vrot.lane.b32.xlu0 %v1384, 16
    %v1573 = vpop.permute.xlu0 %1572
    %1574 = vrot.lane.b32.xlu0 %v1385, 16
    %v1575 = vpop.permute.xlu0 %1574
    %1576 = vrot.lane.b32.xlu0 %v1386, 16
    %v1577 = vpop.permute.xlu0 %1576
    %1578 = vrot.lane.b32.xlu0 %v1387, 16
    %v1579 = vpop.permute.xlu0 %1578
    %vm1644 = vcmask 162944
    %1645 = vst.msk [vmem:[#allocation2] sm:$0xff] %vm1644, %v1453
    %1646 = vst.msk [vmem:[#allocation2 + $0x8] sm:$0xff] %vm1644, %v1455
    %1647 = vst.msk [vmem:[#allocation2 + $0x10] sm:$0xff] %vm1644, %v1457
    %1648 = vst.msk [vmem:[#allocation2 + $0x18] sm:$0xff] %vm1644, %v1459
    %1649 = vst.msk [vmem:[#allocation2 + $0x20] sm:$0xff] %vm1644, %v1461
    %1650 = vst.msk [vmem:[#allocation2 + $0x28] sm:$0xff] %vm1644, %v1463
    %1651 = vst.msk [vmem:[#allocation2 + $0x30] sm:$0xff] %vm1644, %v1465
    %1652 = vst.msk [vmem:[#allocation2 + $0x38] sm:$0xff] %vm1644, %v1467
    %1653 = vst.msk [vmem:[#allocation2 + $0x40] sm:$0xff] %vm1644, %v1469
    %1654 = vst.msk [vmem:[#allocation2 + $0x48] sm:$0xff] %vm1644, %v1471
    %1655 = vst.msk [vmem:[#allocation2 + $0x50] sm:$0xff] %vm1644, %v1473
    %1656 = vst.msk [vmem:[#allocation2 + $0x58] sm:$0xff] %vm1644, %v1475
    %1657 = vst.msk [vmem:[#allocation2 + $0x60] sm:$0xff] %vm1644, %v1477
    %1658 = vst.msk [vmem:[#allocation2 + $0x68] sm:$0xff] %vm1644, %v1479
    %1659 = vst.msk [vmem:[#allocation2 + $0x70] sm:$0xff] %vm1644, %v1481
    %1660 = vst.msk [vmem:[#allocation2 + $0x78] sm:$0xff] %vm1644, %v1483
    %1661 = vst.msk [vmem:[#allocation2 + $0x80] sm:$0xff] %vm1644, %v1485
    %1662 = vst.msk [vmem:[#allocation2 + $0x88] sm:$0xff] %vm1644, %v1487
    %1663 = vst.msk [vmem:[#allocation2 + $0x90] sm:$0xff] %vm1644, %v1489
    %1664 = vst.msk [vmem:[#allocation2 + $0x98] sm:$0xff] %vm1644, %v1491
    %1665 = vst.msk [vmem:[#allocation2 + $0xa0] sm:$0xff] %vm1644, %v1493
    %1666 = vst.msk [vmem:[#allocation2 + $0xa8] sm:$0xff] %vm1644, %v1495
    %1667 = vst.msk [vmem:[#allocation2 + $0xb0] sm:$0xff] %vm1644, %v1497
    %1668 = vst.msk [vmem:[#allocation2 + $0xb8] sm:$0xff] %vm1644, %v1499
    %1669 = vst.msk [vmem:[#allocation2 + $0xc0] sm:$0xff] %vm1644, %v1501
    %1670 = vst.msk [vmem:[#allocation2 + $0xc8] sm:$0xff] %vm1644, %v1503
    %1671 = vst.msk [vmem:[#allocation2 + $0xd0] sm:$0xff] %vm1644, %v1505
    %1672 = vst.msk [vmem:[#allocation2 + $0xd8] sm:$0xff] %vm1644, %v1507
    %1673 = vst.msk [vmem:[#allocation2 + $0xe0] sm:$0xff] %vm1644, %v1509
    %1674 = vst.msk [vmem:[#allocation2 + $0xe8] sm:$0xff] %vm1644, %v1511
    %1675 = vst.msk [vmem:[#allocation2 + $0xf0] sm:$0xff] %vm1644, %v1513
    %1676 = vst.msk [vmem:[#allocation2 + $0xf8] sm:$0xff] %vm1644, %v1515
    %1677 = vst.msk [vmem:[#allocation2 + $0x100] sm:$0xff] %vm1644, %v1517
    %1678 = vst.msk [vmem:[#allocation2 + $0x108] sm:$0xff] %vm1644, %v1519
    %1679 = vst.msk [vmem:[#allocation2 + $0x110] sm:$0xff] %vm1644, %v1521
    %1680 = vst.msk [vmem:[#allocation2 + $0x118] sm:$0xff] %vm1644, %v1523
    %1681 = vst.msk [vmem:[#allocation2 + $0x120] sm:$0xff] %vm1644, %v1525
    %1682 = vst.msk [vmem:[#allocation2 + $0x128] sm:$0xff] %vm1644, %v1527
    %1683 = vst.msk [vmem:[#allocation2 + $0x130] sm:$0xff] %vm1644, %v1529
    %1684 = vst.msk [vmem:[#allocation2 + $0x138] sm:$0xff] %vm1644, %v1531
    %1685 = vst.msk [vmem:[#allocation2 + $0x140] sm:$0xff] %vm1644, %v1533
    %1686 = vst.msk [vmem:[#allocation2 + $0x148] sm:$0xff] %vm1644, %v1535
    %1687 = vst.msk [vmem:[#allocation2 + $0x150] sm:$0xff] %vm1644, %v1537
    %1688 = vst.msk [vmem:[#allocation2 + $0x158] sm:$0xff] %vm1644, %v1539
    %1689 = vst.msk [vmem:[#allocation2 + $0x160] sm:$0xff] %vm1644, %v1541
    %1690 = vst.msk [vmem:[#allocation2 + $0x168] sm:$0xff] %vm1644, %v1543
    %1691 = vst.msk [vmem:[#allocation2 + $0x170] sm:$0xff] %vm1644, %v1545
    %1692 = vst.msk [vmem:[#allocation2 + $0x178] sm:$0xff] %vm1644, %v1547
    %1693 = vst.msk [vmem:[#allocation2 + $0x180] sm:$0xff] %vm1644, %v1549
    %1694 = vst.msk [vmem:[#allocation2 + $0x188] sm:$0xff] %vm1644, %v1551
    %1695 = vst.msk [vmem:[#allocation2 + $0x190] sm:$0xff] %vm1644, %v1553
    %1696 = vst.msk [vmem:[#allocation2 + $0x198] sm:$0xff] %vm1644, %v1555
    %1697 = vst.msk [vmem:[#allocation2 + $0x1a0] sm:$0xff] %vm1644, %v1557
    %1698 = vst.msk [vmem:[#allocation2 + $0x1a8] sm:$0xff] %vm1644, %v1559
    %1699 = vst.msk [vmem:[#allocation2 + $0x1b0] sm:$0xff] %vm1644, %v1561
    %1700 = vst.msk [vmem:[#allocation2 + $0x1b8] sm:$0xff] %vm1644, %v1563
    %1701 = vst.msk [vmem:[#allocation2 + $0x1c0] sm:$0xff] %vm1644, %v1565
    %1702 = vst.msk [vmem:[#allocation2 + $0x1c8] sm:$0xff] %vm1644, %v1567
    %1703 = vst.msk [vmem:[#allocation2 + $0x1d0] sm:$0xff] %vm1644, %v1569
    %1704 = vst.msk [vmem:[#allocation2 + $0x1d8] sm:$0xff] %vm1644, %v1571
    %1705 = vst.msk [vmem:[#allocation2 + $0x1e0] sm:$0xff] %vm1644, %v1573
    %1706 = vst.msk [vmem:[#allocation2 + $0x1e8] sm:$0xff] %vm1644, %v1575
    %1707 = vst.msk [vmem:[#allocation2 + $0x1f0] sm:$0xff] %vm1644, %v1577
    %1708 = vst.msk [vmem:[#allocation2 + $0x1f8] sm:$0xff] %vm1644, %v1579
    %v1709 = vld [vmem:[%s938 + $0x2] sm:$0xff]
    %v1710 = vld [vmem:[%s938 + $0xa] sm:$0xff]
    %v1711 = vld [vmem:[%s938 + $0x1a] sm:$0xff]
    %v1712 = vld [vmem:[%s938 + $0x22] sm:$0xff]
    %v1713 = vld [vmem:[%s938 + $0x32] sm:$0xff]
    %v1714 = vld [vmem:[%s938 + $0x3a] sm:$0xff]
    %v1715 = vld [vmem:[%s938 + $0x4a] sm:$0xff]
    %v1716 = vld [vmem:[%s938 + $0x52] sm:$0xff]
    %v1717 = vld [vmem:[%s938 + $0x62] sm:$0xff]
    %v1718 = vld [vmem:[%s938 + $0x6a] sm:$0xff]
    %v1719 = vld [vmem:[%s938 + $0x7a] sm:$0xff]
    %v1720 = vld [vmem:[%s938 + $0x82] sm:$0xff]
    %v1721 = vld [vmem:[%s938 + $0x92] sm:$0xff]
    %v1722 = vld [vmem:[%s938 + $0x9a] sm:$0xff]
    %v1723 = vld [vmem:[%s938 + $0xaa] sm:$0xff]
    %v1724 = vld [vmem:[%s938 + $0xb2] sm:$0xff]
    %v1725 = vld [vmem:[%s938 + $0xc2] sm:$0xff]
    %v1726 = vld [vmem:[%s938 + $0xca] sm:$0xff]
    %v1727 = vld [vmem:[%s938 + $0xda] sm:$0xff]
    %v1728 = vld [vmem:[%s938 + $0xe2] sm:$0xff]
    %v1729 = vld [vmem:[%s938 + $0xf2] sm:$0xff]
    %v1730 = vld [vmem:[%s938 + $0xfa] sm:$0xff]
    %v1731 = vld [vmem:[%s938 + $0x10a] sm:$0xff]
    %v1732 = vld [vmem:[%s938 + $0x112] sm:$0xff]
    %v1733 = vld [vmem:[%s938 + $0x122] sm:$0xff]
    %v1734 = vld [vmem:[%s938 + $0x12a] sm:$0xff]
    %v1735 = vld [vmem:[%s938 + $0x13a] sm:$0xff]
    %v1736 = vld [vmem:[%s938 + $0x142] sm:$0xff]
    %v1737 = vld [vmem:[%s938 + $0x152] sm:$0xff]
    %v1738 = vld [vmem:[%s938 + $0x15a] sm:$0xff]
    %v1739 = vld [vmem:[%s938 + $0x16a] sm:$0xff]
    %v1740 = vld [vmem:[%s938 + $0x172] sm:$0xff]
    %v1741 = vld [vmem:[%s938 + $0x1b2] sm:$0xff]
    %v1742 = vld [vmem:[%s938 + $0x1ba] sm:$0xff]
    %v1743 = vld [vmem:[%s938 + $0x1ca] sm:$0xff]
    %v1744 = vld [vmem:[%s938 + $0x1d2] sm:$0xff]
    %v1745 = vld [vmem:[%s938 + $0x1e2] sm:$0xff]
    %v1746 = vld [vmem:[%s938 + $0x1ea] sm:$0xff]
    %v1747 = vld [vmem:[%s938 + $0x1fa] sm:$0xff]
    %v1748 = vld [vmem:[%s938 + $0x202] sm:$0xff]
    %v1749 = vld [vmem:[%s938 + $0x212] sm:$0xff]
    %v1750 = vld [vmem:[%s938 + $0x21a] sm:$0xff]
    %v1751 = vld [vmem:[%s938 + $0x22a] sm:$0xff]
    %v1752 = vld [vmem:[%s938 + $0x232] sm:$0xff]
    %v1753 = vld [vmem:[%s938 + $0x242] sm:$0xff]
    %v1754 = vld [vmem:[%s938 + $0x24a] sm:$0xff]
    %v1755 = vld [vmem:[%s938 + $0x25a] sm:$0xff]
    %v1756 = vld [vmem:[%s938 + $0x262] sm:$0xff]
    %v1757 = vld [vmem:[%s938 + $0x272] sm:$0xff]
    %v1758 = vld [vmem:[%s938 + $0x27a] sm:$0xff]
    %v1759 = vld [vmem:[%s938 + $0x28a] sm:$0xff]
    %v1760 = vld [vmem:[%s938 + $0x292] sm:$0xff]
    %v1761 = vld [vmem:[%s938 + $0x2a2] sm:$0xff]
    %v1762 = vld [vmem:[%s938 + $0x2aa] sm:$0xff]
    %v1763 = vld [vmem:[%s938 + $0x2ba] sm:$0xff]
    %v1764 = vld [vmem:[%s938 + $0x2c2] sm:$0xff]
    %v1765 = vld [vmem:[%s938 + $0x2d2] sm:$0xff]
    %v1766 = vld [vmem:[%s938 + $0x2da] sm:$0xff]
    %v1767 = vld [vmem:[%s938 + $0x2ea] sm:$0xff]
    %v1768 = vld [vmem:[%s938 + $0x2f2] sm:$0xff]
    %v1769 = vld [vmem:[%s938 + $0x302] sm:$0xff]
    %v1770 = vld [vmem:[%s938 + $0x30a] sm:$0xff]
    %v1771 = vld [vmem:[%s938 + $0x31a] sm:$0xff]
    %v1772 = vld [vmem:[%s938 + $0x322] sm:$0xff]
    %1837 = vrot.lane.b32.xlu0 %v1709, 20
    %v1838 = vpop.permute.xlu0 %1837
    %1839 = vrot.lane.b32.xlu0 %v1710, 20
    %v1840 = vpop.permute.xlu0 %1839
    %1841 = vrot.lane.b32.xlu0 %v1711, 20
    %v1842 = vpop.permute.xlu0 %1841
    %1843 = vrot.lane.b32.xlu0 %v1712, 20
    %v1844 = vpop.permute.xlu0 %1843
    %1845 = vrot.lane.b32.xlu0 %v1713, 20
    %v1846 = vpop.permute.xlu0 %1845
    %1847 = vrot.lane.b32.xlu0 %v1714, 20
    %v1848 = vpop.permute.xlu0 %1847
    %1849 = vrot.lane.b32.xlu0 %v1715, 20
    %v1850 = vpop.permute.xlu0 %1849
    %1851 = vrot.lane.b32.xlu0 %v1716, 20
    %v1852 = vpop.permute.xlu0 %1851
    %1853 = vrot.lane.b32.xlu0 %v1717, 20
    %v1854 = vpop.permute.xlu0 %1853
    %1855 = vrot.lane.b32.xlu0 %v1718, 20
    %v1856 = vpop.permute.xlu0 %1855
    %1857 = vrot.lane.b32.xlu0 %v1719, 20
    %v1858 = vpop.permute.xlu0 %1857
    %1859 = vrot.lane.b32.xlu0 %v1720, 20
    %v1860 = vpop.permute.xlu0 %1859
    %1861 = vrot.lane.b32.xlu0 %v1721, 20
    %v1862 = vpop.permute.xlu0 %1861
    %1863 = vrot.lane.b32.xlu0 %v1722, 20
    %v1864 = vpop.permute.xlu0 %1863
    %1865 = vrot.lane.b32.xlu0 %v1723, 20
    %v1866 = vpop.permute.xlu0 %1865
    %1867 = vrot.lane.b32.xlu0 %v1724, 20
    %v1868 = vpop.permute.xlu0 %1867
    %1869 = vrot.lane.b32.xlu0 %v1725, 20
    %v1870 = vpop.permute.xlu0 %1869
    %1871 = vrot.lane.b32.xlu0 %v1726, 20
    %v1872 = vpop.permute.xlu0 %1871
    %1873 = vrot.lane.b32.xlu0 %v1727, 20
    %v1874 = vpop.permute.xlu0 %1873
    %1875 = vrot.lane.b32.xlu0 %v1728, 20
    %v1876 = vpop.permute.xlu0 %1875
    %1877 = vrot.lane.b32.xlu0 %v1729, 20
    %v1878 = vpop.permute.xlu0 %1877
    %1879 = vrot.lane.b32.xlu0 %v1730, 20
    %v1880 = vpop.permute.xlu0 %1879
    %1881 = vrot.lane.b32.xlu0 %v1731, 20
    %v1882 = vpop.permute.xlu0 %1881
    %1883 = vrot.lane.b32.xlu0 %v1732, 20
    %v1884 = vpop.permute.xlu0 %1883
    %1885 = vrot.lane.b32.xlu0 %v1733, 20
    %v1886 = vpop.permute.xlu0 %1885
    %1887 = vrot.lane.b32.xlu0 %v1734, 20
    %v1888 = vpop.permute.xlu0 %1887
    %1889 = vrot.lane.b32.xlu0 %v1735, 20
    %v1890 = vpop.permute.xlu0 %1889
    %1891 = vrot.lane.b32.xlu0 %v1736, 20
    %v1892 = vpop.permute.xlu0 %1891
    %1893 = vrot.lane.b32.xlu0 %v1737, 20
    %v1894 = vpop.permute.xlu0 %1893
    %1895 = vrot.lane.b32.xlu0 %v1738, 20
    %v1896 = vpop.permute.xlu0 %1895
    %1897 = vrot.lane.b32.xlu0 %v1739, 20
    %v1898 = vpop.permute.xlu0 %1897
    %1899 = vrot.lane.b32.xlu0 %v1740, 20
    %v1900 = vpop.permute.xlu0 %1899
    %1901 = vrot.lane.b32.xlu0 %v1741, 20
    %v1902 = vpop.permute.xlu0 %1901
    %1903 = vrot.lane.b32.xlu0 %v1742, 20
    %v1904 = vpop.permute.xlu0 %1903
    %1905 = vrot.lane.b32.xlu0 %v1743, 20
    %v1906 = vpop.permute.xlu0 %1905
    %1907 = vrot.lane.b32.xlu0 %v1744, 20
    %v1908 = vpop.permute.xlu0 %1907
    %1909 = vrot.lane.b32.xlu0 %v1745, 20
    %v1910 = vpop.permute.xlu0 %1909
    %1911 = vrot.lane.b32.xlu0 %v1746, 20
    %v1912 = vpop.permute.xlu0 %1911
    %1913 = vrot.lane.b32.xlu0 %v1747, 20
    %v1914 = vpop.permute.xlu0 %1913
    %1915 = vrot.lane.b32.xlu0 %v1748, 20
    %v1916 = vpop.permute.xlu0 %1915
    %1917 = vrot.lane.b32.xlu0 %v1749, 20
    %v1918 = vpop.permute.xlu0 %1917
    %1919 = vrot.lane.b32.xlu0 %v1750, 20
    %v1920 = vpop.permute.xlu0 %1919
    %1921 = vrot.lane.b32.xlu0 %v1751, 20
    %v1922 = vpop.permute.xlu0 %1921
    %1923 = vrot.lane.b32.xlu0 %v1752, 20
    %v1924 = vpop.permute.xlu0 %1923
    %1925 = vrot.lane.b32.xlu0 %v1753, 20
    %v1926 = vpop.permute.xlu0 %1925
    %1927 = vrot.lane.b32.xlu0 %v1754, 20
    %v1928 = vpop.permute.xlu0 %1927
    %1929 = vrot.lane.b32.xlu0 %v1755, 20
    %v1930 = vpop.permute.xlu0 %1929
    %1931 = vrot.lane.b32.xlu0 %v1756, 20
    %v1932 = vpop.permute.xlu0 %1931
    %1933 = vrot.lane.b32.xlu0 %v1757, 20
    %v1934 = vpop.permute.xlu0 %1933
    %1935 = vrot.lane.b32.xlu0 %v1758, 20
    %v1936 = vpop.permute.xlu0 %1935
    %1937 = vrot.lane.b32.xlu0 %v1759, 20
    %v1938 = vpop.permute.xlu0 %1937
    %1939 = vrot.lane.b32.xlu0 %v1760, 20
    %v1940 = vpop.permute.xlu0 %1939
    %1941 = vrot.lane.b32.xlu0 %v1761, 20
    %v1942 = vpop.permute.xlu0 %1941
    %1943 = vrot.lane.b32.xlu0 %v1762, 20
    %v1944 = vpop.permute.xlu0 %1943
    %1945 = vrot.lane.b32.xlu0 %v1763, 20
    %v1946 = vpop.permute.xlu0 %1945
    %1947 = vrot.lane.b32.xlu0 %v1764, 20
    %v1948 = vpop.permute.xlu0 %1947
    %1949 = vrot.lane.b32.xlu0 %v1765, 20
    %v1950 = vpop.permute.xlu0 %1949
    %1951 = vrot.lane.b32.xlu0 %v1766, 20
    %v1952 = vpop.permute.xlu0 %1951
    %1953 = vrot.lane.b32.xlu0 %v1767, 20
    %v1954 = vpop.permute.xlu0 %1953
    %1955 = vrot.lane.b32.xlu0 %v1768, 20
    %v1956 = vpop.permute.xlu0 %1955
    %1957 = vrot.lane.b32.xlu0 %v1769, 20
    %v1958 = vpop.permute.xlu0 %1957
    %1959 = vrot.lane.b32.xlu0 %v1770, 20
    %v1960 = vpop.permute.xlu0 %1959
    %1961 = vrot.lane.b32.xlu0 %v1771, 20
    %v1962 = vpop.permute.xlu0 %1961
    %1963 = vrot.lane.b32.xlu0 %v1772, 20
    %v1964 = vpop.permute.xlu0 %1963
    %vm2029 = vcmask 195744
    %2030 = vst.msk [vmem:[#allocation2] sm:$0xff] %vm2029, %v1838
    %2031 = vst.msk [vmem:[#allocation2 + $0x8] sm:$0xff] %vm2029, %v1840
    %2032 = vst.msk [vmem:[#allocation2 + $0x10] sm:$0xff] %vm2029, %v1842
    %2033 = vst.msk [vmem:[#allocation2 + $0x18] sm:$0xff] %vm2029, %v1844
    %2034 = vst.msk [vmem:[#allocation2 + $0x20] sm:$0xff] %vm2029, %v1846
    %2035 = vst.msk [vmem:[#allocation2 + $0x28] sm:$0xff] %vm2029, %v1848
    %2036 = vst.msk [vmem:[#allocation2 + $0x30] sm:$0xff] %vm2029, %v1850
    %2037 = vst.msk [vmem:[#allocation2 + $0x38] sm:$0xff] %vm2029, %v1852
    %2038 = vst.msk [vmem:[#allocation2 + $0x40] sm:$0xff] %vm2029, %v1854
    %2039 = vst.msk [vmem:[#allocation2 + $0x48] sm:$0xff] %vm2029, %v1856
    %2040 = vst.msk [vmem:[#allocation2 + $0x50] sm:$0xff] %vm2029, %v1858
    %2041 = vst.msk [vmem:[#allocation2 + $0x58] sm:$0xff] %vm2029, %v1860
    %2042 = vst.msk [vmem:[#allocation2 + $0x60] sm:$0xff] %vm2029, %v1862
    %2043 = vst.msk [vmem:[#allocation2 + $0x68] sm:$0xff] %vm2029, %v1864
    %2044 = vst.msk [vmem:[#allocation2 + $0x70] sm:$0xff] %vm2029, %v1866
    %2045 = vst.msk [vmem:[#allocation2 + $0x78] sm:$0xff] %vm2029, %v1868
    %2046 = vst.msk [vmem:[#allocation2 + $0x80] sm:$0xff] %vm2029, %v1870
    %2047 = vst.msk [vmem:[#allocation2 + $0x88] sm:$0xff] %vm2029, %v1872
    %2048 = vst.msk [vmem:[#allocation2 + $0x90] sm:$0xff] %vm2029, %v1874
    %2049 = vst.msk [vmem:[#allocation2 + $0x98] sm:$0xff] %vm2029, %v1876
    %2050 = vst.msk [vmem:[#allocation2 + $0xa0] sm:$0xff] %vm2029, %v1878
    %2051 = vst.msk [vmem:[#allocation2 + $0xa8] sm:$0xff] %vm2029, %v1880
    %2052 = vst.msk [vmem:[#allocation2 + $0xb0] sm:$0xff] %vm2029, %v1882
    %2053 = vst.msk [vmem:[#allocation2 + $0xb8] sm:$0xff] %vm2029, %v1884
    %2054 = vst.msk [vmem:[#allocation2 + $0xc0] sm:$0xff] %vm2029, %v1886
    %2055 = vst.msk [vmem:[#allocation2 + $0xc8] sm:$0xff] %vm2029, %v1888
    %2056 = vst.msk [vmem:[#allocation2 + $0xd0] sm:$0xff] %vm2029, %v1890
    %2057 = vst.msk [vmem:[#allocation2 + $0xd8] sm:$0xff] %vm2029, %v1892
    %2058 = vst.msk [vmem:[#allocation2 + $0xe0] sm:$0xff] %vm2029, %v1894
    %2059 = vst.msk [vmem:[#allocation2 + $0xe8] sm:$0xff] %vm2029, %v1896
    %2060 = vst.msk [vmem:[#allocation2 + $0xf0] sm:$0xff] %vm2029, %v1898
    %2061 = vst.msk [vmem:[#allocation2 + $0xf8] sm:$0xff] %vm2029, %v1900
    %2062 = vst.msk [vmem:[#allocation2 + $0x100] sm:$0xff] %vm2029, %v1902
    %2063 = vst.msk [vmem:[#allocation2 + $0x108] sm:$0xff] %vm2029, %v1904
    %2064 = vst.msk [vmem:[#allocation2 + $0x110] sm:$0xff] %vm2029, %v1906
    %2065 = vst.msk [vmem:[#allocation2 + $0x118] sm:$0xff] %vm2029, %v1908
    %2066 = vst.msk [vmem:[#allocation2 + $0x120] sm:$0xff] %vm2029, %v1910
    %2067 = vst.msk [vmem:[#allocation2 + $0x128] sm:$0xff] %vm2029, %v1912
    %2068 = vst.msk [vmem:[#allocation2 + $0x130] sm:$0xff] %vm2029, %v1914
    %2069 = vst.msk [vmem:[#allocation2 + $0x138] sm:$0xff] %vm2029, %v1916
    %2070 = vst.msk [vmem:[#allocation2 + $0x140] sm:$0xff] %vm2029, %v1918
    %2071 = vst.msk [vmem:[#allocation2 + $0x148] sm:$0xff] %vm2029, %v1920
    %2072 = vst.msk [vmem:[#allocation2 + $0x150] sm:$0xff] %vm2029, %v1922
    %2073 = vst.msk [vmem:[#allocation2 + $0x158] sm:$0xff] %vm2029, %v1924
    %2074 = vst.msk [vmem:[#allocation2 + $0x160] sm:$0xff] %vm2029, %v1926
    %2075 = vst.msk [vmem:[#allocation2 + $0x168] sm:$0xff] %vm2029, %v1928
    %2076 = vst.msk [vmem:[#allocation2 + $0x170] sm:$0xff] %vm2029, %v1930
    %2077 = vst.msk [vmem:[#allocation2 + $0x178] sm:$0xff] %vm2029, %v1932
    %2078 = vst.msk [vmem:[#allocation2 + $0x180] sm:$0xff] %vm2029, %v1934
    %2079 = vst.msk [vmem:[#allocation2 + $0x188] sm:$0xff] %vm2029, %v1936
    %2080 = vst.msk [vmem:[#allocation2 + $0x190] sm:$0xff] %vm2029, %v1938
    %2081 = vst.msk [vmem:[#allocation2 + $0x198] sm:$0xff] %vm2029, %v1940
    %2082 = vst.msk [vmem:[#allocation2 + $0x1a0] sm:$0xff] %vm2029, %v1942
    %2083 = vst.msk [vmem:[#allocation2 + $0x1a8] sm:$0xff] %vm2029, %v1944
    %2084 = vst.msk [vmem:[#allocation2 + $0x1b0] sm:$0xff] %vm2029, %v1946
    %2085 = vst.msk [vmem:[#allocation2 + $0x1b8] sm:$0xff] %vm2029, %v1948
    %2086 = vst.msk [vmem:[#allocation2 + $0x1c0] sm:$0xff] %vm2029, %v1950
    %2087 = vst.msk [vmem:[#allocation2 + $0x1c8] sm:$0xff] %vm2029, %v1952
    %2088 = vst.msk [vmem:[#allocation2 + $0x1d0] sm:$0xff] %vm2029, %v1954
    %2089 = vst.msk [vmem:[#allocation2 + $0x1d8] sm:$0xff] %vm2029, %v1956
    %2090 = vst.msk [vmem:[#allocation2 + $0x1e0] sm:$0xff] %vm2029, %v1958
    %2091 = vst.msk [vmem:[#allocation2 + $0x1e8] sm:$0xff] %vm2029, %v1960
    %2092 = vst.msk [vmem:[#allocation2 + $0x1f0] sm:$0xff] %vm2029, %v1962
    %2093 = vst.msk [vmem:[#allocation2 + $0x1f8] sm:$0xff] %vm2029, %v1964
    %s2094 = scalar_lea.vmem %s0, 48
    %v2095 = vld [vmem:[%s2094] sm:$0xff]
    %v2096 = vld [vmem:[%s2094 + $0x8] sm:$0xff]
    %v2097 = vld [vmem:[%s2094 + $0x18] sm:$0xff]
    %v2098 = vld [vmem:[%s2094 + $0x20] sm:$0xff]
    %v2099 = vld [vmem:[%s2094 + $0x30] sm:$0xff]
    %v2100 = vld [vmem:[%s2094 + $0x38] sm:$0xff]
    %v2101 = vld [vmem:[%s2094 + $0x48] sm:$0xff]
    %v2102 = vld [vmem:[%s2094 + $0x50] sm:$0xff]
    %v2103 = vld [vmem:[%s2094 + $0x60] sm:$0xff]
    %v2104 = vld [vmem:[%s2094 + $0x68] sm:$0xff]
    %v2105 = vld [vmem:[%s2094 + $0x78] sm:$0xff]
    %v2106 = vld [vmem:[%s2094 + $0x80] sm:$0xff]
    %v2107 = vld [vmem:[%s2094 + $0x90] sm:$0xff]
    %v2108 = vld [vmem:[%s2094 + $0x98] sm:$0xff]
    %v2109 = vld [vmem:[%s2094 + $0xa8] sm:$0xff]
    %v2110 = vld [vmem:[%s2094 + $0xb0] sm:$0xff]
    %v2111 = vld [vmem:[%s2094 + $0xc0] sm:$0xff]
    %v2112 = vld [vmem:[%s2094 + $0xc8] sm:$0xff]
    %v2113 = vld [vmem:[%s2094 + $0xd8] sm:$0xff]
    %v2114 = vld [vmem:[%s2094 + $0xe0] sm:$0xff]
    %v2115 = vld [vmem:[%s2094 + $0xf0] sm:$0xff]
    %v2116 = vld [vmem:[%s2094 + $0xf8] sm:$0xff]
    %v2117 = vld [vmem:[%s2094 + $0x108] sm:$0xff]
    %v2118 = vld [vmem:[%s2094 + $0x110] sm:$0xff]
    %v2119 = vld [vmem:[%s2094 + $0x120] sm:$0xff]
    %v2120 = vld [vmem:[%s2094 + $0x128] sm:$0xff]
    %v2121 = vld [vmem:[%s2094 + $0x138] sm:$0xff]
    %v2122 = vld [vmem:[%s2094 + $0x140] sm:$0xff]
    %v2123 = vld [vmem:[%s2094 + $0x150] sm:$0xff]
    %v2124 = vld [vmem:[%s2094 + $0x158] sm:$0xff]
    %v2125 = vld [vmem:[%s2094 + $0x168] sm:$0xff]
    %v2126 = vld [vmem:[%s2094 + $0x170] sm:$0xff]
    %v2127 = vld [vmem:[%s2094 + $0x1b0] sm:$0xff]
    %v2128 = vld [vmem:[%s2094 + $0x1b8] sm:$0xff]
    %v2129 = vld [vmem:[%s2094 + $0x1c8] sm:$0xff]
    %v2130 = vld [vmem:[%s2094 + $0x1d0] sm:$0xff]
    %v2131 = vld [vmem:[%s2094 + $0x1e0] sm:$0xff]
    %v2132 = vld [vmem:[%s2094 + $0x1e8] sm:$0xff]
    %v2133 = vld [vmem:[%s2094 + $0x1f8] sm:$0xff]
    %v2134 = vld [vmem:[%s2094 + $0x200] sm:$0xff]
    %v2135 = vld [vmem:[%s2094 + $0x210] sm:$0xff]
    %v2136 = vld [vmem:[%s2094 + $0x218] sm:$0xff]
    %v2137 = vld [vmem:[%s2094 + $0x228] sm:$0xff]
    %v2138 = vld [vmem:[%s2094 + $0x230] sm:$0xff]
    %v2139 = vld [vmem:[%s2094 + $0x240] sm:$0xff]
    %v2140 = vld [vmem:[%s2094 + $0x248] sm:$0xff]
    %v2141 = vld [vmem:[%s2094 + $0x258] sm:$0xff]
    %v2142 = vld [vmem:[%s2094 + $0x260] sm:$0xff]
    %v2143 = vld [vmem:[%s2094 + $0x270] sm:$0xff]
    %v2144 = vld [vmem:[%s2094 + $0x278] sm:$0xff]
    %v2145 = vld [vmem:[%s2094 + $0x288] sm:$0xff]
    %v2146 = vld [vmem:[%s2094 + $0x290] sm:$0xff]
    %v2147 = vld [vmem:[%s2094 + $0x2a0] sm:$0xff]
    %v2148 = vld [vmem:[%s2094 + $0x2a8] sm:$0xff]
    %v2149 = vld [vmem:[%s2094 + $0x2b8] sm:$0xff]
    %v2150 = vld [vmem:[%s2094 + $0x2c0] sm:$0xff]
    %v2151 = vld [vmem:[%s2094 + $0x2d0] sm:$0xff]
    %v2152 = vld [vmem:[%s2094 + $0x2d8] sm:$0xff]
    %v2153 = vld [vmem:[%s2094 + $0x2e8] sm:$0xff]
    %v2154 = vld [vmem:[%s2094 + $0x2f0] sm:$0xff]
    %v2155 = vld [vmem:[%s2094 + $0x300] sm:$0xff]
    %v2156 = vld [vmem:[%s2094 + $0x308] sm:$0xff]
    %v2157 = vld [vmem:[%s2094 + $0x318] sm:$0xff]
    %v2158 = vld [vmem:[%s2094 + $0x320] sm:$0xff]
    %2223 = vrot.lane.b32.xlu0 %v2095, 24
    %v2224 = vpop.permute.xlu0 %2223
    %2225 = vrot.lane.b32.xlu0 %v2096, 24
    %v2226 = vpop.permute.xlu0 %2225
    %2227 = vrot.lane.b32.xlu0 %v2097, 24
    %v2228 = vpop.permute.xlu0 %2227
    %2229 = vrot.lane.b32.xlu0 %v2098, 24
    %v2230 = vpop.permute.xlu0 %2229
    %2231 = vrot.lane.b32.xlu0 %v2099, 24
    %v2232 = vpop.permute.xlu0 %2231
    %2233 = vrot.lane.b32.xlu0 %v2100, 24
    %v2234 = vpop.permute.xlu0 %2233
    %2235 = vrot.lane.b32.xlu0 %v2101, 24
    %v2236 = vpop.permute.xlu0 %2235
    %2237 = vrot.lane.b32.xlu0 %v2102, 24
    %v2238 = vpop.permute.xlu0 %2237
    %2239 = vrot.lane.b32.xlu0 %v2103, 24
    %v2240 = vpop.permute.xlu0 %2239
    %2241 = vrot.lane.b32.xlu0 %v2104, 24
    %v2242 = vpop.permute.xlu0 %2241
    %2243 = vrot.lane.b32.xlu0 %v2105, 24
    %v2244 = vpop.permute.xlu0 %2243
    %2245 = vrot.lane.b32.xlu0 %v2106, 24
    %v2246 = vpop.permute.xlu0 %2245
    %2247 = vrot.lane.b32.xlu0 %v2107, 24
    %v2248 = vpop.permute.xlu0 %2247
    %2249 = vrot.lane.b32.xlu0 %v2108, 24
    %v2250 = vpop.permute.xlu0 %2249
    %2251 = vrot.lane.b32.xlu0 %v2109, 24
    %v2252 = vpop.permute.xlu0 %2251
    %2253 = vrot.lane.b32.xlu0 %v2110, 24
    %v2254 = vpop.permute.xlu0 %2253
    %2255 = vrot.lane.b32.xlu0 %v2111, 24
    %v2256 = vpop.permute.xlu0 %2255
    %2257 = vrot.lane.b32.xlu0 %v2112, 24
    %v2258 = vpop.permute.xlu0 %2257
    %2259 = vrot.lane.b32.xlu0 %v2113, 24
    %v2260 = vpop.permute.xlu0 %2259
    %2261 = vrot.lane.b32.xlu0 %v2114, 24
    %v2262 = vpop.permute.xlu0 %2261
    %2263 = vrot.lane.b32.xlu0 %v2115, 24
    %v2264 = vpop.permute.xlu0 %2263
    %2265 = vrot.lane.b32.xlu0 %v2116, 24
    %v2266 = vpop.permute.xlu0 %2265
    %2267 = vrot.lane.b32.xlu0 %v2117, 24
    %v2268 = vpop.permute.xlu0 %2267
    %2269 = vrot.lane.b32.xlu0 %v2118, 24
    %v2270 = vpop.permute.xlu0 %2269
    %2271 = vrot.lane.b32.xlu0 %v2119, 24
    %v2272 = vpop.permute.xlu0 %2271
    %2273 = vrot.lane.b32.xlu0 %v2120, 24
    %v2274 = vpop.permute.xlu0 %2273
    %2275 = vrot.lane.b32.xlu0 %v2121, 24
    %v2276 = vpop.permute.xlu0 %2275
    %2277 = vrot.lane.b32.xlu0 %v2122, 24
    %v2278 = vpop.permute.xlu0 %2277
    %2279 = vrot.lane.b32.xlu0 %v2123, 24
    %v2280 = vpop.permute.xlu0 %2279
    %2281 = vrot.lane.b32.xlu0 %v2124, 24
    %v2282 = vpop.permute.xlu0 %2281
    %2283 = vrot.lane.b32.xlu0 %v2125, 24
    %v2284 = vpop.permute.xlu0 %2283
    %2285 = vrot.lane.b32.xlu0 %v2126, 24
    %v2286 = vpop.permute.xlu0 %2285
    %2287 = vrot.lane.b32.xlu0 %v2127, 24
    %v2288 = vpop.permute.xlu0 %2287
    %2289 = vrot.lane.b32.xlu0 %v2128, 24
    %v2290 = vpop.permute.xlu0 %2289
    %2291 = vrot.lane.b32.xlu0 %v2129, 24
    %v2292 = vpop.permute.xlu0 %2291
    %2293 = vrot.lane.b32.xlu0 %v2130, 24
    %v2294 = vpop.permute.xlu0 %2293
    %2295 = vrot.lane.b32.xlu0 %v2131, 24
    %v2296 = vpop.permute.xlu0 %2295
    %2297 = vrot.lane.b32.xlu0 %v2132, 24
    %v2298 = vpop.permute.xlu0 %2297
    %2299 = vrot.lane.b32.xlu0 %v2133, 24
    %v2300 = vpop.permute.xlu0 %2299
    %2301 = vrot.lane.b32.xlu0 %v2134, 24
    %v2302 = vpop.permute.xlu0 %2301
    %2303 = vrot.lane.b32.xlu0 %v2135, 24
    %v2304 = vpop.permute.xlu0 %2303
    %2305 = vrot.lane.b32.xlu0 %v2136, 24
    %v2306 = vpop.permute.xlu0 %2305
    %2307 = vrot.lane.b32.xlu0 %v2137, 24
    %v2308 = vpop.permute.xlu0 %2307
    %2309 = vrot.lane.b32.xlu0 %v2138, 24
    %v2310 = vpop.permute.xlu0 %2309
    %2311 = vrot.lane.b32.xlu0 %v2139, 24
    %v2312 = vpop.permute.xlu0 %2311
    %2313 = vrot.lane.b32.xlu0 %v2140, 24
    %v2314 = vpop.permute.xlu0 %2313
    %2315 = vrot.lane.b32.xlu0 %v2141, 24
    %v2316 = vpop.permute.xlu0 %2315
    %2317 = vrot.lane.b32.xlu0 %v2142, 24
    %v2318 = vpop.permute.xlu0 %2317
    %2319 = vrot.lane.b32.xlu0 %v2143, 24
    %v2320 = vpop.permute.xlu0 %2319
    %2321 = vrot.lane.b32.xlu0 %v2144, 24
    %v2322 = vpop.permute.xlu0 %2321
    %2323 = vrot.lane.b32.xlu0 %v2145, 24
    %v2324 = vpop.permute.xlu0 %2323
    %2325 = vrot.lane.b32.xlu0 %v2146, 24
    %v2326 = vpop.permute.xlu0 %2325
    %2327 = vrot.lane.b32.xlu0 %v2147, 24
    %v2328 = vpop.permute.xlu0 %2327
    %2329 = vrot.lane.b32.xlu0 %v2148, 24
    %v2330 = vpop.permute.xlu0 %2329
    %2331 = vrot.lane.b32.xlu0 %v2149, 24
    %v2332 = vpop.permute.xlu0 %2331
    %2333 = vrot.lane.b32.xlu0 %v2150, 24
    %v2334 = vpop.permute.xlu0 %2333
    %2335 = vrot.lane.b32.xlu0 %v2151, 24
    %v2336 = vpop.permute.xlu0 %2335
    %2337 = vrot.lane.b32.xlu0 %v2152, 24
    %v2338 = vpop.permute.xlu0 %2337
    %2339 = vrot.lane.b32.xlu0 %v2153, 24
    %v2340 = vpop.permute.xlu0 %2339
    %2341 = vrot.lane.b32.xlu0 %v2154, 24
    %v2342 = vpop.permute.xlu0 %2341
    %2343 = vrot.lane.b32.xlu0 %v2155, 24
    %v2344 = vpop.permute.xlu0 %2343
    %2345 = vrot.lane.b32.xlu0 %v2156, 24
    %v2346 = vpop.permute.xlu0 %2345
    %2347 = vrot.lane.b32.xlu0 %v2157, 24
    %v2348 = vpop.permute.xlu0 %2347
    %2349 = vrot.lane.b32.xlu0 %v2158, 24
    %v2350 = vpop.permute.xlu0 %2349
    %vm2415 = vcmask 228544
    %2416 = vst.msk [vmem:[#allocation2] sm:$0xff] %vm2415, %v2224
    %2417 = vst.msk [vmem:[#allocation2 + $0x8] sm:$0xff] %vm2415, %v2226
    %2418 = vst.msk [vmem:[#allocation2 + $0x10] sm:$0xff] %vm2415, %v2228
    %2419 = vst.msk [vmem:[#allocation2 + $0x18] sm:$0xff] %vm2415, %v2230
    %2420 = vst.msk [vmem:[#allocation2 + $0x20] sm:$0xff] %vm2415, %v2232
    %2421 = vst.msk [vmem:[#allocation2 + $0x28] sm:$0xff] %vm2415, %v2234
    %2422 = vst.msk [vmem:[#allocation2 + $0x30] sm:$0xff] %vm2415, %v2236
    %2423 = vst.msk [vmem:[#allocation2 + $0x38] sm:$0xff] %vm2415, %v2238
    %2424 = vst.msk [vmem:[#allocation2 + $0x40] sm:$0xff] %vm2415, %v2240
    %2425 = vst.msk [vmem:[#allocation2 + $0x48] sm:$0xff] %vm2415, %v2242
    %2426 = vst.msk [vmem:[#allocation2 + $0x50] sm:$0xff] %vm2415, %v2244
    %2427 = vst.msk [vmem:[#allocation2 + $0x58] sm:$0xff] %vm2415, %v2246
    %2428 = vst.msk [vmem:[#allocation2 + $0x60] sm:$0xff] %vm2415, %v2248
    %2429 = vst.msk [vmem:[#allocation2 + $0x68] sm:$0xff] %vm2415, %v2250
    %2430 = vst.msk [vmem:[#allocation2 + $0x70] sm:$0xff] %vm2415, %v2252
    %2431 = vst.msk [vmem:[#allocation2 + $0x78] sm:$0xff] %vm2415, %v2254
    %2432 = vst.msk [vmem:[#allocation2 + $0x80] sm:$0xff] %vm2415, %v2256
    %2433 = vst.msk [vmem:[#allocation2 + $0x88] sm:$0xff] %vm2415, %v2258
    %2434 = vst.msk [vmem:[#allocation2 + $0x90] sm:$0xff] %vm2415, %v2260
    %2435 = vst.msk [vmem:[#allocation2 + $0x98] sm:$0xff] %vm2415, %v2262
    %2436 = vst.msk [vmem:[#allocation2 + $0xa0] sm:$0xff] %vm2415, %v2264
    %2437 = vst.msk [vmem:[#allocation2 + $0xa8] sm:$0xff] %vm2415, %v2266
    %2438 = vst.msk [vmem:[#allocation2 + $0xb0] sm:$0xff] %vm2415, %v2268
    %2439 = vst.msk [vmem:[#allocation2 + $0xb8] sm:$0xff] %vm2415, %v2270
    %2440 = vst.msk [vmem:[#allocation2 + $0xc0] sm:$0xff] %vm2415, %v2272
    %2441 = vst.msk [vmem:[#allocation2 + $0xc8] sm:$0xff] %vm2415, %v2274
    %2442 = vst.msk [vmem:[#allocation2 + $0xd0] sm:$0xff] %vm2415, %v2276
    %2443 = vst.msk [vmem:[#allocation2 + $0xd8] sm:$0xff] %vm2415, %v2278
    %2444 = vst.msk [vmem:[#allocation2 + $0xe0] sm:$0xff] %vm2415, %v2280
    %2445 = vst.msk [vmem:[#allocation2 + $0xe8] sm:$0xff] %vm2415, %v2282
    %2446 = vst.msk [vmem:[#allocation2 + $0xf0] sm:$0xff] %vm2415, %v2284
    %2447 = vst.msk [vmem:[#allocation2 + $0xf8] sm:$0xff] %vm2415, %v2286
    %2448 = vst.msk [vmem:[#allocation2 + $0x100] sm:$0xff] %vm2415, %v2288
    %2449 = vst.msk [vmem:[#allocation2 + $0x108] sm:$0xff] %vm2415, %v2290
    %2450 = vst.msk [vmem:[#allocation2 + $0x110] sm:$0xff] %vm2415, %v2292
    %2451 = vst.msk [vmem:[#allocation2 + $0x118] sm:$0xff] %vm2415, %v2294
    %2452 = vst.msk [vmem:[#allocation2 + $0x120] sm:$0xff] %vm2415, %v2296
    %2453 = vst.msk [vmem:[#allocation2 + $0x128] sm:$0xff] %vm2415, %v2298
    %2454 = vst.msk [vmem:[#allocation2 + $0x130] sm:$0xff] %vm2415, %v2300
    %2455 = vst.msk [vmem:[#allocation2 + $0x138] sm:$0xff] %vm2415, %v2302
    %2456 = vst.msk [vmem:[#allocation2 + $0x140] sm:$0xff] %vm2415, %v2304
    %2457 = vst.msk [vmem:[#allocation2 + $0x148] sm:$0xff] %vm2415, %v2306
    %2458 = vst.msk [vmem:[#allocation2 + $0x150] sm:$0xff] %vm2415, %v2308
    %2459 = vst.msk [vmem:[#allocation2 + $0x158] sm:$0xff] %vm2415, %v2310
    %2460 = vst.msk [vmem:[#allocation2 + $0x160] sm:$0xff] %vm2415, %v2312
    %2461 = vst.msk [vmem:[#allocation2 + $0x168] sm:$0xff] %vm2415, %v2314
    %2462 = vst.msk [vmem:[#allocation2 + $0x170] sm:$0xff] %vm2415, %v2316
    %2463 = vst.msk [vmem:[#allocation2 + $0x178] sm:$0xff] %vm2415, %v2318
    %2464 = vst.msk [vmem:[#allocation2 + $0x180] sm:$0xff] %vm2415, %v2320
    %2465 = vst.msk [vmem:[#allocation2 + $0x188] sm:$0xff] %vm2415, %v2322
    %2466 = vst.msk [vmem:[#allocation2 + $0x190] sm:$0xff] %vm2415, %v2324
    %2467 = vst.msk [vmem:[#allocation2 + $0x198] sm:$0xff] %vm2415, %v2326
    %2468 = vst.msk [vmem:[#allocation2 + $0x1a0] sm:$0xff] %vm2415, %v2328
    %2469 = vst.msk [vmem:[#allocation2 + $0x1a8] sm:$0xff] %vm2415, %v2330
    %2470 = vst.msk [vmem:[#allocation2 + $0x1b0] sm:$0xff] %vm2415, %v2332
    %2471 = vst.msk [vmem:[#allocation2 + $0x1b8] sm:$0xff] %vm2415, %v2334
    %2472 = vst.msk [vmem:[#allocation2 + $0x1c0] sm:$0xff] %vm2415, %v2336
    %2473 = vst.msk [vmem:[#allocation2 + $0x1c8] sm:$0xff] %vm2415, %v2338
    %2474 = vst.msk [vmem:[#allocation2 + $0x1d0] sm:$0xff] %vm2415, %v2340
    %2475 = vst.msk [vmem:[#allocation2 + $0x1d8] sm:$0xff] %vm2415, %v2342
    %2476 = vst.msk [vmem:[#allocation2 + $0x1e0] sm:$0xff] %vm2415, %v2344
    %2477 = vst.msk [vmem:[#allocation2 + $0x1e8] sm:$0xff] %vm2415, %v2346
    %2478 = vst.msk [vmem:[#allocation2 + $0x1f0] sm:$0xff] %vm2415, %v2348
    %2479 = vst.msk [vmem:[#allocation2 + $0x1f8] sm:$0xff] %vm2415, %v2350
    %v2480 = vld [vmem:[%s2094 + $0x1] sm:$0xff]
    %v2481 = vld [vmem:[%s2094 + $0x9] sm:$0xff]
    %v2482 = vld [vmem:[%s2094 + $0x19] sm:$0xff]
    %v2483 = vld [vmem:[%s2094 + $0x21] sm:$0xff]
    %v2484 = vld [vmem:[%s2094 + $0x31] sm:$0xff]
    %v2485 = vld [vmem:[%s2094 + $0x39] sm:$0xff]
    %v2486 = vld [vmem:[%s2094 + $0x49] sm:$0xff]
    %v2487 = vld [vmem:[%s2094 + $0x51] sm:$0xff]
    %v2488 = vld [vmem:[%s2094 + $0x61] sm:$0xff]
    %v2489 = vld [vmem:[%s2094 + $0x69] sm:$0xff]
    %v2490 = vld [vmem:[%s2094 + $0x79] sm:$0xff]
    %v2491 = vld [vmem:[%s2094 + $0x81] sm:$0xff]
    %v2492 = vld [vmem:[%s2094 + $0x91] sm:$0xff]
    %v2493 = vld [vmem:[%s2094 + $0x99] sm:$0xff]
    %v2494 = vld [vmem:[%s2094 + $0xa9] sm:$0xff]
    %v2495 = vld [vmem:[%s2094 + $0xb1] sm:$0xff]
    %v2496 = vld [vmem:[%s2094 + $0xc1] sm:$0xff]
    %v2497 = vld [vmem:[%s2094 + $0xc9] sm:$0xff]
    %v2498 = vld [vmem:[%s2094 + $0xd9] sm:$0xff]
    %v2499 = vld [vmem:[%s2094 + $0xe1] sm:$0xff]
    %v2500 = vld [vmem:[%s2094 + $0xf1] sm:$0xff]
    %v2501 = vld [vmem:[%s2094 + $0xf9] sm:$0xff]
    %v2502 = vld [vmem:[%s2094 + $0x109] sm:$0xff]
    %v2503 = vld [vmem:[%s2094 + $0x111] sm:$0xff]
    %v2504 = vld [vmem:[%s2094 + $0x121] sm:$0xff]
    %v2505 = vld [vmem:[%s2094 + $0x129] sm:$0xff]
    %v2506 = vld [vmem:[%s2094 + $0x139] sm:$0xff]
    %v2507 = vld [vmem:[%s2094 + $0x141] sm:$0xff]
    %v2508 = vld [vmem:[%s2094 + $0x151] sm:$0xff]
    %v2509 = vld [vmem:[%s2094 + $0x159] sm:$0xff]
    %v2510 = vld [vmem:[%s2094 + $0x169] sm:$0xff]
    %v2511 = vld [vmem:[%s2094 + $0x171] sm:$0xff]
    %v2512 = vld [vmem:[%s2094 + $0x1b1] sm:$0xff]
    %v2513 = vld [vmem:[%s2094 + $0x1b9] sm:$0xff]
    %v2514 = vld [vmem:[%s2094 + $0x1c9] sm:$0xff]
    %v2515 = vld [vmem:[%s2094 + $0x1d1] sm:$0xff]
    %v2516 = vld [vmem:[%s2094 + $0x1e1] sm:$0xff]
    %v2517 = vld [vmem:[%s2094 + $0x1e9] sm:$0xff]
    %v2518 = vld [vmem:[%s2094 + $0x1f9] sm:$0xff]
    %v2519 = vld [vmem:[%s2094 + $0x201] sm:$0xff]
    %v2520 = vld [vmem:[%s2094 + $0x211] sm:$0xff]
    %v2521 = vld [vmem:[%s2094 + $0x219] sm:$0xff]
    %v2522 = vld [vmem:[%s2094 + $0x229] sm:$0xff]
    %v2523 = vld [vmem:[%s2094 + $0x231] sm:$0xff]
    %v2524 = vld [vmem:[%s2094 + $0x241] sm:$0xff]
    %v2525 = vld [vmem:[%s2094 + $0x249] sm:$0xff]
    %v2526 = vld [vmem:[%s2094 + $0x259] sm:$0xff]
    %v2527 = vld [vmem:[%s2094 + $0x261] sm:$0xff]
    %v2528 = vld [vmem:[%s2094 + $0x271] sm:$0xff]
    %v2529 = vld [vmem:[%s2094 + $0x279] sm:$0xff]
    %v2530 = vld [vmem:[%s2094 + $0x289] sm:$0xff]
    %v2531 = vld [vmem:[%s2094 + $0x291] sm:$0xff]
    %v2532 = vld [vmem:[%s2094 + $0x2a1] sm:$0xff]
    %v2533 = vld [vmem:[%s2094 + $0x2a9] sm:$0xff]
    %v2534 = vld [vmem:[%s2094 + $0x2b9] sm:$0xff]
    %v2535 = vld [vmem:[%s2094 + $0x2c1] sm:$0xff]
    %v2536 = vld [vmem:[%s2094 + $0x2d1] sm:$0xff]
    %v2537 = vld [vmem:[%s2094 + $0x2d9] sm:$0xff]
    %v2538 = vld [vmem:[%s2094 + $0x2e9] sm:$0xff]
    %v2539 = vld [vmem:[%s2094 + $0x2f1] sm:$0xff]
    %v2540 = vld [vmem:[%s2094 + $0x301] sm:$0xff]
    %v2541 = vld [vmem:[%s2094 + $0x309] sm:$0xff]
    %v2542 = vld [vmem:[%s2094 + $0x319] sm:$0xff]
    %v2543 = vld [vmem:[%s2094 + $0x321] sm:$0xff]
    %2608 = vrot.lane.b32.xlu0 %v2480, 28
    %v2609 = vpop.permute.xlu0 %2608
    %2610 = vrot.lane.b32.xlu0 %v2481, 28
    %v2611 = vpop.permute.xlu0 %2610
    %2612 = vrot.lane.b32.xlu0 %v2482, 28
    %v2613 = vpop.permute.xlu0 %2612
    %2614 = vrot.lane.b32.xlu0 %v2483, 28
    %v2615 = vpop.permute.xlu0 %2614
    %2616 = vrot.lane.b32.xlu0 %v2484, 28
    %v2617 = vpop.permute.xlu0 %2616
    %2618 = vrot.lane.b32.xlu0 %v2485, 28
    %v2619 = vpop.permute.xlu0 %2618
    %2620 = vrot.lane.b32.xlu0 %v2486, 28
    %v2621 = vpop.permute.xlu0 %2620
    %2622 = vrot.lane.b32.xlu0 %v2487, 28
    %v2623 = vpop.permute.xlu0 %2622
    %2624 = vrot.lane.b32.xlu0 %v2488, 28
    %v2625 = vpop.permute.xlu0 %2624
    %2626 = vrot.lane.b32.xlu0 %v2489, 28
    %v2627 = vpop.permute.xlu0 %2626
    %2628 = vrot.lane.b32.xlu0 %v2490, 28
    %v2629 = vpop.permute.xlu0 %2628
    %2630 = vrot.lane.b32.xlu0 %v2491, 28
    %v2631 = vpop.permute.xlu0 %2630
    %2632 = vrot.lane.b32.xlu0 %v2492, 28
    %v2633 = vpop.permute.xlu0 %2632
    %2634 = vrot.lane.b32.xlu0 %v2493, 28
    %v2635 = vpop.permute.xlu0 %2634
    %2636 = vrot.lane.b32.xlu0 %v2494, 28
    %v2637 = vpop.permute.xlu0 %2636
    %2638 = vrot.lane.b32.xlu0 %v2495, 28
    %v2639 = vpop.permute.xlu0 %2638
    %2640 = vrot.lane.b32.xlu0 %v2496, 28
    %v2641 = vpop.permute.xlu0 %2640
    %2642 = vrot.lane.b32.xlu0 %v2497, 28
    %v2643 = vpop.permute.xlu0 %2642
    %2644 = vrot.lane.b32.xlu0 %v2498, 28
    %v2645 = vpop.permute.xlu0 %2644
    %2646 = vrot.lane.b32.xlu0 %v2499, 28
    %v2647 = vpop.permute.xlu0 %2646
    %2648 = vrot.lane.b32.xlu0 %v2500, 28
    %v2649 = vpop.permute.xlu0 %2648
    %2650 = vrot.lane.b32.xlu0 %v2501, 28
    %v2651 = vpop.permute.xlu0 %2650
    %2652 = vrot.lane.b32.xlu0 %v2502, 28
    %v2653 = vpop.permute.xlu0 %2652
    %2654 = vrot.lane.b32.xlu0 %v2503, 28
    %v2655 = vpop.permute.xlu0 %2654
    %2656 = vrot.lane.b32.xlu0 %v2504, 28
    %v2657 = vpop.permute.xlu0 %2656
    %2658 = vrot.lane.b32.xlu0 %v2505, 28
    %v2659 = vpop.permute.xlu0 %2658
    %2660 = vrot.lane.b32.xlu0 %v2506, 28
    %v2661 = vpop.permute.xlu0 %2660
    %2662 = vrot.lane.b32.xlu0 %v2507, 28
    %v2663 = vpop.permute.xlu0 %2662
    %2664 = vrot.lane.b32.xlu0 %v2508, 28
    %v2665 = vpop.permute.xlu0 %2664
    %2666 = vrot.lane.b32.xlu0 %v2509, 28
    %v2667 = vpop.permute.xlu0 %2666
    %2668 = vrot.lane.b32.xlu0 %v2510, 28
    %v2669 = vpop.permute.xlu0 %2668
    %2670 = vrot.lane.b32.xlu0 %v2511, 28
    %v2671 = vpop.permute.xlu0 %2670
    %2672 = vrot.lane.b32.xlu0 %v2512, 28
    %v2673 = vpop.permute.xlu0 %2672
    %2674 = vrot.lane.b32.xlu0 %v2513, 28
    %v2675 = vpop.permute.xlu0 %2674
    %2676 = vrot.lane.b32.xlu0 %v2514, 28
    %v2677 = vpop.permute.xlu0 %2676
    %2678 = vrot.lane.b32.xlu0 %v2515, 28
    %v2679 = vpop.permute.xlu0 %2678
    %2680 = vrot.lane.b32.xlu0 %v2516, 28
    %v2681 = vpop.permute.xlu0 %2680
    %2682 = vrot.lane.b32.xlu0 %v2517, 28
    %v2683 = vpop.permute.xlu0 %2682
    %2684 = vrot.lane.b32.xlu0 %v2518, 28
    %v2685 = vpop.permute.xlu0 %2684
    %2686 = vrot.lane.b32.xlu0 %v2519, 28
    %v2687 = vpop.permute.xlu0 %2686
    %2688 = vrot.lane.b32.xlu0 %v2520, 28
    %v2689 = vpop.permute.xlu0 %2688
    %2690 = vrot.lane.b32.xlu0 %v2521, 28
    %v2691 = vpop.permute.xlu0 %2690
    %2692 = vrot.lane.b32.xlu0 %v2522, 28
    %v2693 = vpop.permute.xlu0 %2692
    %2694 = vrot.lane.b32.xlu0 %v2523, 28
    %v2695 = vpop.permute.xlu0 %2694
    %2696 = vrot.lane.b32.xlu0 %v2524, 28
    %v2697 = vpop.permute.xlu0 %2696
    %2698 = vrot.lane.b32.xlu0 %v2525, 28
    %v2699 = vpop.permute.xlu0 %2698
    %2700 = vrot.lane.b32.xlu0 %v2526, 28
    %v2701 = vpop.permute.xlu0 %2700
    %2702 = vrot.lane.b32.xlu0 %v2527, 28
    %v2703 = vpop.permute.xlu0 %2702
    %2704 = vrot.lane.b32.xlu0 %v2528, 28
    %v2705 = vpop.permute.xlu0 %2704
    %2706 = vrot.lane.b32.xlu0 %v2529, 28
    %v2707 = vpop.permute.xlu0 %2706
    %2708 = vrot.lane.b32.xlu0 %v2530, 28
    %v2709 = vpop.permute.xlu0 %2708
    %2710 = vrot.lane.b32.xlu0 %v2531, 28
    %v2711 = vpop.permute.xlu0 %2710
    %2712 = vrot.lane.b32.xlu0 %v2532, 28
    %v2713 = vpop.permute.xlu0 %2712
    %2714 = vrot.lane.b32.xlu0 %v2533, 28
    %v2715 = vpop.permute.xlu0 %2714
    %2716 = vrot.lane.b32.xlu0 %v2534, 28
    %v2717 = vpop.permute.xlu0 %2716
    %2718 = vrot.lane.b32.xlu0 %v2535, 28
    %v2719 = vpop.permute.xlu0 %2718
    %2720 = vrot.lane.b32.xlu0 %v2536, 28
    %v2721 = vpop.permute.xlu0 %2720
    %2722 = vrot.lane.b32.xlu0 %v2537, 28
    %v2723 = vpop.permute.xlu0 %2722
    %2724 = vrot.lane.b32.xlu0 %v2538, 28
    %v2725 = vpop.permute.xlu0 %2724
    %2726 = vrot.lane.b32.xlu0 %v2539, 28
    %v2727 = vpop.permute.xlu0 %2726
    %2728 = vrot.lane.b32.xlu0 %v2540, 28
    %v2729 = vpop.permute.xlu0 %2728
    %2730 = vrot.lane.b32.xlu0 %v2541, 28
    %v2731 = vpop.permute.xlu0 %2730
    %2732 = vrot.lane.b32.xlu0 %v2542, 28
    %v2733 = vpop.permute.xlu0 %2732
    %2734 = vrot.lane.b32.xlu0 %v2543, 28
    %v2735 = vpop.permute.xlu0 %2734
    %vm2800 = vcmask 261344
    %2801 = vst.msk [vmem:[#allocation2] sm:$0xff] %vm2800, %v2609
    %2802 = vst.msk [vmem:[#allocation2 + $0x8] sm:$0xff] %vm2800, %v2611
    %2803 = vst.msk [vmem:[#allocation2 + $0x10] sm:$0xff] %vm2800, %v2613
    %2804 = vst.msk [vmem:[#allocation2 + $0x18] sm:$0xff] %vm2800, %v2615
    %2805 = vst.msk [vmem:[#allocation2 + $0x20] sm:$0xff] %vm2800, %v2617
    %2806 = vst.msk [vmem:[#allocation2 + $0x28] sm:$0xff] %vm2800, %v2619
    %2807 = vst.msk [vmem:[#allocation2 + $0x30] sm:$0xff] %vm2800, %v2621
    %2808 = vst.msk [vmem:[#allocation2 + $0x38] sm:$0xff] %vm2800, %v2623
    %2809 = vst.msk [vmem:[#allocation2 + $0x40] sm:$0xff] %vm2800, %v2625
    %2810 = vst.msk [vmem:[#allocation2 + $0x48] sm:$0xff] %vm2800, %v2627
    %2811 = vst.msk [vmem:[#allocation2 + $0x50] sm:$0xff] %vm2800, %v2629
    %2812 = vst.msk [vmem:[#allocation2 + $0x58] sm:$0xff] %vm2800, %v2631
    %2813 = vst.msk [vmem:[#allocation2 + $0x60] sm:$0xff] %vm2800, %v2633
    %2814 = vst.msk [vmem:[#allocation2 + $0x68] sm:$0xff] %vm2800, %v2635
    %2815 = vst.msk [vmem:[#allocation2 + $0x70] sm:$0xff] %vm2800, %v2637
    %2816 = vst.msk [vmem:[#allocation2 + $0x78] sm:$0xff] %vm2800, %v2639
    %2817 = vst.msk [vmem:[#allocation2 + $0x80] sm:$0xff] %vm2800, %v2641
    %2818 = vst.msk [vmem:[#allocation2 + $0x88] sm:$0xff] %vm2800, %v2643
    %2819 = vst.msk [vmem:[#allocation2 + $0x90] sm:$0xff] %vm2800, %v2645
    %2820 = vst.msk [vmem:[#allocation2 + $0x98] sm:$0xff] %vm2800, %v2647
    %2821 = vst.msk [vmem:[#allocation2 + $0xa0] sm:$0xff] %vm2800, %v2649
    %2822 = vst.msk [vmem:[#allocation2 + $0xa8] sm:$0xff] %vm2800, %v2651
    %2823 = vst.msk [vmem:[#allocation2 + $0xb0] sm:$0xff] %vm2800, %v2653
    %2824 = vst.msk [vmem:[#allocation2 + $0xb8] sm:$0xff] %vm2800, %v2655
    %2825 = vst.msk [vmem:[#allocation2 + $0xc0] sm:$0xff] %vm2800, %v2657
    %2826 = vst.msk [vmem:[#allocation2 + $0xc8] sm:$0xff] %vm2800, %v2659
    %2827 = vst.msk [vmem:[#allocation2 + $0xd0] sm:$0xff] %vm2800, %v2661
    %2828 = vst.msk [vmem:[#allocation2 + $0xd8] sm:$0xff] %vm2800, %v2663
    %2829 = vst.msk [vmem:[#allocation2 + $0xe0] sm:$0xff] %vm2800, %v2665
    %2830 = vst.msk [vmem:[#allocation2 + $0xe8] sm:$0xff] %vm2800, %v2667
    %2831 = vst.msk [vmem:[#allocation2 + $0xf0] sm:$0xff] %vm2800, %v2669
    %2832 = vst.msk [vmem:[#allocation2 + $0xf8] sm:$0xff] %vm2800, %v2671
    %2833 = vst.msk [vmem:[#allocation2 + $0x100] sm:$0xff] %vm2800, %v2673
    %2834 = vst.msk [vmem:[#allocation2 + $0x108] sm:$0xff] %vm2800, %v2675
    %2835 = vst.msk [vmem:[#allocation2 + $0x110] sm:$0xff] %vm2800, %v2677
    %2836 = vst.msk [vmem:[#allocation2 + $0x118] sm:$0xff] %vm2800, %v2679
    %2837 = vst.msk [vmem:[#allocation2 + $0x120] sm:$0xff] %vm2800, %v2681
    %2838 = vst.msk [vmem:[#allocation2 + $0x128] sm:$0xff] %vm2800, %v2683
    %2839 = vst.msk [vmem:[#allocation2 + $0x130] sm:$0xff] %vm2800, %v2685
    %2840 = vst.msk [vmem:[#allocation2 + $0x138] sm:$0xff] %vm2800, %v2687
    %2841 = vst.msk [vmem:[#allocation2 + $0x140] sm:$0xff] %vm2800, %v2689
    %2842 = vst.msk [vmem:[#allocation2 + $0x148] sm:$0xff] %vm2800, %v2691
    %2843 = vst.msk [vmem:[#allocation2 + $0x150] sm:$0xff] %vm2800, %v2693
    %2844 = vst.msk [vmem:[#allocation2 + $0x158] sm:$0xff] %vm2800, %v2695
    %2845 = vst.msk [vmem:[#allocation2 + $0x160] sm:$0xff] %vm2800, %v2697
    %2846 = vst.msk [vmem:[#allocation2 + $0x168] sm:$0xff] %vm2800, %v2699
    %2847 = vst.msk [vmem:[#allocation2 + $0x170] sm:$0xff] %vm2800, %v2701
    %2848 = vst.msk [vmem:[#allocation2 + $0x178] sm:$0xff] %vm2800, %v2703
    %2849 = vst.msk [vmem:[#allocation2 + $0x180] sm:$0xff] %vm2800, %v2705
    %2850 = vst.msk [vmem:[#allocation2 + $0x188] sm:$0xff] %vm2800, %v2707
    %2851 = vst.msk [vmem:[#allocation2 + $0x190] sm:$0xff] %vm2800, %v2709
    %2852 = vst.msk [vmem:[#allocation2 + $0x198] sm:$0xff] %vm2800, %v2711
    %2853 = vst.msk [vmem:[#allocation2 + $0x1a0] sm:$0xff] %vm2800, %v2713
    %2854 = vst.msk [vmem:[#allocation2 + $0x1a8] sm:$0xff] %vm2800, %v2715
    %2855 = vst.msk [vmem:[#allocation2 + $0x1b0] sm:$0xff] %vm2800, %v2717
    %2856 = vst.msk [vmem:[#allocation2 + $0x1b8] sm:$0xff] %vm2800, %v2719
    %2857 = vst.msk [vmem:[#allocation2 + $0x1c0] sm:$0xff] %vm2800, %v2721
    %2858 = vst.msk [vmem:[#allocation2 + $0x1c8] sm:$0xff] %vm2800, %v2723
    %2859 = vst.msk [vmem:[#allocation2 + $0x1d0] sm:$0xff] %vm2800, %v2725
    %2860 = vst.msk [vmem:[#allocation2 + $0x1d8] sm:$0xff] %vm2800, %v2727
    %2861 = vst.msk [vmem:[#allocation2 + $0x1e0] sm:$0xff] %vm2800, %v2729
    %2862 = vst.msk [vmem:[#allocation2 + $0x1e8] sm:$0xff] %vm2800, %v2731
    %2863 = vst.msk [vmem:[#allocation2 + $0x1f0] sm:$0xff] %vm2800, %v2733
    %2864 = vst.msk [vmem:[#allocation2 + $0x1f8] sm:$0xff] %vm2800, %v2735
    %v2865 = vld [vmem:[%s2094 + $0x2] sm:$0xff]
    %v2866 = vld [vmem:[%s2094 + $0xa] sm:$0xff]
    %v2867 = vld [vmem:[%s2094 + $0x1a] sm:$0xff]
    %v2868 = vld [vmem:[%s2094 + $0x22] sm:$0xff]
    %v2869 = vld [vmem:[%s2094 + $0x32] sm:$0xff]
    %v2870 = vld [vmem:[%s2094 + $0x3a] sm:$0xff]
    %v2871 = vld [vmem:[%s2094 + $0x4a] sm:$0xff]
    %v2872 = vld [vmem:[%s2094 + $0x52] sm:$0xff]
    %v2873 = vld [vmem:[%s2094 + $0x62] sm:$0xff]
    %v2874 = vld [vmem:[%s2094 + $0x6a] sm:$0xff]
    %v2875 = vld [vmem:[%s2094 + $0x7a] sm:$0xff]
    %v2876 = vld [vmem:[%s2094 + $0x82] sm:$0xff]
    %v2877 = vld [vmem:[%s2094 + $0x92] sm:$0xff]
    %v2878 = vld [vmem:[%s2094 + $0x9a] sm:$0xff]
    %v2879 = vld [vmem:[%s2094 + $0xaa] sm:$0xff]
    %v2880 = vld [vmem:[%s2094 + $0xb2] sm:$0xff]
    %v2881 = vld [vmem:[%s2094 + $0xc2] sm:$0xff]
    %v2882 = vld [vmem:[%s2094 + $0xca] sm:$0xff]
    %v2883 = vld [vmem:[%s2094 + $0xda] sm:$0xff]
    %v2884 = vld [vmem:[%s2094 + $0xe2] sm:$0xff]
    %v2885 = vld [vmem:[%s2094 + $0xf2] sm:$0xff]
    %v2886 = vld [vmem:[%s2094 + $0xfa] sm:$0xff]
    %v2887 = vld [vmem:[%s2094 + $0x10a] sm:$0xff]
    %v2888 = vld [vmem:[%s2094 + $0x112] sm:$0xff]
    %v2889 = vld [vmem:[%s2094 + $0x122] sm:$0xff]
    %v2890 = vld [vmem:[%s2094 + $0x12a] sm:$0xff]
    %v2891 = vld [vmem:[%s2094 + $0x13a] sm:$0xff]
    %v2892 = vld [vmem:[%s2094 + $0x142] sm:$0xff]
    %v2893 = vld [vmem:[%s2094 + $0x152] sm:$0xff]
    %v2894 = vld [vmem:[%s2094 + $0x15a] sm:$0xff]
    %v2895 = vld [vmem:[%s2094 + $0x16a] sm:$0xff]
    %v2896 = vld [vmem:[%s2094 + $0x172] sm:$0xff]
    %v2897 = vld [vmem:[%s2094 + $0x1b2] sm:$0xff]
    %v2898 = vld [vmem:[%s2094 + $0x1ba] sm:$0xff]
    %v2899 = vld [vmem:[%s2094 + $0x1ca] sm:$0xff]
    %v2900 = vld [vmem:[%s2094 + $0x1d2] sm:$0xff]
    %v2901 = vld [vmem:[%s2094 + $0x1e2] sm:$0xff]
    %v2902 = vld [vmem:[%s2094 + $0x1ea] sm:$0xff]
    %v2903 = vld [vmem:[%s2094 + $0x1fa] sm:$0xff]
    %v2904 = vld [vmem:[%s2094 + $0x202] sm:$0xff]
    %v2905 = vld [vmem:[%s2094 + $0x212] sm:$0xff]
    %v2906 = vld [vmem:[%s2094 + $0x21a] sm:$0xff]
    %v2907 = vld [vmem:[%s2094 + $0x22a] sm:$0xff]
    %v2908 = vld [vmem:[%s2094 + $0x232] sm:$0xff]
    %v2909 = vld [vmem:[%s2094 + $0x242] sm:$0xff]
    %v2910 = vld [vmem:[%s2094 + $0x24a] sm:$0xff]
    %v2911 = vld [vmem:[%s2094 + $0x25a] sm:$0xff]
    %v2912 = vld [vmem:[%s2094 + $0x262] sm:$0xff]
    %v2913 = vld [vmem:[%s2094 + $0x272] sm:$0xff]
    %v2914 = vld [vmem:[%s2094 + $0x27a] sm:$0xff]
    %v2915 = vld [vmem:[%s2094 + $0x28a] sm:$0xff]
    %v2916 = vld [vmem:[%s2094 + $0x292] sm:$0xff]
    %v2917 = vld [vmem:[%s2094 + $0x2a2] sm:$0xff]
    %v2918 = vld [vmem:[%s2094 + $0x2aa] sm:$0xff]
    %v2919 = vld [vmem:[%s2094 + $0x2ba] sm:$0xff]
    %v2920 = vld [vmem:[%s2094 + $0x2c2] sm:$0xff]
    %v2921 = vld [vmem:[%s2094 + $0x2d2] sm:$0xff]
    %v2922 = vld [vmem:[%s2094 + $0x2da] sm:$0xff]
    %v2923 = vld [vmem:[%s2094 + $0x2ea] sm:$0xff]
    %v2924 = vld [vmem:[%s2094 + $0x2f2] sm:$0xff]
    %v2925 = vld [vmem:[%s2094 + $0x302] sm:$0xff]
    %v2926 = vld [vmem:[%s2094 + $0x30a] sm:$0xff]
    %v2927 = vld [vmem:[%s2094 + $0x31a] sm:$0xff]
    %v2928 = vld [vmem:[%s2094 + $0x322] sm:$0xff]
    %2993 = vrot.lane.b32.xlu0 %v2865, 32
    %v2994 = vpop.permute.xlu0 %2993
    %2995 = vrot.lane.b32.xlu0 %v2866, 32
    %v2996 = vpop.permute.xlu0 %2995
    %2997 = vrot.lane.b32.xlu0 %v2867, 32
    %v2998 = vpop.permute.xlu0 %2997
    %2999 = vrot.lane.b32.xlu0 %v2868, 32
    %v3000 = vpop.permute.xlu0 %2999
    %3001 = vrot.lane.b32.xlu0 %v2869, 32
    %v3002 = vpop.permute.xlu0 %3001
    %3003 = vrot.lane.b32.xlu0 %v2870, 32
    %v3004 = vpop.permute.xlu0 %3003
    %3005 = vrot.lane.b32.xlu0 %v2871, 32
    %v3006 = vpop.permute.xlu0 %3005
    %3007 = vrot.lane.b32.xlu0 %v2872, 32
    %v3008 = vpop.permute.xlu0 %3007
    %3009 = vrot.lane.b32.xlu0 %v2873, 32
    %v3010 = vpop.permute.xlu0 %3009
    %3011 = vrot.lane.b32.xlu0 %v2874, 32
    %v3012 = vpop.permute.xlu0 %3011
    %3013 = vrot.lane.b32.xlu0 %v2875, 32
    %v3014 = vpop.permute.xlu0 %3013
    %3015 = vrot.lane.b32.xlu0 %v2876, 32
    %v3016 = vpop.permute.xlu0 %3015
    %3017 = vrot.lane.b32.xlu0 %v2877, 32
    %v3018 = vpop.permute.xlu0 %3017
    %3019 = vrot.lane.b32.xlu0 %v2878, 32
    %v3020 = vpop.permute.xlu0 %3019
    %3021 = vrot.lane.b32.xlu0 %v2879, 32
    %v3022 = vpop.permute.xlu0 %3021
    %3023 = vrot.lane.b32.xlu0 %v2880, 32
    %v3024 = vpop.permute.xlu0 %3023
    %3025 = vrot.lane.b32.xlu0 %v2881, 32
    %v3026 = vpop.permute.xlu0 %3025
    %3027 = vrot.lane.b32.xlu0 %v2882, 32
    %v3028 = vpop.permute.xlu0 %3027
    %3029 = vrot.lane.b32.xlu0 %v2883, 32
    %v3030 = vpop.permute.xlu0 %3029
    %3031 = vrot.lane.b32.xlu0 %v2884, 32
    %v3032 = vpop.permute.xlu0 %3031
    %3033 = vrot.lane.b32.xlu0 %v2885, 32
    %v3034 = vpop.permute.xlu0 %3033
    %3035 = vrot.lane.b32.xlu0 %v2886, 32
    %v3036 = vpop.permute.xlu0 %3035
    %3037 = vrot.lane.b32.xlu0 %v2887, 32
    %v3038 = vpop.permute.xlu0 %3037
    %3039 = vrot.lane.b32.xlu0 %v2888, 32
    %v3040 = vpop.permute.xlu0 %3039
    %3041 = vrot.lane.b32.xlu0 %v2889, 32
    %v3042 = vpop.permute.xlu0 %3041
    %3043 = vrot.lane.b32.xlu0 %v2890, 32
    %v3044 = vpop.permute.xlu0 %3043
    %3045 = vrot.lane.b32.xlu0 %v2891, 32
    %v3046 = vpop.permute.xlu0 %3045
    %3047 = vrot.lane.b32.xlu0 %v2892, 32
    %v3048 = vpop.permute.xlu0 %3047
    %3049 = vrot.lane.b32.xlu0 %v2893, 32
    %v3050 = vpop.permute.xlu0 %3049
    %3051 = vrot.lane.b32.xlu0 %v2894, 32
    %v3052 = vpop.permute.xlu0 %3051
    %3053 = vrot.lane.b32.xlu0 %v2895, 32
    %v3054 = vpop.permute.xlu0 %3053
    %3055 = vrot.lane.b32.xlu0 %v2896, 32
    %v3056 = vpop.permute.xlu0 %3055
    %3057 = vrot.lane.b32.xlu0 %v2897, 32
    %v3058 = vpop.permute.xlu0 %3057
    %3059 = vrot.lane.b32.xlu0 %v2898, 32
    %v3060 = vpop.permute.xlu0 %3059
    %3061 = vrot.lane.b32.xlu0 %v2899, 32
    %v3062 = vpop.permute.xlu0 %3061
    %3063 = vrot.lane.b32.xlu0 %v2900, 32
    %v3064 = vpop.permute.xlu0 %3063
    %3065 = vrot.lane.b32.xlu0 %v2901, 32
    %v3066 = vpop.permute.xlu0 %3065
    %3067 = vrot.lane.b32.xlu0 %v2902, 32
    %v3068 = vpop.permute.xlu0 %3067
    %3069 = vrot.lane.b32.xlu0 %v2903, 32
    %v3070 = vpop.permute.xlu0 %3069
    %3071 = vrot.lane.b32.xlu0 %v2904, 32
    %v3072 = vpop.permute.xlu0 %3071
    %3073 = vrot.lane.b32.xlu0 %v2905, 32
    %v3074 = vpop.permute.xlu0 %3073
    %3075 = vrot.lane.b32.xlu0 %v2906, 32
    %v3076 = vpop.permute.xlu0 %3075
    %3077 = vrot.lane.b32.xlu0 %v2907, 32
    %v3078 = vpop.permute.xlu0 %3077
    %3079 = vrot.lane.b32.xlu0 %v2908, 32
    %v3080 = vpop.permute.xlu0 %3079
    %3081 = vrot.lane.b32.xlu0 %v2909, 32
    %v3082 = vpop.permute.xlu0 %3081
    %3083 = vrot.lane.b32.xlu0 %v2910, 32
    %v3084 = vpop.permute.xlu0 %3083
    %3085 = vrot.lane.b32.xlu0 %v2911, 32
    %v3086 = vpop.permute.xlu0 %3085
    %3087 = vrot.lane.b32.xlu0 %v2912, 32
    %v3088 = vpop.permute.xlu0 %3087
    %3089 = vrot.lane.b32.xlu0 %v2913, 32
    %v3090 = vpop.permute.xlu0 %3089
    %3091 = vrot.lane.b32.xlu0 %v2914, 32
    %v3092 = vpop.permute.xlu0 %3091
    %3093 = vrot.lane.b32.xlu0 %v2915, 32
    %v3094 = vpop.permute.xlu0 %3093
    %3095 = vrot.lane.b32.xlu0 %v2916, 32
    %v3096 = vpop.permute.xlu0 %3095
    %3097 = vrot.lane.b32.xlu0 %v2917, 32
    %v3098 = vpop.permute.xlu0 %3097
    %3099 = vrot.lane.b32.xlu0 %v2918, 32
    %v3100 = vpop.permute.xlu0 %3099
    %3101 = vrot.lane.b32.xlu0 %v2919, 32
    %v3102 = vpop.permute.xlu0 %3101
    %3103 = vrot.lane.b32.xlu0 %v2920, 32
    %v3104 = vpop.permute.xlu0 %3103
    %3105 = vrot.lane.b32.xlu0 %v2921, 32
    %v3106 = vpop.permute.xlu0 %3105
    %3107 = vrot.lane.b32.xlu0 %v2922, 32
    %v3108 = vpop.permute.xlu0 %3107
    %3109 = vrot.lane.b32.xlu0 %v2923, 32
    %v3110 = vpop.permute.xlu0 %3109
    %3111 = vrot.lane.b32.xlu0 %v2924, 32
    %v3112 = vpop.permute.xlu0 %3111
    %3113 = vrot.lane.b32.xlu0 %v2925, 32
    %v3114 = vpop.permute.xlu0 %3113
    %3115 = vrot.lane.b32.xlu0 %v2926, 32
    %v3116 = vpop.permute.xlu0 %3115
    %3117 = vrot.lane.b32.xlu0 %v2927, 32
    %v3118 = vpop.permute.xlu0 %3117
    %3119 = vrot.lane.b32.xlu0 %v2928, 32
    %v3120 = vpop.permute.xlu0 %3119
    %vm3185 = vcmask 294144
    %3186 = vst.msk [vmem:[#allocation2] sm:$0xff] %vm3185, %v2994
    %3187 = vst.msk [vmem:[#allocation2 + $0x8] sm:$0xff] %vm3185, %v2996
    %3188 = vst.msk [vmem:[#allocation2 + $0x10] sm:$0xff] %vm3185, %v2998
    %3189 = vst.msk [vmem:[#allocation2 + $0x18] sm:$0xff] %vm3185, %v3000
    %3190 = vst.msk [vmem:[#allocation2 + $0x20] sm:$0xff] %vm3185, %v3002
    %3191 = vst.msk [vmem:[#allocation2 + $0x28] sm:$0xff] %vm3185, %v3004
    %3192 = vst.msk [vmem:[#allocation2 + $0x30] sm:$0xff] %vm3185, %v3006
    %3193 = vst.msk [vmem:[#allocation2 + $0x38] sm:$0xff] %vm3185, %v3008
    %3194 = vst.msk [vmem:[#allocation2 + $0x40] sm:$0xff] %vm3185, %v3010
    %3195 = vst.msk [vmem:[#allocation2 + $0x48] sm:$0xff] %vm3185, %v3012
    %3196 = vst.msk [vmem:[#allocation2 + $0x50] sm:$0xff] %vm3185, %v3014
    %3197 = vst.msk [vmem:[#allocation2 + $0x58] sm:$0xff] %vm3185, %v3016
    %3198 = vst.msk [vmem:[#allocation2 + $0x60] sm:$0xff] %vm3185, %v3018
    %3199 = vst.msk [vmem:[#allocation2 + $0x68] sm:$0xff] %vm3185, %v3020
    %3200 = vst.msk [vmem:[#allocation2 + $0x70] sm:$0xff] %vm3185, %v3022
    %3201 = vst.msk [vmem:[#allocation2 + $0x78] sm:$0xff] %vm3185, %v3024
    %3202 = vst.msk [vmem:[#allocation2 + $0x80] sm:$0xff] %vm3185, %v3026
    %3203 = vst.msk [vmem:[#allocation2 + $0x88] sm:$0xff] %vm3185, %v3028
    %3204 = vst.msk [vmem:[#allocation2 + $0x90] sm:$0xff] %vm3185, %v3030
    %3205 = vst.msk [vmem:[#allocation2 + $0x98] sm:$0xff] %vm3185, %v3032
    %3206 = vst.msk [vmem:[#allocation2 + $0xa0] sm:$0xff] %vm3185, %v3034
    %3207 = vst.msk [vmem:[#allocation2 + $0xa8] sm:$0xff] %vm3185, %v3036
    %3208 = vst.msk [vmem:[#allocation2 + $0xb0] sm:$0xff] %vm3185, %v3038
    %3209 = vst.msk [vmem:[#allocation2 + $0xb8] sm:$0xff] %vm3185, %v3040
    %3210 = vst.msk [vmem:[#allocation2 + $0xc0] sm:$0xff] %vm3185, %v3042
    %3211 = vst.msk [vmem:[#allocation2 + $0xc8] sm:$0xff] %vm3185, %v3044
    %3212 = vst.msk [vmem:[#allocation2 + $0xd0] sm:$0xff] %vm3185, %v3046
    %3213 = vst.msk [vmem:[#allocation2 + $0xd8] sm:$0xff] %vm3185, %v3048
    %3214 = vst.msk [vmem:[#allocation2 + $0xe0] sm:$0xff] %vm3185, %v3050
    %3215 = vst.msk [vmem:[#allocation2 + $0xe8] sm:$0xff] %vm3185, %v3052
    %3216 = vst.msk [vmem:[#allocation2 + $0xf0] sm:$0xff] %vm3185, %v3054
    %3217 = vst.msk [vmem:[#allocation2 + $0xf8] sm:$0xff] %vm3185, %v3056
    %3218 = vst.msk [vmem:[#allocation2 + $0x100] sm:$0xff] %vm3185, %v3058
    %3219 = vst.msk [vmem:[#allocation2 + $0x108] sm:$0xff] %vm3185, %v3060
    %3220 = vst.msk [vmem:[#allocation2 + $0x110] sm:$0xff] %vm3185, %v3062
    %3221 = vst.msk [vmem:[#allocation2 + $0x118] sm:$0xff] %vm3185, %v3064
    %3222 = vst.msk [vmem:[#allocation2 + $0x120] sm:$0xff] %vm3185, %v3066
    %3223 = vst.msk [vmem:[#allocation2 + $0x128] sm:$0xff] %vm3185, %v3068
    %3224 = vst.msk [vmem:[#allocation2 + $0x130] sm:$0xff] %vm3185, %v3070
    %3225 = vst.msk [vmem:[#allocation2 + $0x138] sm:$0xff] %vm3185, %v3072
    %3226 = vst.msk [vmem:[#allocation2 + $0x140] sm:$0xff] %vm3185, %v3074
    %3227 = vst.msk [vmem:[#allocation2 + $0x148] sm:$0xff] %vm3185, %v3076
    %3228 = vst.msk [vmem:[#allocation2 + $0x150] sm:$0xff] %vm3185, %v3078
    %3229 = vst.msk [vmem:[#allocation2 + $0x158] sm:$0xff] %vm3185, %v3080
    %3230 = vst.msk [vmem:[#allocation2 + $0x160] sm:$0xff] %vm3185, %v3082
    %3231 = vst.msk [vmem:[#allocation2 + $0x168] sm:$0xff] %vm3185, %v3084
    %3232 = vst.msk [vmem:[#allocation2 + $0x170] sm:$0xff] %vm3185, %v3086
    %3233 = vst.msk [vmem:[#allocation2 + $0x178] sm:$0xff] %vm3185, %v3088
    %3234 = vst.msk [vmem:[#allocation2 + $0x180] sm:$0xff] %vm3185, %v3090
    %3235 = vst.msk [vmem:[#allocation2 + $0x188] sm:$0xff] %vm3185, %v3092
    %3236 = vst.msk [vmem:[#allocation2 + $0x190] sm:$0xff] %vm3185, %v3094
    %3237 = vst.msk [vmem:[#allocation2 + $0x198] sm:$0xff] %vm3185, %v3096
    %3238 = vst.msk [vmem:[#allocation2 + $0x1a0] sm:$0xff] %vm3185, %v3098
    %3239 = vst.msk [vmem:[#allocation2 + $0x1a8] sm:$0xff] %vm3185, %v3100
    %3240 = vst.msk [vmem:[#allocation2 + $0x1b0] sm:$0xff] %vm3185, %v3102
    %3241 = vst.msk [vmem:[#allocation2 + $0x1b8] sm:$0xff] %vm3185, %v3104
    %3242 = vst.msk [vmem:[#allocation2 + $0x1c0] sm:$0xff] %vm3185, %v3106
    %3243 = vst.msk [vmem:[#allocation2 + $0x1c8] sm:$0xff] %vm3185, %v3108
    %3244 = vst.msk [vmem:[#allocation2 + $0x1d0] sm:$0xff] %vm3185, %v3110
    %3245 = vst.msk [vmem:[#allocation2 + $0x1d8] sm:$0xff] %vm3185, %v3112
    %3246 = vst.msk [vmem:[#allocation2 + $0x1e0] sm:$0xff] %vm3185, %v3114
    %3247 = vst.msk [vmem:[#allocation2 + $0x1e8] sm:$0xff] %vm3185, %v3116
    %3248 = vst.msk [vmem:[#allocation2 + $0x1f0] sm:$0xff] %vm3185, %v3118
    %3249 = vst.msk [vmem:[#allocation2 + $0x1f8] sm:$0xff] %vm3185, %v3120
    %v3250 = vld [vmem:[#allocation2] sm:$0xff]
    %v3251 = vld [vmem:[#allocation2 + $0x8] sm:$0xff]
    %v3252 = vld [vmem:[#allocation2 + $0x10] sm:$0xff]
    %v3253 = vld [vmem:[#allocation2 + $0x18] sm:$0xff]
    %v3254 = vld [vmem:[#allocation2 + $0x20] sm:$0xff]
    %v3255 = vld [vmem:[#allocation2 + $0x28] sm:$0xff]
    %v3256 = vld [vmem:[#allocation2 + $0x30] sm:$0xff]
    %v3257 = vld [vmem:[#allocation2 + $0x38] sm:$0xff]
    %v3258 = vld [vmem:[#allocation2 + $0x40] sm:$0xff]
    %v3259 = vld [vmem:[#allocation2 + $0x48] sm:$0xff]
    %v3260 = vld [vmem:[#allocation2 + $0x50] sm:$0xff]
    %v3261 = vld [vmem:[#allocation2 + $0x58] sm:$0xff]
    %v3262 = vld [vmem:[#allocation2 + $0x60] sm:$0xff]
    %v3263 = vld [vmem:[#allocation2 + $0x68] sm:$0xff]
    %v3264 = vld [vmem:[#allocation2 + $0x70] sm:$0xff]
    %v3265 = vld [vmem:[#allocation2 + $0x78] sm:$0xff]
    %v3266 = vld [vmem:[#allocation2 + $0x80] sm:$0xff]
    %v3267 = vld [vmem:[#allocation2 + $0x88] sm:$0xff]
    %v3268 = vld [vmem:[#allocation2 + $0x90] sm:$0xff]
    %v3269 = vld [vmem:[#allocation2 + $0x98] sm:$0xff]
    %v3270 = vld [vmem:[#allocation2 + $0xa0] sm:$0xff]
    %v3271 = vld [vmem:[#allocation2 + $0xa8] sm:$0xff]
    %v3272 = vld [vmem:[#allocation2 + $0xb0] sm:$0xff]
    %v3273 = vld [vmem:[#allocation2 + $0xb8] sm:$0xff]
    %v3274 = vld [vmem:[#allocation2 + $0xc0] sm:$0xff]
    %v3275 = vld [vmem:[#allocation2 + $0xc8] sm:$0xff]
    %v3276 = vld [vmem:[#allocation2 + $0xd0] sm:$0xff]
    %v3277 = vld [vmem:[#allocation2 + $0xd8] sm:$0xff]
    %v3278 = vld [vmem:[#allocation2 + $0xe0] sm:$0xff]
    %v3279 = vld [vmem:[#allocation2 + $0xe8] sm:$0xff]
    %v3280 = vld [vmem:[#allocation2 + $0xf0] sm:$0xff]
    %v3281 = vld [vmem:[#allocation2 + $0xf8] sm:$0xff]
    %v3282 = vld [vmem:[#allocation2 + $0x100] sm:$0xff]
    %v3283 = vld [vmem:[#allocation2 + $0x108] sm:$0xff]
    %v3284 = vld [vmem:[#allocation2 + $0x110] sm:$0xff]
    %v3285 = vld [vmem:[#allocation2 + $0x118] sm:$0xff]
    %v3286 = vld [vmem:[#allocation2 + $0x120] sm:$0xff]
    %v3287 = vld [vmem:[#allocation2 + $0x128] sm:$0xff]
    %v3288 = vld [vmem:[#allocation2 + $0x130] sm:$0xff]
    %v3289 = vld [vmem:[#allocation2 + $0x138] sm:$0xff]
    %v3290 = vld [vmem:[#allocation2 + $0x140] sm:$0xff]
    %v3291 = vld [vmem:[#allocation2 + $0x148] sm:$0xff]
    %v3292 = vld [vmem:[#allocation2 + $0x150] sm:$0xff]
    %v3293 = vld [vmem:[#allocation2 + $0x158] sm:$0xff]
    %v3294 = vld [vmem:[#allocation2 + $0x160] sm:$0xff]
    %v3295 = vld [vmem:[#allocation2 + $0x168] sm:$0xff]
    %v3296 = vld [vmem:[#allocation2 + $0x170] sm:$0xff]
    %v3297 = vld [vmem:[#allocation2 + $0x178] sm:$0xff]
    %v3298 = vld [vmem:[#allocation2 + $0x180] sm:$0xff]
    %v3299 = vld [vmem:[#allocation2 + $0x188] sm:$0xff]
    %v3300 = vld [vmem:[#allocation2 + $0x190] sm:$0xff]
    %v3301 = vld [vmem:[#allocation2 + $0x198] sm:$0xff]
    %v3302 = vld [vmem:[#allocation2 + $0x1a0] sm:$0xff]
    %v3303 = vld [vmem:[#allocation2 + $0x1a8] sm:$0xff]
    %v3304 = vld [vmem:[#allocation2 + $0x1b0] sm:$0xff]
    %v3305 = vld [vmem:[#allocation2 + $0x1b8] sm:$0xff]
    %v3306 = vld [vmem:[#allocation2 + $0x1c0] sm:$0xff]
    %v3307 = vld [vmem:[#allocation2 + $0x1c8] sm:$0xff]
    %v3308 = vld [vmem:[#allocation2 + $0x1d0] sm:$0xff]
    %v3309 = vld [vmem:[#allocation2 + $0x1d8] sm:$0xff]
    %v3310 = vld [vmem:[#allocation2 + $0x1e0] sm:$0xff]
    %v3311 = vld [vmem:[#allocation2 + $0x1e8] sm:$0xff]
    %v3312 = vld [vmem:[#allocation2 + $0x1f0] sm:$0xff]
    %v3313 = vld [vmem:[#allocation2 + $0x1f8] sm:$0xff]
    %v3314 = vld [vmem:[%s1] sm:$0xff]
    %v3315 = vld [vmem:[%s1 + $0x8] sm:$0xff]
    %v3316 = vld [vmem:[%s1 + $0x10] sm:$0xff]
    %v3317 = vld [vmem:[%s1 + $0x18] sm:$0xff]
    %v3318 = vld [vmem:[%s1 + $0x20] sm:$0xf]
    %v3319 = vld [vmem:[%s2] sm:$0x1]
    %v3321 = vlaneseq
    %v3322 = vshrl.u32 %v3321, 7
    %v3323 = vsub.s32 0, %v3322
    %v3324 = vrot.slane %v3319, %v3323
    %vm3326 = vcmask 293888
    %v3328 = vsel %vm3326, %v3250, 0
    %v3331 = vsel %vm3326, %v3251, 0
    %v3334 = vsel %vm3326, %v3252, 0
    %v3337 = vsel %vm3326, %v3253, 0
    %v3340 = vsel %vm3326, %v3254, 0
    %v3343 = vsel %vm3326, %v3255, 0
    %v3346 = vsel %vm3326, %v3256, 0
    %v3349 = vsel %vm3326, %v3257, 0
    %v3352 = vsel %vm3326, %v3258, 0
    %v3355 = vsel %vm3326, %v3259, 0
    %v3358 = vsel %vm3326, %v3260, 0
    %v3361 = vsel %vm3326, %v3261, 0
    %v3364 = vsel %vm3326, %v3262, 0
    %v3367 = vsel %vm3326, %v3263, 0
    %v3370 = vsel %vm3326, %v3264, 0
    %v3373 = vsel %vm3326, %v3265, 0
    %v3376 = vsel %vm3326, %v3266, 0
    %v3379 = vsel %vm3326, %v3267, 0
    %v3382 = vsel %vm3326, %v3268, 0
    %v3385 = vsel %vm3326, %v3269, 0
    %v3388 = vsel %vm3326, %v3270, 0
    %v3391 = vsel %vm3326, %v3271, 0
    %v3394 = vsel %vm3326, %v3272, 0
    %v3397 = vsel %vm3326, %v3273, 0
    %v3400 = vsel %vm3326, %v3274, 0
    %v3403 = vsel %vm3326, %v3275, 0
    %v3406 = vsel %vm3326, %v3276, 0
    %v3409 = vsel %vm3326, %v3277, 0
    %v3412 = vsel %vm3326, %v3278, 0
    %v3415 = vsel %vm3326, %v3279, 0
    %v3418 = vsel %vm3326, %v3280, 0
    %v3421 = vsel %vm3326, %v3281, 0
    %v3424 = vsel %vm3326, %v3282, 0
    %v3427 = vsel %vm3326, %v3283, 0
    %v3430 = vsel %vm3326, %v3284, 0
    %v3433 = vsel %vm3326, %v3285, 0
    %v3436 = vsel %vm3326, %v3286, 0
    %v3439 = vsel %vm3326, %v3287, 0
    %v3442 = vsel %vm3326, %v3288, 0
    %v3445 = vsel %vm3326, %v3289, 0
    %v3448 = vsel %vm3326, %v3290, 0
    %v3451 = vsel %vm3326, %v3291, 0
    %v3454 = vsel %vm3326, %v3292, 0
    %v3457 = vsel %vm3326, %v3293, 0
    %v3460 = vsel %vm3326, %v3294, 0
    %v3463 = vsel %vm3326, %v3295, 0
    %v3466 = vsel %vm3326, %v3296, 0
    %v3469 = vsel %vm3326, %v3297, 0
    %v3472 = vsel %vm3326, %v3298, 0
    %v3475 = vsel %vm3326, %v3299, 0
    %v3478 = vsel %vm3326, %v3300, 0
    %v3481 = vsel %vm3326, %v3301, 0
    %v3484 = vsel %vm3326, %v3302, 0
    %v3487 = vsel %vm3326, %v3303, 0
    %v3490 = vsel %vm3326, %v3304, 0
    %v3493 = vsel %vm3326, %v3305, 0
    %v3496 = vsel %vm3326, %v3306, 0
    %v3499 = vsel %vm3326, %v3307, 0
    %v3502 = vsel %vm3326, %v3308, 0
    %v3505 = vsel %vm3326, %v3309, 0
    %v3508 = vsel %vm3326, %v3310, 0
    %v3511 = vsel %vm3326, %v3311, 0
    %v3514 = vsel %vm3326, %v3312, 0
    %v3517 = vsel %vm3326, %v3313, 0
    %vm3519 = vcmask 1043456
    %v3521 = vsel %vm3519, %v3318, 0
    %3523 = vmatprep.subr.mxu0 0.0
    %3524 = vmatpush1.msra.mxu0 %v3314
    %3525 = vmatprep.subr.mxu0 0.0
    %3526 = vmatpush1.msra.mxu0 %v3315
    %3527 = vmatprep.subr.mxu0 0.0
    %3528 = vmatpush1.msra.mxu0 %v3316
    %3529 = vmatprep.subr.mxu0 0.0
    %3530 = vmatpush1.msra.mxu0 %v3317
    %3531 = vmatprep.subr.mxu0 0.0
    %3532 = vmatpush1.msra.mxu0 %v3521
    %3533 = vmatprep.subr.mxu0 0.0
    %3534 = vmatpush1.msra.mxu0 0.0
    %3535 = vmatprep.subr.mxu0 0.0
    %3536 = vmatpush1.msra.mxu0 0.0
    %3537 = vmatprep.subr.mxu0 0.0
    %3538 = vmatpush1.msra.mxu0 0.0
    %3539 = vmatprep.subr.mxu0 0.0
    %3540 = vmatpush1.msra.mxu0 0.0
    %3541 = vmatprep.subr.mxu0 0.0
    %3542 = vmatpush1.msra.mxu0 0.0
    %3543 = vmatprep.subr.mxu0 0.0
    %3544 = vmatpush1.msra.mxu0 0.0
    %3545 = vmatprep.subr.mxu0 0.0
    %3546 = vmatpush1.msra.mxu0 0.0
    %3547 = vmatprep.subr.mxu0 0.0
    %3548 = vmatpush1.msra.mxu0 0.0
    %3549 = vmatprep.subr.mxu0 0.0
    %3550 = vmatpush1.msra.mxu0 0.0
    %3551 = vmatprep.subr.mxu0 0.0
    %3552 = vmatpush1.msra.mxu0 0.0
    %3553 = vmatprep.subr.mxu0 0.0
    %3554 = vmatpush1.msra.mxu0 0.0
    %3555 = vmatprep.subr.mxu0 0.0
    %3556 = vmatpush1.msra.mxu0 0.0
    %3557 = vmatprep.subr.mxu0 0.0
    %3558 = vmatpush1.msra.mxu0 0.0
    %3559 = vmatprep.subr.mxu0 0.0
    %3560 = vmatpush1.msra.mxu0 0.0
    %3561 = vmatprep.subr.mxu0 0.0
    %3562 = vmatpush1.msra.mxu0 0.0
    %3563 = vmatprep.subr.mxu0 0.0
    %3564 = vmatpush1.msra.mxu0 0.0
    %3565 = vmatprep.subr.mxu0 0.0
    %3566 = vmatpush1.msra.mxu0 0.0
    %3567 = vmatprep.subr.mxu0 0.0
    %3568 = vmatpush1.msra.mxu0 0.0
    %3569 = vmatprep.subr.mxu0 0.0
    %3570 = vmatpush1.msra.mxu0 0.0
    %3571 = vmatprep.subr.mxu0 0.0
    %3572 = vmatpush1.msra.mxu0 0.0
    %3573 = vmatprep.subr.mxu0 0.0
    %3574 = vmatpush1.msra.mxu0 0.0
    %3575 = vmatprep.subr.mxu0 0.0
    %3576 = vmatpush1.msra.mxu0 0.0
    %3577 = vmatprep.subr.mxu0 0.0
    %3578 = vmatpush1.msra.mxu0 0.0
    %3579 = vmatprep.subr.mxu0 0.0
    %3580 = vmatpush1.msra.mxu0 0.0
    %3581 = vmatprep.subr.mxu0 0.0
    %3582 = vmatpush1.msra.mxu0 0.0
    %3583 = vmatprep.subr.mxu0 0.0
    %3584 = vmatpush1.msra.mxu0 0.0
    %3585 = vmatprep.subr.mxu0 0.0
    %3586 = vmatpush1.msra.mxu0 0.0
    %3587 = vmatprep.mubr.f32.mxu0 0.0
    %3588 = vmatmul.mubr.f32.gmra.mrb[0].mxu0 %v3328
    %v3589 = vpop.f32.mrb[0].mxu0
    %v3590 = vadd.f32 %v3324, %v3589
    %v3591 = vpop.f32.mrb[0].mxu0
    %3592 = vmatprep.mubr.f32.mxu0 0.0
    %3593 = vmatmul.mubr.f32.gmra.mrb[0].mxu0 %v3331
    %v3594 = vpop.f32.mrb[0].mxu0
    %v3595 = vadd.f32 %v3324, %v3594
    %v3596 = vpop.f32.mrb[0].mxu0
    %3597 = vmatprep.mubr.f32.mxu0 0.0
    %3598 = vmatmul.mubr.f32.gmra.mrb[0].mxu0 %v3334
    %v3599 = vpop.f32.mrb[0].mxu0
    %v3600 = vadd.f32 %v3324, %v3599
    %v3601 = vpop.f32.mrb[0].mxu0
    %3602 = vmatprep.mubr.f32.mxu0 0.0
    %3603 = vmatmul.mubr.f32.gmra.mrb[0].mxu0 %v3337
    %v3604 = vpop.f32.mrb[0].mxu0
    %v3605 = vadd.f32 %v3324, %v3604
    %v3606 = vpop.f32.mrb[0].mxu0
    %3607 = vmatprep.mubr.f32.mxu0 0.0
    %3608 = vmatmul.mubr.f32.gmra.mrb[0].mxu0 %v3340
    %v3609 = vpop.f32.mrb[0].mxu0
    %v3610 = vadd.f32 %v3324, %v3609
    %v3611 = vpop.f32.mrb[0].mxu0
    %3612 = vmatprep.mubr.f32.mxu0 0.0
    %3613 = vmatmul.mubr.f32.gmra.mrb[0].mxu0 %v3343
    %v3614 = vpop.f32.mrb[0].mxu0
    %v3615 = vadd.f32 %v3324, %v3614
    %v3616 = vpop.f32.mrb[0].mxu0
    %3617 = vmatprep.mubr.f32.mxu0 0.0
    %3618 = vmatmul.mubr.f32.gmra.mrb[0].mxu0 %v3346
    %v3619 = vpop.f32.mrb[0].mxu0
    %v3620 = vadd.f32 %v3324, %v3619
    %v3621 = vpop.f32.mrb[0].mxu0
    %3622 = vmatprep.mubr.f32.mxu0 0.0
    %3623 = vmatmul.mubr.f32.gmra.mrb[0].mxu0 %v3349
    %v3624 = vpop.f32.mrb[0].mxu0
    %v3625 = vadd.f32 %v3324, %v3624
    %v3626 = vpop.f32.mrb[0].mxu0
    %3627 = vmatprep.mubr.f32.mxu0 0.0
    %3628 = vmatmul.mubr.f32.gmra.mrb[0].mxu0 %v3352
    %v3629 = vpop.f32.mrb[0].mxu0
    %v3630 = vadd.f32 %v3324, %v3629
    %v3631 = vpop.f32.mrb[0].mxu0
    %3632 = vmatprep.mubr.f32.mxu0 0.0
    %3633 = vmatmul.mubr.f32.gmra.mrb[0].mxu0 %v3355
    %v3634 = vpop.f32.mrb[0].mxu0
    %v3635 = vadd.f32 %v3324, %v3634
    %v3636 = vpop.f32.mrb[0].mxu0
    %3637 = vmatprep.mubr.f32.mxu0 0.0
    %3638 = vmatmul.mubr.f32.gmra.mrb[0].mxu0 %v3358
    %v3639 = vpop.f32.mrb[0].mxu0
    %v3640 = vadd.f32 %v3324, %v3639
    %v3641 = vpop.f32.mrb[0].mxu0
    %3642 = vmatprep.mubr.f32.mxu0 0.0
    %3643 = vmatmul.mubr.f32.gmra.mrb[0].mxu0 %v3361
    %v3644 = vpop.f32.mrb[0].mxu0
    %v3645 = vadd.f32 %v3324, %v3644
    %v3646 = vpop.f32.mrb[0].mxu0
    %3647 = vmatprep.mubr.f32.mxu0 0.0
    %3648 = vmatmul.mubr.f32.gmra.mrb[0].mxu0 %v3364
    %v3649 = vpop.f32.mrb[0].mxu0
    %v3650 = vadd.f32 %v3324, %v3649
    %v3651 = vpop.f32.mrb[0].mxu0
    %3652 = vmatprep.mubr.f32.mxu0 0.0
    %3653 = vmatmul.mubr.f32.gmra.mrb[0].mxu0 %v3367
    %v3654 = vpop.f32.mrb[0].mxu0
    %v3655 = vadd.f32 %v3324, %v3654
    %v3656 = vpop.f32.mrb[0].mxu0
    %3657 = vmatprep.mubr.f32.mxu0 0.0
    %3658 = vmatmul.mubr.f32.gmra.mrb[0].mxu0 %v3370
    %v3659 = vpop.f32.mrb[0].mxu0
    %v3660 = vadd.f32 %v3324, %v3659
    %v3661 = vpop.f32.mrb[0].mxu0
    %3662 = vmatprep.mubr.f32.mxu0 0.0
    %3663 = vmatmul.mubr.f32.gmra.mrb[0].mxu0 %v3373
    %v3664 = vpop.f32.mrb[0].mxu0
    %v3665 = vadd.f32 %v3324, %v3664
    %v3666 = vpop.f32.mrb[0].mxu0
    %3667 = vmatprep.mubr.f32.mxu0 0.0
    %3668 = vmatmul.mubr.f32.gmra.mrb[0].mxu0 %v3376
    %v3669 = vpop.f32.mrb[0].mxu0
    %v3670 = vadd.f32 %v3324, %v3669
    %v3671 = vpop.f32.mrb[0].mxu0
    %3672 = vmatprep.mubr.f32.mxu0 0.0
    %3673 = vmatmul.mubr.f32.gmra.mrb[0].mxu0 %v3379
    %v3674 = vpop.f32.mrb[0].mxu0
    %v3675 = vadd.f32 %v3324, %v3674
    %v3676 = vpop.f32.mrb[0].mxu0
    %3677 = vmatprep.mubr.f32.mxu0 0.0
    %3678 = vmatmul.mubr.f32.gmra.mrb[0].mxu0 %v3382
    %v3679 = vpop.f32.mrb[0].mxu0
    %v3680 = vadd.f32 %v3324, %v3679
    %v3681 = vpop.f32.mrb[0].mxu0
    %3682 = vmatprep.mubr.f32.mxu0 0.0
    %3683 = vmatmul.mubr.f32.gmra.mrb[0].mxu0 %v3385
    %v3684 = vpop.f32.mrb[0].mxu0
    %v3685 = vadd.f32 %v3324, %v3684
    %v3686 = vpop.f32.mrb[0].mxu0
    %3687 = vmatprep.mubr.f32.mxu0 0.0
    %3688 = vmatmul.mubr.f32.gmra.mrb[0].mxu0 %v3388
    %v3689 = vpop.f32.mrb[0].mxu0
    %v3690 = vadd.f32 %v3324, %v3689
    %v3691 = vpop.f32.mrb[0].mxu0
    %3692 = vmatprep.mubr.f32.mxu0 0.0
    %3693 = vmatmul.mubr.f32.gmra.mrb[0].mxu0 %v3391
    %v3694 = vpop.f32.mrb[0].mxu0
    %v3695 = vadd.f32 %v3324, %v3694
    %v3696 = vpop.f32.mrb[0].mxu0
    %3697 = vmatprep.mubr.f32.mxu0 0.0
    %3698 = vmatmul.mubr.f32.gmra.mrb[0].mxu0 %v3394
    %v3699 = vpop.f32.mrb[0].mxu0
    %v3700 = vadd.f32 %v3324, %v3699
    %v3701 = vpop.f32.mrb[0].mxu0
    %3702 = vmatprep.mubr.f32.mxu0 0.0
    %3703 = vmatmul.mubr.f32.gmra.mrb[0].mxu0 %v3397
    %v3704 = vpop.f32.mrb[0].mxu0
    %v3705 = vadd.f32 %v3324, %v3704
    %v3706 = vpop.f32.mrb[0].mxu0
    %3707 = vmatprep.mubr.f32.mxu0 0.0
    %3708 = vmatmul.mubr.f32.gmra.mrb[0].mxu0 %v3400
    %v3709 = vpop.f32.mrb[0].mxu0
    %v3710 = vadd.f32 %v3324, %v3709
    %v3711 = vpop.f32.mrb[0].mxu0
    %3712 = vmatprep.mubr.f32.mxu0 0.0
    %3713 = vmatmul.mubr.f32.gmra.mrb[0].mxu0 %v3403
    %v3714 = vpop.f32.mrb[0].mxu0
    %v3715 = vadd.f32 %v3324, %v3714
    %v3716 = vpop.f32.mrb[0].mxu0
    %3717 = vmatprep.mubr.f32.mxu0 0.0
    %3718 = vmatmul.mubr.f32.gmra.mrb[0].mxu0 %v3406
    %v3719 = vpop.f32.mrb[0].mxu0
    %v3720 = vadd.f32 %v3324, %v3719
    %v3721 = vpop.f32.mrb[0].mxu0
    %3722 = vmatprep.mubr.f32.mxu0 0.0
    %3723 = vmatmul.mubr.f32.gmra.mrb[0].mxu0 %v3409
    %v3724 = vpop.f32.mrb[0].mxu0
    %v3725 = vadd.f32 %v3324, %v3724
    %v3726 = vpop.f32.mrb[0].mxu0
    %3727 = vmatprep.mubr.f32.mxu0 0.0
    %3728 = vmatmul.mubr.f32.gmra.mrb[0].mxu0 %v3412
    %v3729 = vpop.f32.mrb[0].mxu0
    %v3730 = vadd.f32 %v3324, %v3729
    %v3731 = vpop.f32.mrb[0].mxu0
    %3732 = vmatprep.mubr.f32.mxu0 0.0
    %3733 = vmatmul.mubr.f32.gmra.mrb[0].mxu0 %v3415
    %v3734 = vpop.f32.mrb[0].mxu0
    %v3735 = vadd.f32 %v3324, %v3734
    %v3736 = vpop.f32.mrb[0].mxu0
    %3737 = vmatprep.mubr.f32.mxu0 0.0
    %3738 = vmatmul.mubr.f32.gmra.mrb[0].mxu0 %v3418
    %v3739 = vpop.f32.mrb[0].mxu0
    %v3740 = vadd.f32 %v3324, %v3739
    %v3741 = vpop.f32.mrb[0].mxu0
    %3742 = vmatprep.mubr.f32.mxu0 0.0
    %3743 = vmatmul.mubr.f32.gmra.mrb[0].mxu0 %v3421
    %v3744 = vpop.f32.mrb[0].mxu0
    %v3745 = vadd.f32 %v3324, %v3744
    %v3746 = vpop.f32.mrb[0].mxu0
    %3747 = vmatprep.mubr.f32.mxu0 0.0
    %3748 = vmatmul.mubr.f32.gmra.mrb[0].mxu0 %v3424
    %v3749 = vpop.f32.mrb[0].mxu0
    %v3750 = vadd.f32 %v3324, %v3749
    %v3751 = vpop.f32.mrb[0].mxu0
    %3752 = vmatprep.mubr.f32.mxu0 0.0
    %3753 = vmatmul.mubr.f32.gmra.mrb[0].mxu0 %v3427
    %v3754 = vpop.f32.mrb[0].mxu0
    %v3755 = vadd.f32 %v3324, %v3754
    %v3756 = vpop.f32.mrb[0].mxu0
    %3757 = vmatprep.mubr.f32.mxu0 0.0
    %3758 = vmatmul.mubr.f32.gmra.mrb[0].mxu0 %v3430
    %v3759 = vpop.f32.mrb[0].mxu0
    %v3760 = vadd.f32 %v3324, %v3759
    %v3761 = vpop.f32.mrb[0].mxu0
    %3762 = vmatprep.mubr.f32.mxu0 0.0
    %3763 = vmatmul.mubr.f32.gmra.mrb[0].mxu0 %v3433
    %v3764 = vpop.f32.mrb[0].mxu0
    %v3765 = vadd.f32 %v3324, %v3764
    %v3766 = vpop.f32.mrb[0].mxu0
    %3767 = vmatprep.mubr.f32.mxu0 0.0
    %3768 = vmatmul.mubr.f32.gmra.mrb[0].mxu0 %v3436
    %v3769 = vpop.f32.mrb[0].mxu0
    %v3770 = vadd.f32 %v3324, %v3769
    %v3771 = vpop.f32.mrb[0].mxu0
    %3772 = vmatprep.mubr.f32.mxu0 0.0
    %3773 = vmatmul.mubr.f32.gmra.mrb[0].mxu0 %v3439
    %v3774 = vpop.f32.mrb[0].mxu0
    %v3775 = vadd.f32 %v3324, %v3774
    %v3776 = vpop.f32.mrb[0].mxu0
    %3777 = vmatprep.mubr.f32.mxu0 0.0
    %3778 = vmatmul.mubr.f32.gmra.mrb[0].mxu0 %v3442
    %v3779 = vpop.f32.mrb[0].mxu0
    %v3780 = vadd.f32 %v3324, %v3779
    %v3781 = vpop.f32.mrb[0].mxu0
    %3782 = vmatprep.mubr.f32.mxu0 0.0
    %3783 = vmatmul.mubr.f32.gmra.mrb[0].mxu0 %v3445
    %v3784 = vpop.f32.mrb[0].mxu0
    %v3785 = vadd.f32 %v3324, %v3784
    %v3786 = vpop.f32.mrb[0].mxu0
    %3787 = vmatprep.mubr.f32.mxu0 0.0
    %3788 = vmatmul.mubr.f32.gmra.mrb[0].mxu0 %v3448
    %v3789 = vpop.f32.mrb[0].mxu0
    %v3790 = vadd.f32 %v3324, %v3789
    %v3791 = vpop.f32.mrb[0].mxu0
    %3792 = vmatprep.mubr.f32.mxu0 0.0
    %3793 = vmatmul.mubr.f32.gmra.mrb[0].mxu0 %v3451
    %v3794 = vpop.f32.mrb[0].mxu0
    %v3795 = vadd.f32 %v3324, %v3794
    %v3796 = vpop.f32.mrb[0].mxu0
    %3797 = vmatprep.mubr.f32.mxu0 0.0
    %3798 = vmatmul.mubr.f32.gmra.mrb[0].mxu0 %v3454
    %v3799 = vpop.f32.mrb[0].mxu0
    %v3800 = vadd.f32 %v3324, %v3799
    %v3801 = vpop.f32.mrb[0].mxu0
    %3802 = vmatprep.mubr.f32.mxu0 0.0
    %3803 = vmatmul.mubr.f32.gmra.mrb[0].mxu0 %v3457
    %v3804 = vpop.f32.mrb[0].mxu0
    %v3805 = vadd.f32 %v3324, %v3804
    %v3806 = vpop.f32.mrb[0].mxu0
    %3807 = vmatprep.mubr.f32.mxu0 0.0
    %3808 = vmatmul.mubr.f32.gmra.mrb[0].mxu0 %v3460
    %v3809 = vpop.f32.mrb[0].mxu0
    %v3810 = vadd.f32 %v3324, %v3809
    %v3811 = vpop.f32.mrb[0].mxu0
    %3812 = vmatprep.mubr.f32.mxu0 0.0
    %3813 = vmatmul.mubr.f32.gmra.mrb[0].mxu0 %v3463
    %v3814 = vpop.f32.mrb[0].mxu0
    %v3815 = vadd.f32 %v3324, %v3814
    %v3816 = vpop.f32.mrb[0].mxu0
    %3817 = vmatprep.mubr.f32.mxu0 0.0
    %3818 = vmatmul.mubr.f32.gmra.mrb[0].mxu0 %v3466
    %v3819 = vpop.f32.mrb[0].mxu0
    %v3820 = vadd.f32 %v3324, %v3819
    %v3821 = vpop.f32.mrb[0].mxu0
    %3822 = vmatprep.mubr.f32.mxu0 0.0
    %3823 = vmatmul.mubr.f32.gmra.mrb[0].mxu0 %v3469
    %v3824 = vpop.f32.mrb[0].mxu0
    %v3825 = vadd.f32 %v3324, %v3824
    %v3826 = vpop.f32.mrb[0].mxu0
    %3827 = vmatprep.mubr.f32.mxu0 0.0
    %3828 = vmatmul.mubr.f32.gmra.mrb[0].mxu0 %v3472
    %v3829 = vpop.f32.mrb[0].mxu0
    %v3830 = vadd.f32 %v3324, %v3829
    %v3831 = vpop.f32.mrb[0].mxu0
    %3832 = vmatprep.mubr.f32.mxu0 0.0
    %3833 = vmatmul.mubr.f32.gmra.mrb[0].mxu0 %v3475
    %v3834 = vpop.f32.mrb[0].mxu0
    %v3835 = vadd.f32 %v3324, %v3834
    %v3836 = vpop.f32.mrb[0].mxu0
    %3837 = vmatprep.mubr.f32.mxu0 0.0
    %3838 = vmatmul.mubr.f32.gmra.mrb[0].mxu0 %v3478
    %v3839 = vpop.f32.mrb[0].mxu0
    %v3840 = vadd.f32 %v3324, %v3839
    %v3841 = vpop.f32.mrb[0].mxu0
    %3842 = vmatprep.mubr.f32.mxu0 0.0
    %3843 = vmatmul.mubr.f32.gmra.mrb[0].mxu0 %v3481
    %v3844 = vpop.f32.mrb[0].mxu0
    %v3845 = vadd.f32 %v3324, %v3844
    %v3846 = vpop.f32.mrb[0].mxu0
    %3847 = vmatprep.mubr.f32.mxu0 0.0
    %3848 = vmatmul.mubr.f32.gmra.mrb[0].mxu0 %v3484
    %v3849 = vpop.f32.mrb[0].mxu0
    %v3850 = vadd.f32 %v3324, %v3849
    %v3851 = vpop.f32.mrb[0].mxu0
    %3852 = vmatprep.mubr.f32.mxu0 0.0
    %3853 = vmatmul.mubr.f32.gmra.mrb[0].mxu0 %v3487
    %v3854 = vpop.f32.mrb[0].mxu0
    %v3855 = vadd.f32 %v3324, %v3854
    %v3856 = vpop.f32.mrb[0].mxu0
    %3857 = vmatprep.mubr.f32.mxu0 0.0
    %3858 = vmatmul.mubr.f32.gmra.mrb[0].mxu0 %v3490
    %v3859 = vpop.f32.mrb[0].mxu0
    %v3860 = vadd.f32 %v3324, %v3859
    %v3861 = vpop.f32.mrb[0].mxu0
    %3862 = vmatprep.mubr.f32.mxu0 0.0
    %3863 = vmatmul.mubr.f32.gmra.mrb[0].mxu0 %v3493
    %v3864 = vpop.f32.mrb[0].mxu0
    %v3865 = vadd.f32 %v3324, %v3864
    %v3866 = vpop.f32.mrb[0].mxu0
    %3867 = vmatprep.mubr.f32.mxu0 0.0
    %3868 = vmatmul.mubr.f32.gmra.mrb[0].mxu0 %v3496
    %v3869 = vpop.f32.mrb[0].mxu0
    %v3870 = vadd.f32 %v3324, %v3869
    %v3871 = vpop.f32.mrb[0].mxu0
    %3872 = vmatprep.mubr.f32.mxu0 0.0
    %3873 = vmatmul.mubr.f32.gmra.mrb[0].mxu0 %v3499
    %v3874 = vpop.f32.mrb[0].mxu0
    %v3875 = vadd.f32 %v3324, %v3874
    %v3876 = vpop.f32.mrb[0].mxu0
    %3877 = vmatprep.mubr.f32.mxu0 0.0
    %3878 = vmatmul.mubr.f32.gmra.mrb[0].mxu0 %v3502
    %v3879 = vpop.f32.mrb[0].mxu0
    %v3880 = vadd.f32 %v3324, %v3879
    %v3881 = vpop.f32.mrb[0].mxu0
    %3882 = vmatprep.mubr.f32.mxu0 0.0
    %3883 = vmatmul.mubr.f32.gmra.mrb[0].mxu0 %v3505
    %v3884 = vpop.f32.mrb[0].mxu0
    %v3885 = vadd.f32 %v3324, %v3884
    %v3886 = vpop.f32.mrb[0].mxu0
    %3887 = vmatprep.mubr.f32.mxu0 0.0
    %3888 = vmatmul.mubr.f32.gmra.mrb[0].mxu0 %v3508
    %v3889 = vpop.f32.mrb[0].mxu0
    %v3890 = vadd.f32 %v3324, %v3889
    %v3891 = vpop.f32.mrb[0].mxu0
    %3892 = vmatprep.mubr.f32.mxu0 0.0
    %3893 = vmatmul.mubr.f32.gmra.mrb[0].mxu0 %v3511
    %v3894 = vpop.f32.mrb[0].mxu0
    %v3895 = vadd.f32 %v3324, %v3894
    %v3896 = vpop.f32.mrb[0].mxu0
    %3897 = vmatprep.mubr.f32.mxu0 0.0
    %3898 = vmatmul.mubr.f32.gmra.mrb[0].mxu0 %v3514
    %v3899 = vpop.f32.mrb[0].mxu0
    %v3900 = vadd.f32 %v3324, %v3899
    %v3901 = vpop.f32.mrb[0].mxu0
    %3902 = vmatprep.mubr.f32.mxu0 0.0
    %3903 = vmatmul.mubr.f32.gmra.mrb[0].mxu0 %v3517
    %v3904 = vpop.f32.mrb[0].mxu0
    %v3905 = vadd.f32 %v3324, %v3904
    %v3906 = vpop.f32.mrb[0].mxu0
    %3907 = vdwg.mxu0
    %vm3908 = vcmask 64512
    %v3909 = vsel %vm3908, %v3590, 0.0
    %v3910 = vsel %vm3908, %v3595, 0.0
    %v3911 = vadd.f32 %v3909, %v3910
    %v3912 = vsel %vm3908, %v3600, 0.0
    %v3913 = vadd.f32 %v3911, %v3912
    %v3914 = vsel %vm3908, %v3605, 0.0
    %v3915 = vadd.f32 %v3913, %v3914
    %v3916 = vsel %vm3908, %v3610, 0.0
    %v3917 = vadd.f32 %v3915, %v3916
    %v3918 = vsel %vm3908, %v3615, 0.0
    %v3919 = vadd.f32 %v3917, %v3918
    %v3920 = vsel %vm3908, %v3620, 0.0
    %v3921 = vadd.f32 %v3919, %v3920
    %v3922 = vsel %vm3908, %v3625, 0.0
    %v3923 = vadd.f32 %v3921, %v3922
    %v3924 = vsel %vm3908, %v3630, 0.0
    %v3925 = vadd.f32 %v3923, %v3924
    %v3926 = vsel %vm3908, %v3635, 0.0
    %v3927 = vadd.f32 %v3925, %v3926
    %v3928 = vsel %vm3908, %v3640, 0.0
    %v3929 = vadd.f32 %v3927, %v3928
    %v3930 = vsel %vm3908, %v3645, 0.0
    %v3931 = vadd.f32 %v3929, %v3930
    %v3932 = vsel %vm3908, %v3650, 0.0
    %v3933 = vadd.f32 %v3931, %v3932
    %v3934 = vsel %vm3908, %v3655, 0.0
    %v3935 = vadd.f32 %v3933, %v3934
    %v3936 = vsel %vm3908, %v3660, 0.0
    %v3937 = vadd.f32 %v3935, %v3936
    %v3938 = vsel %vm3908, %v3665, 0.0
    %v3939 = vadd.f32 %v3937, %v3938
    %v3940 = vsel %vm3908, %v3670, 0.0
    %v3941 = vadd.f32 %v3939, %v3940
    %v3942 = vsel %vm3908, %v3675, 0.0
    %v3943 = vadd.f32 %v3941, %v3942
    %v3944 = vsel %vm3908, %v3680, 0.0
    %v3945 = vadd.f32 %v3943, %v3944
    %v3946 = vsel %vm3908, %v3685, 0.0
    %v3947 = vadd.f32 %v3945, %v3946
    %v3948 = vsel %vm3908, %v3690, 0.0
    %v3949 = vadd.f32 %v3947, %v3948
    %v3950 = vsel %vm3908, %v3695, 0.0
    %v3951 = vadd.f32 %v3949, %v3950
    %v3952 = vsel %vm3908, %v3700, 0.0
    %v3953 = vadd.f32 %v3951, %v3952
    %v3954 = vsel %vm3908, %v3705, 0.0
    %v3955 = vadd.f32 %v3953, %v3954
    %v3956 = vsel %vm3908, %v3710, 0.0
    %v3957 = vadd.f32 %v3955, %v3956
    %v3958 = vsel %vm3908, %v3715, 0.0
    %v3959 = vadd.f32 %v3957, %v3958
    %v3960 = vsel %vm3908, %v3720, 0.0
    %v3961 = vadd.f32 %v3959, %v3960
    %v3962 = vsel %vm3908, %v3725, 0.0
    %v3963 = vadd.f32 %v3961, %v3962
    %v3964 = vsel %vm3908, %v3730, 0.0
    %v3965 = vadd.f32 %v3963, %v3964
    %v3966 = vsel %vm3908, %v3735, 0.0
    %v3967 = vadd.f32 %v3965, %v3966
    %v3968 = vsel %vm3908, %v3740, 0.0
    %v3969 = vadd.f32 %v3967, %v3968
    %v3970 = vsel %vm3908, %v3745, 0.0
    %v3971 = vadd.f32 %v3969, %v3970
    %v3972 = vsel %vm3908, %v3750, 0.0
    %v3973 = vadd.f32 %v3971, %v3972
    %v3974 = vsel %vm3908, %v3755, 0.0
    %v3975 = vadd.f32 %v3973, %v3974
    %v3976 = vsel %vm3908, %v3760, 0.0
    %v3977 = vadd.f32 %v3975, %v3976
    %v3978 = vsel %vm3908, %v3765, 0.0
    %v3979 = vadd.f32 %v3977, %v3978
    %v3980 = vsel %vm3908, %v3770, 0.0
    %v3981 = vadd.f32 %v3979, %v3980
    %v3982 = vsel %vm3908, %v3775, 0.0
    %v3983 = vadd.f32 %v3981, %v3982
    %v3984 = vsel %vm3908, %v3780, 0.0
    %v3985 = vadd.f32 %v3983, %v3984
    %v3986 = vsel %vm3908, %v3785, 0.0
    %v3987 = vadd.f32 %v3985, %v3986
    %v3988 = vsel %vm3908, %v3790, 0.0
    %v3989 = vadd.f32 %v3987, %v3988
    %v3990 = vsel %vm3908, %v3795, 0.0
    %v3991 = vadd.f32 %v3989, %v3990
    %v3992 = vsel %vm3908, %v3800, 0.0
    %v3993 = vadd.f32 %v3991, %v3992
    %v3994 = vsel %vm3908, %v3805, 0.0
    %v3995 = vadd.f32 %v3993, %v3994
    %v3996 = vsel %vm3908, %v3810, 0.0
    %v3997 = vadd.f32 %v3995, %v3996
    %v3998 = vsel %vm3908, %v3815, 0.0
    %v3999 = vadd.f32 %v3997, %v3998
    %v4000 = vsel %vm3908, %v3820, 0.0
    %v4001 = vadd.f32 %v3999, %v4000
    %v4002 = vsel %vm3908, %v3825, 0.0
    %v4003 = vadd.f32 %v4001, %v4002
    %v4004 = vsel %vm3908, %v3830, 0.0
    %v4005 = vadd.f32 %v4003, %v4004
    %v4006 = vsel %vm3908, %v3835, 0.0
    %v4007 = vadd.f32 %v4005, %v4006
    %v4008 = vsel %vm3908, %v3840, 0.0
    %v4009 = vadd.f32 %v4007, %v4008
    %v4010 = vsel %vm3908, %v3845, 0.0
    %v4011 = vadd.f32 %v4009, %v4010
    %v4012 = vsel %vm3908, %v3850, 0.0
    %v4013 = vadd.f32 %v4011, %v4012
    %v4014 = vsel %vm3908, %v3855, 0.0
    %v4015 = vadd.f32 %v4013, %v4014
    %v4016 = vsel %vm3908, %v3860, 0.0
    %v4017 = vadd.f32 %v4015, %v4016
    %v4018 = vsel %vm3908, %v3865, 0.0
    %v4019 = vadd.f32 %v4017, %v4018
    %v4020 = vsel %vm3908, %v3870, 0.0
    %v4021 = vadd.f32 %v4019, %v4020
    %v4022 = vsel %vm3908, %v3875, 0.0
    %v4023 = vadd.f32 %v4021, %v4022
    %v4024 = vsel %vm3908, %v3880, 0.0
    %v4025 = vadd.f32 %v4023, %v4024
    %v4026 = vsel %vm3908, %v3885, 0.0
    %v4027 = vadd.f32 %v4025, %v4026
    %v4028 = vsel %vm3908, %v3890, 0.0
    %v4029 = vadd.f32 %v4027, %v4028
    %v4030 = vsel %vm3908, %v3895, 0.0
    %v4031 = vadd.f32 %v4029, %v4030
    %v4032 = vsel %vm3908, %v3900, 0.0
    %v4033 = vadd.f32 %v4031, %v4032
    %v4034 = vsel %vm3908, %v3905, 0.0
    %v4035 = vadd.f32 %v4033, %v4034
    %v4036 = vrot.slane %v4035, 4
    %v4037 = vadd.f32 %v4035, %v4036
    %v4038 = vrot.slane %v4037, 2
    %v4039 = vadd.f32 %v4037, %v4038
    %v4040 = vrot.slane %v4039, 1
    %v4041 = vadd.f32 %v4039, %v4040
    %v4042 = vmul.f32 %v3590, %v3590
    %v4043 = vmul.f32 %v3595, %v3595
    %v4044 = vmul.f32 %v3600, %v3600
    %v4045 = vmul.f32 %v3605, %v3605
    %v4046 = vmul.f32 %v3610, %v3610
    %v4047 = vmul.f32 %v3615, %v3615
    %v4048 = vmul.f32 %v3620, %v3620
    %v4049 = vmul.f32 %v3625, %v3625
    %v4050 = vmul.f32 %v3630, %v3630
    %v4051 = vmul.f32 %v3635, %v3635
    %v4052 = vmul.f32 %v3640, %v3640
    %v4053 = vmul.f32 %v3645, %v3645
    %v4054 = vmul.f32 %v3650, %v3650
    %v4055 = vmul.f32 %v3655, %v3655
    %v4056 = vmul.f32 %v3660, %v3660
    %v4057 = vmul.f32 %v3665, %v3665
    %v4058 = vmul.f32 %v3670, %v3670
    %v4059 = vmul.f32 %v3675, %v3675
    %v4060 = vmul.f32 %v3680, %v3680
    %v4061 = vmul.f32 %v3685, %v3685
    %v4062 = vmul.f32 %v3690, %v3690
    %v4063 = vmul.f32 %v3695, %v3695
    %v4064 = vmul.f32 %v3700, %v3700
    %v4065 = vmul.f32 %v3705, %v3705
    %v4066 = vmul.f32 %v3710, %v3710
    %v4067 = vmul.f32 %v3715, %v3715
    %v4068 = vmul.f32 %v3720, %v3720
    %v4069 = vmul.f32 %v3725, %v3725
    %v4070 = vmul.f32 %v3730, %v3730
    %v4071 = vmul.f32 %v3735, %v3735
    %v4072 = vmul.f32 %v3740, %v3740
    %v4073 = vmul.f32 %v3745, %v3745
    %v4074 = vmul.f32 %v3750, %v3750
    %v4075 = vmul.f32 %v3755, %v3755
    %v4076 = vmul.f32 %v3760, %v3760
    %v4077 = vmul.f32 %v3765, %v3765
    %v4078 = vmul.f32 %v3770, %v3770
    %v4079 = vmul.f32 %v3775, %v3775
    %v4080 = vmul.f32 %v3780, %v3780
    %v4081 = vmul.f32 %v3785, %v3785
    %v4082 = vmul.f32 %v3790, %v3790
    %v4083 = vmul.f32 %v3795, %v3795
    %v4084 = vmul.f32 %v3800, %v3800
    %v4085 = vmul.f32 %v3805, %v3805
    %v4086 = vmul.f32 %v3810, %v3810
    %v4087 = vmul.f32 %v3815, %v3815
    %v4088 = vmul.f32 %v3820, %v3820
    %v4089 = vmul.f32 %v3825, %v3825
    %v4090 = vmul.f32 %v3830, %v3830
    %v4091 = vmul.f32 %v3835, %v3835
    %v4092 = vmul.f32 %v3840, %v3840
    %v4093 = vmul.f32 %v3845, %v3845
    %v4094 = vmul.f32 %v3850, %v3850
    %v4095 = vmul.f32 %v3855, %v3855
    %v4096 = vmul.f32 %v3860, %v3860
    %v4097 = vmul.f32 %v3865, %v3865
    %v4098 = vmul.f32 %v3870, %v3870
    %v4099 = vmul.f32 %v3875, %v3875
    %v4100 = vmul.f32 %v3880, %v3880
    %v4101 = vmul.f32 %v3885, %v3885
    %v4102 = vmul.f32 %v3890, %v3890
    %v4103 = vmul.f32 %v3895, %v3895
    %v4104 = vmul.f32 %v3900, %v3900
    %v4105 = vmul.f32 %v3905, %v3905
    %v4106 = vsel %vm3908, %v4042, 0.0
    %v4107 = vsel %vm3908, %v4043, 0.0
    %v4108 = vadd.f32 %v4106, %v4107
    %v4109 = vsel %vm3908, %v4044, 0.0
    %v4110 = vadd.f32 %v4108, %v4109
    %v4111 = vsel %vm3908, %v4045, 0.0
    %v4112 = vadd.f32 %v4110, %v4111
    %v4113 = vsel %vm3908, %v4046, 0.0
    %v4114 = vadd.f32 %v4112, %v4113
    %v4115 = vsel %vm3908, %v4047, 0.0
    %v4116 = vadd.f32 %v4114, %v4115
    %v4117 = vsel %vm3908, %v4048, 0.0
    %v4118 = vadd.f32 %v4116, %v4117
    %v4119 = vsel %vm3908, %v4049, 0.0
    %v4120 = vadd.f32 %v4118, %v4119
    %v4121 = vsel %vm3908, %v4050, 0.0
    %v4122 = vadd.f32 %v4120, %v4121
    %v4123 = vsel %vm3908, %v4051, 0.0
    %v4124 = vadd.f32 %v4122, %v4123
    %v4125 = vsel %vm3908, %v4052, 0.0
    %v4126 = vadd.f32 %v4124, %v4125
    %v4127 = vsel %vm3908, %v4053, 0.0
    %v4128 = vadd.f32 %v4126, %v4127
    %v4129 = vsel %vm3908, %v4054, 0.0
    %v4130 = vadd.f32 %v4128, %v4129
    %v4131 = vsel %vm3908, %v4055, 0.0
    %v4132 = vadd.f32 %v4130, %v4131
    %v4133 = vsel %vm3908, %v4056, 0.0
    %v4134 = vadd.f32 %v4132, %v4133
    %v4135 = vsel %vm3908, %v4057, 0.0
    %v4136 = vadd.f32 %v4134, %v4135
    %v4137 = vsel %vm3908, %v4058, 0.0
    %v4138 = vadd.f32 %v4136, %v4137
    %v4139 = vsel %vm3908, %v4059, 0.0
    %v4140 = vadd.f32 %v4138, %v4139
    %v4141 = vsel %vm3908, %v4060, 0.0
    %v4142 = vadd.f32 %v4140, %v4141
    %v4143 = vsel %vm3908, %v4061, 0.0
    %v4144 = vadd.f32 %v4142, %v4143
    %v4145 = vsel %vm3908, %v4062, 0.0
    %v4146 = vadd.f32 %v4144, %v4145
    %v4147 = vsel %vm3908, %v4063, 0.0
    %v4148 = vadd.f32 %v4146, %v4147
    %v4149 = vsel %vm3908, %v4064, 0.0
    %v4150 = vadd.f32 %v4148, %v4149
    %v4151 = vsel %vm3908, %v4065, 0.0
    %v4152 = vadd.f32 %v4150, %v4151
    %v4153 = vsel %vm3908, %v4066, 0.0
    %v4154 = vadd.f32 %v4152, %v4153
    %v4155 = vsel %vm3908, %v4067, 0.0
    %v4156 = vadd.f32 %v4154, %v4155
    %v4157 = vsel %vm3908, %v4068, 0.0
    %v4158 = vadd.f32 %v4156, %v4157
    %v4159 = vsel %vm3908, %v4069, 0.0
    %v4160 = vadd.f32 %v4158, %v4159
    %v4161 = vsel %vm3908, %v4070, 0.0
    %v4162 = vadd.f32 %v4160, %v4161
    %v4163 = vsel %vm3908, %v4071, 0.0
    %v4164 = vadd.f32 %v4162, %v4163
    %v4165 = vsel %vm3908, %v4072, 0.0
    %v4166 = vadd.f32 %v4164, %v4165
    %v4167 = vsel %vm3908, %v4073, 0.0
    %v4168 = vadd.f32 %v4166, %v4167
    %v4169 = vsel %vm3908, %v4074, 0.0
    %v4170 = vadd.f32 %v4168, %v4169
    %v4171 = vsel %vm3908, %v4075, 0.0
    %v4172 = vadd.f32 %v4170, %v4171
    %v4173 = vsel %vm3908, %v4076, 0.0
    %v4174 = vadd.f32 %v4172, %v4173
    %v4175 = vsel %vm3908, %v4077, 0.0
    %v4176 = vadd.f32 %v4174, %v4175
    %v4177 = vsel %vm3908, %v4078, 0.0
    %v4178 = vadd.f32 %v4176, %v4177
    %v4179 = vsel %vm3908, %v4079, 0.0
    %v4180 = vadd.f32 %v4178, %v4179
    %v4181 = vsel %vm3908, %v4080, 0.0
    %v4182 = vadd.f32 %v4180, %v4181
    %v4183 = vsel %vm3908, %v4081, 0.0
    %v4184 = vadd.f32 %v4182, %v4183
    %v4185 = vsel %vm3908, %v4082, 0.0
    %v4186 = vadd.f32 %v4184, %v4185
    %v4187 = vsel %vm3908, %v4083, 0.0
    %v4188 = vadd.f32 %v4186, %v4187
    %v4189 = vsel %vm3908, %v4084, 0.0
    %v4190 = vadd.f32 %v4188, %v4189
    %v4191 = vsel %vm3908, %v4085, 0.0
    %v4192 = vadd.f32 %v4190, %v4191
    %v4193 = vsel %vm3908, %v4086, 0.0
    %v4194 = vadd.f32 %v4192, %v4193
    %v4195 = vsel %vm3908, %v4087, 0.0
    %v4196 = vadd.f32 %v4194, %v4195
    %v4197 = vsel %vm3908, %v4088, 0.0
    %v4198 = vadd.f32 %v4196, %v4197
    %v4199 = vsel %vm3908, %v4089, 0.0
    %v4200 = vadd.f32 %v4198, %v4199
    %v4201 = vsel %vm3908, %v4090, 0.0
    %v4202 = vadd.f32 %v4200, %v4201
    %v4203 = vsel %vm3908, %v4091, 0.0
    %v4204 = vadd.f32 %v4202, %v4203
    %v4205 = vsel %vm3908, %v4092, 0.0
    %v4206 = vadd.f32 %v4204, %v4205
    %v4207 = vsel %vm3908, %v4093, 0.0
    %v4208 = vadd.f32 %v4206, %v4207
    %v4209 = vsel %vm3908, %v4094, 0.0
    %v4210 = vadd.f32 %v4208, %v4209
    %v4211 = vsel %vm3908, %v4095, 0.0
    %v4212 = vadd.f32 %v4210, %v4211
    %v4213 = vsel %vm3908, %v4096, 0.0
    %v4214 = vadd.f32 %v4212, %v4213
    %v4215 = vsel %vm3908, %v4097, 0.0
    %v4216 = vadd.f32 %v4214, %v4215
    %v4217 = vsel %vm3908, %v4098, 0.0
    %v4218 = vadd.f32 %v4216, %v4217
    %v4219 = vsel %vm3908, %v4099, 0.0
    %v4220 = vadd.f32 %v4218, %v4219
    %v4221 = vsel %vm3908, %v4100, 0.0
    %v4222 = vadd.f32 %v4220, %v4221
    %v4223 = vsel %vm3908, %v4101, 0.0
    %v4224 = vadd.f32 %v4222, %v4223
    %v4225 = vsel %vm3908, %v4102, 0.0
    %v4226 = vadd.f32 %v4224, %v4225
    %v4227 = vsel %vm3908, %v4103, 0.0
    %v4228 = vadd.f32 %v4226, %v4227
    %v4229 = vsel %vm3908, %v4104, 0.0
    %v4230 = vadd.f32 %v4228, %v4229
    %v4231 = vsel %vm3908, %v4105, 0.0
    %v4232 = vadd.f32 %v4230, %v4231
    %v4233 = vrot.slane %v4232, 4
    %v4234 = vadd.f32 %v4232, %v4233
    %v4235 = vrot.slane %v4234, 2
    %v4236 = vadd.f32 %v4234, %v4235
    %v4237 = vrot.slane %v4236, 1
    %v4238 = vadd.f32 %v4236, %v4237
    %v4239 = vmul.f32 %v4041, 0.001953125
    %v4240 = vmul.f32 %v4238, 0.001953125
    %v4241 = vmul.f32 %v4239, %v4239
    %v4242 = vsub.f32 %v4240, %v4241
    %v4243 = vsub.f32 %v3590, %v4239
    %v4244 = vsub.f32 %v3595, %v4239
    %v4245 = vsub.f32 %v3600, %v4239
    %v4246 = vsub.f32 %v3605, %v4239
    %v4247 = vsub.f32 %v3610, %v4239
    %v4248 = vsub.f32 %v3615, %v4239
    %v4249 = vsub.f32 %v3620, %v4239
    %v4250 = vsub.f32 %v3625, %v4239
    %v4251 = vsub.f32 %v3630, %v4239
    %v4252 = vsub.f32 %v3635, %v4239
    %v4253 = vsub.f32 %v3640, %v4239
    %v4254 = vsub.f32 %v3645, %v4239
    %v4255 = vsub.f32 %v3650, %v4239
    %v4256 = vsub.f32 %v3655, %v4239
    %v4257 = vsub.f32 %v3660, %v4239
    %v4258 = vsub.f32 %v3665, %v4239
    %v4259 = vsub.f32 %v3670, %v4239
    %v4260 = vsub.f32 %v3675, %v4239
    %v4261 = vsub.f32 %v3680, %v4239
    %v4262 = vsub.f32 %v3685, %v4239
    %v4263 = vsub.f32 %v3690, %v4239
    %v4264 = vsub.f32 %v3695, %v4239
    %v4265 = vsub.f32 %v3700, %v4239
    %v4266 = vsub.f32 %v3705, %v4239
    %v4267 = vsub.f32 %v3710, %v4239
    %v4268 = vsub.f32 %v3715, %v4239
    %v4269 = vsub.f32 %v3720, %v4239
    %v4270 = vsub.f32 %v3725, %v4239
    %v4271 = vsub.f32 %v3730, %v4239
    %v4272 = vsub.f32 %v3735, %v4239
    %v4273 = vsub.f32 %v3740, %v4239
    %v4274 = vsub.f32 %v3745, %v4239
    %v4275 = vsub.f32 %v3750, %v4239
    %v4276 = vsub.f32 %v3755, %v4239
    %v4277 = vsub.f32 %v3760, %v4239
    %v4278 = vsub.f32 %v3765, %v4239
    %v4279 = vsub.f32 %v3770, %v4239
    %v4280 = vsub.f32 %v3775, %v4239
    %v4281 = vsub.f32 %v3780, %v4239
    %v4282 = vsub.f32 %v3785, %v4239
    %v4283 = vsub.f32 %v3790, %v4239
    %v4284 = vsub.f32 %v3795, %v4239
    %v4285 = vsub.f32 %v3800, %v4239
    %v4286 = vsub.f32 %v3805, %v4239
    %v4287 = vsub.f32 %v3810, %v4239
    %v4288 = vsub.f32 %v3815, %v4239
    %v4289 = vsub.f32 %v3820, %v4239
    %v4290 = vsub.f32 %v3825, %v4239
    %v4291 = vsub.f32 %v3830, %v4239
    %v4292 = vsub.f32 %v3835, %v4239
    %v4293 = vsub.f32 %v3840, %v4239
    %v4294 = vsub.f32 %v3845, %v4239
    %v4295 = vsub.f32 %v3850, %v4239
    %v4296 = vsub.f32 %v3855, %v4239
    %v4297 = vsub.f32 %v3860, %v4239
    %v4298 = vsub.f32 %v3865, %v4239
    %v4299 = vsub.f32 %v3870, %v4239
    %v4300 = vsub.f32 %v3875, %v4239
    %v4301 = vsub.f32 %v3880, %v4239
    %v4302 = vsub.f32 %v3885, %v4239
    %v4303 = vsub.f32 %v3890, %v4239
    %v4304 = vsub.f32 %v3895, %v4239
    %v4305 = vsub.f32 %v3900, %v4239
    %v4306 = vsub.f32 %v3905, %v4239
    %v4307 = vadd.f32 %v4242, 1e-05
    %v4308 = vrsqrt.pop %v4307
    %v4309 = vmul.f32 %v4243, %v4308
    %v4310 = vmul.f32 %v4244, %v4308
    %v4311 = vmul.f32 %v4245, %v4308
    %v4312 = vmul.f32 %v4246, %v4308
    %v4313 = vmul.f32 %v4247, %v4308
    %v4314 = vmul.f32 %v4248, %v4308
    %v4315 = vmul.f32 %v4249, %v4308
    %v4316 = vmul.f32 %v4250, %v4308
    %v4317 = vmul.f32 %v4251, %v4308
    %v4318 = vmul.f32 %v4252, %v4308
    %v4319 = vmul.f32 %v4253, %v4308
    %v4320 = vmul.f32 %v4254, %v4308
    %v4321 = vmul.f32 %v4255, %v4308
    %v4322 = vmul.f32 %v4256, %v4308
    %v4323 = vmul.f32 %v4257, %v4308
    %v4324 = vmul.f32 %v4258, %v4308
    %v4325 = vmul.f32 %v4259, %v4308
    %v4326 = vmul.f32 %v4260, %v4308
    %v4327 = vmul.f32 %v4261, %v4308
    %v4328 = vmul.f32 %v4262, %v4308
    %v4329 = vmul.f32 %v4263, %v4308
    %v4330 = vmul.f32 %v4264, %v4308
    %v4331 = vmul.f32 %v4265, %v4308
    %v4332 = vmul.f32 %v4266, %v4308
    %v4333 = vmul.f32 %v4267, %v4308
    %v4334 = vmul.f32 %v4268, %v4308
    %v4335 = vmul.f32 %v4269, %v4308
    %v4336 = vmul.f32 %v4270, %v4308
    %v4337 = vmul.f32 %v4271, %v4308
    %v4338 = vmul.f32 %v4272, %v4308
    %v4339 = vmul.f32 %v4273, %v4308
    %v4340 = vmul.f32 %v4274, %v4308
    %v4341 = vmul.f32 %v4275, %v4308
    %v4342 = vmul.f32 %v4276, %v4308
    %v4343 = vmul.f32 %v4277, %v4308
    %v4344 = vmul.f32 %v4278, %v4308
    %v4345 = vmul.f32 %v4279, %v4308
    %v4346 = vmul.f32 %v4280, %v4308
    %v4347 = vmul.f32 %v4281, %v4308
    %v4348 = vmul.f32 %v4282, %v4308
    %v4349 = vmul.f32 %v4283, %v4308
    %v4350 = vmul.f32 %v4284, %v4308
    %v4351 = vmul.f32 %v4285, %v4308
    %v4352 = vmul.f32 %v4286, %v4308
    %v4353 = vmul.f32 %v4287, %v4308
    %v4354 = vmul.f32 %v4288, %v4308
    %v4355 = vmul.f32 %v4289, %v4308
    %v4356 = vmul.f32 %v4290, %v4308
    %v4357 = vmul.f32 %v4291, %v4308
    %v4358 = vmul.f32 %v4292, %v4308
    %v4359 = vmul.f32 %v4293, %v4308
    %v4360 = vmul.f32 %v4294, %v4308
    %v4361 = vmul.f32 %v4295, %v4308
    %v4362 = vmul.f32 %v4296, %v4308
    %v4363 = vmul.f32 %v4297, %v4308
    %v4364 = vmul.f32 %v4298, %v4308
    %v4365 = vmul.f32 %v4299, %v4308
    %v4366 = vmul.f32 %v4300, %v4308
    %v4367 = vmul.f32 %v4301, %v4308
    %v4368 = vmul.f32 %v4302, %v4308
    %v4369 = vmul.f32 %v4303, %v4308
    %v4370 = vmul.f32 %v4304, %v4308
    %v4371 = vmul.f32 %v4305, %v4308
    %v4372 = vmul.f32 %v4306, %v4308
    %v4373 = vld [vmem:[%s3] sm:$0x1]
    %v4375 = vlaneseq
    %v4376 = vshrl.u32 %v4375, 7
    %v4377 = vsub.s32 0, %v4376
    %v4378 = vrot.slane %v4373, %v4377
    %v4380 = vmul.f32 %v4309, %v4378
    %v4381 = vmul.f32 %v4310, %v4378
    %v4382 = vmul.f32 %v4311, %v4378
    %v4383 = vmul.f32 %v4312, %v4378
    %v4384 = vmul.f32 %v4313, %v4378
    %v4385 = vmul.f32 %v4314, %v4378
    %v4386 = vmul.f32 %v4315, %v4378
    %v4387 = vmul.f32 %v4316, %v4378
    %v4388 = vmul.f32 %v4317, %v4378
    %v4389 = vmul.f32 %v4318, %v4378
    %v4390 = vmul.f32 %v4319, %v4378
    %v4391 = vmul.f32 %v4320, %v4378
    %v4392 = vmul.f32 %v4321, %v4378
    %v4393 = vmul.f32 %v4322, %v4378
    %v4394 = vmul.f32 %v4323, %v4378
    %v4395 = vmul.f32 %v4324, %v4378
    %v4396 = vmul.f32 %v4325, %v4378
    %v4397 = vmul.f32 %v4326, %v4378
    %v4398 = vmul.f32 %v4327, %v4378
    %v4399 = vmul.f32 %v4328, %v4378
    %v4400 = vmul.f32 %v4329, %v4378
    %v4401 = vmul.f32 %v4330, %v4378
    %v4402 = vmul.f32 %v4331, %v4378
    %v4403 = vmul.f32 %v4332, %v4378
    %v4404 = vmul.f32 %v4333, %v4378
    %v4405 = vmul.f32 %v4334, %v4378
    %v4406 = vmul.f32 %v4335, %v4378
    %v4407 = vmul.f32 %v4336, %v4378
    %v4408 = vmul.f32 %v4337, %v4378
    %v4409 = vmul.f32 %v4338, %v4378
    %v4410 = vmul.f32 %v4339, %v4378
    %v4411 = vmul.f32 %v4340, %v4378
    %v4412 = vmul.f32 %v4341, %v4378
    %v4413 = vmul.f32 %v4342, %v4378
    %v4414 = vmul.f32 %v4343, %v4378
    %v4415 = vmul.f32 %v4344, %v4378
    %v4416 = vmul.f32 %v4345, %v4378
    %v4417 = vmul.f32 %v4346, %v4378
    %v4418 = vmul.f32 %v4347, %v4378
    %v4419 = vmul.f32 %v4348, %v4378
    %v4420 = vmul.f32 %v4349, %v4378
    %v4421 = vmul.f32 %v4350, %v4378
    %v4422 = vmul.f32 %v4351, %v4378
    %v4423 = vmul.f32 %v4352, %v4378
    %v4424 = vmul.f32 %v4353, %v4378
    %v4425 = vmul.f32 %v4354, %v4378
    %v4426 = vmul.f32 %v4355, %v4378
    %v4427 = vmul.f32 %v4356, %v4378
    %v4428 = vmul.f32 %v4357, %v4378
    %v4429 = vmul.f32 %v4358, %v4378
    %v4430 = vmul.f32 %v4359, %v4378
    %v4431 = vmul.f32 %v4360, %v4378
    %v4432 = vmul.f32 %v4361, %v4378
    %v4433 = vmul.f32 %v4362, %v4378
    %v4434 = vmul.f32 %v4363, %v4378
    %v4435 = vmul.f32 %v4364, %v4378
    %v4436 = vmul.f32 %v4365, %v4378
    %v4437 = vmul.f32 %v4366, %v4378
    %v4438 = vmul.f32 %v4367, %v4378
    %v4439 = vmul.f32 %v4368, %v4378
    %v4440 = vmul.f32 %v4369, %v4378
    %v4441 = vmul.f32 %v4370, %v4378
    %v4442 = vmul.f32 %v4371, %v4378
    %v4443 = vmul.f32 %v4372, %v4378
    %v4444 = vld [vmem:[%s4] sm:$0x1]
    %v4446 = vlaneseq
    %v4447 = vshrl.u32 %v4446, 7
    %v4448 = vsub.s32 0, %v4447
    %v4449 = vrot.slane %v4444, %v4448
    %v4451 = vadd.f32 %v4380, %v4449
    %v4452 = vadd.f32 %v4381, %v4449
    %v4453 = vadd.f32 %v4382, %v4449
    %v4454 = vadd.f32 %v4383, %v4449
    %v4455 = vadd.f32 %v4384, %v4449
    %v4456 = vadd.f32 %v4385, %v4449
    %v4457 = vadd.f32 %v4386, %v4449
    %v4458 = vadd.f32 %v4387, %v4449
    %v4459 = vadd.f32 %v4388, %v4449
    %v4460 = vadd.f32 %v4389, %v4449
    %v4461 = vadd.f32 %v4390, %v4449
    %v4462 = vadd.f32 %v4391, %v4449
    %v4463 = vadd.f32 %v4392, %v4449
    %v4464 = vadd.f32 %v4393, %v4449
    %v4465 = vadd.f32 %v4394, %v4449
    %v4466 = vadd.f32 %v4395, %v4449
    %v4467 = vadd.f32 %v4396, %v4449
    %v4468 = vadd.f32 %v4397, %v4449
    %v4469 = vadd.f32 %v4398, %v4449
    %v4470 = vadd.f32 %v4399, %v4449
    %v4471 = vadd.f32 %v4400, %v4449
    %v4472 = vadd.f32 %v4401, %v4449
    %v4473 = vadd.f32 %v4402, %v4449
    %v4474 = vadd.f32 %v4403, %v4449
    %v4475 = vadd.f32 %v4404, %v4449
    %v4476 = vadd.f32 %v4405, %v4449
    %v4477 = vadd.f32 %v4406, %v4449
    %v4478 = vadd.f32 %v4407, %v4449
    %v4479 = vadd.f32 %v4408, %v4449
    %v4480 = vadd.f32 %v4409, %v4449
    %v4481 = vadd.f32 %v4410, %v4449
    %v4482 = vadd.f32 %v4411, %v4449
    %v4483 = vadd.f32 %v4412, %v4449
    %v4484 = vadd.f32 %v4413, %v4449
    %v4485 = vadd.f32 %v4414, %v4449
    %v4486 = vadd.f32 %v4415, %v4449
    %v4487 = vadd.f32 %v4416, %v4449
    %v4488 = vadd.f32 %v4417, %v4449
    %v4489 = vadd.f32 %v4418, %v4449
    %v4490 = vadd.f32 %v4419, %v4449
    %v4491 = vadd.f32 %v4420, %v4449
    %v4492 = vadd.f32 %v4421, %v4449
    %v4493 = vadd.f32 %v4422, %v4449
    %v4494 = vadd.f32 %v4423, %v4449
    %v4495 = vadd.f32 %v4424, %v4449
    %v4496 = vadd.f32 %v4425, %v4449
    %v4497 = vadd.f32 %v4426, %v4449
    %v4498 = vadd.f32 %v4427, %v4449
    %v4499 = vadd.f32 %v4428, %v4449
    %v4500 = vadd.f32 %v4429, %v4449
    %v4501 = vadd.f32 %v4430, %v4449
    %v4502 = vadd.f32 %v4431, %v4449
    %v4503 = vadd.f32 %v4432, %v4449
    %v4504 = vadd.f32 %v4433, %v4449
    %v4505 = vadd.f32 %v4434, %v4449
    %v4506 = vadd.f32 %v4435, %v4449
    %v4507 = vadd.f32 %v4436, %v4449
    %v4508 = vadd.f32 %v4437, %v4449
    %v4509 = vadd.f32 %v4438, %v4449
    %v4510 = vadd.f32 %v4439, %v4449
    %v4511 = vadd.f32 %v4440, %v4449
    %v4512 = vadd.f32 %v4441, %v4449
    %v4513 = vadd.f32 %v4442, %v4449
    %v4514 = vadd.f32 %v4443, %v4449
    %v4515 = vmax.f32 %v4451, 0.0
    %v4516 = vmax.f32 %v4452, 0.0
    %v4517 = vmax.f32 %v4453, 0.0
    %v4518 = vmax.f32 %v4454, 0.0
    %v4519 = vmax.f32 %v4455, 0.0
    %v4520 = vmax.f32 %v4456, 0.0
    %v4521 = vmax.f32 %v4457, 0.0
    %v4522 = vmax.f32 %v4458, 0.0
    %v4523 = vmax.f32 %v4459, 0.0
    %v4524 = vmax.f32 %v4460, 0.0
    %v4525 = vmax.f32 %v4461, 0.0
    %v4526 = vmax.f32 %v4462, 0.0
    %v4527 = vmax.f32 %v4463, 0.0
    %v4528 = vmax.f32 %v4464, 0.0
    %v4529 = vmax.f32 %v4465, 0.0
    %v4530 = vmax.f32 %v4466, 0.0
    %v4531 = vmax.f32 %v4467, 0.0
    %v4532 = vmax.f32 %v4468, 0.0
    %v4533 = vmax.f32 %v4469, 0.0
    %v4534 = vmax.f32 %v4470, 0.0
    %v4535 = vmax.f32 %v4471, 0.0
    %v4536 = vmax.f32 %v4472, 0.0
    %v4537 = vmax.f32 %v4473, 0.0
    %v4538 = vmax.f32 %v4474, 0.0
    %v4539 = vmax.f32 %v4475, 0.0
    %v4540 = vmax.f32 %v4476, 0.0
    %v4541 = vmax.f32 %v4477, 0.0
    %v4542 = vmax.f32 %v4478, 0.0
    %v4543 = vmax.f32 %v4479, 0.0
    %v4544 = vmax.f32 %v4480, 0.0
    %v4545 = vmax.f32 %v4481, 0.0
    %v4546 = vmax.f32 %v4482, 0.0
    %v4547 = vmax.f32 %v4483, 0.0
    %v4548 = vmax.f32 %v4484, 0.0
    %v4549 = vmax.f32 %v4485, 0.0
    %v4550 = vmax.f32 %v4486, 0.0
    %v4551 = vmax.f32 %v4487, 0.0
    %v4552 = vmax.f32 %v4488, 0.0
    %v4553 = vmax.f32 %v4489, 0.0
    %v4554 = vmax.f32 %v4490, 0.0
    %v4555 = vmax.f32 %v4491, 0.0
    %v4556 = vmax.f32 %v4492, 0.0
    %v4557 = vmax.f32 %v4493, 0.0
    %v4558 = vmax.f32 %v4494, 0.0
    %v4559 = vmax.f32 %v4495, 0.0
    %v4560 = vmax.f32 %v4496, 0.0
    %v4561 = vmax.f32 %v4497, 0.0
    %v4562 = vmax.f32 %v4498, 0.0
    %v4563 = vmax.f32 %v4499, 0.0
    %v4564 = vmax.f32 %v4500, 0.0
    %v4565 = vmax.f32 %v4501, 0.0
    %v4566 = vmax.f32 %v4502, 0.0
    %v4567 = vmax.f32 %v4503, 0.0
    %v4568 = vmax.f32 %v4504, 0.0
    %v4569 = vmax.f32 %v4505, 0.0
    %v4570 = vmax.f32 %v4506, 0.0
    %v4571 = vmax.f32 %v4507, 0.0
    %v4572 = vmax.f32 %v4508, 0.0
    %v4573 = vmax.f32 %v4509, 0.0
    %v4574 = vmax.f32 %v4510, 0.0
    %v4575 = vmax.f32 %v4511, 0.0
    %v4576 = vmax.f32 %v4512, 0.0
    %v4577 = vmax.f32 %v4513, 0.0
    %v4578 = vmax.f32 %v4514, 0.0
    %4579 = vst.msk [vmem:[#allocation3] sm:$0xff] %vm3908, 0.0
    %4580 = vst.msk [vmem:[#allocation3 + $0x8] sm:$0xff] %vm3908, 0.0
    %vm4581 = vcmask 58368
    %4582 = vst.msk [vmem:[#allocation3 + $0x10] sm:$0x3] %vm4581, 0.0
    %4583 = vst.msk [vmem:[#allocation3 + $0x1b0] sm:$0xff] %vm3908, 0.0
    %4584 = vst.msk [vmem:[#allocation3 + $0x1b8] sm:$0xff] %vm3908, 0.0
    %4585 = vst.msk [vmem:[#allocation3 + $0x1c0] sm:$0x3] %vm4581, 0.0
    %s4586 = scalar_lea.vmem [#allocation3], 408
    %4587 = vst.msk [vmem:[%s4586] sm:$0xff] %vm3908, 0.0
    %4588 = vst.msk [vmem:[%s4586 + $0x8] sm:$0xff] %vm3908, 0.0
    %4589 = vst.msk [vmem:[%s4586 + $0x10] sm:$0x3] %vm4581, 0.0
    %4590 = vst.msk [vmem:[%s4586 + $0x1b0] sm:$0xff] %vm3908, 0.0
    %4591 = vst.msk [vmem:[%s4586 + $0x1b8] sm:$0xff] %vm3908, 0.0
    %4592 = vst.msk [vmem:[%s4586 + $0x1c0] sm:$0x3] %vm4581, 0.0
    %vm4593 = vcmask 57344
    %4594 = vst.msk [vmem:[#allocation3] sm:$0x1] %vm4593, 0.0
    %4595 = vst.msk [vmem:[#allocation3 + $0x18] sm:$0x1] %vm4593, 0.0
    %4596 = vst.msk [vmem:[#allocation3 + $0x30] sm:$0x1] %vm4593, 0.0
    %4597 = vst.msk [vmem:[#allocation3 + $0x48] sm:$0x1] %vm4593, 0.0
    %4598 = vst.msk [vmem:[#allocation3 + $0x60] sm:$0x1] %vm4593, 0.0
    %4599 = vst.msk [vmem:[#allocation3 + $0x78] sm:$0x1] %vm4593, 0.0
    %4600 = vst.msk [vmem:[#allocation3 + $0x90] sm:$0x1] %vm4593, 0.0
    %4601 = vst.msk [vmem:[#allocation3 + $0xa8] sm:$0x1] %vm4593, 0.0
    %4602 = vst.msk [vmem:[#allocation3 + $0xc0] sm:$0x1] %vm4593, 0.0
    %4603 = vst.msk [vmem:[#allocation3 + $0xd8] sm:$0x1] %vm4593, 0.0
    %4604 = vst.msk [vmem:[#allocation3 + $0xf0] sm:$0x1] %vm4593, 0.0
    %4605 = vst.msk [vmem:[#allocation3 + $0x108] sm:$0x1] %vm4593, 0.0
    %4606 = vst.msk [vmem:[#allocation3 + $0x120] sm:$0x1] %vm4593, 0.0
    %4607 = vst.msk [vmem:[#allocation3 + $0x138] sm:$0x1] %vm4593, 0.0
    %4608 = vst.msk [vmem:[#allocation3 + $0x150] sm:$0x1] %vm4593, 0.0
    %4609 = vst.msk [vmem:[#allocation3 + $0x168] sm:$0x1] %vm4593, 0.0
    %4610 = vst.msk [vmem:[#allocation3 + $0x180] sm:$0x1] %vm4593, 0.0
    %4611 = vst.msk [vmem:[#allocation3 + $0x198] sm:$0x1] %vm4593, 0.0
    %4612 = vst.msk [vmem:[#allocation3 + $0x1b0] sm:$0x1] %vm4593, 0.0
    %4613 = vst.msk [vmem:[#allocation3 + $0x1c8] sm:$0x1] %vm4593, 0.0
    %4614 = vst.msk [vmem:[#allocation3 + $0x1e0] sm:$0x1] %vm4593, 0.0
    %4615 = vst.msk [vmem:[#allocation3 + $0x1f8] sm:$0x1] %vm4593, 0.0
    %4616 = vst.msk [vmem:[#allocation3 + $0x210] sm:$0x1] %vm4593, 0.0
    %4617 = vst.msk [vmem:[#allocation3 + $0x228] sm:$0x1] %vm4593, 0.0
    %4618 = vst.msk [vmem:[#allocation3 + $0x240] sm:$0x1] %vm4593, 0.0
    %4619 = vst.msk [vmem:[#allocation3 + $0x258] sm:$0x1] %vm4593, 0.0
    %4620 = vst.msk [vmem:[#allocation3 + $0x270] sm:$0x1] %vm4593, 0.0
    %4621 = vst.msk [vmem:[#allocation3 + $0x288] sm:$0x1] %vm4593, 0.0
    %4622 = vst.msk [vmem:[#allocation3 + $0x2a0] sm:$0x1] %vm4593, 0.0
    %4623 = vst.msk [vmem:[#allocation3 + $0x2b8] sm:$0x1] %vm4593, 0.0
    %4624 = vst.msk [vmem:[#allocation3 + $0x2d0] sm:$0x1] %vm4593, 0.0
    %4625 = vst.msk [vmem:[#allocation3 + $0x2e8] sm:$0x1] %vm4593, 0.0
    %4626 = vst.msk [vmem:[#allocation3 + $0x300] sm:$0x1] %vm4593, 0.0
    %4627 = vst.msk [vmem:[#allocation3 + $0x318] sm:$0x1] %vm4593, 0.0
    %4628 = vst.msk [vmem:[#allocation3 + $0x330] sm:$0x1] %vm4593, 0.0
    %4629 = vst.msk [vmem:[#allocation3 + $0x348] sm:$0x1] %vm4593, 0.0
    %4630 = vst.msk [vmem:[#allocation3 + $0x11] sm:$0x1] %vm4593, 0.0
    %4631 = vst.msk [vmem:[#allocation3 + $0x29] sm:$0x1] %vm4593, 0.0
    %4632 = vst.msk [vmem:[#allocation3 + $0x41] sm:$0x1] %vm4593, 0.0
    %4633 = vst.msk [vmem:[#allocation3 + $0x59] sm:$0x1] %vm4593, 0.0
    %4634 = vst.msk [vmem:[#allocation3 + $0x71] sm:$0x1] %vm4593, 0.0
    %4635 = vst.msk [vmem:[#allocation3 + $0x89] sm:$0x1] %vm4593, 0.0
    %4636 = vst.msk [vmem:[#allocation3 + $0xa1] sm:$0x1] %vm4593, 0.0
    %4637 = vst.msk [vmem:[#allocation3 + $0xb9] sm:$0x1] %vm4593, 0.0
    %4638 = vst.msk [vmem:[#allocation3 + $0xd1] sm:$0x1] %vm4593, 0.0
    %4639 = vst.msk [vmem:[#allocation3 + $0xe9] sm:$0x1] %vm4593, 0.0
    %4640 = vst.msk [vmem:[#allocation3 + $0x101] sm:$0x1] %vm4593, 0.0
    %4641 = vst.msk [vmem:[#allocation3 + $0x119] sm:$0x1] %vm4593, 0.0
    %4642 = vst.msk [vmem:[#allocation3 + $0x131] sm:$0x1] %vm4593, 0.0
    %4643 = vst.msk [vmem:[#allocation3 + $0x149] sm:$0x1] %vm4593, 0.0
    %4644 = vst.msk [vmem:[#allocation3 + $0x161] sm:$0x1] %vm4593, 0.0
    %4645 = vst.msk [vmem:[#allocation3 + $0x179] sm:$0x1] %vm4593, 0.0
    %4646 = vst.msk [vmem:[#allocation3 + $0x191] sm:$0x1] %vm4593, 0.0
    %4647 = vst.msk [vmem:[#allocation3 + $0x1a9] sm:$0x1] %vm4593, 0.0
    %4648 = vst.msk [vmem:[#allocation3 + $0x1c1] sm:$0x1] %vm4593, 0.0
    %4649 = vst.msk [vmem:[#allocation3 + $0x1d9] sm:$0x1] %vm4593, 0.0
    %4650 = vst.msk [vmem:[#allocation3 + $0x1f1] sm:$0x1] %vm4593, 0.0
    %4651 = vst.msk [vmem:[#allocation3 + $0x209] sm:$0x1] %vm4593, 0.0
    %4652 = vst.msk [vmem:[#allocation3 + $0x221] sm:$0x1] %vm4593, 0.0
    %4653 = vst.msk [vmem:[#allocation3 + $0x239] sm:$0x1] %vm4593, 0.0
    %4654 = vst.msk [vmem:[#allocation3 + $0x251] sm:$0x1] %vm4593, 0.0
    %4655 = vst.msk [vmem:[#allocation3 + $0x269] sm:$0x1] %vm4593, 0.0
    %4656 = vst.msk [vmem:[#allocation3 + $0x281] sm:$0x1] %vm4593, 0.0
    %4657 = vst.msk [vmem:[#allocation3 + $0x299] sm:$0x1] %vm4593, 0.0
    %4658 = vst.msk [vmem:[#allocation3 + $0x2b1] sm:$0x1] %vm4593, 0.0
    %4659 = vst.msk [vmem:[#allocation3 + $0x2c9] sm:$0x1] %vm4593, 0.0
    %4660 = vst.msk [vmem:[#allocation3 + $0x2e1] sm:$0x1] %vm4593, 0.0
    %4661 = vst.msk [vmem:[#allocation3 + $0x2f9] sm:$0x1] %vm4593, 0.0
    %4662 = vst.msk [vmem:[#allocation3 + $0x311] sm:$0x1] %vm4593, 0.0
    %4663 = vst.msk [vmem:[#allocation3 + $0x329] sm:$0x1] %vm4593, 0.0
    %4664 = vst.msk [vmem:[#allocation3 + $0x341] sm:$0x1] %vm4593, 0.0
    %4665 = vst.msk [vmem:[#allocation3 + $0x359] sm:$0x1] %vm4593, 0.0
    %s4666 = scalar_lea.vmem [#allocation3], 24
    %4667 = vst.msk [vmem:[%s4666 + $0x1] sm:$0xff] %vm3908, %v4515
    %4668 = vst.msk [vmem:[%s4666 + $0x9] sm:$0xff] %vm3908, %v4516
    %4669 = vst.msk [vmem:[%s4666 + $0x19] sm:$0xff] %vm3908, %v4517
    %4670 = vst.msk [vmem:[%s4666 + $0x21] sm:$0xff] %vm3908, %v4518
    %4671 = vst.msk [vmem:[%s4666 + $0x31] sm:$0xff] %vm3908, %v4519
    %4672 = vst.msk [vmem:[%s4666 + $0x39] sm:$0xff] %vm3908, %v4520
    %4673 = vst.msk [vmem:[%s4666 + $0x49] sm:$0xff] %vm3908, %v4521
    %4674 = vst.msk [vmem:[%s4666 + $0x51] sm:$0xff] %vm3908, %v4522
    %4675 = vst.msk [vmem:[%s4666 + $0x61] sm:$0xff] %vm3908, %v4523
    %4676 = vst.msk [vmem:[%s4666 + $0x69] sm:$0xff] %vm3908, %v4524
    %4677 = vst.msk [vmem:[%s4666 + $0x79] sm:$0xff] %vm3908, %v4525
    %4678 = vst.msk [vmem:[%s4666 + $0x81] sm:$0xff] %vm3908, %v4526
    %4679 = vst.msk [vmem:[%s4666 + $0x91] sm:$0xff] %vm3908, %v4527
    %4680 = vst.msk [vmem:[%s4666 + $0x99] sm:$0xff] %vm3908, %v4528
    %4681 = vst.msk [vmem:[%s4666 + $0xa9] sm:$0xff] %vm3908, %v4529
    %4682 = vst.msk [vmem:[%s4666 + $0xb1] sm:$0xff] %vm3908, %v4530
    %4683 = vst.msk [vmem:[%s4666 + $0xc1] sm:$0xff] %vm3908, %v4531
    %4684 = vst.msk [vmem:[%s4666 + $0xc9] sm:$0xff] %vm3908, %v4532
    %4685 = vst.msk [vmem:[%s4666 + $0xd9] sm:$0xff] %vm3908, %v4533
    %4686 = vst.msk [vmem:[%s4666 + $0xe1] sm:$0xff] %vm3908, %v4534
    %4687 = vst.msk [vmem:[%s4666 + $0xf1] sm:$0xff] %vm3908, %v4535
    %4688 = vst.msk [vmem:[%s4666 + $0xf9] sm:$0xff] %vm3908, %v4536
    %4689 = vst.msk [vmem:[%s4666 + $0x109] sm:$0xff] %vm3908, %v4537
    %4690 = vst.msk [vmem:[%s4666 + $0x111] sm:$0xff] %vm3908, %v4538
    %4691 = vst.msk [vmem:[%s4666 + $0x121] sm:$0xff] %vm3908, %v4539
    %4692 = vst.msk [vmem:[%s4666 + $0x129] sm:$0xff] %vm3908, %v4540
    %4693 = vst.msk [vmem:[%s4666 + $0x139] sm:$0xff] %vm3908, %v4541
    %4694 = vst.msk [vmem:[%s4666 + $0x141] sm:$0xff] %vm3908, %v4542
    %4695 = vst.msk [vmem:[%s4666 + $0x151] sm:$0xff] %vm3908, %v4543
    %4696 = vst.msk [vmem:[%s4666 + $0x159] sm:$0xff] %vm3908, %v4544
    %4697 = vst.msk [vmem:[%s4666 + $0x169] sm:$0xff] %vm3908, %v4545
    %4698 = vst.msk [vmem:[%s4666 + $0x171] sm:$0xff] %vm3908, %v4546
    %4699 = vst.msk [vmem:[%s4666 + $0x1b1] sm:$0xff] %vm3908, %v4547
    %4700 = vst.msk [vmem:[%s4666 + $0x1b9] sm:$0xff] %vm3908, %v4548
    %4701 = vst.msk [vmem:[%s4666 + $0x1c9] sm:$0xff] %vm3908, %v4549
    %4702 = vst.msk [vmem:[%s4666 + $0x1d1] sm:$0xff] %vm3908, %v4550
    %4703 = vst.msk [vmem:[%s4666 + $0x1e1] sm:$0xff] %vm3908, %v4551
    %4704 = vst.msk [vmem:[%s4666 + $0x1e9] sm:$0xff] %vm3908, %v4552
    %4705 = vst.msk [vmem:[%s4666 + $0x1f9] sm:$0xff] %vm3908, %v4553
    %4706 = vst.msk [vmem:[%s4666 + $0x201] sm:$0xff] %vm3908, %v4554
    %4707 = vst.msk [vmem:[%s4666 + $0x211] sm:$0xff] %vm3908, %v4555
    %4708 = vst.msk [vmem:[%s4666 + $0x219] sm:$0xff] %vm3908, %v4556
    %4709 = vst.msk [vmem:[%s4666 + $0x229] sm:$0xff] %vm3908, %v4557
    %4710 = vst.msk [vmem:[%s4666 + $0x231] sm:$0xff] %vm3908, %v4558
    %4711 = vst.msk [vmem:[%s4666 + $0x241] sm:$0xff] %vm3908, %v4559
    %4712 = vst.msk [vmem:[%s4666 + $0x249] sm:$0xff] %vm3908, %v4560
    %4713 = vst.msk [vmem:[%s4666 + $0x259] sm:$0xff] %vm3908, %v4561
    %4714 = vst.msk [vmem:[%s4666 + $0x261] sm:$0xff] %vm3908, %v4562
    %4715 = vst.msk [vmem:[%s4666 + $0x271] sm:$0xff] %vm3908, %v4563
    %4716 = vst.msk [vmem:[%s4666 + $0x279] sm:$0xff] %vm3908, %v4564
    %4717 = vst.msk [vmem:[%s4666 + $0x289] sm:$0xff] %vm3908, %v4565
    %4718 = vst.msk [vmem:[%s4666 + $0x291] sm:$0xff] %vm3908, %v4566
    %4719 = vst.msk [vmem:[%s4666 + $0x2a1] sm:$0xff] %vm3908, %v4567
    %4720 = vst.msk [vmem:[%s4666 + $0x2a9] sm:$0xff] %vm3908, %v4568
    %4721 = vst.msk [vmem:[%s4666 + $0x2b9] sm:$0xff] %vm3908, %v4569
    %4722 = vst.msk [vmem:[%s4666 + $0x2c1] sm:$0xff] %vm3908, %v4570
    %4723 = vst.msk [vmem:[%s4666 + $0x2d1] sm:$0xff] %vm3908, %v4571
    %4724 = vst.msk [vmem:[%s4666 + $0x2d9] sm:$0xff] %vm3908, %v4572
    %4725 = vst.msk [vmem:[%s4666 + $0x2e9] sm:$0xff] %vm3908, %v4573
    %4726 = vst.msk [vmem:[%s4666 + $0x2f1] sm:$0xff] %vm3908, %v4574
    %4727 = vst.msk [vmem:[%s4666 + $0x301] sm:$0xff] %vm3908, %v4575
    %4728 = vst.msk [vmem:[%s4666 + $0x309] sm:$0xff] %vm3908, %v4576
    %4729 = vst.msk [vmem:[%s4666 + $0x319] sm:$0xff] %vm3908, %v4577
    %4730 = vst.msk [vmem:[%s4666 + $0x321] sm:$0xff] %vm3908, %v4578
    %v4731 = vld [vmem:[#allocation3] sm:$0xff]
    %v4732 = vld [vmem:[#allocation3 + $0x8] sm:$0xff]
    %v4733 = vld [vmem:[#allocation3 + $0x18] sm:$0xff]
    %v4734 = vld [vmem:[#allocation3 + $0x20] sm:$0xff]
    %v4735 = vld [vmem:[#allocation3 + $0x30] sm:$0xff]
    %v4736 = vld [vmem:[#allocation3 + $0x38] sm:$0xff]
    %v4737 = vld [vmem:[#allocation3 + $0x48] sm:$0xff]
    %v4738 = vld [vmem:[#allocation3 + $0x50] sm:$0xff]
    %v4739 = vld [vmem:[#allocation3 + $0x60] sm:$0xff]
    %v4740 = vld [vmem:[#allocation3 + $0x68] sm:$0xff]
    %v4741 = vld [vmem:[#allocation3 + $0x78] sm:$0xff]
    %v4742 = vld [vmem:[#allocation3 + $0x80] sm:$0xff]
    %v4743 = vld [vmem:[#allocation3 + $0x90] sm:$0xff]
    %v4744 = vld [vmem:[#allocation3 + $0x98] sm:$0xff]
    %v4745 = vld [vmem:[#allocation3 + $0xa8] sm:$0xff]
    %v4746 = vld [vmem:[#allocation3 + $0xb0] sm:$0xff]
    %v4747 = vld [vmem:[#allocation3 + $0xc0] sm:$0xff]
    %v4748 = vld [vmem:[#allocation3 + $0xc8] sm:$0xff]
    %v4749 = vld [vmem:[#allocation3 + $0xd8] sm:$0xff]
    %v4750 = vld [vmem:[#allocation3 + $0xe0] sm:$0xff]
    %v4751 = vld [vmem:[#allocation3 + $0xf0] sm:$0xff]
    %v4752 = vld [vmem:[#allocation3 + $0xf8] sm:$0xff]
    %v4753 = vld [vmem:[#allocation3 + $0x108] sm:$0xff]
    %v4754 = vld [vmem:[#allocation3 + $0x110] sm:$0xff]
    %v4755 = vld [vmem:[#allocation3 + $0x120] sm:$0xff]
    %v4756 = vld [vmem:[#allocation3 + $0x128] sm:$0xff]
    %v4757 = vld [vmem:[#allocation3 + $0x138] sm:$0xff]
    %v4758 = vld [vmem:[#allocation3 + $0x140] sm:$0xff]
    %v4759 = vld [vmem:[#allocation3 + $0x150] sm:$0xff]
    %v4760 = vld [vmem:[#allocation3 + $0x158] sm:$0xff]
    %v4761 = vld [vmem:[#allocation3 + $0x168] sm:$0xff]
    %v4762 = vld [vmem:[#allocation3 + $0x170] sm:$0xff]
    %v4763 = vld [vmem:[#allocation3 + $0x1b0] sm:$0xff]
    %v4764 = vld [vmem:[#allocation3 + $0x1b8] sm:$0xff]
    %v4765 = vld [vmem:[#allocation3 + $0x1c8] sm:$0xff]
    %v4766 = vld [vmem:[#allocation3 + $0x1d0] sm:$0xff]
    %v4767 = vld [vmem:[#allocation3 + $0x1e0] sm:$0xff]
    %v4768 = vld [vmem:[#allocation3 + $0x1e8] sm:$0xff]
    %v4769 = vld [vmem:[#allocation3 + $0x1f8] sm:$0xff]
    %v4770 = vld [vmem:[#allocation3 + $0x200] sm:$0xff]
    %v4771 = vld [vmem:[#allocation3 + $0x210] sm:$0xff]
    %v4772 = vld [vmem:[#allocation3 + $0x218] sm:$0xff]
    %v4773 = vld [vmem:[#allocation3 + $0x228] sm:$0xff]
    %v4774 = vld [vmem:[#allocation3 + $0x230] sm:$0xff]
    %v4775 = vld [vmem:[#allocation3 + $0x240] sm:$0xff]
    %v4776 = vld [vmem:[#allocation3 + $0x248] sm:$0xff]
    %v4777 = vld [vmem:[#allocation3 + $0x258] sm:$0xff]
    %v4778 = vld [vmem:[#allocation3 + $0x260] sm:$0xff]
    %v4779 = vld [vmem:[#allocation3 + $0x270] sm:$0xff]
    %v4780 = vld [vmem:[#allocation3 + $0x278] sm:$0xff]
    %v4781 = vld [vmem:[#allocation3 + $0x288] sm:$0xff]
    %v4782 = vld [vmem:[#allocation3 + $0x290] sm:$0xff]
    %v4783 = vld [vmem:[#allocation3 + $0x2a0] sm:$0xff]
    %v4784 = vld [vmem:[#allocation3 + $0x2a8] sm:$0xff]
    %v4785 = vld [vmem:[#allocation3 + $0x2b8] sm:$0xff]
    %v4786 = vld [vmem:[#allocation3 + $0x2c0] sm:$0xff]
    %v4787 = vld [vmem:[#allocation3 + $0x2d0] sm:$0xff]
    %v4788 = vld [vmem:[#allocation3 + $0x2d8] sm:$0xff]
    %v4789 = vld [vmem:[#allocation3 + $0x2e8] sm:$0xff]
    %v4790 = vld [vmem:[#allocation3 + $0x2f0] sm:$0xff]
    %v4791 = vld [vmem:[#allocation3 + $0x300] sm:$0xff]
    %v4792 = vld [vmem:[#allocation3 + $0x308] sm:$0xff]
    %v4793 = vld [vmem:[#allocation3 + $0x318] sm:$0xff]
    %v4794 = vld [vmem:[#allocation3 + $0x320] sm:$0xff]
    %4795 = vst.msk [vmem:[#allocation4] sm:$0xff] %vm3908, %v4731
    %4796 = vst.msk [vmem:[#allocation4 + $0x8] sm:$0xff] %vm3908, %v4732
    %4797 = vst.msk [vmem:[#allocation4 + $0x10] sm:$0xff] %vm3908, %v4733
    %4798 = vst.msk [vmem:[#allocation4 + $0x18] sm:$0xff] %vm3908, %v4734
    %4799 = vst.msk [vmem:[#allocation4 + $0x20] sm:$0xff] %vm3908, %v4735
    %4800 = vst.msk [vmem:[#allocation4 + $0x28] sm:$0xff] %vm3908, %v4736
    %4801 = vst.msk [vmem:[#allocation4 + $0x30] sm:$0xff] %vm3908, %v4737
    %4802 = vst.msk [vmem:[#allocation4 + $0x38] sm:$0xff] %vm3908, %v4738
    %4803 = vst.msk [vmem:[#allocation4 + $0x40] sm:$0xff] %vm3908, %v4739
    %4804 = vst.msk [vmem:[#allocation4 + $0x48] sm:$0xff] %vm3908, %v4740
    %4805 = vst.msk [vmem:[#allocation4 + $0x50] sm:$0xff] %vm3908, %v4741
    %4806 = vst.msk [vmem:[#allocation4 + $0x58] sm:$0xff] %vm3908, %v4742
    %4807 = vst.msk [vmem:[#allocation4 + $0x60] sm:$0xff] %vm3908, %v4743
    %4808 = vst.msk [vmem:[#allocation4 + $0x68] sm:$0xff] %vm3908, %v4744
    %4809 = vst.msk [vmem:[#allocation4 + $0x70] sm:$0xff] %vm3908, %v4745
    %4810 = vst.msk [vmem:[#allocation4 + $0x78] sm:$0xff] %vm3908, %v4746
    %4811 = vst.msk [vmem:[#allocation4 + $0x80] sm:$0xff] %vm3908, %v4747
    %4812 = vst.msk [vmem:[#allocation4 + $0x88] sm:$0xff] %vm3908, %v4748
    %4813 = vst.msk [vmem:[#allocation4 + $0x90] sm:$0xff] %vm3908, %v4749
    %4814 = vst.msk [vmem:[#allocation4 + $0x98] sm:$0xff] %vm3908, %v4750
    %4815 = vst.msk [vmem:[#allocation4 + $0xa0] sm:$0xff] %vm3908, %v4751
    %4816 = vst.msk [vmem:[#allocation4 + $0xa8] sm:$0xff] %vm3908, %v4752
    %4817 = vst.msk [vmem:[#allocation4 + $0xb0] sm:$0xff] %vm3908, %v4753
    %4818 = vst.msk [vmem:[#allocation4 + $0xb8] sm:$0xff] %vm3908, %v4754
    %4819 = vst.msk [vmem:[#allocation4 + $0xc0] sm:$0xff] %vm3908, %v4755
    %4820 = vst.msk [vmem:[#allocation4 + $0xc8] sm:$0xff] %vm3908, %v4756
    %4821 = vst.msk [vmem:[#allocation4 + $0xd0] sm:$0xff] %vm3908, %v4757
    %4822 = vst.msk [vmem:[#allocation4 + $0xd8] sm:$0xff] %vm3908, %v4758
    %4823 = vst.msk [vmem:[#allocation4 + $0xe0] sm:$0xff] %vm3908, %v4759
    %4824 = vst.msk [vmem:[#allocation4 + $0xe8] sm:$0xff] %vm3908, %v4760
    %4825 = vst.msk [vmem:[#allocation4 + $0xf0] sm:$0xff] %vm3908, %v4761
    %4826 = vst.msk [vmem:[#allocation4 + $0xf8] sm:$0xff] %vm3908, %v4762
    %4827 = vst.msk [vmem:[#allocation4 + $0x100] sm:$0xff] %vm3908, %v4763
    %4828 = vst.msk [vmem:[#allocation4 + $0x108] sm:$0xff] %vm3908, %v4764
    %4829 = vst.msk [vmem:[#allocation4 + $0x110] sm:$0xff] %vm3908, %v4765
    %4830 = vst.msk [vmem:[#allocation4 + $0x118] sm:$0xff] %vm3908, %v4766
    %4831 = vst.msk [vmem:[#allocation4 + $0x120] sm:$0xff] %vm3908, %v4767
    %4832 = vst.msk [vmem:[#allocation4 + $0x128] sm:$0xff] %vm3908, %v4768
    %4833 = vst.msk [vmem:[#allocation4 + $0x130] sm:$0xff] %vm3908, %v4769
    %4834 = vst.msk [vmem:[#allocation4 + $0x138] sm:$0xff] %vm3908, %v4770
    %4835 = vst.msk [vmem:[#allocation4 + $0x140] sm:$0xff] %vm3908, %v4771
    %4836 = vst.msk [vmem:[#allocation4 + $0x148] sm:$0xff] %vm3908, %v4772
    %4837 = vst.msk [vmem:[#allocation4 + $0x150] sm:$0xff] %vm3908, %v4773
    %4838 = vst.msk [vmem:[#allocation4 + $0x158] sm:$0xff] %vm3908, %v4774
    %4839 = vst.msk [vmem:[#allocation4 + $0x160] sm:$0xff] %vm3908, %v4775
    %4840 = vst.msk [vmem:[#allocation4 + $0x168] sm:$0xff] %vm3908, %v4776
    %4841 = vst.msk [vmem:[#allocation4 + $0x170] sm:$0xff] %vm3908, %v4777
    %4842 = vst.msk [vmem:[#allocation4 + $0x178] sm:$0xff] %vm3908, %v4778
    %4843 = vst.msk [vmem:[#allocation4 + $0x180] sm:$0xff] %vm3908, %v4779
    %4844 = vst.msk [vmem:[#allocation4 + $0x188] sm:$0xff] %vm3908, %v4780
    %4845 = vst.msk [vmem:[#allocation4 + $0x190] sm:$0xff] %vm3908, %v4781
    %4846 = vst.msk [vmem:[#allocation4 + $0x198] sm:$0xff] %vm3908, %v4782
    %4847 = vst.msk [vmem:[#allocation4 + $0x1a0] sm:$0xff] %vm3908, %v4783
    %4848 = vst.msk [vmem:[#allocation4 + $0x1a8] sm:$0xff] %vm3908, %v4784
    %4849 = vst.msk [vmem:[#allocation4 + $0x1b0] sm:$0xff] %vm3908, %v4785
    %4850 = vst.msk [vmem:[#allocation4 + $0x1b8] sm:$0xff] %vm3908, %v4786
    %4851 = vst.msk [vmem:[#allocation4 + $0x1c0] sm:$0xff] %vm3908, %v4787
    %4852 = vst.msk [vmem:[#allocation4 + $0x1c8] sm:$0xff] %vm3908, %v4788
    %4853 = vst.msk [vmem:[#allocation4 + $0x1d0] sm:$0xff] %vm3908, %v4789
    %4854 = vst.msk [vmem:[#allocation4 + $0x1d8] sm:$0xff] %vm3908, %v4790
    %4855 = vst.msk [vmem:[#allocation4 + $0x1e0] sm:$0xff] %vm3908, %v4791
    %4856 = vst.msk [vmem:[#allocation4 + $0x1e8] sm:$0xff] %vm3908, %v4792
    %4857 = vst.msk [vmem:[#allocation4 + $0x1f0] sm:$0xff] %vm3908, %v4793
    %4858 = vst.msk [vmem:[#allocation4 + $0x1f8] sm:$0xff] %vm3908, %v4794
    %v4859 = vld [vmem:[#allocation3 + $0x1] sm:$0xff]
    %v4860 = vld [vmem:[#allocation3 + $0x9] sm:$0xff]
    %v4861 = vld [vmem:[#allocation3 + $0x19] sm:$0xff]
    %v4862 = vld [vmem:[#allocation3 + $0x21] sm:$0xff]
    %v4863 = vld [vmem:[#allocation3 + $0x31] sm:$0xff]
    %v4864 = vld [vmem:[#allocation3 + $0x39] sm:$0xff]
    %v4865 = vld [vmem:[#allocation3 + $0x49] sm:$0xff]
    %v4866 = vld [vmem:[#allocation3 + $0x51] sm:$0xff]
    %v4867 = vld [vmem:[#allocation3 + $0x61] sm:$0xff]
    %v4868 = vld [vmem:[#allocation3 + $0x69] sm:$0xff]
    %v4869 = vld [vmem:[#allocation3 + $0x79] sm:$0xff]
    %v4870 = vld [vmem:[#allocation3 + $0x81] sm:$0xff]
    %v4871 = vld [vmem:[#allocation3 + $0x91] sm:$0xff]
    %v4872 = vld [vmem:[#allocation3 + $0x99] sm:$0xff]
    %v4873 = vld [vmem:[#allocation3 + $0xa9] sm:$0xff]
    %v4874 = vld [vmem:[#allocation3 + $0xb1] sm:$0xff]
    %v4875 = vld [vmem:[#allocation3 + $0xc1] sm:$0xff]
    %v4876 = vld [vmem:[#allocation3 + $0xc9] sm:$0xff]
    %v4877 = vld [vmem:[#allocation3 + $0xd9] sm:$0xff]
    %v4878 = vld [vmem:[#allocation3 + $0xe1] sm:$0xff]
    %v4879 = vld [vmem:[#allocation3 + $0xf1] sm:$0xff]
    %v4880 = vld [vmem:[#allocation3 + $0xf9] sm:$0xff]
    %v4881 = vld [vmem:[#allocation3 + $0x109] sm:$0xff]
    %v4882 = vld [vmem:[#allocation3 + $0x111] sm:$0xff]
    %v4883 = vld [vmem:[#allocation3 + $0x121] sm:$0xff]
    %v4884 = vld [vmem:[#allocation3 + $0x129] sm:$0xff]
    %v4885 = vld [vmem:[#allocation3 + $0x139] sm:$0xff]
    %v4886 = vld [vmem:[#allocation3 + $0x141] sm:$0xff]
    %v4887 = vld [vmem:[#allocation3 + $0x151] sm:$0xff]
    %v4888 = vld [vmem:[#allocation3 + $0x159] sm:$0xff]
    %v4889 = vld [vmem:[#allocation3 + $0x169] sm:$0xff]
    %v4890 = vld [vmem:[#allocation3 + $0x171] sm:$0xff]
    %v4891 = vld [vmem:[#allocation3 + $0x1b1] sm:$0xff]
    %v4892 = vld [vmem:[#allocation3 + $0x1b9] sm:$0xff]
    %v4893 = vld [vmem:[#allocation3 + $0x1c9] sm:$0xff]
    %v4894 = vld [vmem:[#allocation3 + $0x1d1] sm:$0xff]
    %v4895 = vld [vmem:[#allocation3 + $0x1e1] sm:$0xff]
    %v4896 = vld [vmem:[#allocation3 + $0x1e9] sm:$0xff]
    %v4897 = vld [vmem:[#allocation3 + $0x1f9] sm:$0xff]
    %v4898 = vld [vmem:[#allocation3 + $0x201] sm:$0xff]
    %v4899 = vld [vmem:[#allocation3 + $0x211] sm:$0xff]
    %v4900 = vld [vmem:[#allocation3 + $0x219] sm:$0xff]
    %v4901 = vld [vmem:[#allocation3 + $0x229] sm:$0xff]
    %v4902 = vld [vmem:[#allocation3 + $0x231] sm:$0xff]
    %v4903 = vld [vmem:[#allocation3 + $0x241] sm:$0xff]
    %v4904 = vld [vmem:[#allocation3 + $0x249] sm:$0xff]
    %v4905 = vld [vmem:[#allocation3 + $0x259] sm:$0xff]
    %v4906 = vld [vmem:[#allocation3 + $0x261] sm:$0xff]
    %v4907 = vld [vmem:[#allocation3 + $0x271] sm:$0xff]
    %v4908 = vld [vmem:[#allocation3 + $0x279] sm:$0xff]
    %v4909 = vld [vmem:[#allocation3 + $0x289] sm:$0xff]
    %v4910 = vld [vmem:[#allocation3 + $0x291] sm:$0xff]
    %v4911 = vld [vmem:[#allocation3 + $0x2a1] sm:$0xff]
    %v4912 = vld [vmem:[#allocation3 + $0x2a9] sm:$0xff]
    %v4913 = vld [vmem:[#allocation3 + $0x2b9] sm:$0xff]
    %v4914 = vld [vmem:[#allocation3 + $0x2c1] sm:$0xff]
    %v4915 = vld [vmem:[#allocation3 + $0x2d1] sm:$0xff]
    %v4916 = vld [vmem:[#allocation3 + $0x2d9] sm:$0xff]
    %v4917 = vld [vmem:[#allocation3 + $0x2e9] sm:$0xff]
    %v4918 = vld [vmem:[#allocation3 + $0x2f1] sm:$0xff]
    %v4919 = vld [vmem:[#allocation3 + $0x301] sm:$0xff]
    %v4920 = vld [vmem:[#allocation3 + $0x309] sm:$0xff]
    %v4921 = vld [vmem:[#allocation3 + $0x319] sm:$0xff]
    %v4922 = vld [vmem:[#allocation3 + $0x321] sm:$0xff]
    %4987 = vrot.lane.b32.xlu0 %v4859, 8
    %v4988 = vpop.permute.xlu0 %4987
    %4989 = vrot.lane.b32.xlu0 %v4860, 8
    %v4990 = vpop.permute.xlu0 %4989
    %4991 = vrot.lane.b32.xlu0 %v4861, 8
    %v4992 = vpop.permute.xlu0 %4991
    %4993 = vrot.lane.b32.xlu0 %v4862, 8
    %v4994 = vpop.permute.xlu0 %4993
    %4995 = vrot.lane.b32.xlu0 %v4863, 8
    %v4996 = vpop.permute.xlu0 %4995
    %4997 = vrot.lane.b32.xlu0 %v4864, 8
    %v4998 = vpop.permute.xlu0 %4997
    %4999 = vrot.lane.b32.xlu0 %v4865, 8
    %v5000 = vpop.permute.xlu0 %4999
    %5001 = vrot.lane.b32.xlu0 %v4866, 8
    %v5002 = vpop.permute.xlu0 %5001
    %5003 = vrot.lane.b32.xlu0 %v4867, 8
    %v5004 = vpop.permute.xlu0 %5003
    %5005 = vrot.lane.b32.xlu0 %v4868, 8
    %v5006 = vpop.permute.xlu0 %5005
    %5007 = vrot.lane.b32.xlu0 %v4869, 8
    %v5008 = vpop.permute.xlu0 %5007
    %5009 = vrot.lane.b32.xlu0 %v4870, 8
    %v5010 = vpop.permute.xlu0 %5009
    %5011 = vrot.lane.b32.xlu0 %v4871, 8
    %v5012 = vpop.permute.xlu0 %5011
    %5013 = vrot.lane.b32.xlu0 %v4872, 8
    %v5014 = vpop.permute.xlu0 %5013
    %5015 = vrot.lane.b32.xlu0 %v4873, 8
    %v5016 = vpop.permute.xlu0 %5015
    %5017 = vrot.lane.b32.xlu0 %v4874, 8
    %v5018 = vpop.permute.xlu0 %5017
    %5019 = vrot.lane.b32.xlu0 %v4875, 8
    %v5020 = vpop.permute.xlu0 %5019
    %5021 = vrot.lane.b32.xlu0 %v4876, 8
    %v5022 = vpop.permute.xlu0 %5021
    %5023 = vrot.lane.b32.xlu0 %v4877, 8
    %v5024 = vpop.permute.xlu0 %5023
    %5025 = vrot.lane.b32.xlu0 %v4878, 8
    %v5026 = vpop.permute.xlu0 %5025
    %5027 = vrot.lane.b32.xlu0 %v4879, 8
    %v5028 = vpop.permute.xlu0 %5027
    %5029 = vrot.lane.b32.xlu0 %v4880, 8
    %v5030 = vpop.permute.xlu0 %5029
    %5031 = vrot.lane.b32.xlu0 %v4881, 8
    %v5032 = vpop.permute.xlu0 %5031
    %5033 = vrot.lane.b32.xlu0 %v4882, 8
    %v5034 = vpop.permute.xlu0 %5033
    %5035 = vrot.lane.b32.xlu0 %v4883, 8
    %v5036 = vpop.permute.xlu0 %5035
    %5037 = vrot.lane.b32.xlu0 %v4884, 8
    %v5038 = vpop.permute.xlu0 %5037
    %5039 = vrot.lane.b32.xlu0 %v4885, 8
    %v5040 = vpop.permute.xlu0 %5039
    %5041 = vrot.lane.b32.xlu0 %v4886, 8
    %v5042 = vpop.permute.xlu0 %5041
    %5043 = vrot.lane.b32.xlu0 %v4887, 8
    %v5044 = vpop.permute.xlu0 %5043
    %5045 = vrot.lane.b32.xlu0 %v4888, 8
    %v5046 = vpop.permute.xlu0 %5045
    %5047 = vrot.lane.b32.xlu0 %v4889, 8
    %v5048 = vpop.permute.xlu0 %5047
    %5049 = vrot.lane.b32.xlu0 %v4890, 8
    %v5050 = vpop.permute.xlu0 %5049
    %5051 = vrot.lane.b32.xlu0 %v4891, 8
    %v5052 = vpop.permute.xlu0 %5051
    %5053 = vrot.lane.b32.xlu0 %v4892, 8
    %v5054 = vpop.permute.xlu0 %5053
    %5055 = vrot.lane.b32.xlu0 %v4893, 8
    %v5056 = vpop.permute.xlu0 %5055
    %5057 = vrot.lane.b32.xlu0 %v4894, 8
    %v5058 = vpop.permute.xlu0 %5057
    %5059 = vrot.lane.b32.xlu0 %v4895, 8
    %v5060 = vpop.permute.xlu0 %5059
    %5061 = vrot.lane.b32.xlu0 %v4896, 8
    %v5062 = vpop.permute.xlu0 %5061
    %5063 = vrot.lane.b32.xlu0 %v4897, 8
    %v5064 = vpop.permute.xlu0 %5063
    %5065 = vrot.lane.b32.xlu0 %v4898, 8
    %v5066 = vpop.permute.xlu0 %5065
    %5067 = vrot.lane.b32.xlu0 %v4899, 8
    %v5068 = vpop.permute.xlu0 %5067
    %5069 = vrot.lane.b32.xlu0 %v4900, 8
    %v5070 = vpop.permute.xlu0 %5069
    %5071 = vrot.lane.b32.xlu0 %v4901, 8
    %v5072 = vpop.permute.xlu0 %5071
    %5073 = vrot.lane.b32.xlu0 %v4902, 8
    %v5074 = vpop.permute.xlu0 %5073
    %5075 = vrot.lane.b32.xlu0 %v4903, 8
    %v5076 = vpop.permute.xlu0 %5075
    %5077 = vrot.lane.b32.xlu0 %v4904, 8
    %v5078 = vpop.permute.xlu0 %5077
    %5079 = vrot.lane.b32.xlu0 %v4905, 8
    %v5080 = vpop.permute.xlu0 %5079
    %5081 = vrot.lane.b32.xlu0 %v4906, 8
    %v5082 = vpop.permute.xlu0 %5081
    %5083 = vrot.lane.b32.xlu0 %v4907, 8
    %v5084 = vpop.permute.xlu0 %5083
    %5085 = vrot.lane.b32.xlu0 %v4908, 8
    %v5086 = vpop.permute.xlu0 %5085
    %5087 = vrot.lane.b32.xlu0 %v4909, 8
    %v5088 = vpop.permute.xlu0 %5087
    %5089 = vrot.lane.b32.xlu0 %v4910, 8
    %v5090 = vpop.permute.xlu0 %5089
    %5091 = vrot.lane.b32.xlu0 %v4911, 8
    %v5092 = vpop.permute.xlu0 %5091
    %5093 = vrot.lane.b32.xlu0 %v4912, 8
    %v5094 = vpop.permute.xlu0 %5093
    %5095 = vrot.lane.b32.xlu0 %v4913, 8
    %v5096 = vpop.permute.xlu0 %5095
    %5097 = vrot.lane.b32.xlu0 %v4914, 8
    %v5098 = vpop.permute.xlu0 %5097
    %5099 = vrot.lane.b32.xlu0 %v4915, 8
    %v5100 = vpop.permute.xlu0 %5099
    %5101 = vrot.lane.b32.xlu0 %v4916, 8
    %v5102 = vpop.permute.xlu0 %5101
    %5103 = vrot.lane.b32.xlu0 %v4917, 8
    %v5104 = vpop.permute.xlu0 %5103
    %5105 = vrot.lane.b32.xlu0 %v4918, 8
    %v5106 = vpop.permute.xlu0 %5105
    %5107 = vrot.lane.b32.xlu0 %v4919, 8
    %v5108 = vpop.permute.xlu0 %5107
    %5109 = vrot.lane.b32.xlu0 %v4920, 8
    %v5110 = vpop.permute.xlu0 %5109
    %5111 = vrot.lane.b32.xlu0 %v4921, 8
    %v5112 = vpop.permute.xlu0 %5111
    %5113 = vrot.lane.b32.xlu0 %v4922, 8
    %v5114 = vpop.permute.xlu0 %5113
    %vm5179 = vcmask 130112
    %5180 = vst.msk [vmem:[#allocation4] sm:$0xff] %vm5179, %v4988
    %5181 = vst.msk [vmem:[#allocation4 + $0x8] sm:$0xff] %vm5179, %v4990
    %5182 = vst.msk [vmem:[#allocation4 + $0x10] sm:$0xff] %vm5179, %v4992
    %5183 = vst.msk [vmem:[#allocation4 + $0x18] sm:$0xff] %vm5179, %v4994
    %5184 = vst.msk [vmem:[#allocation4 + $0x20] sm:$0xff] %vm5179, %v4996
    %5185 = vst.msk [vmem:[#allocation4 + $0x28] sm:$0xff] %vm5179, %v4998
    %5186 = vst.msk [vmem:[#allocation4 + $0x30] sm:$0xff] %vm5179, %v5000
    %5187 = vst.msk [vmem:[#allocation4 + $0x38] sm:$0xff] %vm5179, %v5002
    %5188 = vst.msk [vmem:[#allocation4 + $0x40] sm:$0xff] %vm5179, %v5004
    %5189 = vst.msk [vmem:[#allocation4 + $0x48] sm:$0xff] %vm5179, %v5006
    %5190 = vst.msk [vmem:[#allocation4 + $0x50] sm:$0xff] %vm5179, %v5008
    %5191 = vst.msk [vmem:[#allocation4 + $0x58] sm:$0xff] %vm5179, %v5010
    %5192 = vst.msk [vmem:[#allocation4 + $0x60] sm:$0xff] %vm5179, %v5012
    %5193 = vst.msk [vmem:[#allocation4 + $0x68] sm:$0xff] %vm5179, %v5014
    %5194 = vst.msk [vmem:[#allocation4 + $0x70] sm:$0xff] %vm5179, %v5016
    %5195 = vst.msk [vmem:[#allocation4 + $0x78] sm:$0xff] %vm5179, %v5018
    %5196 = vst.msk [vmem:[#allocation4 + $0x80] sm:$0xff] %vm5179, %v5020
    %5197 = vst.msk [vmem:[#allocation4 + $0x88] sm:$0xff] %vm5179, %v5022
    %5198 = vst.msk [vmem:[#allocation4 + $0x90] sm:$0xff] %vm5179, %v5024
    %5199 = vst.msk [vmem:[#allocation4 + $0x98] sm:$0xff] %vm5179, %v5026
    %5200 = vst.msk [vmem:[#allocation4 + $0xa0] sm:$0xff] %vm5179, %v5028
    %5201 = vst.msk [vmem:[#allocation4 + $0xa8] sm:$0xff] %vm5179, %v5030
    %5202 = vst.msk [vmem:[#allocation4 + $0xb0] sm:$0xff] %vm5179, %v5032
    %5203 = vst.msk [vmem:[#allocation4 + $0xb8] sm:$0xff] %vm5179, %v5034
    %5204 = vst.msk [vmem:[#allocation4 + $0xc0] sm:$0xff] %vm5179, %v5036
    %5205 = vst.msk [vmem:[#allocation4 + $0xc8] sm:$0xff] %vm5179, %v5038
    %5206 = vst.msk [vmem:[#allocation4 + $0xd0] sm:$0xff] %vm5179, %v5040
    %5207 = vst.msk [vmem:[#allocation4 + $0xd8] sm:$0xff] %vm5179, %v5042
    %5208 = vst.msk [vmem:[#allocation4 + $0xe0] sm:$0xff] %vm5179, %v5044
    %5209 = vst.msk [vmem:[#allocation4 + $0xe8] sm:$0xff] %vm5179, %v5046
    %5210 = vst.msk [vmem:[#allocation4 + $0xf0] sm:$0xff] %vm5179, %v5048
    %5211 = vst.msk [vmem:[#allocation4 + $0xf8] sm:$0xff] %vm5179, %v5050
    %5212 = vst.msk [vmem:[#allocation4 + $0x100] sm:$0xff] %vm5179, %v5052
    %5213 = vst.msk [vmem:[#allocation4 + $0x108] sm:$0xff] %vm5179, %v5054
    %5214 = vst.msk [vmem:[#allocation4 + $0x110] sm:$0xff] %vm5179, %v5056
    %5215 = vst.msk [vmem:[#allocation4 + $0x118] sm:$0xff] %vm5179, %v5058
    %5216 = vst.msk [vmem:[#allocation4 + $0x120] sm:$0xff] %vm5179, %v5060
    %5217 = vst.msk [vmem:[#allocation4 + $0x128] sm:$0xff] %vm5179, %v5062
    %5218 = vst.msk [vmem:[#allocation4 + $0x130] sm:$0xff] %vm5179, %v5064
    %5219 = vst.msk [vmem:[#allocation4 + $0x138] sm:$0xff] %vm5179, %v5066
    %5220 = vst.msk [vmem:[#allocation4 + $0x140] sm:$0xff] %vm5179, %v5068
    %5221 = vst.msk [vmem:[#allocation4 + $0x148] sm:$0xff] %vm5179, %v5070
    %5222 = vst.msk [vmem:[#allocation4 + $0x150] sm:$0xff] %vm5179, %v5072
    %5223 = vst.msk [vmem:[#allocation4 + $0x158] sm:$0xff] %vm5179, %v5074
    %5224 = vst.msk [vmem:[#allocation4 + $0x160] sm:$0xff] %vm5179, %v5076
    %5225 = vst.msk [vmem:[#allocation4 + $0x168] sm:$0xff] %vm5179, %v5078
    %5226 = vst.msk [vmem:[#allocation4 + $0x170] sm:$0xff] %vm5179, %v5080
    %5227 = vst.msk [vmem:[#allocation4 + $0x178] sm:$0xff] %vm5179, %v5082
    %5228 = vst.msk [vmem:[#allocation4 + $0x180] sm:$0xff] %vm5179, %v5084
    %5229 = vst.msk [vmem:[#allocation4 + $0x188] sm:$0xff] %vm5179, %v5086
    %5230 = vst.msk [vmem:[#allocation4 + $0x190] sm:$0xff] %vm5179, %v5088
    %5231 = vst.msk [vmem:[#allocation4 + $0x198] sm:$0xff] %vm5179, %v5090
    %5232 = vst.msk [vmem:[#allocation4 + $0x1a0] sm:$0xff] %vm5179, %v5092
    %5233 = vst.msk [vmem:[#allocation4 + $0x1a8] sm:$0xff] %vm5179, %v5094
    %5234 = vst.msk [vmem:[#allocation4 + $0x1b0] sm:$0xff] %vm5179, %v5096
    %5235 = vst.msk [vmem:[#allocation4 + $0x1b8] sm:$0xff] %vm5179, %v5098
    %5236 = vst.msk [vmem:[#allocation4 + $0x1c0] sm:$0xff] %vm5179, %v5100
    %5237 = vst.msk [vmem:[#allocation4 + $0x1c8] sm:$0xff] %vm5179, %v5102
    %5238 = vst.msk [vmem:[#allocation4 + $0x1d0] sm:$0xff] %vm5179, %v5104
    %5239 = vst.msk [vmem:[#allocation4 + $0x1d8] sm:$0xff] %vm5179, %v5106
    %5240 = vst.msk [vmem:[#allocation4 + $0x1e0] sm:$0xff] %vm5179, %v5108
    %5241 = vst.msk [vmem:[#allocation4 + $0x1e8] sm:$0xff] %vm5179, %v5110
    %5242 = vst.msk [vmem:[#allocation4 + $0x1f0] sm:$0xff] %vm5179, %v5112
    %5243 = vst.msk [vmem:[#allocation4 + $0x1f8] sm:$0xff] %vm5179, %v5114
    %v5244 = vld [vmem:[#allocation3 + $0x2] sm:$0xff]
    %v5245 = vld [vmem:[#allocation3 + $0xa] sm:$0xff]
    %v5246 = vld [vmem:[#allocation3 + $0x1a] sm:$0xff]
    %v5247 = vld [vmem:[#allocation3 + $0x22] sm:$0xff]
    %v5248 = vld [vmem:[#allocation3 + $0x32] sm:$0xff]
    %v5249 = vld [vmem:[#allocation3 + $0x3a] sm:$0xff]
    %v5250 = vld [vmem:[#allocation3 + $0x4a] sm:$0xff]
    %v5251 = vld [vmem:[#allocation3 + $0x52] sm:$0xff]
    %v5252 = vld [vmem:[#allocation3 + $0x62] sm:$0xff]
    %v5253 = vld [vmem:[#allocation3 + $0x6a] sm:$0xff]
    %v5254 = vld [vmem:[#allocation3 + $0x7a] sm:$0xff]
    %v5255 = vld [vmem:[#allocation3 + $0x82] sm:$0xff]
    %v5256 = vld [vmem:[#allocation3 + $0x92] sm:$0xff]
    %v5257 = vld [vmem:[#allocation3 + $0x9a] sm:$0xff]
    %v5258 = vld [vmem:[#allocation3 + $0xaa] sm:$0xff]
    %v5259 = vld [vmem:[#allocation3 + $0xb2] sm:$0xff]
    %v5260 = vld [vmem:[#allocation3 + $0xc2] sm:$0xff]
    %v5261 = vld [vmem:[#allocation3 + $0xca] sm:$0xff]
    %v5262 = vld [vmem:[#allocation3 + $0xda] sm:$0xff]
    %v5263 = vld [vmem:[#allocation3 + $0xe2] sm:$0xff]
    %v5264 = vld [vmem:[#allocation3 + $0xf2] sm:$0xff]
    %v5265 = vld [vmem:[#allocation3 + $0xfa] sm:$0xff]
    %v5266 = vld [vmem:[#allocation3 + $0x10a] sm:$0xff]
    %v5267 = vld [vmem:[#allocation3 + $0x112] sm:$0xff]
    %v5268 = vld [vmem:[#allocation3 + $0x122] sm:$0xff]
    %v5269 = vld [vmem:[#allocation3 + $0x12a] sm:$0xff]
    %v5270 = vld [vmem:[#allocation3 + $0x13a] sm:$0xff]
    %v5271 = vld [vmem:[#allocation3 + $0x142] sm:$0xff]
    %v5272 = vld [vmem:[#allocation3 + $0x152] sm:$0xff]
    %v5273 = vld [vmem:[#allocation3 + $0x15a] sm:$0xff]
    %v5274 = vld [vmem:[#allocation3 + $0x16a] sm:$0xff]
    %v5275 = vld [vmem:[#allocation3 + $0x172] sm:$0xff]
    %v5276 = vld [vmem:[#allocation3 + $0x1b2] sm:$0xff]
    %v5277 = vld [vmem:[#allocation3 + $0x1ba] sm:$0xff]
    %v5278 = vld [vmem:[#allocation3 + $0x1ca] sm:$0xff]
    %v5279 = vld [vmem:[#allocation3 + $0x1d2] sm:$0xff]
    %v5280 = vld [vmem:[#allocation3 + $0x1e2] sm:$0xff]
    %v5281 = vld [vmem:[#allocation3 + $0x1ea] sm:$0xff]
    %v5282 = vld [vmem:[#allocation3 + $0x1fa] sm:$0xff]
    %v5283 = vld [vmem:[#allocation3 + $0x202] sm:$0xff]
    %v5284 = vld [vmem:[#allocation3 + $0x212] sm:$0xff]
    %v5285 = vld [vmem:[#allocation3 + $0x21a] sm:$0xff]
    %v5286 = vld [vmem:[#allocation3 + $0x22a] sm:$0xff]
    %v5287 = vld [vmem:[#allocation3 + $0x232] sm:$0xff]
    %v5288 = vld [vmem:[#allocation3 + $0x242] sm:$0xff]
    %v5289 = vld [vmem:[#allocation3 + $0x24a] sm:$0xff]
    %v5290 = vld [vmem:[#allocation3 + $0x25a] sm:$0xff]
    %v5291 = vld [vmem:[#allocation3 + $0x262] sm:$0xff]
    %v5292 = vld [vmem:[#allocation3 + $0x272] sm:$0xff]
    %v5293 = vld [vmem:[#allocation3 + $0x27a] sm:$0xff]
    %v5294 = vld [vmem:[#allocation3 + $0x28a] sm:$0xff]
    %v5295 = vld [vmem:[#allocation3 + $0x292] sm:$0xff]
    %v5296 = vld [vmem:[#allocation3 + $0x2a2] sm:$0xff]
    %v5297 = vld [vmem:[#allocation3 + $0x2aa] sm:$0xff]
    %v5298 = vld [vmem:[#allocation3 + $0x2ba] sm:$0xff]
    %v5299 = vld [vmem:[#allocation3 + $0x2c2] sm:$0xff]
    %v5300 = vld [vmem:[#allocation3 + $0x2d2] sm:$0xff]
    %v5301 = vld [vmem:[#allocation3 + $0x2da] sm:$0xff]
    %v5302 = vld [vmem:[#allocation3 + $0x2ea] sm:$0xff]
    %v5303 = vld [vmem:[#allocation3 + $0x2f2] sm:$0xff]
    %v5304 = vld [vmem:[#allocation3 + $0x302] sm:$0xff]
    %v5305 = vld [vmem:[#allocation3 + $0x30a] sm:$0xff]
    %v5306 = vld [vmem:[#allocation3 + $0x31a] sm:$0xff]
    %v5307 = vld [vmem:[#allocation3 + $0x322] sm:$0xff]
    %5372 = vrot.lane.b32.xlu0 %v5244, 16
    %v5373 = vpop.permute.xlu0 %5372
    %5374 = vrot.lane.b32.xlu0 %v5245, 16
    %v5375 = vpop.permute.xlu0 %5374
    %5376 = vrot.lane.b32.xlu0 %v5246, 16
    %v5377 = vpop.permute.xlu0 %5376
    %5378 = vrot.lane.b32.xlu0 %v5247, 16
    %v5379 = vpop.permute.xlu0 %5378
    %5380 = vrot.lane.b32.xlu0 %v5248, 16
    %v5381 = vpop.permute.xlu0 %5380
    %5382 = vrot.lane.b32.xlu0 %v5249, 16
    %v5383 = vpop.permute.xlu0 %5382
    %5384 = vrot.lane.b32.xlu0 %v5250, 16
    %v5385 = vpop.permute.xlu0 %5384
    %5386 = vrot.lane.b32.xlu0 %v5251, 16
    %v5387 = vpop.permute.xlu0 %5386
    %5388 = vrot.lane.b32.xlu0 %v5252, 16
    %v5389 = vpop.permute.xlu0 %5388
    %5390 = vrot.lane.b32.xlu0 %v5253, 16
    %v5391 = vpop.permute.xlu0 %5390
    %5392 = vrot.lane.b32.xlu0 %v5254, 16
    %v5393 = vpop.permute.xlu0 %5392
    %5394 = vrot.lane.b32.xlu0 %v5255, 16
    %v5395 = vpop.permute.xlu0 %5394
    %5396 = vrot.lane.b32.xlu0 %v5256, 16
    %v5397 = vpop.permute.xlu0 %5396
    %5398 = vrot.lane.b32.xlu0 %v5257, 16
    %v5399 = vpop.permute.xlu0 %5398
    %5400 = vrot.lane.b32.xlu0 %v5258, 16
    %v5401 = vpop.permute.xlu0 %5400
    %5402 = vrot.lane.b32.xlu0 %v5259, 16
    %v5403 = vpop.permute.xlu0 %5402
    %5404 = vrot.lane.b32.xlu0 %v5260, 16
    %v5405 = vpop.permute.xlu0 %5404
    %5406 = vrot.lane.b32.xlu0 %v5261, 16
    %v5407 = vpop.permute.xlu0 %5406
    %5408 = vrot.lane.b32.xlu0 %v5262, 16
    %v5409 = vpop.permute.xlu0 %5408
    %5410 = vrot.lane.b32.xlu0 %v5263, 16
    %v5411 = vpop.permute.xlu0 %5410
    %5412 = vrot.lane.b32.xlu0 %v5264, 16
    %v5413 = vpop.permute.xlu0 %5412
    %5414 = vrot.lane.b32.xlu0 %v5265, 16
    %v5415 = vpop.permute.xlu0 %5414
    %5416 = vrot.lane.b32.xlu0 %v5266, 16
    %v5417 = vpop.permute.xlu0 %5416
    %5418 = vrot.lane.b32.xlu0 %v5267, 16
    %v5419 = vpop.permute.xlu0 %5418
    %5420 = vrot.lane.b32.xlu0 %v5268, 16
    %v5421 = vpop.permute.xlu0 %5420
    %5422 = vrot.lane.b32.xlu0 %v5269, 16
    %v5423 = vpop.permute.xlu0 %5422
    %5424 = vrot.lane.b32.xlu0 %v5270, 16
    %v5425 = vpop.permute.xlu0 %5424
    %5426 = vrot.lane.b32.xlu0 %v5271, 16
    %v5427 = vpop.permute.xlu0 %5426
    %5428 = vrot.lane.b32.xlu0 %v5272, 16
    %v5429 = vpop.permute.xlu0 %5428
    %5430 = vrot.lane.b32.xlu0 %v5273, 16
    %v5431 = vpop.permute.xlu0 %5430
    %5432 = vrot.lane.b32.xlu0 %v5274, 16
    %v5433 = vpop.permute.xlu0 %5432
    %5434 = vrot.lane.b32.xlu0 %v5275, 16
    %v5435 = vpop.permute.xlu0 %5434
    %5436 = vrot.lane.b32.xlu0 %v5276, 16
    %v5437 = vpop.permute.xlu0 %5436
    %5438 = vrot.lane.b32.xlu0 %v5277, 16
    %v5439 = vpop.permute.xlu0 %5438
    %5440 = vrot.lane.b32.xlu0 %v5278, 16
    %v5441 = vpop.permute.xlu0 %5440
    %5442 = vrot.lane.b32.xlu0 %v5279, 16
    %v5443 = vpop.permute.xlu0 %5442
    %5444 = vrot.lane.b32.xlu0 %v5280, 16
    %v5445 = vpop.permute.xlu0 %5444
    %5446 = vrot.lane.b32.xlu0 %v5281, 16
    %v5447 = vpop.permute.xlu0 %5446
    %5448 = vrot.lane.b32.xlu0 %v5282, 16
    %v5449 = vpop.permute.xlu0 %5448
    %5450 = vrot.lane.b32.xlu0 %v5283, 16
    %v5451 = vpop.permute.xlu0 %5450
    %5452 = vrot.lane.b32.xlu0 %v5284, 16
    %v5453 = vpop.permute.xlu0 %5452
    %5454 = vrot.lane.b32.xlu0 %v5285, 16
    %v5455 = vpop.permute.xlu0 %5454
    %5456 = vrot.lane.b32.xlu0 %v5286, 16
    %v5457 = vpop.permute.xlu0 %5456
    %5458 = vrot.lane.b32.xlu0 %v5287, 16
    %v5459 = vpop.permute.xlu0 %5458
    %5460 = vrot.lane.b32.xlu0 %v5288, 16
    %v5461 = vpop.permute.xlu0 %5460
    %5462 = vrot.lane.b32.xlu0 %v5289, 16
    %v5463 = vpop.permute.xlu0 %5462
    %5464 = vrot.lane.b32.xlu0 %v5290, 16
    %v5465 = vpop.permute.xlu0 %5464
    %5466 = vrot.lane.b32.xlu0 %v5291, 16
    %v5467 = vpop.permute.xlu0 %5466
    %5468 = vrot.lane.b32.xlu0 %v5292, 16
    %v5469 = vpop.permute.xlu0 %5468
    %5470 = vrot.lane.b32.xlu0 %v5293, 16
    %v5471 = vpop.permute.xlu0 %5470
    %5472 = vrot.lane.b32.xlu0 %v5294, 16
    %v5473 = vpop.permute.xlu0 %5472
    %5474 = vrot.lane.b32.xlu0 %v5295, 16
    %v5475 = vpop.permute.xlu0 %5474
    %5476 = vrot.lane.b32.xlu0 %v5296, 16
    %v5477 = vpop.permute.xlu0 %5476
    %5478 = vrot.lane.b32.xlu0 %v5297, 16
    %v5479 = vpop.permute.xlu0 %5478
    %5480 = vrot.lane.b32.xlu0 %v5298, 16
    %v5481 = vpop.permute.xlu0 %5480
    %5482 = vrot.lane.b32.xlu0 %v5299, 16
    %v5483 = vpop.permute.xlu0 %5482
    %5484 = vrot.lane.b32.xlu0 %v5300, 16
    %v5485 = vpop.permute.xlu0 %5484
    %5486 = vrot.lane.b32.xlu0 %v5301, 16
    %v5487 = vpop.permute.xlu0 %5486
    %5488 = vrot.lane.b32.xlu0 %v5302, 16
    %v5489 = vpop.permute.xlu0 %5488
    %5490 = vrot.lane.b32.xlu0 %v5303, 16
    %v5491 = vpop.permute.xlu0 %5490
    %5492 = vrot.lane.b32.xlu0 %v5304, 16
    %v5493 = vpop.permute.xlu0 %5492
    %5494 = vrot.lane.b32.xlu0 %v5305, 16
    %v5495 = vpop.permute.xlu0 %5494
    %5496 = vrot.lane.b32.xlu0 %v5306, 16
    %v5497 = vpop.permute.xlu0 %5496
    %5498 = vrot.lane.b32.xlu0 %v5307, 16
    %v5499 = vpop.permute.xlu0 %5498
    %vm5564 = vcmask 195712
    %5565 = vst.msk [vmem:[#allocation4] sm:$0xff] %vm5564, %v5373
    %5566 = vst.msk [vmem:[#allocation4 + $0x8] sm:$0xff] %vm5564, %v5375
    %5567 = vst.msk [vmem:[#allocation4 + $0x10] sm:$0xff] %vm5564, %v5377
    %5568 = vst.msk [vmem:[#allocation4 + $0x18] sm:$0xff] %vm5564, %v5379
    %5569 = vst.msk [vmem:[#allocation4 + $0x20] sm:$0xff] %vm5564, %v5381
    %5570 = vst.msk [vmem:[#allocation4 + $0x28] sm:$0xff] %vm5564, %v5383
    %5571 = vst.msk [vmem:[#allocation4 + $0x30] sm:$0xff] %vm5564, %v5385
    %5572 = vst.msk [vmem:[#allocation4 + $0x38] sm:$0xff] %vm5564, %v5387
    %5573 = vst.msk [vmem:[#allocation4 + $0x40] sm:$0xff] %vm5564, %v5389
    %5574 = vst.msk [vmem:[#allocation4 + $0x48] sm:$0xff] %vm5564, %v5391
    %5575 = vst.msk [vmem:[#allocation4 + $0x50] sm:$0xff] %vm5564, %v5393
    %5576 = vst.msk [vmem:[#allocation4 + $0x58] sm:$0xff] %vm5564, %v5395
    %5577 = vst.msk [vmem:[#allocation4 + $0x60] sm:$0xff] %vm5564, %v5397
    %5578 = vst.msk [vmem:[#allocation4 + $0x68] sm:$0xff] %vm5564, %v5399
    %5579 = vst.msk [vmem:[#allocation4 + $0x70] sm:$0xff] %vm5564, %v5401
    %5580 = vst.msk [vmem:[#allocation4 + $0x78] sm:$0xff] %vm5564, %v5403
    %5581 = vst.msk [vmem:[#allocation4 + $0x80] sm:$0xff] %vm5564, %v5405
    %5582 = vst.msk [vmem:[#allocation4 + $0x88] sm:$0xff] %vm5564, %v5407
    %5583 = vst.msk [vmem:[#allocation4 + $0x90] sm:$0xff] %vm5564, %v5409
    %5584 = vst.msk [vmem:[#allocation4 + $0x98] sm:$0xff] %vm5564, %v5411
    %5585 = vst.msk [vmem:[#allocation4 + $0xa0] sm:$0xff] %vm5564, %v5413
    %5586 = vst.msk [vmem:[#allocation4 + $0xa8] sm:$0xff] %vm5564, %v5415
    %5587 = vst.msk [vmem:[#allocation4 + $0xb0] sm:$0xff] %vm5564, %v5417
    %5588 = vst.msk [vmem:[#allocation4 + $0xb8] sm:$0xff] %vm5564, %v5419
    %5589 = vst.msk [vmem:[#allocation4 + $0xc0] sm:$0xff] %vm5564, %v5421
    %5590 = vst.msk [vmem:[#allocation4 + $0xc8] sm:$0xff] %vm5564, %v5423
    %5591 = vst.msk [vmem:[#allocation4 + $0xd0] sm:$0xff] %vm5564, %v5425
    %5592 = vst.msk [vmem:[#allocation4 + $0xd8] sm:$0xff] %vm5564, %v5427
    %5593 = vst.msk [vmem:[#allocation4 + $0xe0] sm:$0xff] %vm5564, %v5429
    %5594 = vst.msk [vmem:[#allocation4 + $0xe8] sm:$0xff] %vm5564, %v5431
    %5595 = vst.msk [vmem:[#allocation4 + $0xf0] sm:$0xff] %vm5564, %v5433
    %5596 = vst.msk [vmem:[#allocation4 + $0xf8] sm:$0xff] %vm5564, %v5435
    %5597 = vst.msk [vmem:[#allocation4 + $0x100] sm:$0xff] %vm5564, %v5437
    %5598 = vst.msk [vmem:[#allocation4 + $0x108] sm:$0xff] %vm5564, %v5439
    %5599 = vst.msk [vmem:[#allocation4 + $0x110] sm:$0xff] %vm5564, %v5441
    %5600 = vst.msk [vmem:[#allocation4 + $0x118] sm:$0xff] %vm5564, %v5443
    %5601 = vst.msk [vmem:[#allocation4 + $0x120] sm:$0xff] %vm5564, %v5445
    %5602 = vst.msk [vmem:[#allocation4 + $0x128] sm:$0xff] %vm5564, %v5447
    %5603 = vst.msk [vmem:[#allocation4 + $0x130] sm:$0xff] %vm5564, %v5449
    %5604 = vst.msk [vmem:[#allocation4 + $0x138] sm:$0xff] %vm5564, %v5451
    %5605 = vst.msk [vmem:[#allocation4 + $0x140] sm:$0xff] %vm5564, %v5453
    %5606 = vst.msk [vmem:[#allocation4 + $0x148] sm:$0xff] %vm5564, %v5455
    %5607 = vst.msk [vmem:[#allocation4 + $0x150] sm:$0xff] %vm5564, %v5457
    %5608 = vst.msk [vmem:[#allocation4 + $0x158] sm:$0xff] %vm5564, %v5459
    %5609 = vst.msk [vmem:[#allocation4 + $0x160] sm:$0xff] %vm5564, %v5461
    %5610 = vst.msk [vmem:[#allocation4 + $0x168] sm:$0xff] %vm5564, %v5463
    %5611 = vst.msk [vmem:[#allocation4 + $0x170] sm:$0xff] %vm5564, %v5465
    %5612 = vst.msk [vmem:[#allocation4 + $0x178] sm:$0xff] %vm5564, %v5467
    %5613 = vst.msk [vmem:[#allocation4 + $0x180] sm:$0xff] %vm5564, %v5469
    %5614 = vst.msk [vmem:[#allocation4 + $0x188] sm:$0xff] %vm5564, %v5471
    %5615 = vst.msk [vmem:[#allocation4 + $0x190] sm:$0xff] %vm5564, %v5473
    %5616 = vst.msk [vmem:[#allocation4 + $0x198] sm:$0xff] %vm5564, %v5475
    %5617 = vst.msk [vmem:[#allocation4 + $0x1a0] sm:$0xff] %vm5564, %v5477
    %5618 = vst.msk [vmem:[#allocation4 + $0x1a8] sm:$0xff] %vm5564, %v5479
    %5619 = vst.msk [vmem:[#allocation4 + $0x1b0] sm:$0xff] %vm5564, %v5481
    %5620 = vst.msk [vmem:[#allocation4 + $0x1b8] sm:$0xff] %vm5564, %v5483
    %5621 = vst.msk [vmem:[#allocation4 + $0x1c0] sm:$0xff] %vm5564, %v5485
    %5622 = vst.msk [vmem:[#allocation4 + $0x1c8] sm:$0xff] %vm5564, %v5487
    %5623 = vst.msk [vmem:[#allocation4 + $0x1d0] sm:$0xff] %vm5564, %v5489
    %5624 = vst.msk [vmem:[#allocation4 + $0x1d8] sm:$0xff] %vm5564, %v5491
    %5625 = vst.msk [vmem:[#allocation4 + $0x1e0] sm:$0xff] %vm5564, %v5493
    %5626 = vst.msk [vmem:[#allocation4 + $0x1e8] sm:$0xff] %vm5564, %v5495
    %5627 = vst.msk [vmem:[#allocation4 + $0x1f0] sm:$0xff] %vm5564, %v5497
    %5628 = vst.msk [vmem:[#allocation4 + $0x1f8] sm:$0xff] %vm5564, %v5499
    %v5629 = vld [vmem:[%s4666] sm:$0xff]
    %v5630 = vld [vmem:[%s4666 + $0x8] sm:$0xff]
    %v5631 = vld [vmem:[%s4666 + $0x18] sm:$0xff]
    %v5632 = vld [vmem:[%s4666 + $0x20] sm:$0xff]
    %v5633 = vld [vmem:[%s4666 + $0x30] sm:$0xff]
    %v5634 = vld [vmem:[%s4666 + $0x38] sm:$0xff]
    %v5635 = vld [vmem:[%s4666 + $0x48] sm:$0xff]
    %v5636 = vld [vmem:[%s4666 + $0x50] sm:$0xff]
    %v5637 = vld [vmem:[%s4666 + $0x60] sm:$0xff]
    %v5638 = vld [vmem:[%s4666 + $0x68] sm:$0xff]
    %v5639 = vld [vmem:[%s4666 + $0x78] sm:$0xff]
    %v5640 = vld [vmem:[%s4666 + $0x80] sm:$0xff]
    %v5641 = vld [vmem:[%s4666 + $0x90] sm:$0xff]
    %v5642 = vld [vmem:[%s4666 + $0x98] sm:$0xff]
    %v5643 = vld [vmem:[%s4666 + $0xa8] sm:$0xff]
    %v5644 = vld [vmem:[%s4666 + $0xb0] sm:$0xff]
    %v5645 = vld [vmem:[%s4666 + $0xc0] sm:$0xff]
    %v5646 = vld [vmem:[%s4666 + $0xc8] sm:$0xff]
    %v5647 = vld [vmem:[%s4666 + $0xd8] sm:$0xff]
    %v5648 = vld [vmem:[%s4666 + $0xe0] sm:$0xff]
    %v5649 = vld [vmem:[%s4666 + $0xf0] sm:$0xff]
    %v5650 = vld [vmem:[%s4666 + $0xf8] sm:$0xff]
    %v5651 = vld [vmem:[%s4666 + $0x108] sm:$0xff]
    %v5652 = vld [vmem:[%s4666 + $0x110] sm:$0xff]
    %v5653 = vld [vmem:[%s4666 + $0x120] sm:$0xff]
    %v5654 = vld [vmem:[%s4666 + $0x128] sm:$0xff]
    %v5655 = vld [vmem:[%s4666 + $0x138] sm:$0xff]
    %v5656 = vld [vmem:[%s4666 + $0x140] sm:$0xff]
    %v5657 = vld [vmem:[%s4666 + $0x150] sm:$0xff]
    %v5658 = vld [vmem:[%s4666 + $0x158] sm:$0xff]
    %v5659 = vld [vmem:[%s4666 + $0x168] sm:$0xff]
    %v5660 = vld [vmem:[%s4666 + $0x170] sm:$0xff]
    %v5661 = vld [vmem:[%s4666 + $0x1b0] sm:$0xff]
    %v5662 = vld [vmem:[%s4666 + $0x1b8] sm:$0xff]
    %v5663 = vld [vmem:[%s4666 + $0x1c8] sm:$0xff]
    %v5664 = vld [vmem:[%s4666 + $0x1d0] sm:$0xff]
    %v5665 = vld [vmem:[%s4666 + $0x1e0] sm:$0xff]
    %v5666 = vld [vmem:[%s4666 + $0x1e8] sm:$0xff]
    %v5667 = vld [vmem:[%s4666 + $0x1f8] sm:$0xff]
    %v5668 = vld [vmem:[%s4666 + $0x200] sm:$0xff]
    %v5669 = vld [vmem:[%s4666 + $0x210] sm:$0xff]
    %v5670 = vld [vmem:[%s4666 + $0x218] sm:$0xff]
    %v5671 = vld [vmem:[%s4666 + $0x228] sm:$0xff]
    %v5672 = vld [vmem:[%s4666 + $0x230] sm:$0xff]
    %v5673 = vld [vmem:[%s4666 + $0x240] sm:$0xff]
    %v5674 = vld [vmem:[%s4666 + $0x248] sm:$0xff]
    %v5675 = vld [vmem:[%s4666 + $0x258] sm:$0xff]
    %v5676 = vld [vmem:[%s4666 + $0x260] sm:$0xff]
    %v5677 = vld [vmem:[%s4666 + $0x270] sm:$0xff]
    %v5678 = vld [vmem:[%s4666 + $0x278] sm:$0xff]
    %v5679 = vld [vmem:[%s4666 + $0x288] sm:$0xff]
    %v5680 = vld [vmem:[%s4666 + $0x290] sm:$0xff]
    %v5681 = vld [vmem:[%s4666 + $0x2a0] sm:$0xff]
    %v5682 = vld [vmem:[%s4666 + $0x2a8] sm:$0xff]
    %v5683 = vld [vmem:[%s4666 + $0x2b8] sm:$0xff]
    %v5684 = vld [vmem:[%s4666 + $0x2c0] sm:$0xff]
    %v5685 = vld [vmem:[%s4666 + $0x2d0] sm:$0xff]
    %v5686 = vld [vmem:[%s4666 + $0x2d8] sm:$0xff]
    %v5687 = vld [vmem:[%s4666 + $0x2e8] sm:$0xff]
    %v5688 = vld [vmem:[%s4666 + $0x2f0] sm:$0xff]
    %v5689 = vld [vmem:[%s4666 + $0x300] sm:$0xff]
    %v5690 = vld [vmem:[%s4666 + $0x308] sm:$0xff]
    %v5691 = vld [vmem:[%s4666 + $0x318] sm:$0xff]
    %v5692 = vld [vmem:[%s4666 + $0x320] sm:$0xff]
    %5757 = vrot.lane.b32.xlu0 %v5629, 24
    %v5758 = vpop.permute.xlu0 %5757
    %5759 = vrot.lane.b32.xlu0 %v5630, 24
    %v5760 = vpop.permute.xlu0 %5759
    %5761 = vrot.lane.b32.xlu0 %v5631, 24
    %v5762 = vpop.permute.xlu0 %5761
    %5763 = vrot.lane.b32.xlu0 %v5632, 24
    %v5764 = vpop.permute.xlu0 %5763
    %5765 = vrot.lane.b32.xlu0 %v5633, 24
    %v5766 = vpop.permute.xlu0 %5765
    %5767 = vrot.lane.b32.xlu0 %v5634, 24
    %v5768 = vpop.permute.xlu0 %5767
    %5769 = vrot.lane.b32.xlu0 %v5635, 24
    %v5770 = vpop.permute.xlu0 %5769
    %5771 = vrot.lane.b32.xlu0 %v5636, 24
    %v5772 = vpop.permute.xlu0 %5771
    %5773 = vrot.lane.b32.xlu0 %v5637, 24
    %v5774 = vpop.permute.xlu0 %5773
    %5775 = vrot.lane.b32.xlu0 %v5638, 24
    %v5776 = vpop.permute.xlu0 %5775
    %5777 = vrot.lane.b32.xlu0 %v5639, 24
    %v5778 = vpop.permute.xlu0 %5777
    %5779 = vrot.lane.b32.xlu0 %v5640, 24
    %v5780 = vpop.permute.xlu0 %5779
    %5781 = vrot.lane.b32.xlu0 %v5641, 24
    %v5782 = vpop.permute.xlu0 %5781
    %5783 = vrot.lane.b32.xlu0 %v5642, 24
    %v5784 = vpop.permute.xlu0 %5783
    %5785 = vrot.lane.b32.xlu0 %v5643, 24
    %v5786 = vpop.permute.xlu0 %5785
    %5787 = vrot.lane.b32.xlu0 %v5644, 24
    %v5788 = vpop.permute.xlu0 %5787
    %5789 = vrot.lane.b32.xlu0 %v5645, 24
    %v5790 = vpop.permute.xlu0 %5789
    %5791 = vrot.lane.b32.xlu0 %v5646, 24
    %v5792 = vpop.permute.xlu0 %5791
    %5793 = vrot.lane.b32.xlu0 %v5647, 24
    %v5794 = vpop.permute.xlu0 %5793
    %5795 = vrot.lane.b32.xlu0 %v5648, 24
    %v5796 = vpop.permute.xlu0 %5795
    %5797 = vrot.lane.b32.xlu0 %v5649, 24
    %v5798 = vpop.permute.xlu0 %5797
    %5799 = vrot.lane.b32.xlu0 %v5650, 24
    %v5800 = vpop.permute.xlu0 %5799
    %5801 = vrot.lane.b32.xlu0 %v5651, 24
    %v5802 = vpop.permute.xlu0 %5801
    %5803 = vrot.lane.b32.xlu0 %v5652, 24
    %v5804 = vpop.permute.xlu0 %5803
    %5805 = vrot.lane.b32.xlu0 %v5653, 24
    %v5806 = vpop.permute.xlu0 %5805
    %5807 = vrot.lane.b32.xlu0 %v5654, 24
    %v5808 = vpop.permute.xlu0 %5807
    %5809 = vrot.lane.b32.xlu0 %v5655, 24
    %v5810 = vpop.permute.xlu0 %5809
    %5811 = vrot.lane.b32.xlu0 %v5656, 24
    %v5812 = vpop.permute.xlu0 %5811
    %5813 = vrot.lane.b32.xlu0 %v5657, 24
    %v5814 = vpop.permute.xlu0 %5813
    %5815 = vrot.lane.b32.xlu0 %v5658, 24
    %v5816 = vpop.permute.xlu0 %5815
    %5817 = vrot.lane.b32.xlu0 %v5659, 24
    %v5818 = vpop.permute.xlu0 %5817
    %5819 = vrot.lane.b32.xlu0 %v5660, 24
    %v5820 = vpop.permute.xlu0 %5819
    %5821 = vrot.lane.b32.xlu0 %v5661, 24
    %v5822 = vpop.permute.xlu0 %5821
    %5823 = vrot.lane.b32.xlu0 %v5662, 24
    %v5824 = vpop.permute.xlu0 %5823
    %5825 = vrot.lane.b32.xlu0 %v5663, 24
    %v5826 = vpop.permute.xlu0 %5825
    %5827 = vrot.lane.b32.xlu0 %v5664, 24
    %v5828 = vpop.permute.xlu0 %5827
    %5829 = vrot.lane.b32.xlu0 %v5665, 24
    %v5830 = vpop.permute.xlu0 %5829
    %5831 = vrot.lane.b32.xlu0 %v5666, 24
    %v5832 = vpop.permute.xlu0 %5831
    %5833 = vrot.lane.b32.xlu0 %v5667, 24
    %v5834 = vpop.permute.xlu0 %5833
    %5835 = vrot.lane.b32.xlu0 %v5668, 24
    %v5836 = vpop.permute.xlu0 %5835
    %5837 = vrot.lane.b32.xlu0 %v5669, 24
    %v5838 = vpop.permute.xlu0 %5837
    %5839 = vrot.lane.b32.xlu0 %v5670, 24
    %v5840 = vpop.permute.xlu0 %5839
    %5841 = vrot.lane.b32.xlu0 %v5671, 24
    %v5842 = vpop.permute.xlu0 %5841
    %5843 = vrot.lane.b32.xlu0 %v5672, 24
    %v5844 = vpop.permute.xlu0 %5843
    %5845 = vrot.lane.b32.xlu0 %v5673, 24
    %v5846 = vpop.permute.xlu0 %5845
    %5847 = vrot.lane.b32.xlu0 %v5674, 24
    %v5848 = vpop.permute.xlu0 %5847
    %5849 = vrot.lane.b32.xlu0 %v5675, 24
    %v5850 = vpop.permute.xlu0 %5849
    %5851 = vrot.lane.b32.xlu0 %v5676, 24
    %v5852 = vpop.permute.xlu0 %5851
    %5853 = vrot.lane.b32.xlu0 %v5677, 24
    %v5854 = vpop.permute.xlu0 %5853
    %5855 = vrot.lane.b32.xlu0 %v5678, 24
    %v5856 = vpop.permute.xlu0 %5855
    %5857 = vrot.lane.b32.xlu0 %v5679, 24
    %v5858 = vpop.permute.xlu0 %5857
    %5859 = vrot.lane.b32.xlu0 %v5680, 24
    %v5860 = vpop.permute.xlu0 %5859
    %5861 = vrot.lane.b32.xlu0 %v5681, 24
    %v5862 = vpop.permute.xlu0 %5861
    %5863 = vrot.lane.b32.xlu0 %v5682, 24
    %v5864 = vpop.permute.xlu0 %5863
    %5865 = vrot.lane.b32.xlu0 %v5683, 24
    %v5866 = vpop.permute.xlu0 %5865
    %5867 = vrot.lane.b32.xlu0 %v5684, 24
    %v5868 = vpop.permute.xlu0 %5867
    %5869 = vrot.lane.b32.xlu0 %v5685, 24
    %v5870 = vpop.permute.xlu0 %5869
    %5871 = vrot.lane.b32.xlu0 %v5686, 24
    %v5872 = vpop.permute.xlu0 %5871
    %5873 = vrot.lane.b32.xlu0 %v5687, 24
    %v5874 = vpop.permute.xlu0 %5873
    %5875 = vrot.lane.b32.xlu0 %v5688, 24
    %v5876 = vpop.permute.xlu0 %5875
    %5877 = vrot.lane.b32.xlu0 %v5689, 24
    %v5878 = vpop.permute.xlu0 %5877
    %5879 = vrot.lane.b32.xlu0 %v5690, 24
    %v5880 = vpop.permute.xlu0 %5879
    %5881 = vrot.lane.b32.xlu0 %v5691, 24
    %v5882 = vpop.permute.xlu0 %5881
    %5883 = vrot.lane.b32.xlu0 %v5692, 24
    %v5884 = vpop.permute.xlu0 %5883
    %vm5949 = vcmask 261312
    %5950 = vst.msk [vmem:[#allocation4] sm:$0xff] %vm5949, %v5758
    %5951 = vst.msk [vmem:[#allocation4 + $0x8] sm:$0xff] %vm5949, %v5760
    %5952 = vst.msk [vmem:[#allocation4 + $0x10] sm:$0xff] %vm5949, %v5762
    %5953 = vst.msk [vmem:[#allocation4 + $0x18] sm:$0xff] %vm5949, %v5764
    %5954 = vst.msk [vmem:[#allocation4 + $0x20] sm:$0xff] %vm5949, %v5766
    %5955 = vst.msk [vmem:[#allocation4 + $0x28] sm:$0xff] %vm5949, %v5768
    %5956 = vst.msk [vmem:[#allocation4 + $0x30] sm:$0xff] %vm5949, %v5770
    %5957 = vst.msk [vmem:[#allocation4 + $0x38] sm:$0xff] %vm5949, %v5772
    %5958 = vst.msk [vmem:[#allocation4 + $0x40] sm:$0xff] %vm5949, %v5774
    %5959 = vst.msk [vmem:[#allocation4 + $0x48] sm:$0xff] %vm5949, %v5776
    %5960 = vst.msk [vmem:[#allocation4 + $0x50] sm:$0xff] %vm5949, %v5778
    %5961 = vst.msk [vmem:[#allocation4 + $0x58] sm:$0xff] %vm5949, %v5780
    %5962 = vst.msk [vmem:[#allocation4 + $0x60] sm:$0xff] %vm5949, %v5782
    %5963 = vst.msk [vmem:[#allocation4 + $0x68] sm:$0xff] %vm5949, %v5784
    %5964 = vst.msk [vmem:[#allocation4 + $0x70] sm:$0xff] %vm5949, %v5786
    %5965 = vst.msk [vmem:[#allocation4 + $0x78] sm:$0xff] %vm5949, %v5788
    %5966 = vst.msk [vmem:[#allocation4 + $0x80] sm:$0xff] %vm5949, %v5790
    %5967 = vst.msk [vmem:[#allocation4 + $0x88] sm:$0xff] %vm5949, %v5792
    %5968 = vst.msk [vmem:[#allocation4 + $0x90] sm:$0xff] %vm5949, %v5794
    %5969 = vst.msk [vmem:[#allocation4 + $0x98] sm:$0xff] %vm5949, %v5796
    %5970 = vst.msk [vmem:[#allocation4 + $0xa0] sm:$0xff] %vm5949, %v5798
    %5971 = vst.msk [vmem:[#allocation4 + $0xa8] sm:$0xff] %vm5949, %v5800
    %5972 = vst.msk [vmem:[#allocation4 + $0xb0] sm:$0xff] %vm5949, %v5802
    %5973 = vst.msk [vmem:[#allocation4 + $0xb8] sm:$0xff] %vm5949, %v5804
    %5974 = vst.msk [vmem:[#allocation4 + $0xc0] sm:$0xff] %vm5949, %v5806
    %5975 = vst.msk [vmem:[#allocation4 + $0xc8] sm:$0xff] %vm5949, %v5808
    %5976 = vst.msk [vmem:[#allocation4 + $0xd0] sm:$0xff] %vm5949, %v5810
    %5977 = vst.msk [vmem:[#allocation4 + $0xd8] sm:$0xff] %vm5949, %v5812
    %5978 = vst.msk [vmem:[#allocation4 + $0xe0] sm:$0xff] %vm5949, %v5814
    %5979 = vst.msk [vmem:[#allocation4 + $0xe8] sm:$0xff] %vm5949, %v5816
    %5980 = vst.msk [vmem:[#allocation4 + $0xf0] sm:$0xff] %vm5949, %v5818
    %5981 = vst.msk [vmem:[#allocation4 + $0xf8] sm:$0xff] %vm5949, %v5820
    %5982 = vst.msk [vmem:[#allocation4 + $0x100] sm:$0xff] %vm5949, %v5822
    %5983 = vst.msk [vmem:[#allocation4 + $0x108] sm:$0xff] %vm5949, %v5824
    %5984 = vst.msk [vmem:[#allocation4 + $0x110] sm:$0xff] %vm5949, %v5826
    %5985 = vst.msk [vmem:[#allocation4 + $0x118] sm:$0xff] %vm5949, %v5828
    %5986 = vst.msk [vmem:[#allocation4 + $0x120] sm:$0xff] %vm5949, %v5830
    %5987 = vst.msk [vmem:[#allocation4 + $0x128] sm:$0xff] %vm5949, %v5832
    %5988 = vst.msk [vmem:[#allocation4 + $0x130] sm:$0xff] %vm5949, %v5834
    %5989 = vst.msk [vmem:[#allocation4 + $0x138] sm:$0xff] %vm5949, %v5836
    %5990 = vst.msk [vmem:[#allocation4 + $0x140] sm:$0xff] %vm5949, %v5838
    %5991 = vst.msk [vmem:[#allocation4 + $0x148] sm:$0xff] %vm5949, %v5840
    %5992 = vst.msk [vmem:[#allocation4 + $0x150] sm:$0xff] %vm5949, %v5842
    %5993 = vst.msk [vmem:[#allocation4 + $0x158] sm:$0xff] %vm5949, %v5844
    %5994 = vst.msk [vmem:[#allocation4 + $0x160] sm:$0xff] %vm5949, %v5846
    %5995 = vst.msk [vmem:[#allocation4 + $0x168] sm:$0xff] %vm5949, %v5848
    %5996 = vst.msk [vmem:[#allocation4 + $0x170] sm:$0xff] %vm5949, %v5850
    %5997 = vst.msk [vmem:[#allocation4 + $0x178] sm:$0xff] %vm5949, %v5852
    %5998 = vst.msk [vmem:[#allocation4 + $0x180] sm:$0xff] %vm5949, %v5854
    %5999 = vst.msk [vmem:[#allocation4 + $0x188] sm:$0xff] %vm5949, %v5856
    %6000 = vst.msk [vmem:[#allocation4 + $0x190] sm:$0xff] %vm5949, %v5858
    %6001 = vst.msk [vmem:[#allocation4 + $0x198] sm:$0xff] %vm5949, %v5860
    %6002 = vst.msk [vmem:[#allocation4 + $0x1a0] sm:$0xff] %vm5949, %v5862
    %6003 = vst.msk [vmem:[#allocation4 + $0x1a8] sm:$0xff] %vm5949, %v5864
    %6004 = vst.msk [vmem:[#allocation4 + $0x1b0] sm:$0xff] %vm5949, %v5866
    %6005 = vst.msk [vmem:[#allocation4 + $0x1b8] sm:$0xff] %vm5949, %v5868
    %6006 = vst.msk [vmem:[#allocation4 + $0x1c0] sm:$0xff] %vm5949, %v5870
    %6007 = vst.msk [vmem:[#allocation4 + $0x1c8] sm:$0xff] %vm5949, %v5872
    %6008 = vst.msk [vmem:[#allocation4 + $0x1d0] sm:$0xff] %vm5949, %v5874
    %6009 = vst.msk [vmem:[#allocation4 + $0x1d8] sm:$0xff] %vm5949, %v5876
    %6010 = vst.msk [vmem:[#allocation4 + $0x1e0] sm:$0xff] %vm5949, %v5878
    %6011 = vst.msk [vmem:[#allocation4 + $0x1e8] sm:$0xff] %vm5949, %v5880
    %6012 = vst.msk [vmem:[#allocation4 + $0x1f0] sm:$0xff] %vm5949, %v5882
    %6013 = vst.msk [vmem:[#allocation4 + $0x1f8] sm:$0xff] %vm5949, %v5884
    %v6014 = vld [vmem:[%s4666 + $0x1] sm:$0xff]
    %v6015 = vld [vmem:[%s4666 + $0x9] sm:$0xff]
    %v6016 = vld [vmem:[%s4666 + $0x19] sm:$0xff]
    %v6017 = vld [vmem:[%s4666 + $0x21] sm:$0xff]
    %v6018 = vld [vmem:[%s4666 + $0x31] sm:$0xff]
    %v6019 = vld [vmem:[%s4666 + $0x39] sm:$0xff]
    %v6020 = vld [vmem:[%s4666 + $0x49] sm:$0xff]
    %v6021 = vld [vmem:[%s4666 + $0x51] sm:$0xff]
    %v6022 = vld [vmem:[%s4666 + $0x61] sm:$0xff]
    %v6023 = vld [vmem:[%s4666 + $0x69] sm:$0xff]
    %v6024 = vld [vmem:[%s4666 + $0x79] sm:$0xff]
    %v6025 = vld [vmem:[%s4666 + $0x81] sm:$0xff]
    %v6026 = vld [vmem:[%s4666 + $0x91] sm:$0xff]
    %v6027 = vld [vmem:[%s4666 + $0x99] sm:$0xff]
    %v6028 = vld [vmem:[%s4666 + $0xa9] sm:$0xff]
    %v6029 = vld [vmem:[%s4666 + $0xb1] sm:$0xff]
    %v6030 = vld [vmem:[%s4666 + $0xc1] sm:$0xff]
    %v6031 = vld [vmem:[%s4666 + $0xc9] sm:$0xff]
    %v6032 = vld [vmem:[%s4666 + $0xd9] sm:$0xff]
    %v6033 = vld [vmem:[%s4666 + $0xe1] sm:$0xff]
    %v6034 = vld [vmem:[%s4666 + $0xf1] sm:$0xff]
    %v6035 = vld [vmem:[%s4666 + $0xf9] sm:$0xff]
    %v6036 = vld [vmem:[%s4666 + $0x109] sm:$0xff]
    %v6037 = vld [vmem:[%s4666 + $0x111] sm:$0xff]
    %v6038 = vld [vmem:[%s4666 + $0x121] sm:$0xff]
    %v6039 = vld [vmem:[%s4666 + $0x129] sm:$0xff]
    %v6040 = vld [vmem:[%s4666 + $0x139] sm:$0xff]
    %v6041 = vld [vmem:[%s4666 + $0x141] sm:$0xff]
    %v6042 = vld [vmem:[%s4666 + $0x151] sm:$0xff]
    %v6043 = vld [vmem:[%s4666 + $0x159] sm:$0xff]
    %v6044 = vld [vmem:[%s4666 + $0x169] sm:$0xff]
    %v6045 = vld [vmem:[%s4666 + $0x171] sm:$0xff]
    %v6046 = vld [vmem:[%s4666 + $0x1b1] sm:$0xff]
    %v6047 = vld [vmem:[%s4666 + $0x1b9] sm:$0xff]
    %v6048 = vld [vmem:[%s4666 + $0x1c9] sm:$0xff]
    %v6049 = vld [vmem:[%s4666 + $0x1d1] sm:$0xff]
    %v6050 = vld [vmem:[%s4666 + $0x1e1] sm:$0xff]
    %v6051 = vld [vmem:[%s4666 + $0x1e9] sm:$0xff]
    %v6052 = vld [vmem:[%s4666 + $0x1f9] sm:$0xff]
    %v6053 = vld [vmem:[%s4666 + $0x201] sm:$0xff]
    %v6054 = vld [vmem:[%s4666 + $0x211] sm:$0xff]
    %v6055 = vld [vmem:[%s4666 + $0x219] sm:$0xff]
    %v6056 = vld [vmem:[%s4666 + $0x229] sm:$0xff]
    %v6057 = vld [vmem:[%s4666 + $0x231] sm:$0xff]
    %v6058 = vld [vmem:[%s4666 + $0x241] sm:$0xff]
    %v6059 = vld [vmem:[%s4666 + $0x249] sm:$0xff]
    %v6060 = vld [vmem:[%s4666 + $0x259] sm:$0xff]
    %v6061 = vld [vmem:[%s4666 + $0x261] sm:$0xff]
    %v6062 = vld [vmem:[%s4666 + $0x271] sm:$0xff]
    %v6063 = vld [vmem:[%s4666 + $0x279] sm:$0xff]
    %v6064 = vld [vmem:[%s4666 + $0x289] sm:$0xff]
    %v6065 = vld [vmem:[%s4666 + $0x291] sm:$0xff]
    %v6066 = vld [vmem:[%s4666 + $0x2a1] sm:$0xff]
    %v6067 = vld [vmem:[%s4666 + $0x2a9] sm:$0xff]
    %v6068 = vld [vmem:[%s4666 + $0x2b9] sm:$0xff]
    %v6069 = vld [vmem:[%s4666 + $0x2c1] sm:$0xff]
    %v6070 = vld [vmem:[%s4666 + $0x2d1] sm:$0xff]
    %v6071 = vld [vmem:[%s4666 + $0x2d9] sm:$0xff]
    %v6072 = vld [vmem:[%s4666 + $0x2e9] sm:$0xff]
    %v6073 = vld [vmem:[%s4666 + $0x2f1] sm:$0xff]
    %v6074 = vld [vmem:[%s4666 + $0x301] sm:$0xff]
    %v6075 = vld [vmem:[%s4666 + $0x309] sm:$0xff]
    %v6076 = vld [vmem:[%s4666 + $0x319] sm:$0xff]
    %v6077 = vld [vmem:[%s4666 + $0x321] sm:$0xff]
    %6142 = vrot.lane.b32.xlu0 %v6014, 32
    %v6143 = vpop.permute.xlu0 %6142
    %6144 = vrot.lane.b32.xlu0 %v6015, 32
    %v6145 = vpop.permute.xlu0 %6144
    %6146 = vrot.lane.b32.xlu0 %v6016, 32
    %v6147 = vpop.permute.xlu0 %6146
    %6148 = vrot.lane.b32.xlu0 %v6017, 32
    %v6149 = vpop.permute.xlu0 %6148
    %6150 = vrot.lane.b32.xlu0 %v6018, 32
    %v6151 = vpop.permute.xlu0 %6150
    %6152 = vrot.lane.b32.xlu0 %v6019, 32
    %v6153 = vpop.permute.xlu0 %6152
    %6154 = vrot.lane.b32.xlu0 %v6020, 32
    %v6155 = vpop.permute.xlu0 %6154
    %6156 = vrot.lane.b32.xlu0 %v6021, 32
    %v6157 = vpop.permute.xlu0 %6156
    %6158 = vrot.lane.b32.xlu0 %v6022, 32
    %v6159 = vpop.permute.xlu0 %6158
    %6160 = vrot.lane.b32.xlu0 %v6023, 32
    %v6161 = vpop.permute.xlu0 %6160
    %6162 = vrot.lane.b32.xlu0 %v6024, 32
    %v6163 = vpop.permute.xlu0 %6162
    %6164 = vrot.lane.b32.xlu0 %v6025, 32
    %v6165 = vpop.permute.xlu0 %6164
    %6166 = vrot.lane.b32.xlu0 %v6026, 32
    %v6167 = vpop.permute.xlu0 %6166
    %6168 = vrot.lane.b32.xlu0 %v6027, 32
    %v6169 = vpop.permute.xlu0 %6168
    %6170 = vrot.lane.b32.xlu0 %v6028, 32
    %v6171 = vpop.permute.xlu0 %6170
    %6172 = vrot.lane.b32.xlu0 %v6029, 32
    %v6173 = vpop.permute.xlu0 %6172
    %6174 = vrot.lane.b32.xlu0 %v6030, 32
    %v6175 = vpop.permute.xlu0 %6174
    %6176 = vrot.lane.b32.xlu0 %v6031, 32
    %v6177 = vpop.permute.xlu0 %6176
    %6178 = vrot.lane.b32.xlu0 %v6032, 32
    %v6179 = vpop.permute.xlu0 %6178
    %6180 = vrot.lane.b32.xlu0 %v6033, 32
    %v6181 = vpop.permute.xlu0 %6180
    %6182 = vrot.lane.b32.xlu0 %v6034, 32
    %v6183 = vpop.permute.xlu0 %6182
    %6184 = vrot.lane.b32.xlu0 %v6035, 32
    %v6185 = vpop.permute.xlu0 %6184
    %6186 = vrot.lane.b32.xlu0 %v6036, 32
    %v6187 = vpop.permute.xlu0 %6186
    %6188 = vrot.lane.b32.xlu0 %v6037, 32
    %v6189 = vpop.permute.xlu0 %6188
    %6190 = vrot.lane.b32.xlu0 %v6038, 32
    %v6191 = vpop.permute.xlu0 %6190
    %6192 = vrot.lane.b32.xlu0 %v6039, 32
    %v6193 = vpop.permute.xlu0 %6192
    %6194 = vrot.lane.b32.xlu0 %v6040, 32
    %v6195 = vpop.permute.xlu0 %6194
    %6196 = vrot.lane.b32.xlu0 %v6041, 32
    %v6197 = vpop.permute.xlu0 %6196
    %6198 = vrot.lane.b32.xlu0 %v6042, 32
    %v6199 = vpop.permute.xlu0 %6198
    %6200 = vrot.lane.b32.xlu0 %v6043, 32
    %v6201 = vpop.permute.xlu0 %6200
    %6202 = vrot.lane.b32.xlu0 %v6044, 32
    %v6203 = vpop.permute.xlu0 %6202
    %6204 = vrot.lane.b32.xlu0 %v6045, 32
    %v6205 = vpop.permute.xlu0 %6204
    %6206 = vrot.lane.b32.xlu0 %v6046, 32
    %v6207 = vpop.permute.xlu0 %6206
    %6208 = vrot.lane.b32.xlu0 %v6047, 32
    %v6209 = vpop.permute.xlu0 %6208
    %6210 = vrot.lane.b32.xlu0 %v6048, 32
    %v6211 = vpop.permute.xlu0 %6210
    %6212 = vrot.lane.b32.xlu0 %v6049, 32
    %v6213 = vpop.permute.xlu0 %6212
    %6214 = vrot.lane.b32.xlu0 %v6050, 32
    %v6215 = vpop.permute.xlu0 %6214
    %6216 = vrot.lane.b32.xlu0 %v6051, 32
    %v6217 = vpop.permute.xlu0 %6216
    %6218 = vrot.lane.b32.xlu0 %v6052, 32
    %v6219 = vpop.permute.xlu0 %6218
    %6220 = vrot.lane.b32.xlu0 %v6053, 32
    %v6221 = vpop.permute.xlu0 %6220
    %6222 = vrot.lane.b32.xlu0 %v6054, 32
    %v6223 = vpop.permute.xlu0 %6222
    %6224 = vrot.lane.b32.xlu0 %v6055, 32
    %v6225 = vpop.permute.xlu0 %6224
    %6226 = vrot.lane.b32.xlu0 %v6056, 32
    %v6227 = vpop.permute.xlu0 %6226
    %6228 = vrot.lane.b32.xlu0 %v6057, 32
    %v6229 = vpop.permute.xlu0 %6228
    %6230 = vrot.lane.b32.xlu0 %v6058, 32
    %v6231 = vpop.permute.xlu0 %6230
    %6232 = vrot.lane.b32.xlu0 %v6059, 32
    %v6233 = vpop.permute.xlu0 %6232
    %6234 = vrot.lane.b32.xlu0 %v6060, 32
    %v6235 = vpop.permute.xlu0 %6234
    %6236 = vrot.lane.b32.xlu0 %v6061, 32
    %v6237 = vpop.permute.xlu0 %6236
    %6238 = vrot.lane.b32.xlu0 %v6062, 32
    %v6239 = vpop.permute.xlu0 %6238
    %6240 = vrot.lane.b32.xlu0 %v6063, 32
    %v6241 = vpop.permute.xlu0 %6240
    %6242 = vrot.lane.b32.xlu0 %v6064, 32
    %v6243 = vpop.permute.xlu0 %6242
    %6244 = vrot.lane.b32.xlu0 %v6065, 32
    %v6245 = vpop.permute.xlu0 %6244
    %6246 = vrot.lane.b32.xlu0 %v6066, 32
    %v6247 = vpop.permute.xlu0 %6246
    %6248 = vrot.lane.b32.xlu0 %v6067, 32
    %v6249 = vpop.permute.xlu0 %6248
    %6250 = vrot.lane.b32.xlu0 %v6068, 32
    %v6251 = vpop.permute.xlu0 %6250
    %6252 = vrot.lane.b32.xlu0 %v6069, 32
    %v6253 = vpop.permute.xlu0 %6252
    %6254 = vrot.lane.b32.xlu0 %v6070, 32
    %v6255 = vpop.permute.xlu0 %6254
    %6256 = vrot.lane.b32.xlu0 %v6071, 32
    %v6257 = vpop.permute.xlu0 %6256
    %6258 = vrot.lane.b32.xlu0 %v6072, 32
    %v6259 = vpop.permute.xlu0 %6258
    %6260 = vrot.lane.b32.xlu0 %v6073, 32
    %v6261 = vpop.permute.xlu0 %6260
    %6262 = vrot.lane.b32.xlu0 %v6074, 32
    %v6263 = vpop.permute.xlu0 %6262
    %6264 = vrot.lane.b32.xlu0 %v6075, 32
    %v6265 = vpop.permute.xlu0 %6264
    %6266 = vrot.lane.b32.xlu0 %v6076, 32
    %v6267 = vpop.permute.xlu0 %6266
    %6268 = vrot.lane.b32.xlu0 %v6077, 32
    %v6269 = vpop.permute.xlu0 %6268
    %vm6334 = vcmask 326912
    %6335 = vst.msk [vmem:[#allocation4] sm:$0xff] %vm6334, %v6143
    %6336 = vst.msk [vmem:[#allocation4 + $0x8] sm:$0xff] %vm6334, %v6145
    %6337 = vst.msk [vmem:[#allocation4 + $0x10] sm:$0xff] %vm6334, %v6147
    %6338 = vst.msk [vmem:[#allocation4 + $0x18] sm:$0xff] %vm6334, %v6149
    %6339 = vst.msk [vmem:[#allocation4 + $0x20] sm:$0xff] %vm6334, %v6151
    %6340 = vst.msk [vmem:[#allocation4 + $0x28] sm:$0xff] %vm6334, %v6153
    %6341 = vst.msk [vmem:[#allocation4 + $0x30] sm:$0xff] %vm6334, %v6155
    %6342 = vst.msk [vmem:[#allocation4 + $0x38] sm:$0xff] %vm6334, %v6157
    %6343 = vst.msk [vmem:[#allocation4 + $0x40] sm:$0xff] %vm6334, %v6159
    %6344 = vst.msk [vmem:[#allocation4 + $0x48] sm:$0xff] %vm6334, %v6161
    %6345 = vst.msk [vmem:[#allocation4 + $0x50] sm:$0xff] %vm6334, %v6163
    %6346 = vst.msk [vmem:[#allocation4 + $0x58] sm:$0xff] %vm6334, %v6165
    %6347 = vst.msk [vmem:[#allocation4 + $0x60] sm:$0xff] %vm6334, %v6167
    %6348 = vst.msk [vmem:[#allocation4 + $0x68] sm:$0xff] %vm6334, %v6169
    %6349 = vst.msk [vmem:[#allocation4 + $0x70] sm:$0xff] %vm6334, %v6171
    %6350 = vst.msk [vmem:[#allocation4 + $0x78] sm:$0xff] %vm6334, %v6173
    %6351 = vst.msk [vmem:[#allocation4 + $0x80] sm:$0xff] %vm6334, %v6175
    %6352 = vst.msk [vmem:[#allocation4 + $0x88] sm:$0xff] %vm6334, %v6177
    %6353 = vst.msk [vmem:[#allocation4 + $0x90] sm:$0xff] %vm6334, %v6179
    %6354 = vst.msk [vmem:[#allocation4 + $0x98] sm:$0xff] %vm6334, %v6181
    %6355 = vst.msk [vmem:[#allocation4 + $0xa0] sm:$0xff] %vm6334, %v6183
    %6356 = vst.msk [vmem:[#allocation4 + $0xa8] sm:$0xff] %vm6334, %v6185
    %6357 = vst.msk [vmem:[#allocation4 + $0xb0] sm:$0xff] %vm6334, %v6187
    %6358 = vst.msk [vmem:[#allocation4 + $0xb8] sm:$0xff] %vm6334, %v6189
    %6359 = vst.msk [vmem:[#allocation4 + $0xc0] sm:$0xff] %vm6334, %v6191
    %6360 = vst.msk [vmem:[#allocation4 + $0xc8] sm:$0xff] %vm6334, %v6193
    %6361 = vst.msk [vmem:[#allocation4 + $0xd0] sm:$0xff] %vm6334, %v6195
    %6362 = vst.msk [vmem:[#allocation4 + $0xd8] sm:$0xff] %vm6334, %v6197
    %6363 = vst.msk [vmem:[#allocation4 + $0xe0] sm:$0xff] %vm6334, %v6199
    %6364 = vst.msk [vmem:[#allocation4 + $0xe8] sm:$0xff] %vm6334, %v6201
    %6365 = vst.msk [vmem:[#allocation4 + $0xf0] sm:$0xff] %vm6334, %v6203
    %6366 = vst.msk [vmem:[#allocation4 + $0xf8] sm:$0xff] %vm6334, %v6205
    %6367 = vst.msk [vmem:[#allocation4 + $0x100] sm:$0xff] %vm6334, %v6207
    %6368 = vst.msk [vmem:[#allocation4 + $0x108] sm:$0xff] %vm6334, %v6209
    %6369 = vst.msk [vmem:[#allocation4 + $0x110] sm:$0xff] %vm6334, %v6211
    %6370 = vst.msk [vmem:[#allocation4 + $0x118] sm:$0xff] %vm6334, %v6213
    %6371 = vst.msk [vmem:[#allocation4 + $0x120] sm:$0xff] %vm6334, %v6215
    %6372 = vst.msk [vmem:[#allocation4 + $0x128] sm:$0xff] %vm6334, %v6217
    %6373 = vst.msk [vmem:[#allocation4 + $0x130] sm:$0xff] %vm6334, %v6219
    %6374 = vst.msk [vmem:[#allocation4 + $0x138] sm:$0xff] %vm6334, %v6221
    %6375 = vst.msk [vmem:[#allocation4 + $0x140] sm:$0xff] %vm6334, %v6223
    %6376 = vst.msk [vmem:[#allocation4 + $0x148] sm:$0xff] %vm6334, %v6225
    %6377 = vst.msk [vmem:[#allocation4 + $0x150] sm:$0xff] %vm6334, %v6227
    %6378 = vst.msk [vmem:[#allocation4 + $0x158] sm:$0xff] %vm6334, %v6229
    %6379 = vst.msk [vmem:[#allocation4 + $0x160] sm:$0xff] %vm6334, %v6231
    %6380 = vst.msk [vmem:[#allocation4 + $0x168] sm:$0xff] %vm6334, %v6233
    %6381 = vst.msk [vmem:[#allocation4 + $0x170] sm:$0xff] %vm6334, %v6235
    %6382 = vst.msk [vmem:[#allocation4 + $0x178] sm:$0xff] %vm6334, %v6237
    %6383 = vst.msk [vmem:[#allocation4 + $0x180] sm:$0xff] %vm6334, %v6239
    %6384 = vst.msk [vmem:[#allocation4 + $0x188] sm:$0xff] %vm6334, %v6241
    %6385 = vst.msk [vmem:[#allocation4 + $0x190] sm:$0xff] %vm6334, %v6243
    %6386 = vst.msk [vmem:[#allocation4 + $0x198] sm:$0xff] %vm6334, %v6245
    %6387 = vst.msk [vmem:[#allocation4 + $0x1a0] sm:$0xff] %vm6334, %v6247
    %6388 = vst.msk [vmem:[#allocation4 + $0x1a8] sm:$0xff] %vm6334, %v6249
    %6389 = vst.msk [vmem:[#allocation4 + $0x1b0] sm:$0xff] %vm6334, %v6251
    %6390 = vst.msk [vmem:[#allocation4 + $0x1b8] sm:$0xff] %vm6334, %v6253
    %6391 = vst.msk [vmem:[#allocation4 + $0x1c0] sm:$0xff] %vm6334, %v6255
    %6392 = vst.msk [vmem:[#allocation4 + $0x1c8] sm:$0xff] %vm6334, %v6257
    %6393 = vst.msk [vmem:[#allocation4 + $0x1d0] sm:$0xff] %vm6334, %v6259
    %6394 = vst.msk [vmem:[#allocation4 + $0x1d8] sm:$0xff] %vm6334, %v6261
    %6395 = vst.msk [vmem:[#allocation4 + $0x1e0] sm:$0xff] %vm6334, %v6263
    %6396 = vst.msk [vmem:[#allocation4 + $0x1e8] sm:$0xff] %vm6334, %v6265
    %6397 = vst.msk [vmem:[#allocation4 + $0x1f0] sm:$0xff] %vm6334, %v6267
    %6398 = vst.msk [vmem:[#allocation4 + $0x1f8] sm:$0xff] %vm6334, %v6269
    %v6399 = vld [vmem:[%s4666 + $0x2] sm:$0xff]
    %v6400 = vld [vmem:[%s4666 + $0xa] sm:$0xff]
    %v6401 = vld [vmem:[%s4666 + $0x1a] sm:$0xff]
    %v6402 = vld [vmem:[%s4666 + $0x22] sm:$0xff]
    %v6403 = vld [vmem:[%s4666 + $0x32] sm:$0xff]
    %v6404 = vld [vmem:[%s4666 + $0x3a] sm:$0xff]
    %v6405 = vld [vmem:[%s4666 + $0x4a] sm:$0xff]
    %v6406 = vld [vmem:[%s4666 + $0x52] sm:$0xff]
    %v6407 = vld [vmem:[%s4666 + $0x62] sm:$0xff]
    %v6408 = vld [vmem:[%s4666 + $0x6a] sm:$0xff]
    %v6409 = vld [vmem:[%s4666 + $0x7a] sm:$0xff]
    %v6410 = vld [vmem:[%s4666 + $0x82] sm:$0xff]
    %v6411 = vld [vmem:[%s4666 + $0x92] sm:$0xff]
    %v6412 = vld [vmem:[%s4666 + $0x9a] sm:$0xff]
    %v6413 = vld [vmem:[%s4666 + $0xaa] sm:$0xff]
    %v6414 = vld [vmem:[%s4666 + $0xb2] sm:$0xff]
    %v6415 = vld [vmem:[%s4666 + $0xc2] sm:$0xff]
    %v6416 = vld [vmem:[%s4666 + $0xca] sm:$0xff]
    %v6417 = vld [vmem:[%s4666 + $0xda] sm:$0xff]
    %v6418 = vld [vmem:[%s4666 + $0xe2] sm:$0xff]
    %v6419 = vld [vmem:[%s4666 + $0xf2] sm:$0xff]
    %v6420 = vld [vmem:[%s4666 + $0xfa] sm:$0xff]
    %v6421 = vld [vmem:[%s4666 + $0x10a] sm:$0xff]
    %v6422 = vld [vmem:[%s4666 + $0x112] sm:$0xff]
    %v6423 = vld [vmem:[%s4666 + $0x122] sm:$0xff]
    %v6424 = vld [vmem:[%s4666 + $0x12a] sm:$0xff]
    %v6425 = vld [vmem:[%s4666 + $0x13a] sm:$0xff]
    %v6426 = vld [vmem:[%s4666 + $0x142] sm:$0xff]
    %v6427 = vld [vmem:[%s4666 + $0x152] sm:$0xff]
    %v6428 = vld [vmem:[%s4666 + $0x15a] sm:$0xff]
    %v6429 = vld [vmem:[%s4666 + $0x16a] sm:$0xff]
    %v6430 = vld [vmem:[%s4666 + $0x172] sm:$0xff]
    %v6431 = vld [vmem:[%s4666 + $0x1b2] sm:$0xff]
    %v6432 = vld [vmem:[%s4666 + $0x1ba] sm:$0xff]
    %v6433 = vld [vmem:[%s4666 + $0x1ca] sm:$0xff]
    %v6434 = vld [vmem:[%s4666 + $0x1d2] sm:$0xff]
    %v6435 = vld [vmem:[%s4666 + $0x1e2] sm:$0xff]
    %v6436 = vld [vmem:[%s4666 + $0x1ea] sm:$0xff]
    %v6437 = vld [vmem:[%s4666 + $0x1fa] sm:$0xff]
    %v6438 = vld [vmem:[%s4666 + $0x202] sm:$0xff]
    %v6439 = vld [vmem:[%s4666 + $0x212] sm:$0xff]
    %v6440 = vld [vmem:[%s4666 + $0x21a] sm:$0xff]
    %v6441 = vld [vmem:[%s4666 + $0x22a] sm:$0xff]
    %v6442 = vld [vmem:[%s4666 + $0x232] sm:$0xff]
    %v6443 = vld [vmem:[%s4666 + $0x242] sm:$0xff]
    %v6444 = vld [vmem:[%s4666 + $0x24a] sm:$0xff]
    %v6445 = vld [vmem:[%s4666 + $0x25a] sm:$0xff]
    %v6446 = vld [vmem:[%s4666 + $0x262] sm:$0xff]
    %v6447 = vld [vmem:[%s4666 + $0x272] sm:$0xff]
    %v6448 = vld [vmem:[%s4666 + $0x27a] sm:$0xff]
    %v6449 = vld [vmem:[%s4666 + $0x28a] sm:$0xff]
    %v6450 = vld [vmem:[%s4666 + $0x292] sm:$0xff]
    %v6451 = vld [vmem:[%s4666 + $0x2a2] sm:$0xff]
    %v6452 = vld [vmem:[%s4666 + $0x2aa] sm:$0xff]
    %v6453 = vld [vmem:[%s4666 + $0x2ba] sm:$0xff]
    %v6454 = vld [vmem:[%s4666 + $0x2c2] sm:$0xff]
    %v6455 = vld [vmem:[%s4666 + $0x2d2] sm:$0xff]
    %v6456 = vld [vmem:[%s4666 + $0x2da] sm:$0xff]
    %v6457 = vld [vmem:[%s4666 + $0x2ea] sm:$0xff]
    %v6458 = vld [vmem:[%s4666 + $0x2f2] sm:$0xff]
    %v6459 = vld [vmem:[%s4666 + $0x302] sm:$0xff]
    %v6460 = vld [vmem:[%s4666 + $0x30a] sm:$0xff]
    %v6461 = vld [vmem:[%s4666 + $0x31a] sm:$0xff]
    %v6462 = vld [vmem:[%s4666 + $0x322] sm:$0xff]
    %6527 = vrot.lane.b32.xlu0 %v6399, 40
    %v6528 = vpop.permute.xlu0 %6527
    %6529 = vrot.lane.b32.xlu0 %v6400, 40
    %v6530 = vpop.permute.xlu0 %6529
    %6531 = vrot.lane.b32.xlu0 %v6401, 40
    %v6532 = vpop.permute.xlu0 %6531
    %6533 = vrot.lane.b32.xlu0 %v6402, 40
    %v6534 = vpop.permute.xlu0 %6533
    %6535 = vrot.lane.b32.xlu0 %v6403, 40
    %v6536 = vpop.permute.xlu0 %6535
    %6537 = vrot.lane.b32.xlu0 %v6404, 40
    %v6538 = vpop.permute.xlu0 %6537
    %6539 = vrot.lane.b32.xlu0 %v6405, 40
    %v6540 = vpop.permute.xlu0 %6539
    %6541 = vrot.lane.b32.xlu0 %v6406, 40
    %v6542 = vpop.permute.xlu0 %6541
    %6543 = vrot.lane.b32.xlu0 %v6407, 40
    %v6544 = vpop.permute.xlu0 %6543
    %6545 = vrot.lane.b32.xlu0 %v6408, 40
    %v6546 = vpop.permute.xlu0 %6545
    %6547 = vrot.lane.b32.xlu0 %v6409, 40
    %v6548 = vpop.permute.xlu0 %6547
    %6549 = vrot.lane.b32.xlu0 %v6410, 40
    %v6550 = vpop.permute.xlu0 %6549
    %6551 = vrot.lane.b32.xlu0 %v6411, 40
    %v6552 = vpop.permute.xlu0 %6551
    %6553 = vrot.lane.b32.xlu0 %v6412, 40
    %v6554 = vpop.permute.xlu0 %6553
    %6555 = vrot.lane.b32.xlu0 %v6413, 40
    %v6556 = vpop.permute.xlu0 %6555
    %6557 = vrot.lane.b32.xlu0 %v6414, 40
    %v6558 = vpop.permute.xlu0 %6557
    %6559 = vrot.lane.b32.xlu0 %v6415, 40
    %v6560 = vpop.permute.xlu0 %6559
    %6561 = vrot.lane.b32.xlu0 %v6416, 40
    %v6562 = vpop.permute.xlu0 %6561
    %6563 = vrot.lane.b32.xlu0 %v6417, 40
    %v6564 = vpop.permute.xlu0 %6563
    %6565 = vrot.lane.b32.xlu0 %v6418, 40
    %v6566 = vpop.permute.xlu0 %6565
    %6567 = vrot.lane.b32.xlu0 %v6419, 40
    %v6568 = vpop.permute.xlu0 %6567
    %6569 = vrot.lane.b32.xlu0 %v6420, 40
    %v6570 = vpop.permute.xlu0 %6569
    %6571 = vrot.lane.b32.xlu0 %v6421, 40
    %v6572 = vpop.permute.xlu0 %6571
    %6573 = vrot.lane.b32.xlu0 %v6422, 40
    %v6574 = vpop.permute.xlu0 %6573
    %6575 = vrot.lane.b32.xlu0 %v6423, 40
    %v6576 = vpop.permute.xlu0 %6575
    %6577 = vrot.lane.b32.xlu0 %v6424, 40
    %v6578 = vpop.permute.xlu0 %6577
    %6579 = vrot.lane.b32.xlu0 %v6425, 40
    %v6580 = vpop.permute.xlu0 %6579
    %6581 = vrot.lane.b32.xlu0 %v6426, 40
    %v6582 = vpop.permute.xlu0 %6581
    %6583 = vrot.lane.b32.xlu0 %v6427, 40
    %v6584 = vpop.permute.xlu0 %6583
    %6585 = vrot.lane.b32.xlu0 %v6428, 40
    %v6586 = vpop.permute.xlu0 %6585
    %6587 = vrot.lane.b32.xlu0 %v6429, 40
    %v6588 = vpop.permute.xlu0 %6587
    %6589 = vrot.lane.b32.xlu0 %v6430, 40
    %v6590 = vpop.permute.xlu0 %6589
    %6591 = vrot.lane.b32.xlu0 %v6431, 40
    %v6592 = vpop.permute.xlu0 %6591
    %6593 = vrot.lane.b32.xlu0 %v6432, 40
    %v6594 = vpop.permute.xlu0 %6593
    %6595 = vrot.lane.b32.xlu0 %v6433, 40
    %v6596 = vpop.permute.xlu0 %6595
    %6597 = vrot.lane.b32.xlu0 %v6434, 40
    %v6598 = vpop.permute.xlu0 %6597
    %6599 = vrot.lane.b32.xlu0 %v6435, 40
    %v6600 = vpop.permute.xlu0 %6599
    %6601 = vrot.lane.b32.xlu0 %v6436, 40
    %v6602 = vpop.permute.xlu0 %6601
    %6603 = vrot.lane.b32.xlu0 %v6437, 40
    %v6604 = vpop.permute.xlu0 %6603
    %6605 = vrot.lane.b32.xlu0 %v6438, 40
    %v6606 = vpop.permute.xlu0 %6605
    %6607 = vrot.lane.b32.xlu0 %v6439, 40
    %v6608 = vpop.permute.xlu0 %6607
    %6609 = vrot.lane.b32.xlu0 %v6440, 40
    %v6610 = vpop.permute.xlu0 %6609
    %6611 = vrot.lane.b32.xlu0 %v6441, 40
    %v6612 = vpop.permute.xlu0 %6611
    %6613 = vrot.lane.b32.xlu0 %v6442, 40
    %v6614 = vpop.permute.xlu0 %6613
    %6615 = vrot.lane.b32.xlu0 %v6443, 40
    %v6616 = vpop.permute.xlu0 %6615
    %6617 = vrot.lane.b32.xlu0 %v6444, 40
    %v6618 = vpop.permute.xlu0 %6617
    %6619 = vrot.lane.b32.xlu0 %v6445, 40
    %v6620 = vpop.permute.xlu0 %6619
    %6621 = vrot.lane.b32.xlu0 %v6446, 40
    %v6622 = vpop.permute.xlu0 %6621
    %6623 = vrot.lane.b32.xlu0 %v6447, 40
    %v6624 = vpop.permute.xlu0 %6623
    %6625 = vrot.lane.b32.xlu0 %v6448, 40
    %v6626 = vpop.permute.xlu0 %6625
    %6627 = vrot.lane.b32.xlu0 %v6449, 40
    %v6628 = vpop.permute.xlu0 %6627
    %6629 = vrot.lane.b32.xlu0 %v6450, 40
    %v6630 = vpop.permute.xlu0 %6629
    %6631 = vrot.lane.b32.xlu0 %v6451, 40
    %v6632 = vpop.permute.xlu0 %6631
    %6633 = vrot.lane.b32.xlu0 %v6452, 40
    %v6634 = vpop.permute.xlu0 %6633
    %6635 = vrot.lane.b32.xlu0 %v6453, 40
    %v6636 = vpop.permute.xlu0 %6635
    %6637 = vrot.lane.b32.xlu0 %v6454, 40
    %v6638 = vpop.permute.xlu0 %6637
    %6639 = vrot.lane.b32.xlu0 %v6455, 40
    %v6640 = vpop.permute.xlu0 %6639
    %6641 = vrot.lane.b32.xlu0 %v6456, 40
    %v6642 = vpop.permute.xlu0 %6641
    %6643 = vrot.lane.b32.xlu0 %v6457, 40
    %v6644 = vpop.permute.xlu0 %6643
    %6645 = vrot.lane.b32.xlu0 %v6458, 40
    %v6646 = vpop.permute.xlu0 %6645
    %6647 = vrot.lane.b32.xlu0 %v6459, 40
    %v6648 = vpop.permute.xlu0 %6647
    %6649 = vrot.lane.b32.xlu0 %v6460, 40
    %v6650 = vpop.permute.xlu0 %6649
    %6651 = vrot.lane.b32.xlu0 %v6461, 40
    %v6652 = vpop.permute.xlu0 %6651
    %6653 = vrot.lane.b32.xlu0 %v6462, 40
    %v6654 = vpop.permute.xlu0 %6653
    %vm6719 = vcmask 392512
    %6720 = vst.msk [vmem:[#allocation4] sm:$0xff] %vm6719, %v6528
    %6721 = vst.msk [vmem:[#allocation4 + $0x8] sm:$0xff] %vm6719, %v6530
    %6722 = vst.msk [vmem:[#allocation4 + $0x10] sm:$0xff] %vm6719, %v6532
    %6723 = vst.msk [vmem:[#allocation4 + $0x18] sm:$0xff] %vm6719, %v6534
    %6724 = vst.msk [vmem:[#allocation4 + $0x20] sm:$0xff] %vm6719, %v6536
    %6725 = vst.msk [vmem:[#allocation4 + $0x28] sm:$0xff] %vm6719, %v6538
    %6726 = vst.msk [vmem:[#allocation4 + $0x30] sm:$0xff] %vm6719, %v6540
    %6727 = vst.msk [vmem:[#allocation4 + $0x38] sm:$0xff] %vm6719, %v6542
    %6728 = vst.msk [vmem:[#allocation4 + $0x40] sm:$0xff] %vm6719, %v6544
    %6729 = vst.msk [vmem:[#allocation4 + $0x48] sm:$0xff] %vm6719, %v6546
    %6730 = vst.msk [vmem:[#allocation4 + $0x50] sm:$0xff] %vm6719, %v6548
    %6731 = vst.msk [vmem:[#allocation4 + $0x58] sm:$0xff] %vm6719, %v6550
    %6732 = vst.msk [vmem:[#allocation4 + $0x60] sm:$0xff] %vm6719, %v6552
    %6733 = vst.msk [vmem:[#allocation4 + $0x68] sm:$0xff] %vm6719, %v6554
    %6734 = vst.msk [vmem:[#allocation4 + $0x70] sm:$0xff] %vm6719, %v6556
    %6735 = vst.msk [vmem:[#allocation4 + $0x78] sm:$0xff] %vm6719, %v6558
    %6736 = vst.msk [vmem:[#allocation4 + $0x80] sm:$0xff] %vm6719, %v6560
    %6737 = vst.msk [vmem:[#allocation4 + $0x88] sm:$0xff] %vm6719, %v6562
    %6738 = vst.msk [vmem:[#allocation4 + $0x90] sm:$0xff] %vm6719, %v6564
    %6739 = vst.msk [vmem:[#allocation4 + $0x98] sm:$0xff] %vm6719, %v6566
    %6740 = vst.msk [vmem:[#allocation4 + $0xa0] sm:$0xff] %vm6719, %v6568
    %6741 = vst.msk [vmem:[#allocation4 + $0xa8] sm:$0xff] %vm6719, %v6570
    %6742 = vst.msk [vmem:[#allocation4 + $0xb0] sm:$0xff] %vm6719, %v6572
    %6743 = vst.msk [vmem:[#allocation4 + $0xb8] sm:$0xff] %vm6719, %v6574
    %6744 = vst.msk [vmem:[#allocation4 + $0xc0] sm:$0xff] %vm6719, %v6576
    %6745 = vst.msk [vmem:[#allocation4 + $0xc8] sm:$0xff] %vm6719, %v6578
    %6746 = vst.msk [vmem:[#allocation4 + $0xd0] sm:$0xff] %vm6719, %v6580
    %6747 = vst.msk [vmem:[#allocation4 + $0xd8] sm:$0xff] %vm6719, %v6582
    %6748 = vst.msk [vmem:[#allocation4 + $0xe0] sm:$0xff] %vm6719, %v6584
    %6749 = vst.msk [vmem:[#allocation4 + $0xe8] sm:$0xff] %vm6719, %v6586
    %6750 = vst.msk [vmem:[#allocation4 + $0xf0] sm:$0xff] %vm6719, %v6588
    %6751 = vst.msk [vmem:[#allocation4 + $0xf8] sm:$0xff] %vm6719, %v6590
    %6752 = vst.msk [vmem:[#allocation4 + $0x100] sm:$0xff] %vm6719, %v6592
    %6753 = vst.msk [vmem:[#allocation4 + $0x108] sm:$0xff] %vm6719, %v6594
    %6754 = vst.msk [vmem:[#allocation4 + $0x110] sm:$0xff] %vm6719, %v6596
    %6755 = vst.msk [vmem:[#allocation4 + $0x118] sm:$0xff] %vm6719, %v6598
    %6756 = vst.msk [vmem:[#allocation4 + $0x120] sm:$0xff] %vm6719, %v6600
    %6757 = vst.msk [vmem:[#allocation4 + $0x128] sm:$0xff] %vm6719, %v6602
    %6758 = vst.msk [vmem:[#allocation4 + $0x130] sm:$0xff] %vm6719, %v6604
    %6759 = vst.msk [vmem:[#allocation4 + $0x138] sm:$0xff] %vm6719, %v6606
    %6760 = vst.msk [vmem:[#allocation4 + $0x140] sm:$0xff] %vm6719, %v6608
    %6761 = vst.msk [vmem:[#allocation4 + $0x148] sm:$0xff] %vm6719, %v6610
    %6762 = vst.msk [vmem:[#allocation4 + $0x150] sm:$0xff] %vm6719, %v6612
    %6763 = vst.msk [vmem:[#allocation4 + $0x158] sm:$0xff] %vm6719, %v6614
    %6764 = vst.msk [vmem:[#allocation4 + $0x160] sm:$0xff] %vm6719, %v6616
    %6765 = vst.msk [vmem:[#allocation4 + $0x168] sm:$0xff] %vm6719, %v6618
    %6766 = vst.msk [vmem:[#allocation4 + $0x170] sm:$0xff] %vm6719, %v6620
    %6767 = vst.msk [vmem:[#allocation4 + $0x178] sm:$0xff] %vm6719, %v6622
    %6768 = vst.msk [vmem:[#allocation4 + $0x180] sm:$0xff] %vm6719, %v6624
    %6769 = vst.msk [vmem:[#allocation4 + $0x188] sm:$0xff] %vm6719, %v6626
    %6770 = vst.msk [vmem:[#allocation4 + $0x190] sm:$0xff] %vm6719, %v6628
    %6771 = vst.msk [vmem:[#allocation4 + $0x198] sm:$0xff] %vm6719, %v6630
    %6772 = vst.msk [vmem:[#allocation4 + $0x1a0] sm:$0xff] %vm6719, %v6632
    %6773 = vst.msk [vmem:[#allocation4 + $0x1a8] sm:$0xff] %vm6719, %v6634
    %6774 = vst.msk [vmem:[#allocation4 + $0x1b0] sm:$0xff] %vm6719, %v6636
    %6775 = vst.msk [vmem:[#allocation4 + $0x1b8] sm:$0xff] %vm6719, %v6638
    %6776 = vst.msk [vmem:[#allocation4 + $0x1c0] sm:$0xff] %vm6719, %v6640
    %6777 = vst.msk [vmem:[#allocation4 + $0x1c8] sm:$0xff] %vm6719, %v6642
    %6778 = vst.msk [vmem:[#allocation4 + $0x1d0] sm:$0xff] %vm6719, %v6644
    %6779 = vst.msk [vmem:[#allocation4 + $0x1d8] sm:$0xff] %vm6719, %v6646
    %6780 = vst.msk [vmem:[#allocation4 + $0x1e0] sm:$0xff] %vm6719, %v6648
    %6781 = vst.msk [vmem:[#allocation4 + $0x1e8] sm:$0xff] %vm6719, %v6650
    %6782 = vst.msk [vmem:[#allocation4 + $0x1f0] sm:$0xff] %vm6719, %v6652
    %6783 = vst.msk [vmem:[#allocation4 + $0x1f8] sm:$0xff] %vm6719, %v6654
    %s6784 = scalar_lea.vmem [#allocation3], 48
    %v6785 = vld [vmem:[%s6784] sm:$0xff]
    %v6786 = vld [vmem:[%s6784 + $0x8] sm:$0xff]
    %v6787 = vld [vmem:[%s6784 + $0x18] sm:$0xff]
    %v6788 = vld [vmem:[%s6784 + $0x20] sm:$0xff]
    %v6789 = vld [vmem:[%s6784 + $0x30] sm:$0xff]
    %v6790 = vld [vmem:[%s6784 + $0x38] sm:$0xff]
    %v6791 = vld [vmem:[%s6784 + $0x48] sm:$0xff]
    %v6792 = vld [vmem:[%s6784 + $0x50] sm:$0xff]
    %v6793 = vld [vmem:[%s6784 + $0x60] sm:$0xff]
    %v6794 = vld [vmem:[%s6784 + $0x68] sm:$0xff]
    %v6795 = vld [vmem:[%s6784 + $0x78] sm:$0xff]
    %v6796 = vld [vmem:[%s6784 + $0x80] sm:$0xff]
    %v6797 = vld [vmem:[%s6784 + $0x90] sm:$0xff]
    %v6798 = vld [vmem:[%s6784 + $0x98] sm:$0xff]
    %v6799 = vld [vmem:[%s6784 + $0xa8] sm:$0xff]
    %v6800 = vld [vmem:[%s6784 + $0xb0] sm:$0xff]
    %v6801 = vld [vmem:[%s6784 + $0xc0] sm:$0xff]
    %v6802 = vld [vmem:[%s6784 + $0xc8] sm:$0xff]
    %v6803 = vld [vmem:[%s6784 + $0xd8] sm:$0xff]
    %v6804 = vld [vmem:[%s6784 + $0xe0] sm:$0xff]
    %v6805 = vld [vmem:[%s6784 + $0xf0] sm:$0xff]
    %v6806 = vld [vmem:[%s6784 + $0xf8] sm:$0xff]
    %v6807 = vld [vmem:[%s6784 + $0x108] sm:$0xff]
    %v6808 = vld [vmem:[%s6784 + $0x110] sm:$0xff]
    %v6809 = vld [vmem:[%s6784 + $0x120] sm:$0xff]
    %v6810 = vld [vmem:[%s6784 + $0x128] sm:$0xff]
    %v6811 = vld [vmem:[%s6784 + $0x138] sm:$0xff]
    %v6812 = vld [vmem:[%s6784 + $0x140] sm:$0xff]
    %v6813 = vld [vmem:[%s6784 + $0x150] sm:$0xff]
    %v6814 = vld [vmem:[%s6784 + $0x158] sm:$0xff]
    %v6815 = vld [vmem:[%s6784 + $0x168] sm:$0xff]
    %v6816 = vld [vmem:[%s6784 + $0x170] sm:$0xff]
    %v6817 = vld [vmem:[%s6784 + $0x1b0] sm:$0xff]
    %v6818 = vld [vmem:[%s6784 + $0x1b8] sm:$0xff]
    %v6819 = vld [vmem:[%s6784 + $0x1c8] sm:$0xff]
    %v6820 = vld [vmem:[%s6784 + $0x1d0] sm:$0xff]
    %v6821 = vld [vmem:[%s6784 + $0x1e0] sm:$0xff]
    %v6822 = vld [vmem:[%s6784 + $0x1e8] sm:$0xff]
    %v6823 = vld [vmem:[%s6784 + $0x1f8] sm:$0xff]
    %v6824 = vld [vmem:[%s6784 + $0x200] sm:$0xff]
    %v6825 = vld [vmem:[%s6784 + $0x210] sm:$0xff]
    %v6826 = vld [vmem:[%s6784 + $0x218] sm:$0xff]
    %v6827 = vld [vmem:[%s6784 + $0x228] sm:$0xff]
    %v6828 = vld [vmem:[%s6784 + $0x230] sm:$0xff]
    %v6829 = vld [vmem:[%s6784 + $0x240] sm:$0xff]
    %v6830 = vld [vmem:[%s6784 + $0x248] sm:$0xff]
    %v6831 = vld [vmem:[%s6784 + $0x258] sm:$0xff]
    %v6832 = vld [vmem:[%s6784 + $0x260] sm:$0xff]
    %v6833 = vld [vmem:[%s6784 + $0x270] sm:$0xff]
    %v6834 = vld [vmem:[%s6784 + $0x278] sm:$0xff]
    %v6835 = vld [vmem:[%s6784 + $0x288] sm:$0xff]
    %v6836 = vld [vmem:[%s6784 + $0x290] sm:$0xff]
    %v6837 = vld [vmem:[%s6784 + $0x2a0] sm:$0xff]
    %v6838 = vld [vmem:[%s6784 + $0x2a8] sm:$0xff]
    %v6839 = vld [vmem:[%s6784 + $0x2b8] sm:$0xff]
    %v6840 = vld [vmem:[%s6784 + $0x2c0] sm:$0xff]
    %v6841 = vld [vmem:[%s6784 + $0x2d0] sm:$0xff]
    %v6842 = vld [vmem:[%s6784 + $0x2d8] sm:$0xff]
    %v6843 = vld [vmem:[%s6784 + $0x2e8] sm:$0xff]
    %v6844 = vld [vmem:[%s6784 + $0x2f0] sm:$0xff]
    %v6845 = vld [vmem:[%s6784 + $0x300] sm:$0xff]
    %v6846 = vld [vmem:[%s6784 + $0x308] sm:$0xff]
    %v6847 = vld [vmem:[%s6784 + $0x318] sm:$0xff]
    %v6848 = vld [vmem:[%s6784 + $0x320] sm:$0xff]
    %6913 = vrot.lane.b32.xlu0 %v6785, 48
    %v6914 = vpop.permute.xlu0 %6913
    %6915 = vrot.lane.b32.xlu0 %v6786, 48
    %v6916 = vpop.permute.xlu0 %6915
    %6917 = vrot.lane.b32.xlu0 %v6787, 48
    %v6918 = vpop.permute.xlu0 %6917
    %6919 = vrot.lane.b32.xlu0 %v6788, 48
    %v6920 = vpop.permute.xlu0 %6919
    %6921 = vrot.lane.b32.xlu0 %v6789, 48
    %v6922 = vpop.permute.xlu0 %6921
    %6923 = vrot.lane.b32.xlu0 %v6790, 48
    %v6924 = vpop.permute.xlu0 %6923
    %6925 = vrot.lane.b32.xlu0 %v6791, 48
    %v6926 = vpop.permute.xlu0 %6925
    %6927 = vrot.lane.b32.xlu0 %v6792, 48
    %v6928 = vpop.permute.xlu0 %6927
    %6929 = vrot.lane.b32.xlu0 %v6793, 48
    %v6930 = vpop.permute.xlu0 %6929
    %6931 = vrot.lane.b32.xlu0 %v6794, 48
    %v6932 = vpop.permute.xlu0 %6931
    %6933 = vrot.lane.b32.xlu0 %v6795, 48
    %v6934 = vpop.permute.xlu0 %6933
    %6935 = vrot.lane.b32.xlu0 %v6796, 48
    %v6936 = vpop.permute.xlu0 %6935
    %6937 = vrot.lane.b32.xlu0 %v6797, 48
    %v6938 = vpop.permute.xlu0 %6937
    %6939 = vrot.lane.b32.xlu0 %v6798, 48
    %v6940 = vpop.permute.xlu0 %6939
    %6941 = vrot.lane.b32.xlu0 %v6799, 48
    %v6942 = vpop.permute.xlu0 %6941
    %6943 = vrot.lane.b32.xlu0 %v6800, 48
    %v6944 = vpop.permute.xlu0 %6943
    %6945 = vrot.lane.b32.xlu0 %v6801, 48
    %v6946 = vpop.permute.xlu0 %6945
    %6947 = vrot.lane.b32.xlu0 %v6802, 48
    %v6948 = vpop.permute.xlu0 %6947
    %6949 = vrot.lane.b32.xlu0 %v6803, 48
    %v6950 = vpop.permute.xlu0 %6949
    %6951 = vrot.lane.b32.xlu0 %v6804, 48
    %v6952 = vpop.permute.xlu0 %6951
    %6953 = vrot.lane.b32.xlu0 %v6805, 48
    %v6954 = vpop.permute.xlu0 %6953
    %6955 = vrot.lane.b32.xlu0 %v6806, 48
    %v6956 = vpop.permute.xlu0 %6955
    %6957 = vrot.lane.b32.xlu0 %v6807, 48
    %v6958 = vpop.permute.xlu0 %6957
    %6959 = vrot.lane.b32.xlu0 %v6808, 48
    %v6960 = vpop.permute.xlu0 %6959
    %6961 = vrot.lane.b32.xlu0 %v6809, 48
    %v6962 = vpop.permute.xlu0 %6961
    %6963 = vrot.lane.b32.xlu0 %v6810, 48
    %v6964 = vpop.permute.xlu0 %6963
    %6965 = vrot.lane.b32.xlu0 %v6811, 48
    %v6966 = vpop.permute.xlu0 %6965
    %6967 = vrot.lane.b32.xlu0 %v6812, 48
    %v6968 = vpop.permute.xlu0 %6967
    %6969 = vrot.lane.b32.xlu0 %v6813, 48
    %v6970 = vpop.permute.xlu0 %6969
    %6971 = vrot.lane.b32.xlu0 %v6814, 48
    %v6972 = vpop.permute.xlu0 %6971
    %6973 = vrot.lane.b32.xlu0 %v6815, 48
    %v6974 = vpop.permute.xlu0 %6973
    %6975 = vrot.lane.b32.xlu0 %v6816, 48
    %v6976 = vpop.permute.xlu0 %6975
    %6977 = vrot.lane.b32.xlu0 %v6817, 48
    %v6978 = vpop.permute.xlu0 %6977
    %6979 = vrot.lane.b32.xlu0 %v6818, 48
    %v6980 = vpop.permute.xlu0 %6979
    %6981 = vrot.lane.b32.xlu0 %v6819, 48
    %v6982 = vpop.permute.xlu0 %6981
    %6983 = vrot.lane.b32.xlu0 %v6820, 48
    %v6984 = vpop.permute.xlu0 %6983
    %6985 = vrot.lane.b32.xlu0 %v6821, 48
    %v6986 = vpop.permute.xlu0 %6985
    %6987 = vrot.lane.b32.xlu0 %v6822, 48
    %v6988 = vpop.permute.xlu0 %6987
    %6989 = vrot.lane.b32.xlu0 %v6823, 48
    %v6990 = vpop.permute.xlu0 %6989
    %6991 = vrot.lane.b32.xlu0 %v6824, 48
    %v6992 = vpop.permute.xlu0 %6991
    %6993 = vrot.lane.b32.xlu0 %v6825, 48
    %v6994 = vpop.permute.xlu0 %6993
    %6995 = vrot.lane.b32.xlu0 %v6826, 48
    %v6996 = vpop.permute.xlu0 %6995
    %6997 = vrot.lane.b32.xlu0 %v6827, 48
    %v6998 = vpop.permute.xlu0 %6997
    %6999 = vrot.lane.b32.xlu0 %v6828, 48
    %v7000 = vpop.permute.xlu0 %6999
    %7001 = vrot.lane.b32.xlu0 %v6829, 48
    %v7002 = vpop.permute.xlu0 %7001
    %7003 = vrot.lane.b32.xlu0 %v6830, 48
    %v7004 = vpop.permute.xlu0 %7003
    %7005 = vrot.lane.b32.xlu0 %v6831, 48
    %v7006 = vpop.permute.xlu0 %7005
    %7007 = vrot.lane.b32.xlu0 %v6832, 48
    %v7008 = vpop.permute.xlu0 %7007
    %7009 = vrot.lane.b32.xlu0 %v6833, 48
    %v7010 = vpop.permute.xlu0 %7009
    %7011 = vrot.lane.b32.xlu0 %v6834, 48
    %v7012 = vpop.permute.xlu0 %7011
    %7013 = vrot.lane.b32.xlu0 %v6835, 48
    %v7014 = vpop.permute.xlu0 %7013
    %7015 = vrot.lane.b32.xlu0 %v6836, 48
    %v7016 = vpop.permute.xlu0 %7015
    %7017 = vrot.lane.b32.xlu0 %v6837, 48
    %v7018 = vpop.permute.xlu0 %7017
    %7019 = vrot.lane.b32.xlu0 %v6838, 48
    %v7020 = vpop.permute.xlu0 %7019
    %7021 = vrot.lane.b32.xlu0 %v6839, 48
    %v7022 = vpop.permute.xlu0 %7021
    %7023 = vrot.lane.b32.xlu0 %v6840, 48
    %v7024 = vpop.permute.xlu0 %7023
    %7025 = vrot.lane.b32.xlu0 %v6841, 48
    %v7026 = vpop.permute.xlu0 %7025
    %7027 = vrot.lane.b32.xlu0 %v6842, 48
    %v7028 = vpop.permute.xlu0 %7027
    %7029 = vrot.lane.b32.xlu0 %v6843, 48
    %v7030 = vpop.permute.xlu0 %7029
    %7031 = vrot.lane.b32.xlu0 %v6844, 48
    %v7032 = vpop.permute.xlu0 %7031
    %7033 = vrot.lane.b32.xlu0 %v6845, 48
    %v7034 = vpop.permute.xlu0 %7033
    %7035 = vrot.lane.b32.xlu0 %v6846, 48
    %v7036 = vpop.permute.xlu0 %7035
    %7037 = vrot.lane.b32.xlu0 %v6847, 48
    %v7038 = vpop.permute.xlu0 %7037
    %7039 = vrot.lane.b32.xlu0 %v6848, 48
    %v7040 = vpop.permute.xlu0 %7039
    %vm7105 = vcmask 458112
    %7106 = vst.msk [vmem:[#allocation4] sm:$0xff] %vm7105, %v6914
    %7107 = vst.msk [vmem:[#allocation4 + $0x8] sm:$0xff] %vm7105, %v6916
    %7108 = vst.msk [vmem:[#allocation4 + $0x10] sm:$0xff] %vm7105, %v6918
    %7109 = vst.msk [vmem:[#allocation4 + $0x18] sm:$0xff] %vm7105, %v6920
    %7110 = vst.msk [vmem:[#allocation4 + $0x20] sm:$0xff] %vm7105, %v6922
    %7111 = vst.msk [vmem:[#allocation4 + $0x28] sm:$0xff] %vm7105, %v6924
    %7112 = vst.msk [vmem:[#allocation4 + $0x30] sm:$0xff] %vm7105, %v6926
    %7113 = vst.msk [vmem:[#allocation4 + $0x38] sm:$0xff] %vm7105, %v6928
    %7114 = vst.msk [vmem:[#allocation4 + $0x40] sm:$0xff] %vm7105, %v6930
    %7115 = vst.msk [vmem:[#allocation4 + $0x48] sm:$0xff] %vm7105, %v6932
    %7116 = vst.msk [vmem:[#allocation4 + $0x50] sm:$0xff] %vm7105, %v6934
    %7117 = vst.msk [vmem:[#allocation4 + $0x58] sm:$0xff] %vm7105, %v6936
    %7118 = vst.msk [vmem:[#allocation4 + $0x60] sm:$0xff] %vm7105, %v6938
    %7119 = vst.msk [vmem:[#allocation4 + $0x68] sm:$0xff] %vm7105, %v6940
    %7120 = vst.msk [vmem:[#allocation4 + $0x70] sm:$0xff] %vm7105, %v6942
    %7121 = vst.msk [vmem:[#allocation4 + $0x78] sm:$0xff] %vm7105, %v6944
    %7122 = vst.msk [vmem:[#allocation4 + $0x80] sm:$0xff] %vm7105, %v6946
    %7123 = vst.msk [vmem:[#allocation4 + $0x88] sm:$0xff] %vm7105, %v6948
    %7124 = vst.msk [vmem:[#allocation4 + $0x90] sm:$0xff] %vm7105, %v6950
    %7125 = vst.msk [vmem:[#allocation4 + $0x98] sm:$0xff] %vm7105, %v6952
    %7126 = vst.msk [vmem:[#allocation4 + $0xa0] sm:$0xff] %vm7105, %v6954
    %7127 = vst.msk [vmem:[#allocation4 + $0xa8] sm:$0xff] %vm7105, %v6956
    %7128 = vst.msk [vmem:[#allocation4 + $0xb0] sm:$0xff] %vm7105, %v6958
    %7129 = vst.msk [vmem:[#allocation4 + $0xb8] sm:$0xff] %vm7105, %v6960
    %7130 = vst.msk [vmem:[#allocation4 + $0xc0] sm:$0xff] %vm7105, %v6962
    %7131 = vst.msk [vmem:[#allocation4 + $0xc8] sm:$0xff] %vm7105, %v6964
    %7132 = vst.msk [vmem:[#allocation4 + $0xd0] sm:$0xff] %vm7105, %v6966
    %7133 = vst.msk [vmem:[#allocation4 + $0xd8] sm:$0xff] %vm7105, %v6968
    %7134 = vst.msk [vmem:[#allocation4 + $0xe0] sm:$0xff] %vm7105, %v6970
    %7135 = vst.msk [vmem:[#allocation4 + $0xe8] sm:$0xff] %vm7105, %v6972
    %7136 = vst.msk [vmem:[#allocation4 + $0xf0] sm:$0xff] %vm7105, %v6974
    %7137 = vst.msk [vmem:[#allocation4 + $0xf8] sm:$0xff] %vm7105, %v6976
    %7138 = vst.msk [vmem:[#allocation4 + $0x100] sm:$0xff] %vm7105, %v6978
    %7139 = vst.msk [vmem:[#allocation4 + $0x108] sm:$0xff] %vm7105, %v6980
    %7140 = vst.msk [vmem:[#allocation4 + $0x110] sm:$0xff] %vm7105, %v6982
    %7141 = vst.msk [vmem:[#allocation4 + $0x118] sm:$0xff] %vm7105, %v6984
    %7142 = vst.msk [vmem:[#allocation4 + $0x120] sm:$0xff] %vm7105, %v6986
    %7143 = vst.msk [vmem:[#allocation4 + $0x128] sm:$0xff] %vm7105, %v6988
    %7144 = vst.msk [vmem:[#allocation4 + $0x130] sm:$0xff] %vm7105, %v6990
    %7145 = vst.msk [vmem:[#allocation4 + $0x138] sm:$0xff] %vm7105, %v6992
    %7146 = vst.msk [vmem:[#allocation4 + $0x140] sm:$0xff] %vm7105, %v6994
    %7147 = vst.msk [vmem:[#allocation4 + $0x148] sm:$0xff] %vm7105, %v6996
    %7148 = vst.msk [vmem:[#allocation4 + $0x150] sm:$0xff] %vm7105, %v6998
    %7149 = vst.msk [vmem:[#allocation4 + $0x158] sm:$0xff] %vm7105, %v7000
    %7150 = vst.msk [vmem:[#allocation4 + $0x160] sm:$0xff] %vm7105, %v7002
    %7151 = vst.msk [vmem:[#allocation4 + $0x168] sm:$0xff] %vm7105, %v7004
    %7152 = vst.msk [vmem:[#allocation4 + $0x170] sm:$0xff] %vm7105, %v7006
    %7153 = vst.msk [vmem:[#allocation4 + $0x178] sm:$0xff] %vm7105, %v7008
    %7154 = vst.msk [vmem:[#allocation4 + $0x180] sm:$0xff] %vm7105, %v7010
    %7155 = vst.msk [vmem:[#allocation4 + $0x188] sm:$0xff] %vm7105, %v7012
    %7156 = vst.msk [vmem:[#allocation4 + $0x190] sm:$0xff] %vm7105, %v7014
    %7157 = vst.msk [vmem:[#allocation4 + $0x198] sm:$0xff] %vm7105, %v7016
    %7158 = vst.msk [vmem:[#allocation4 + $0x1a0] sm:$0xff] %vm7105, %v7018
    %7159 = vst.msk [vmem:[#allocation4 + $0x1a8] sm:$0xff] %vm7105, %v7020
    %7160 = vst.msk [vmem:[#allocation4 + $0x1b0] sm:$0xff] %vm7105, %v7022
    %7161 = vst.msk [vmem:[#allocation4 + $0x1b8] sm:$0xff] %vm7105, %v7024
    %7162 = vst.msk [vmem:[#allocation4 + $0x1c0] sm:$0xff] %vm7105, %v7026
    %7163 = vst.msk [vmem:[#allocation4 + $0x1c8] sm:$0xff] %vm7105, %v7028
    %7164 = vst.msk [vmem:[#allocation4 + $0x1d0] sm:$0xff] %vm7105, %v7030
    %7165 = vst.msk [vmem:[#allocation4 + $0x1d8] sm:$0xff] %vm7105, %v7032
    %7166 = vst.msk [vmem:[#allocation4 + $0x1e0] sm:$0xff] %vm7105, %v7034
    %7167 = vst.msk [vmem:[#allocation4 + $0x1e8] sm:$0xff] %vm7105, %v7036
    %7168 = vst.msk [vmem:[#allocation4 + $0x1f0] sm:$0xff] %vm7105, %v7038
    %7169 = vst.msk [vmem:[#allocation4 + $0x1f8] sm:$0xff] %vm7105, %v7040
    %v7170 = vld [vmem:[%s6784 + $0x1] sm:$0xff]
    %v7171 = vld [vmem:[%s6784 + $0x9] sm:$0xff]
    %v7172 = vld [vmem:[%s6784 + $0x19] sm:$0xff]
    %v7173 = vld [vmem:[%s6784 + $0x21] sm:$0xff]
    %v7174 = vld [vmem:[%s6784 + $0x31] sm:$0xff]
    %v7175 = vld [vmem:[%s6784 + $0x39] sm:$0xff]
    %v7176 = vld [vmem:[%s6784 + $0x49] sm:$0xff]
    %v7177 = vld [vmem:[%s6784 + $0x51] sm:$0xff]
    %v7178 = vld [vmem:[%s6784 + $0x61] sm:$0xff]
    %v7179 = vld [vmem:[%s6784 + $0x69] sm:$0xff]
    %v7180 = vld [vmem:[%s6784 + $0x79] sm:$0xff]
    %v7181 = vld [vmem:[%s6784 + $0x81] sm:$0xff]
    %v7182 = vld [vmem:[%s6784 + $0x91] sm:$0xff]
    %v7183 = vld [vmem:[%s6784 + $0x99] sm:$0xff]
    %v7184 = vld [vmem:[%s6784 + $0xa9] sm:$0xff]
    %v7185 = vld [vmem:[%s6784 + $0xb1] sm:$0xff]
    %v7186 = vld [vmem:[%s6784 + $0xc1] sm:$0xff]
    %v7187 = vld [vmem:[%s6784 + $0xc9] sm:$0xff]
    %v7188 = vld [vmem:[%s6784 + $0xd9] sm:$0xff]
    %v7189 = vld [vmem:[%s6784 + $0xe1] sm:$0xff]
    %v7190 = vld [vmem:[%s6784 + $0xf1] sm:$0xff]
    %v7191 = vld [vmem:[%s6784 + $0xf9] sm:$0xff]
    %v7192 = vld [vmem:[%s6784 + $0x109] sm:$0xff]
    %v7193 = vld [vmem:[%s6784 + $0x111] sm:$0xff]
    %v7194 = vld [vmem:[%s6784 + $0x121] sm:$0xff]
    %v7195 = vld [vmem:[%s6784 + $0x129] sm:$0xff]
    %v7196 = vld [vmem:[%s6784 + $0x139] sm:$0xff]
    %v7197 = vld [vmem:[%s6784 + $0x141] sm:$0xff]
    %v7198 = vld [vmem:[%s6784 + $0x151] sm:$0xff]
    %v7199 = vld [vmem:[%s6784 + $0x159] sm:$0xff]
    %v7200 = vld [vmem:[%s6784 + $0x169] sm:$0xff]
    %v7201 = vld [vmem:[%s6784 + $0x171] sm:$0xff]
    %v7202 = vld [vmem:[%s6784 + $0x1b1] sm:$0xff]
    %v7203 = vld [vmem:[%s6784 + $0x1b9] sm:$0xff]
    %v7204 = vld [vmem:[%s6784 + $0x1c9] sm:$0xff]
    %v7205 = vld [vmem:[%s6784 + $0x1d1] sm:$0xff]
    %v7206 = vld [vmem:[%s6784 + $0x1e1] sm:$0xff]
    %v7207 = vld [vmem:[%s6784 + $0x1e9] sm:$0xff]
    %v7208 = vld [vmem:[%s6784 + $0x1f9] sm:$0xff]
    %v7209 = vld [vmem:[%s6784 + $0x201] sm:$0xff]
    %v7210 = vld [vmem:[%s6784 + $0x211] sm:$0xff]
    %v7211 = vld [vmem:[%s6784 + $0x219] sm:$0xff]
    %v7212 = vld [vmem:[%s6784 + $0x229] sm:$0xff]
    %v7213 = vld [vmem:[%s6784 + $0x231] sm:$0xff]
    %v7214 = vld [vmem:[%s6784 + $0x241] sm:$0xff]
    %v7215 = vld [vmem:[%s6784 + $0x249] sm:$0xff]
    %v7216 = vld [vmem:[%s6784 + $0x259] sm:$0xff]
    %v7217 = vld [vmem:[%s6784 + $0x261] sm:$0xff]
    %v7218 = vld [vmem:[%s6784 + $0x271] sm:$0xff]
    %v7219 = vld [vmem:[%s6784 + $0x279] sm:$0xff]
    %v7220 = vld [vmem:[%s6784 + $0x289] sm:$0xff]
    %v7221 = vld [vmem:[%s6784 + $0x291] sm:$0xff]
    %v7222 = vld [vmem:[%s6784 + $0x2a1] sm:$0xff]
    %v7223 = vld [vmem:[%s6784 + $0x2a9] sm:$0xff]
    %v7224 = vld [vmem:[%s6784 + $0x2b9] sm:$0xff]
    %v7225 = vld [vmem:[%s6784 + $0x2c1] sm:$0xff]
    %v7226 = vld [vmem:[%s6784 + $0x2d1] sm:$0xff]
    %v7227 = vld [vmem:[%s6784 + $0x2d9] sm:$0xff]
    %v7228 = vld [vmem:[%s6784 + $0x2e9] sm:$0xff]
    %v7229 = vld [vmem:[%s6784 + $0x2f1] sm:$0xff]
    %v7230 = vld [vmem:[%s6784 + $0x301] sm:$0xff]
    %v7231 = vld [vmem:[%s6784 + $0x309] sm:$0xff]
    %v7232 = vld [vmem:[%s6784 + $0x319] sm:$0xff]
    %v7233 = vld [vmem:[%s6784 + $0x321] sm:$0xff]
    %7298 = vrot.lane.b32.xlu0 %v7170, 56
    %v7299 = vpop.permute.xlu0 %7298
    %7300 = vrot.lane.b32.xlu0 %v7171, 56
    %v7301 = vpop.permute.xlu0 %7300
    %7302 = vrot.lane.b32.xlu0 %v7172, 56
    %v7303 = vpop.permute.xlu0 %7302
    %7304 = vrot.lane.b32.xlu0 %v7173, 56
    %v7305 = vpop.permute.xlu0 %7304
    %7306 = vrot.lane.b32.xlu0 %v7174, 56
    %v7307 = vpop.permute.xlu0 %7306
    %7308 = vrot.lane.b32.xlu0 %v7175, 56
    %v7309 = vpop.permute.xlu0 %7308
    %7310 = vrot.lane.b32.xlu0 %v7176, 56
    %v7311 = vpop.permute.xlu0 %7310
    %7312 = vrot.lane.b32.xlu0 %v7177, 56
    %v7313 = vpop.permute.xlu0 %7312
    %7314 = vrot.lane.b32.xlu0 %v7178, 56
    %v7315 = vpop.permute.xlu0 %7314
    %7316 = vrot.lane.b32.xlu0 %v7179, 56
    %v7317 = vpop.permute.xlu0 %7316
    %7318 = vrot.lane.b32.xlu0 %v7180, 56
    %v7319 = vpop.permute.xlu0 %7318
    %7320 = vrot.lane.b32.xlu0 %v7181, 56
    %v7321 = vpop.permute.xlu0 %7320
    %7322 = vrot.lane.b32.xlu0 %v7182, 56
    %v7323 = vpop.permute.xlu0 %7322
    %7324 = vrot.lane.b32.xlu0 %v7183, 56
    %v7325 = vpop.permute.xlu0 %7324
    %7326 = vrot.lane.b32.xlu0 %v7184, 56
    %v7327 = vpop.permute.xlu0 %7326
    %7328 = vrot.lane.b32.xlu0 %v7185, 56
    %v7329 = vpop.permute.xlu0 %7328
    %7330 = vrot.lane.b32.xlu0 %v7186, 56
    %v7331 = vpop.permute.xlu0 %7330
    %7332 = vrot.lane.b32.xlu0 %v7187, 56
    %v7333 = vpop.permute.xlu0 %7332
    %7334 = vrot.lane.b32.xlu0 %v7188, 56
    %v7335 = vpop.permute.xlu0 %7334
    %7336 = vrot.lane.b32.xlu0 %v7189, 56
    %v7337 = vpop.permute.xlu0 %7336
    %7338 = vrot.lane.b32.xlu0 %v7190, 56
    %v7339 = vpop.permute.xlu0 %7338
    %7340 = vrot.lane.b32.xlu0 %v7191, 56
    %v7341 = vpop.permute.xlu0 %7340
    %7342 = vrot.lane.b32.xlu0 %v7192, 56
    %v7343 = vpop.permute.xlu0 %7342
    %7344 = vrot.lane.b32.xlu0 %v7193, 56
    %v7345 = vpop.permute.xlu0 %7344
    %7346 = vrot.lane.b32.xlu0 %v7194, 56
    %v7347 = vpop.permute.xlu0 %7346
    %7348 = vrot.lane.b32.xlu0 %v7195, 56
    %v7349 = vpop.permute.xlu0 %7348
    %7350 = vrot.lane.b32.xlu0 %v7196, 56
    %v7351 = vpop.permute.xlu0 %7350
    %7352 = vrot.lane.b32.xlu0 %v7197, 56
    %v7353 = vpop.permute.xlu0 %7352
    %7354 = vrot.lane.b32.xlu0 %v7198, 56
    %v7355 = vpop.permute.xlu0 %7354
    %7356 = vrot.lane.b32.xlu0 %v7199, 56
    %v7357 = vpop.permute.xlu0 %7356
    %7358 = vrot.lane.b32.xlu0 %v7200, 56
    %v7359 = vpop.permute.xlu0 %7358
    %7360 = vrot.lane.b32.xlu0 %v7201, 56
    %v7361 = vpop.permute.xlu0 %7360
    %7362 = vrot.lane.b32.xlu0 %v7202, 56
    %v7363 = vpop.permute.xlu0 %7362
    %7364 = vrot.lane.b32.xlu0 %v7203, 56
    %v7365 = vpop.permute.xlu0 %7364
    %7366 = vrot.lane.b32.xlu0 %v7204, 56
    %v7367 = vpop.permute.xlu0 %7366
    %7368 = vrot.lane.b32.xlu0 %v7205, 56
    %v7369 = vpop.permute.xlu0 %7368
    %7370 = vrot.lane.b32.xlu0 %v7206, 56
    %v7371 = vpop.permute.xlu0 %7370
    %7372 = vrot.lane.b32.xlu0 %v7207, 56
    %v7373 = vpop.permute.xlu0 %7372
    %7374 = vrot.lane.b32.xlu0 %v7208, 56
    %v7375 = vpop.permute.xlu0 %7374
    %7376 = vrot.lane.b32.xlu0 %v7209, 56
    %v7377 = vpop.permute.xlu0 %7376
    %7378 = vrot.lane.b32.xlu0 %v7210, 56
    %v7379 = vpop.permute.xlu0 %7378
    %7380 = vrot.lane.b32.xlu0 %v7211, 56
    %v7381 = vpop.permute.xlu0 %7380
    %7382 = vrot.lane.b32.xlu0 %v7212, 56
    %v7383 = vpop.permute.xlu0 %7382
    %7384 = vrot.lane.b32.xlu0 %v7213, 56
    %v7385 = vpop.permute.xlu0 %7384
    %7386 = vrot.lane.b32.xlu0 %v7214, 56
    %v7387 = vpop.permute.xlu0 %7386
    %7388 = vrot.lane.b32.xlu0 %v7215, 56
    %v7389 = vpop.permute.xlu0 %7388
    %7390 = vrot.lane.b32.xlu0 %v7216, 56
    %v7391 = vpop.permute.xlu0 %7390
    %7392 = vrot.lane.b32.xlu0 %v7217, 56
    %v7393 = vpop.permute.xlu0 %7392
    %7394 = vrot.lane.b32.xlu0 %v7218, 56
    %v7395 = vpop.permute.xlu0 %7394
    %7396 = vrot.lane.b32.xlu0 %v7219, 56
    %v7397 = vpop.permute.xlu0 %7396
    %7398 = vrot.lane.b32.xlu0 %v7220, 56
    %v7399 = vpop.permute.xlu0 %7398
    %7400 = vrot.lane.b32.xlu0 %v7221, 56
    %v7401 = vpop.permute.xlu0 %7400
    %7402 = vrot.lane.b32.xlu0 %v7222, 56
    %v7403 = vpop.permute.xlu0 %7402
    %7404 = vrot.lane.b32.xlu0 %v7223, 56
    %v7405 = vpop.permute.xlu0 %7404
    %7406 = vrot.lane.b32.xlu0 %v7224, 56
    %v7407 = vpop.permute.xlu0 %7406
    %7408 = vrot.lane.b32.xlu0 %v7225, 56
    %v7409 = vpop.permute.xlu0 %7408
    %7410 = vrot.lane.b32.xlu0 %v7226, 56
    %v7411 = vpop.permute.xlu0 %7410
    %7412 = vrot.lane.b32.xlu0 %v7227, 56
    %v7413 = vpop.permute.xlu0 %7412
    %7414 = vrot.lane.b32.xlu0 %v7228, 56
    %v7415 = vpop.permute.xlu0 %7414
    %7416 = vrot.lane.b32.xlu0 %v7229, 56
    %v7417 = vpop.permute.xlu0 %7416
    %7418 = vrot.lane.b32.xlu0 %v7230, 56
    %v7419 = vpop.permute.xlu0 %7418
    %7420 = vrot.lane.b32.xlu0 %v7231, 56
    %v7421 = vpop.permute.xlu0 %7420
    %7422 = vrot.lane.b32.xlu0 %v7232, 56
    %v7423 = vpop.permute.xlu0 %7422
    %7424 = vrot.lane.b32.xlu0 %v7233, 56
    %v7425 = vpop.permute.xlu0 %7424
    %vm7490 = vcmask 523712
    %7491 = vst.msk [vmem:[#allocation4] sm:$0xff] %vm7490, %v7299
    %7492 = vst.msk [vmem:[#allocation4 + $0x8] sm:$0xff] %vm7490, %v7301
    %7493 = vst.msk [vmem:[#allocation4 + $0x10] sm:$0xff] %vm7490, %v7303
    %7494 = vst.msk [vmem:[#allocation4 + $0x18] sm:$0xff] %vm7490, %v7305
    %7495 = vst.msk [vmem:[#allocation4 + $0x20] sm:$0xff] %vm7490, %v7307
    %7496 = vst.msk [vmem:[#allocation4 + $0x28] sm:$0xff] %vm7490, %v7309
    %7497 = vst.msk [vmem:[#allocation4 + $0x30] sm:$0xff] %vm7490, %v7311
    %7498 = vst.msk [vmem:[#allocation4 + $0x38] sm:$0xff] %vm7490, %v7313
    %7499 = vst.msk [vmem:[#allocation4 + $0x40] sm:$0xff] %vm7490, %v7315
    %7500 = vst.msk [vmem:[#allocation4 + $0x48] sm:$0xff] %vm7490, %v7317
    %7501 = vst.msk [vmem:[#allocation4 + $0x50] sm:$0xff] %vm7490, %v7319
    %7502 = vst.msk [vmem:[#allocation4 + $0x58] sm:$0xff] %vm7490, %v7321
    %7503 = vst.msk [vmem:[#allocation4 + $0x60] sm:$0xff] %vm7490, %v7323
    %7504 = vst.msk [vmem:[#allocation4 + $0x68] sm:$0xff] %vm7490, %v7325
    %7505 = vst.msk [vmem:[#allocation4 + $0x70] sm:$0xff] %vm7490, %v7327
    %7506 = vst.msk [vmem:[#allocation4 + $0x78] sm:$0xff] %vm7490, %v7329
    %7507 = vst.msk [vmem:[#allocation4 + $0x80] sm:$0xff] %vm7490, %v7331
    %7508 = vst.msk [vmem:[#allocation4 + $0x88] sm:$0xff] %vm7490, %v7333
    %7509 = vst.msk [vmem:[#allocation4 + $0x90] sm:$0xff] %vm7490, %v7335
    %7510 = vst.msk [vmem:[#allocation4 + $0x98] sm:$0xff] %vm7490, %v7337
    %7511 = vst.msk [vmem:[#allocation4 + $0xa0] sm:$0xff] %vm7490, %v7339
    %7512 = vst.msk [vmem:[#allocation4 + $0xa8] sm:$0xff] %vm7490, %v7341
    %7513 = vst.msk [vmem:[#allocation4 + $0xb0] sm:$0xff] %vm7490, %v7343
    %7514 = vst.msk [vmem:[#allocation4 + $0xb8] sm:$0xff] %vm7490, %v7345
    %7515 = vst.msk [vmem:[#allocation4 + $0xc0] sm:$0xff] %vm7490, %v7347
    %7516 = vst.msk [vmem:[#allocation4 + $0xc8] sm:$0xff] %vm7490, %v7349
    %7517 = vst.msk [vmem:[#allocation4 + $0xd0] sm:$0xff] %vm7490, %v7351
    %7518 = vst.msk [vmem:[#allocation4 + $0xd8] sm:$0xff] %vm7490, %v7353
    %7519 = vst.msk [vmem:[#allocation4 + $0xe0] sm:$0xff] %vm7490, %v7355
    %7520 = vst.msk [vmem:[#allocation4 + $0xe8] sm:$0xff] %vm7490, %v7357
    %7521 = vst.msk [vmem:[#allocation4 + $0xf0] sm:$0xff] %vm7490, %v7359
    %7522 = vst.msk [vmem:[#allocation4 + $0xf8] sm:$0xff] %vm7490, %v7361
    %7523 = vst.msk [vmem:[#allocation4 + $0x100] sm:$0xff] %vm7490, %v7363
    %7524 = vst.msk [vmem:[#allocation4 + $0x108] sm:$0xff] %vm7490, %v7365
    %7525 = vst.msk [vmem:[#allocation4 + $0x110] sm:$0xff] %vm7490, %v7367
    %7526 = vst.msk [vmem:[#allocation4 + $0x118] sm:$0xff] %vm7490, %v7369
    %7527 = vst.msk [vmem:[#allocation4 + $0x120] sm:$0xff] %vm7490, %v7371
    %7528 = vst.msk [vmem:[#allocation4 + $0x128] sm:$0xff] %vm7490, %v7373
    %7529 = vst.msk [vmem:[#allocation4 + $0x130] sm:$0xff] %vm7490, %v7375
    %7530 = vst.msk [vmem:[#allocation4 + $0x138] sm:$0xff] %vm7490, %v7377
    %7531 = vst.msk [vmem:[#allocation4 + $0x140] sm:$0xff] %vm7490, %v7379
    %7532 = vst.msk [vmem:[#allocation4 + $0x148] sm:$0xff] %vm7490, %v7381
    %7533 = vst.msk [vmem:[#allocation4 + $0x150] sm:$0xff] %vm7490, %v7383
    %7534 = vst.msk [vmem:[#allocation4 + $0x158] sm:$0xff] %vm7490, %v7385
    %7535 = vst.msk [vmem:[#allocation4 + $0x160] sm:$0xff] %vm7490, %v7387
    %7536 = vst.msk [vmem:[#allocation4 + $0x168] sm:$0xff] %vm7490, %v7389
    %7537 = vst.msk [vmem:[#allocation4 + $0x170] sm:$0xff] %vm7490, %v7391
    %7538 = vst.msk [vmem:[#allocation4 + $0x178] sm:$0xff] %vm7490, %v7393
    %7539 = vst.msk [vmem:[#allocation4 + $0x180] sm:$0xff] %vm7490, %v7395
    %7540 = vst.msk [vmem:[#allocation4 + $0x188] sm:$0xff] %vm7490, %v7397
    %7541 = vst.msk [vmem:[#allocation4 + $0x190] sm:$0xff] %vm7490, %v7399
    %7542 = vst.msk [vmem:[#allocation4 + $0x198] sm:$0xff] %vm7490, %v7401
    %7543 = vst.msk [vmem:[#allocation4 + $0x1a0] sm:$0xff] %vm7490, %v7403
    %7544 = vst.msk [vmem:[#allocation4 + $0x1a8] sm:$0xff] %vm7490, %v7405
    %7545 = vst.msk [vmem:[#allocation4 + $0x1b0] sm:$0xff] %vm7490, %v7407
    %7546 = vst.msk [vmem:[#allocation4 + $0x1b8] sm:$0xff] %vm7490, %v7409
    %7547 = vst.msk [vmem:[#allocation4 + $0x1c0] sm:$0xff] %vm7490, %v7411
    %7548 = vst.msk [vmem:[#allocation4 + $0x1c8] sm:$0xff] %vm7490, %v7413
    %7549 = vst.msk [vmem:[#allocation4 + $0x1d0] sm:$0xff] %vm7490, %v7415
    %7550 = vst.msk [vmem:[#allocation4 + $0x1d8] sm:$0xff] %vm7490, %v7417
    %7551 = vst.msk [vmem:[#allocation4 + $0x1e0] sm:$0xff] %vm7490, %v7419
    %7552 = vst.msk [vmem:[#allocation4 + $0x1e8] sm:$0xff] %vm7490, %v7421
    %7553 = vst.msk [vmem:[#allocation4 + $0x1f0] sm:$0xff] %vm7490, %v7423
    %7554 = vst.msk [vmem:[#allocation4 + $0x1f8] sm:$0xff] %vm7490, %v7425
    %v7555 = vld [vmem:[%s6784 + $0x2] sm:$0xff]
    %v7556 = vld [vmem:[%s6784 + $0xa] sm:$0xff]
    %v7557 = vld [vmem:[%s6784 + $0x1a] sm:$0xff]
    %v7558 = vld [vmem:[%s6784 + $0x22] sm:$0xff]
    %v7559 = vld [vmem:[%s6784 + $0x32] sm:$0xff]
    %v7560 = vld [vmem:[%s6784 + $0x3a] sm:$0xff]
    %v7561 = vld [vmem:[%s6784 + $0x4a] sm:$0xff]
    %v7562 = vld [vmem:[%s6784 + $0x52] sm:$0xff]
    %v7563 = vld [vmem:[%s6784 + $0x62] sm:$0xff]
    %v7564 = vld [vmem:[%s6784 + $0x6a] sm:$0xff]
    %v7565 = vld [vmem:[%s6784 + $0x7a] sm:$0xff]
    %v7566 = vld [vmem:[%s6784 + $0x82] sm:$0xff]
    %v7567 = vld [vmem:[%s6784 + $0x92] sm:$0xff]
    %v7568 = vld [vmem:[%s6784 + $0x9a] sm:$0xff]
    %v7569 = vld [vmem:[%s6784 + $0xaa] sm:$0xff]
    %v7570 = vld [vmem:[%s6784 + $0xb2] sm:$0xff]
    %v7571 = vld [vmem:[%s6784 + $0xc2] sm:$0xff]
    %v7572 = vld [vmem:[%s6784 + $0xca] sm:$0xff]
    %v7573 = vld [vmem:[%s6784 + $0xda] sm:$0xff]
    %v7574 = vld [vmem:[%s6784 + $0xe2] sm:$0xff]
    %v7575 = vld [vmem:[%s6784 + $0xf2] sm:$0xff]
    %v7576 = vld [vmem:[%s6784 + $0xfa] sm:$0xff]
    %v7577 = vld [vmem:[%s6784 + $0x10a] sm:$0xff]
    %v7578 = vld [vmem:[%s6784 + $0x112] sm:$0xff]
    %v7579 = vld [vmem:[%s6784 + $0x122] sm:$0xff]
    %v7580 = vld [vmem:[%s6784 + $0x12a] sm:$0xff]
    %v7581 = vld [vmem:[%s6784 + $0x13a] sm:$0xff]
    %v7582 = vld [vmem:[%s6784 + $0x142] sm:$0xff]
    %v7583 = vld [vmem:[%s6784 + $0x152] sm:$0xff]
    %v7584 = vld [vmem:[%s6784 + $0x15a] sm:$0xff]
    %v7585 = vld [vmem:[%s6784 + $0x16a] sm:$0xff]
    %v7586 = vld [vmem:[%s6784 + $0x172] sm:$0xff]
    %v7587 = vld [vmem:[%s6784 + $0x1b2] sm:$0xff]
    %v7588 = vld [vmem:[%s6784 + $0x1ba] sm:$0xff]
    %v7589 = vld [vmem:[%s6784 + $0x1ca] sm:$0xff]
    %v7590 = vld [vmem:[%s6784 + $0x1d2] sm:$0xff]
    %v7591 = vld [vmem:[%s6784 + $0x1e2] sm:$0xff]
    %v7592 = vld [vmem:[%s6784 + $0x1ea] sm:$0xff]
    %v7593 = vld [vmem:[%s6784 + $0x1fa] sm:$0xff]
    %v7594 = vld [vmem:[%s6784 + $0x202] sm:$0xff]
    %v7595 = vld [vmem:[%s6784 + $0x212] sm:$0xff]
    %v7596 = vld [vmem:[%s6784 + $0x21a] sm:$0xff]
    %v7597 = vld [vmem:[%s6784 + $0x22a] sm:$0xff]
    %v7598 = vld [vmem:[%s6784 + $0x232] sm:$0xff]
    %v7599 = vld [vmem:[%s6784 + $0x242] sm:$0xff]
    %v7600 = vld [vmem:[%s6784 + $0x24a] sm:$0xff]
    %v7601 = vld [vmem:[%s6784 + $0x25a] sm:$0xff]
    %v7602 = vld [vmem:[%s6784 + $0x262] sm:$0xff]
    %v7603 = vld [vmem:[%s6784 + $0x272] sm:$0xff]
    %v7604 = vld [vmem:[%s6784 + $0x27a] sm:$0xff]
    %v7605 = vld [vmem:[%s6784 + $0x28a] sm:$0xff]
    %v7606 = vld [vmem:[%s6784 + $0x292] sm:$0xff]
    %v7607 = vld [vmem:[%s6784 + $0x2a2] sm:$0xff]
    %v7608 = vld [vmem:[%s6784 + $0x2aa] sm:$0xff]
    %v7609 = vld [vmem:[%s6784 + $0x2ba] sm:$0xff]
    %v7610 = vld [vmem:[%s6784 + $0x2c2] sm:$0xff]
    %v7611 = vld [vmem:[%s6784 + $0x2d2] sm:$0xff]
    %v7612 = vld [vmem:[%s6784 + $0x2da] sm:$0xff]
    %v7613 = vld [vmem:[%s6784 + $0x2ea] sm:$0xff]
    %v7614 = vld [vmem:[%s6784 + $0x2f2] sm:$0xff]
    %v7615 = vld [vmem:[%s6784 + $0x302] sm:$0xff]
    %v7616 = vld [vmem:[%s6784 + $0x30a] sm:$0xff]
    %v7617 = vld [vmem:[%s6784 + $0x31a] sm:$0xff]
    %v7618 = vld [vmem:[%s6784 + $0x322] sm:$0xff]
    %7683 = vrot.lane.b32.xlu0 %v7555, 64
    %v7684 = vpop.permute.xlu0 %7683
    %7685 = vrot.lane.b32.xlu0 %v7556, 64
    %v7686 = vpop.permute.xlu0 %7685
    %7687 = vrot.lane.b32.xlu0 %v7557, 64
    %v7688 = vpop.permute.xlu0 %7687
    %7689 = vrot.lane.b32.xlu0 %v7558, 64
    %v7690 = vpop.permute.xlu0 %7689
    %7691 = vrot.lane.b32.xlu0 %v7559, 64
    %v7692 = vpop.permute.xlu0 %7691
    %7693 = vrot.lane.b32.xlu0 %v7560, 64
    %v7694 = vpop.permute.xlu0 %7693
    %7695 = vrot.lane.b32.xlu0 %v7561, 64
    %v7696 = vpop.permute.xlu0 %7695
    %7697 = vrot.lane.b32.xlu0 %v7562, 64
    %v7698 = vpop.permute.xlu0 %7697
    %7699 = vrot.lane.b32.xlu0 %v7563, 64
    %v7700 = vpop.permute.xlu0 %7699
    %7701 = vrot.lane.b32.xlu0 %v7564, 64
    %v7702 = vpop.permute.xlu0 %7701
    %7703 = vrot.lane.b32.xlu0 %v7565, 64
    %v7704 = vpop.permute.xlu0 %7703
    %7705 = vrot.lane.b32.xlu0 %v7566, 64
    %v7706 = vpop.permute.xlu0 %7705
    %7707 = vrot.lane.b32.xlu0 %v7567, 64
    %v7708 = vpop.permute.xlu0 %7707
    %7709 = vrot.lane.b32.xlu0 %v7568, 64
    %v7710 = vpop.permute.xlu0 %7709
    %7711 = vrot.lane.b32.xlu0 %v7569, 64
    %v7712 = vpop.permute.xlu0 %7711
    %7713 = vrot.lane.b32.xlu0 %v7570, 64
    %v7714 = vpop.permute.xlu0 %7713
    %7715 = vrot.lane.b32.xlu0 %v7571, 64
    %v7716 = vpop.permute.xlu0 %7715
    %7717 = vrot.lane.b32.xlu0 %v7572, 64
    %v7718 = vpop.permute.xlu0 %7717
    %7719 = vrot.lane.b32.xlu0 %v7573, 64
    %v7720 = vpop.permute.xlu0 %7719
    %7721 = vrot.lane.b32.xlu0 %v7574, 64
    %v7722 = vpop.permute.xlu0 %7721
    %7723 = vrot.lane.b32.xlu0 %v7575, 64
    %v7724 = vpop.permute.xlu0 %7723
    %7725 = vrot.lane.b32.xlu0 %v7576, 64
    %v7726 = vpop.permute.xlu0 %7725
    %7727 = vrot.lane.b32.xlu0 %v7577, 64
    %v7728 = vpop.permute.xlu0 %7727
    %7729 = vrot.lane.b32.xlu0 %v7578, 64
    %v7730 = vpop.permute.xlu0 %7729
    %7731 = vrot.lane.b32.xlu0 %v7579, 64
    %v7732 = vpop.permute.xlu0 %7731
    %7733 = vrot.lane.b32.xlu0 %v7580, 64
    %v7734 = vpop.permute.xlu0 %7733
    %7735 = vrot.lane.b32.xlu0 %v7581, 64
    %v7736 = vpop.permute.xlu0 %7735
    %7737 = vrot.lane.b32.xlu0 %v7582, 64
    %v7738 = vpop.permute.xlu0 %7737
    %7739 = vrot.lane.b32.xlu0 %v7583, 64
    %v7740 = vpop.permute.xlu0 %7739
    %7741 = vrot.lane.b32.xlu0 %v7584, 64
    %v7742 = vpop.permute.xlu0 %7741
    %7743 = vrot.lane.b32.xlu0 %v7585, 64
    %v7744 = vpop.permute.xlu0 %7743
    %7745 = vrot.lane.b32.xlu0 %v7586, 64
    %v7746 = vpop.permute.xlu0 %7745
    %7747 = vrot.lane.b32.xlu0 %v7587, 64
    %v7748 = vpop.permute.xlu0 %7747
    %7749 = vrot.lane.b32.xlu0 %v7588, 64
    %v7750 = vpop.permute.xlu0 %7749
    %7751 = vrot.lane.b32.xlu0 %v7589, 64
    %v7752 = vpop.permute.xlu0 %7751
    %7753 = vrot.lane.b32.xlu0 %v7590, 64
    %v7754 = vpop.permute.xlu0 %7753
    %7755 = vrot.lane.b32.xlu0 %v7591, 64
    %v7756 = vpop.permute.xlu0 %7755
    %7757 = vrot.lane.b32.xlu0 %v7592, 64
    %v7758 = vpop.permute.xlu0 %7757
    %7759 = vrot.lane.b32.xlu0 %v7593, 64
    %v7760 = vpop.permute.xlu0 %7759
    %7761 = vrot.lane.b32.xlu0 %v7594, 64
    %v7762 = vpop.permute.xlu0 %7761
    %7763 = vrot.lane.b32.xlu0 %v7595, 64
    %v7764 = vpop.permute.xlu0 %7763
    %7765 = vrot.lane.b32.xlu0 %v7596, 64
    %v7766 = vpop.permute.xlu0 %7765
    %7767 = vrot.lane.b32.xlu0 %v7597, 64
    %v7768 = vpop.permute.xlu0 %7767
    %7769 = vrot.lane.b32.xlu0 %v7598, 64
    %v7770 = vpop.permute.xlu0 %7769
    %7771 = vrot.lane.b32.xlu0 %v7599, 64
    %v7772 = vpop.permute.xlu0 %7771
    %7773 = vrot.lane.b32.xlu0 %v7600, 64
    %v7774 = vpop.permute.xlu0 %7773
    %7775 = vrot.lane.b32.xlu0 %v7601, 64
    %v7776 = vpop.permute.xlu0 %7775
    %7777 = vrot.lane.b32.xlu0 %v7602, 64
    %v7778 = vpop.permute.xlu0 %7777
    %7779 = vrot.lane.b32.xlu0 %v7603, 64
    %v7780 = vpop.permute.xlu0 %7779
    %7781 = vrot.lane.b32.xlu0 %v7604, 64
    %v7782 = vpop.permute.xlu0 %7781
    %7783 = vrot.lane.b32.xlu0 %v7605, 64
    %v7784 = vpop.permute.xlu0 %7783
    %7785 = vrot.lane.b32.xlu0 %v7606, 64
    %v7786 = vpop.permute.xlu0 %7785
    %7787 = vrot.lane.b32.xlu0 %v7607, 64
    %v7788 = vpop.permute.xlu0 %7787
    %7789 = vrot.lane.b32.xlu0 %v7608, 64
    %v7790 = vpop.permute.xlu0 %7789
    %7791 = vrot.lane.b32.xlu0 %v7609, 64
    %v7792 = vpop.permute.xlu0 %7791
    %7793 = vrot.lane.b32.xlu0 %v7610, 64
    %v7794 = vpop.permute.xlu0 %7793
    %7795 = vrot.lane.b32.xlu0 %v7611, 64
    %v7796 = vpop.permute.xlu0 %7795
    %7797 = vrot.lane.b32.xlu0 %v7612, 64
    %v7798 = vpop.permute.xlu0 %7797
    %7799 = vrot.lane.b32.xlu0 %v7613, 64
    %v7800 = vpop.permute.xlu0 %7799
    %7801 = vrot.lane.b32.xlu0 %v7614, 64
    %v7802 = vpop.permute.xlu0 %7801
    %7803 = vrot.lane.b32.xlu0 %v7615, 64
    %v7804 = vpop.permute.xlu0 %7803
    %7805 = vrot.lane.b32.xlu0 %v7616, 64
    %v7806 = vpop.permute.xlu0 %7805
    %7807 = vrot.lane.b32.xlu0 %v7617, 64
    %v7808 = vpop.permute.xlu0 %7807
    %7809 = vrot.lane.b32.xlu0 %v7618, 64
    %v7810 = vpop.permute.xlu0 %7809
    %vm7875 = vcmask 589312
    %7876 = vst.msk [vmem:[#allocation4] sm:$0xff] %vm7875, %v7684
    %7877 = vst.msk [vmem:[#allocation4 + $0x8] sm:$0xff] %vm7875, %v7686
    %7878 = vst.msk [vmem:[#allocation4 + $0x10] sm:$0xff] %vm7875, %v7688
    %7879 = vst.msk [vmem:[#allocation4 + $0x18] sm:$0xff] %vm7875, %v7690
    %7880 = vst.msk [vmem:[#allocation4 + $0x20] sm:$0xff] %vm7875, %v7692
    %7881 = vst.msk [vmem:[#allocation4 + $0x28] sm:$0xff] %vm7875, %v7694
    %7882 = vst.msk [vmem:[#allocation4 + $0x30] sm:$0xff] %vm7875, %v7696
    %7883 = vst.msk [vmem:[#allocation4 + $0x38] sm:$0xff] %vm7875, %v7698
    %7884 = vst.msk [vmem:[#allocation4 + $0x40] sm:$0xff] %vm7875, %v7700
    %7885 = vst.msk [vmem:[#allocation4 + $0x48] sm:$0xff] %vm7875, %v7702
    %7886 = vst.msk [vmem:[#allocation4 + $0x50] sm:$0xff] %vm7875, %v7704
    %7887 = vst.msk [vmem:[#allocation4 + $0x58] sm:$0xff] %vm7875, %v7706
    %7888 = vst.msk [vmem:[#allocation4 + $0x60] sm:$0xff] %vm7875, %v7708
    %7889 = vst.msk [vmem:[#allocation4 + $0x68] sm:$0xff] %vm7875, %v7710
    %7890 = vst.msk [vmem:[#allocation4 + $0x70] sm:$0xff] %vm7875, %v7712
    %7891 = vst.msk [vmem:[#allocation4 + $0x78] sm:$0xff] %vm7875, %v7714
    %7892 = vst.msk [vmem:[#allocation4 + $0x80] sm:$0xff] %vm7875, %v7716
    %7893 = vst.msk [vmem:[#allocation4 + $0x88] sm:$0xff] %vm7875, %v7718
    %7894 = vst.msk [vmem:[#allocation4 + $0x90] sm:$0xff] %vm7875, %v7720
    %7895 = vst.msk [vmem:[#allocation4 + $0x98] sm:$0xff] %vm7875, %v7722
    %7896 = vst.msk [vmem:[#allocation4 + $0xa0] sm:$0xff] %vm7875, %v7724
    %7897 = vst.msk [vmem:[#allocation4 + $0xa8] sm:$0xff] %vm7875, %v7726
    %7898 = vst.msk [vmem:[#allocation4 + $0xb0] sm:$0xff] %vm7875, %v7728
    %7899 = vst.msk [vmem:[#allocation4 + $0xb8] sm:$0xff] %vm7875, %v7730
    %7900 = vst.msk [vmem:[#allocation4 + $0xc0] sm:$0xff] %vm7875, %v7732
    %7901 = vst.msk [vmem:[#allocation4 + $0xc8] sm:$0xff] %vm7875, %v7734
    %7902 = vst.msk [vmem:[#allocation4 + $0xd0] sm:$0xff] %vm7875, %v7736
    %7903 = vst.msk [vmem:[#allocation4 + $0xd8] sm:$0xff] %vm7875, %v7738
    %7904 = vst.msk [vmem:[#allocation4 + $0xe0] sm:$0xff] %vm7875, %v7740
    %7905 = vst.msk [vmem:[#allocation4 + $0xe8] sm:$0xff] %vm7875, %v7742
    %7906 = vst.msk [vmem:[#allocation4 + $0xf0] sm:$0xff] %vm7875, %v7744
    %7907 = vst.msk [vmem:[#allocation4 + $0xf8] sm:$0xff] %vm7875, %v7746
    %7908 = vst.msk [vmem:[#allocation4 + $0x100] sm:$0xff] %vm7875, %v7748
    %7909 = vst.msk [vmem:[#allocation4 + $0x108] sm:$0xff] %vm7875, %v7750
    %7910 = vst.msk [vmem:[#allocation4 + $0x110] sm:$0xff] %vm7875, %v7752
    %7911 = vst.msk [vmem:[#allocation4 + $0x118] sm:$0xff] %vm7875, %v7754
    %7912 = vst.msk [vmem:[#allocation4 + $0x120] sm:$0xff] %vm7875, %v7756
    %7913 = vst.msk [vmem:[#allocation4 + $0x128] sm:$0xff] %vm7875, %v7758
    %7914 = vst.msk [vmem:[#allocation4 + $0x130] sm:$0xff] %vm7875, %v7760
    %7915 = vst.msk [vmem:[#allocation4 + $0x138] sm:$0xff] %vm7875, %v7762
    %7916 = vst.msk [vmem:[#allocation4 + $0x140] sm:$0xff] %vm7875, %v7764
    %7917 = vst.msk [vmem:[#allocation4 + $0x148] sm:$0xff] %vm7875, %v7766
    %7918 = vst.msk [vmem:[#allocation4 + $0x150] sm:$0xff] %vm7875, %v7768
    %7919 = vst.msk [vmem:[#allocation4 + $0x158] sm:$0xff] %vm7875, %v7770
    %7920 = vst.msk [vmem:[#allocation4 + $0x160] sm:$0xff] %vm7875, %v7772
    %7921 = vst.msk [vmem:[#allocation4 + $0x168] sm:$0xff] %vm7875, %v7774
    %7922 = vst.msk [vmem:[#allocation4 + $0x170] sm:$0xff] %vm7875, %v7776
    %7923 = vst.msk [vmem:[#allocation4 + $0x178] sm:$0xff] %vm7875, %v7778
    %7924 = vst.msk [vmem:[#allocation4 + $0x180] sm:$0xff] %vm7875, %v7780
    %7925 = vst.msk [vmem:[#allocation4 + $0x188] sm:$0xff] %vm7875, %v7782
    %7926 = vst.msk [vmem:[#allocation4 + $0x190] sm:$0xff] %vm7875, %v7784
    %7927 = vst.msk [vmem:[#allocation4 + $0x198] sm:$0xff] %vm7875, %v7786
    %7928 = vst.msk [vmem:[#allocation4 + $0x1a0] sm:$0xff] %vm7875, %v7788
    %7929 = vst.msk [vmem:[#allocation4 + $0x1a8] sm:$0xff] %vm7875, %v7790
    %7930 = vst.msk [vmem:[#allocation4 + $0x1b0] sm:$0xff] %vm7875, %v7792
    %7931 = vst.msk [vmem:[#allocation4 + $0x1b8] sm:$0xff] %vm7875, %v7794
    %7932 = vst.msk [vmem:[#allocation4 + $0x1c0] sm:$0xff] %vm7875, %v7796
    %7933 = vst.msk [vmem:[#allocation4 + $0x1c8] sm:$0xff] %vm7875, %v7798
    %7934 = vst.msk [vmem:[#allocation4 + $0x1d0] sm:$0xff] %vm7875, %v7800
    %7935 = vst.msk [vmem:[#allocation4 + $0x1d8] sm:$0xff] %vm7875, %v7802
    %7936 = vst.msk [vmem:[#allocation4 + $0x1e0] sm:$0xff] %vm7875, %v7804
    %7937 = vst.msk [vmem:[#allocation4 + $0x1e8] sm:$0xff] %vm7875, %v7806
    %7938 = vst.msk [vmem:[#allocation4 + $0x1f0] sm:$0xff] %vm7875, %v7808
    %7939 = vst.msk [vmem:[#allocation4 + $0x1f8] sm:$0xff] %vm7875, %v7810
    %v7940 = vld [vmem:[#allocation4] sm:$0xff]
    %v7941 = vld [vmem:[#allocation4 + $0x8] sm:$0xff]
    %v7942 = vld [vmem:[#allocation4 + $0x10] sm:$0xff]
    %v7943 = vld [vmem:[#allocation4 + $0x18] sm:$0xff]
    %v7944 = vld [vmem:[#allocation4 + $0x20] sm:$0xff]
    %v7945 = vld [vmem:[#allocation4 + $0x28] sm:$0xff]
    %v7946 = vld [vmem:[#allocation4 + $0x30] sm:$0xff]
    %v7947 = vld [vmem:[#allocation4 + $0x38] sm:$0xff]
    %v7948 = vld [vmem:[#allocation4 + $0x40] sm:$0xff]
    %v7949 = vld [vmem:[#allocation4 + $0x48] sm:$0xff]
    %v7950 = vld [vmem:[#allocation4 + $0x50] sm:$0xff]
    %v7951 = vld [vmem:[#allocation4 + $0x58] sm:$0xff]
    %v7952 = vld [vmem:[#allocation4 + $0x60] sm:$0xff]
    %v7953 = vld [vmem:[#allocation4 + $0x68] sm:$0xff]
    %v7954 = vld [vmem:[#allocation4 + $0x70] sm:$0xff]
    %v7955 = vld [vmem:[#allocation4 + $0x78] sm:$0xff]
    %v7956 = vld [vmem:[#allocation4 + $0x80] sm:$0xff]
    %v7957 = vld [vmem:[#allocation4 + $0x88] sm:$0xff]
    %v7958 = vld [vmem:[#allocation4 + $0x90] sm:$0xff]
    %v7959 = vld [vmem:[#allocation4 + $0x98] sm:$0xff]
    %v7960 = vld [vmem:[#allocation4 + $0xa0] sm:$0xff]
    %v7961 = vld [vmem:[#allocation4 + $0xa8] sm:$0xff]
    %v7962 = vld [vmem:[#allocation4 + $0xb0] sm:$0xff]
    %v7963 = vld [vmem:[#allocation4 + $0xb8] sm:$0xff]
    %v7964 = vld [vmem:[#allocation4 + $0xc0] sm:$0xff]
    %v7965 = vld [vmem:[#allocation4 + $0xc8] sm:$0xff]
    %v7966 = vld [vmem:[#allocation4 + $0xd0] sm:$0xff]
    %v7967 = vld [vmem:[#allocation4 + $0xd8] sm:$0xff]
    %v7968 = vld [vmem:[#allocation4 + $0xe0] sm:$0xff]
    %v7969 = vld [vmem:[#allocation4 + $0xe8] sm:$0xff]
    %v7970 = vld [vmem:[#allocation4 + $0xf0] sm:$0xff]
    %v7971 = vld [vmem:[#allocation4 + $0xf8] sm:$0xff]
    %v7972 = vld [vmem:[#allocation4 + $0x100] sm:$0xff]
    %v7973 = vld [vmem:[#allocation4 + $0x108] sm:$0xff]
    %v7974 = vld [vmem:[#allocation4 + $0x110] sm:$0xff]
    %v7975 = vld [vmem:[#allocation4 + $0x118] sm:$0xff]
    %v7976 = vld [vmem:[#allocation4 + $0x120] sm:$0xff]
    %v7977 = vld [vmem:[#allocation4 + $0x128] sm:$0xff]
    %v7978 = vld [vmem:[#allocation4 + $0x130] sm:$0xff]
    %v7979 = vld [vmem:[#allocation4 + $0x138] sm:$0xff]
    %v7980 = vld [vmem:[#allocation4 + $0x140] sm:$0xff]
    %v7981 = vld [vmem:[#allocation4 + $0x148] sm:$0xff]
    %v7982 = vld [vmem:[#allocation4 + $0x150] sm:$0xff]
    %v7983 = vld [vmem:[#allocation4 + $0x158] sm:$0xff]
    %v7984 = vld [vmem:[#allocation4 + $0x160] sm:$0xff]
    %v7985 = vld [vmem:[#allocation4 + $0x168] sm:$0xff]
    %v7986 = vld [vmem:[#allocation4 + $0x170] sm:$0xff]
    %v7987 = vld [vmem:[#allocation4 + $0x178] sm:$0xff]
    %v7988 = vld [vmem:[#allocation4 + $0x180] sm:$0xff]
    %v7989 = vld [vmem:[#allocation4 + $0x188] sm:$0xff]
    %v7990 = vld [vmem:[#allocation4 + $0x190] sm:$0xff]
    %v7991 = vld [vmem:[#allocation4 + $0x198] sm:$0xff]
    %v7992 = vld [vmem:[#allocation4 + $0x1a0] sm:$0xff]
    %v7993 = vld [vmem:[#allocation4 + $0x1a8] sm:$0xff]
    %v7994 = vld [vmem:[#allocation4 + $0x1b0] sm:$0xff]
    %v7995 = vld [vmem:[#allocation4 + $0x1b8] sm:$0xff]
    %v7996 = vld [vmem:[#allocation4 + $0x1c0] sm:$0xff]
    %v7997 = vld [vmem:[#allocation4 + $0x1c8] sm:$0xff]
    %v7998 = vld [vmem:[#allocation4 + $0x1d0] sm:$0xff]
    %v7999 = vld [vmem:[#allocation4 + $0x1d8] sm:$0xff]
    %v8000 = vld [vmem:[#allocation4 + $0x1e0] sm:$0xff]
    %v8001 = vld [vmem:[#allocation4 + $0x1e8] sm:$0xff]
    %v8002 = vld [vmem:[#allocation4 + $0x1f0] sm:$0xff]
    %v8003 = vld [vmem:[#allocation4 + $0x1f8] sm:$0xff]
    %v8004 = vld [vmem:[%s5] sm:$0xff]
    %v8005 = vld [vmem:[%s5 + $0x8] sm:$0xff]
    %v8006 = vld [vmem:[%s5 + $0x10] sm:$0xff]
    %v8007 = vld [vmem:[%s5 + $0x18] sm:$0xff]
    %v8008 = vld [vmem:[%s5 + $0x20] sm:$0xff]
    %v8009 = vld [vmem:[%s5 + $0x28] sm:$0xff]
    %v8010 = vld [vmem:[%s5 + $0x30] sm:$0xff]
    %v8011 = vld [vmem:[%s5 + $0x38] sm:$0xff]
    %v8012 = vld [vmem:[%s5 + $0x40] sm:$0xff]
    %v8013 = vld [vmem:[%s6] sm:$0x1]
    %v8015 = vlaneseq
    %v8016 = vshrl.u32 %v8015, 7
    %v8017 = vsub.s32 0, %v8016
    %v8018 = vrot.slane %v8013, %v8017
    %vm8020 = vcmask 588800
    %v8022 = vsel %vm8020, %v7940, 0
    %v8025 = vsel %vm8020, %v7941, 0
    %v8028 = vsel %vm8020, %v7942, 0
    %v8031 = vsel %vm8020, %v7943, 0
    %v8034 = vsel %vm8020, %v7944, 0
    %v8037 = vsel %vm8020, %v7945, 0
    %v8040 = vsel %vm8020, %v7946, 0
    %v8043 = vsel %vm8020, %v7947, 0
    %v8046 = vsel %vm8020, %v7948, 0
    %v8049 = vsel %vm8020, %v7949, 0
    %v8052 = vsel %vm8020, %v7950, 0
    %v8055 = vsel %vm8020, %v7951, 0
    %v8058 = vsel %vm8020, %v7952, 0
    %v8061 = vsel %vm8020, %v7953, 0
    %v8064 = vsel %vm8020, %v7954, 0
    %v8067 = vsel %vm8020, %v7955, 0
    %v8070 = vsel %vm8020, %v7956, 0
    %v8073 = vsel %vm8020, %v7957, 0
    %v8076 = vsel %vm8020, %v7958, 0
    %v8079 = vsel %vm8020, %v7959, 0
    %v8082 = vsel %vm8020, %v7960, 0
    %v8085 = vsel %vm8020, %v7961, 0
    %v8088 = vsel %vm8020, %v7962, 0
    %v8091 = vsel %vm8020, %v7963, 0
    %v8094 = vsel %vm8020, %v7964, 0
    %v8097 = vsel %vm8020, %v7965, 0
    %v8100 = vsel %vm8020, %v7966, 0
    %v8103 = vsel %vm8020, %v7967, 0
    %v8106 = vsel %vm8020, %v7968, 0
    %v8109 = vsel %vm8020, %v7969, 0
    %v8112 = vsel %vm8020, %v7970, 0
    %v8115 = vsel %vm8020, %v7971, 0
    %v8118 = vsel %vm8020, %v7972, 0
    %v8121 = vsel %vm8020, %v7973, 0
    %v8124 = vsel %vm8020, %v7974, 0
    %v8127 = vsel %vm8020, %v7975, 0
    %v8130 = vsel %vm8020, %v7976, 0
    %v8133 = vsel %vm8020, %v7977, 0
    %v8136 = vsel %vm8020, %v7978, 0
    %v8139 = vsel %vm8020, %v7979, 0
    %v8142 = vsel %vm8020, %v7980, 0
    %v8145 = vsel %vm8020, %v7981, 0
    %v8148 = vsel %vm8020, %v7982, 0
    %v8151 = vsel %vm8020, %v7983, 0
    %v8154 = vsel %vm8020, %v7984, 0
    %v8157 = vsel %vm8020, %v7985, 0
    %v8160 = vsel %vm8020, %v7986, 0
    %v8163 = vsel %vm8020, %v7987, 0
    %v8166 = vsel %vm8020, %v7988, 0
    %v8169 = vsel %vm8020, %v7989, 0
    %v8172 = vsel %vm8020, %v7990, 0
    %v8175 = vsel %vm8020, %v7991, 0
    %v8178 = vsel %vm8020, %v7992, 0
    %v8181 = vsel %vm8020, %v7993, 0
    %v8184 = vsel %vm8020, %v7994, 0
    %v8187 = vsel %vm8020, %v7995, 0
    %v8190 = vsel %vm8020, %v7996, 0
    %v8193 = vsel %vm8020, %v7997, 0
    %v8196 = vsel %vm8020, %v7998, 0
    %v8199 = vsel %vm8020, %v7999, 0
    %v8202 = vsel %vm8020, %v8000, 0
    %v8205 = vsel %vm8020, %v8001, 0
    %v8208 = vsel %vm8020, %v8002, 0
    %v8211 = vsel %vm8020, %v8003, 0
    %8213 = vmatprep.subr.mxu0 0.0
    %8214 = vmatpush1.msra.mxu0 %v8004
    %8215 = vmatprep.subr.mxu0 0.0
    %8216 = vmatpush1.msra.mxu0 %v8005
    %8217 = vmatprep.subr.mxu0 0.0
    %8218 = vmatpush1.msra.mxu0 %v8006
    %8219 = vmatprep.subr.mxu0 0.0
    %8220 = vmatpush1.msra.mxu0 %v8007
    %8221 = vmatprep.subr.mxu0 0.0
    %8222 = vmatpush1.msra.mxu0 %v8008
    %8223 = vmatprep.subr.mxu0 0.0
    %8224 = vmatpush1.msra.mxu0 %v8009
    %8225 = vmatprep.subr.mxu0 0.0
    %8226 = vmatpush1.msra.mxu0 %v8010
    %8227 = vmatprep.subr.mxu0 0.0
    %8228 = vmatpush1.msra.mxu0 %v8011
    %8229 = vmatprep.subr.mxu0 0.0
    %8230 = vmatpush1.msra.mxu0 %v8012
    %8231 = vmatprep.subr.mxu0 0.0
    %8232 = vmatpush1.msra.mxu0 0.0
    %8233 = vmatprep.subr.mxu0 0.0
    %8234 = vmatpush1.msra.mxu0 0.0
    %8235 = vmatprep.subr.mxu0 0.0
    %8236 = vmatpush1.msra.mxu0 0.0
    %8237 = vmatprep.subr.mxu0 0.0
    %8238 = vmatpush1.msra.mxu0 0.0
    %8239 = vmatprep.subr.mxu0 0.0
    %8240 = vmatpush1.msra.mxu0 0.0
    %8241 = vmatprep.subr.mxu0 0.0
    %8242 = vmatpush1.msra.mxu0 0.0
    %8243 = vmatprep.subr.mxu0 0.0
    %8244 = vmatpush1.msra.mxu0 0.0
    %8245 = vmatprep.subr.mxu0 0.0
    %8246 = vmatpush1.msra.mxu0 0.0
    %8247 = vmatprep.subr.mxu0 0.0
    %8248 = vmatpush1.msra.mxu0 0.0
    %8249 = vmatprep.subr.mxu0 0.0
    %8250 = vmatpush1.msra.mxu0 0.0
    %8251 = vmatprep.subr.mxu0 0.0
    %8252 = vmatpush1.msra.mxu0 0.0
    %8253 = vmatprep.subr.mxu0 0.0
    %8254 = vmatpush1.msra.mxu0 0.0
    %8255 = vmatprep.subr.mxu0 0.0
    %8256 = vmatpush1.msra.mxu0 0.0
    %8257 = vmatprep.subr.mxu0 0.0
    %8258 = vmatpush1.msra.mxu0 0.0
    %8259 = vmatprep.subr.mxu0 0.0
    %8260 = vmatpush1.msra.mxu0 0.0
    %8261 = vmatprep.subr.mxu0 0.0
    %8262 = vmatpush1.msra.mxu0 0.0
    %8263 = vmatprep.subr.mxu0 0.0
    %8264 = vmatpush1.msra.mxu0 0.0
    %8265 = vmatprep.subr.mxu0 0.0
    %8266 = vmatpush1.msra.mxu0 0.0
    %8267 = vmatprep.subr.mxu0 0.0
    %8268 = vmatpush1.msra.mxu0 0.0
    %8269 = vmatprep.subr.mxu0 0.0
    %8270 = vmatpush1.msra.mxu0 0.0
    %8271 = vmatprep.subr.mxu0 0.0
    %8272 = vmatpush1.msra.mxu0 0.0
    %8273 = vmatprep.subr.mxu0 0.0
    %8274 = vmatpush1.msra.mxu0 0.0
    %8275 = vmatprep.subr.mxu0 0.0
    %8276 = vmatpush1.msra.mxu0 0.0
    %8277 = vmatprep.mubr.f32.mxu0 0.0
    %8278 = vmatmul.mubr.f32.gmra.mrb[0].mxu0 %v8022
    %v8279 = vpop.f32.mrb[0].mxu0
    %v8280 = vadd.f32 %v8018, %v8279
    %v8281 = vpop.f32.mrb[0].mxu0
    %8282 = vmatprep.mubr.f32.mxu0 0.0
    %8283 = vmatmul.mubr.f32.gmra.mrb[0].mxu0 %v8025
    %v8284 = vpop.f32.mrb[0].mxu0
    %v8285 = vadd.f32 %v8018, %v8284
    %v8286 = vpop.f32.mrb[0].mxu0
    %8287 = vmatprep.mubr.f32.mxu0 0.0
    %8288 = vmatmul.mubr.f32.gmra.mrb[0].mxu0 %v8028
    %v8289 = vpop.f32.mrb[0].mxu0
    %v8290 = vadd.f32 %v8018, %v8289
    %v8291 = vpop.f32.mrb[0].mxu0
    %8292 = vmatprep.mubr.f32.mxu0 0.0
    %8293 = vmatmul.mubr.f32.gmra.mrb[0].mxu0 %v8031
    %v8294 = vpop.f32.mrb[0].mxu0
    %v8295 = vadd.f32 %v8018, %v8294
    %v8296 = vpop.f32.mrb[0].mxu0
    %8297 = vmatprep.mubr.f32.mxu0 0.0
    %8298 = vmatmul.mubr.f32.gmra.mrb[0].mxu0 %v8034
    %v8299 = vpop.f32.mrb[0].mxu0
    %v8300 = vadd.f32 %v8018, %v8299
    %v8301 = vpop.f32.mrb[0].mxu0
    %8302 = vmatprep.mubr.f32.mxu0 0.0
    %8303 = vmatmul.mubr.f32.gmra.mrb[0].mxu0 %v8037
    %v8304 = vpop.f32.mrb[0].mxu0
    %v8305 = vadd.f32 %v8018, %v8304
    %v8306 = vpop.f32.mrb[0].mxu0
    %8307 = vmatprep.mubr.f32.mxu0 0.0
    %8308 = vmatmul.mubr.f32.gmra.mrb[0].mxu0 %v8040
    %v8309 = vpop.f32.mrb[0].mxu0
    %v8310 = vadd.f32 %v8018, %v8309
    %v8311 = vpop.f32.mrb[0].mxu0
    %8312 = vmatprep.mubr.f32.mxu0 0.0
    %8313 = vmatmul.mubr.f32.gmra.mrb[0].mxu0 %v8043
    %v8314 = vpop.f32.mrb[0].mxu0
    %v8315 = vadd.f32 %v8018, %v8314
    %v8316 = vpop.f32.mrb[0].mxu0
    %8317 = vmatprep.mubr.f32.mxu0 0.0
    %8318 = vmatmul.mubr.f32.gmra.mrb[0].mxu0 %v8046
    %v8319 = vpop.f32.mrb[0].mxu0
    %v8320 = vadd.f32 %v8018, %v8319
    %v8321 = vpop.f32.mrb[0].mxu0
    %8322 = vmatprep.mubr.f32.mxu0 0.0
    %8323 = vmatmul.mubr.f32.gmra.mrb[0].mxu0 %v8049
    %v8324 = vpop.f32.mrb[0].mxu0
    %v8325 = vadd.f32 %v8018, %v8324
    %v8326 = vpop.f32.mrb[0].mxu0
    %8327 = vmatprep.mubr.f32.mxu0 0.0
    %8328 = vmatmul.mubr.f32.gmra.mrb[0].mxu0 %v8052
    %v8329 = vpop.f32.mrb[0].mxu0
    %v8330 = vadd.f32 %v8018, %v8329
    %v8331 = vpop.f32.mrb[0].mxu0
    %8332 = vmatprep.mubr.f32.mxu0 0.0
    %8333 = vmatmul.mubr.f32.gmra.mrb[0].mxu0 %v8055
    %v8334 = vpop.f32.mrb[0].mxu0
    %v8335 = vadd.f32 %v8018, %v8334
    %v8336 = vpop.f32.mrb[0].mxu0
    %8337 = vmatprep.mubr.f32.mxu0 0.0
    %8338 = vmatmul.mubr.f32.gmra.mrb[0].mxu0 %v8058
    %v8339 = vpop.f32.mrb[0].mxu0
    %v8340 = vadd.f32 %v8018, %v8339
    %v8341 = vpop.f32.mrb[0].mxu0
    %8342 = vmatprep.mubr.f32.mxu0 0.0
    %8343 = vmatmul.mubr.f32.gmra.mrb[0].mxu0 %v8061
    %v8344 = vpop.f32.mrb[0].mxu0
    %v8345 = vadd.f32 %v8018, %v8344
    %v8346 = vpop.f32.mrb[0].mxu0
    %8347 = vmatprep.mubr.f32.mxu0 0.0
    %8348 = vmatmul.mubr.f32.gmra.mrb[0].mxu0 %v8064
    %v8349 = vpop.f32.mrb[0].mxu0
    %v8350 = vadd.f32 %v8018, %v8349
    %v8351 = vpop.f32.mrb[0].mxu0
    %8352 = vmatprep.mubr.f32.mxu0 0.0
    %8353 = vmatmul.mubr.f32.gmra.mrb[0].mxu0 %v8067
    %v8354 = vpop.f32.mrb[0].mxu0
    %v8355 = vadd.f32 %v8018, %v8354
    %v8356 = vpop.f32.mrb[0].mxu0
    %8357 = vmatprep.mubr.f32.mxu0 0.0
    %8358 = vmatmul.mubr.f32.gmra.mrb[0].mxu0 %v8070
    %v8359 = vpop.f32.mrb[0].mxu0
    %v8360 = vadd.f32 %v8018, %v8359
    %v8361 = vpop.f32.mrb[0].mxu0
    %8362 = vmatprep.mubr.f32.mxu0 0.0
    %8363 = vmatmul.mubr.f32.gmra.mrb[0].mxu0 %v8073
    %v8364 = vpop.f32.mrb[0].mxu0
    %v8365 = vadd.f32 %v8018, %v8364
    %v8366 = vpop.f32.mrb[0].mxu0
    %8367 = vmatprep.mubr.f32.mxu0 0.0
    %8368 = vmatmul.mubr.f32.gmra.mrb[0].mxu0 %v8076
    %v8369 = vpop.f32.mrb[0].mxu0
    %v8370 = vadd.f32 %v8018, %v8369
    %v8371 = vpop.f32.mrb[0].mxu0
    %8372 = vmatprep.mubr.f32.mxu0 0.0
    %8373 = vmatmul.mubr.f32.gmra.mrb[0].mxu0 %v8079
    %v8374 = vpop.f32.mrb[0].mxu0
    %v8375 = vadd.f32 %v8018, %v8374
    %v8376 = vpop.f32.mrb[0].mxu0
    %8377 = vmatprep.mubr.f32.mxu0 0.0
    %8378 = vmatmul.mubr.f32.gmra.mrb[0].mxu0 %v8082
    %v8379 = vpop.f32.mrb[0].mxu0
    %v8380 = vadd.f32 %v8018, %v8379
    %v8381 = vpop.f32.mrb[0].mxu0
    %8382 = vmatprep.mubr.f32.mxu0 0.0
    %8383 = vmatmul.mubr.f32.gmra.mrb[0].mxu0 %v8085
    %v8384 = vpop.f32.mrb[0].mxu0
    %v8385 = vadd.f32 %v8018, %v8384
    %v8386 = vpop.f32.mrb[0].mxu0
    %8387 = vmatprep.mubr.f32.mxu0 0.0
    %8388 = vmatmul.mubr.f32.gmra.mrb[0].mxu0 %v8088
    %v8389 = vpop.f32.mrb[0].mxu0
    %v8390 = vadd.f32 %v8018, %v8389
    %v8391 = vpop.f32.mrb[0].mxu0
    %8392 = vmatprep.mubr.f32.mxu0 0.0
    %8393 = vmatmul.mubr.f32.gmra.mrb[0].mxu0 %v8091
    %v8394 = vpop.f32.mrb[0].mxu0
    %v8395 = vadd.f32 %v8018, %v8394
    %v8396 = vpop.f32.mrb[0].mxu0
    %8397 = vmatprep.mubr.f32.mxu0 0.0
    %8398 = vmatmul.mubr.f32.gmra.mrb[0].mxu0 %v8094
    %v8399 = vpop.f32.mrb[0].mxu0
    %v8400 = vadd.f32 %v8018, %v8399
    %v8401 = vpop.f32.mrb[0].mxu0
    %8402 = vmatprep.mubr.f32.mxu0 0.0
    %8403 = vmatmul.mubr.f32.gmra.mrb[0].mxu0 %v8097
    %v8404 = vpop.f32.mrb[0].mxu0
    %v8405 = vadd.f32 %v8018, %v8404
    %v8406 = vpop.f32.mrb[0].mxu0
    %8407 = vmatprep.mubr.f32.mxu0 0.0
    %8408 = vmatmul.mubr.f32.gmra.mrb[0].mxu0 %v8100
    %v8409 = vpop.f32.mrb[0].mxu0
    %v8410 = vadd.f32 %v8018, %v8409
    %v8411 = vpop.f32.mrb[0].mxu0
    %8412 = vmatprep.mubr.f32.mxu0 0.0
    %8413 = vmatmul.mubr.f32.gmra.mrb[0].mxu0 %v8103
    %v8414 = vpop.f32.mrb[0].mxu0
    %v8415 = vadd.f32 %v8018, %v8414
    %v8416 = vpop.f32.mrb[0].mxu0
    %8417 = vmatprep.mubr.f32.mxu0 0.0
    %8418 = vmatmul.mubr.f32.gmra.mrb[0].mxu0 %v8106
    %v8419 = vpop.f32.mrb[0].mxu0
    %v8420 = vadd.f32 %v8018, %v8419
    %v8421 = vpop.f32.mrb[0].mxu0
    %8422 = vmatprep.mubr.f32.mxu0 0.0
    %8423 = vmatmul.mubr.f32.gmra.mrb[0].mxu0 %v8109
    %v8424 = vpop.f32.mrb[0].mxu0
    %v8425 = vadd.f32 %v8018, %v8424
    %v8426 = vpop.f32.mrb[0].mxu0
    %8427 = vmatprep.mubr.f32.mxu0 0.0
    %8428 = vmatmul.mubr.f32.gmra.mrb[0].mxu0 %v8112
    %v8429 = vpop.f32.mrb[0].mxu0
    %v8430 = vadd.f32 %v8018, %v8429
    %v8431 = vpop.f32.mrb[0].mxu0
    %8432 = vmatprep.mubr.f32.mxu0 0.0
    %8433 = vmatmul.mubr.f32.gmra.mrb[0].mxu0 %v8115
    %v8434 = vpop.f32.mrb[0].mxu0
    %v8435 = vadd.f32 %v8018, %v8434
    %v8436 = vpop.f32.mrb[0].mxu0
    %8437 = vmatprep.mubr.f32.mxu0 0.0
    %8438 = vmatmul.mubr.f32.gmra.mrb[0].mxu0 %v8118
    %v8439 = vpop.f32.mrb[0].mxu0
    %v8440 = vadd.f32 %v8018, %v8439
    %v8441 = vpop.f32.mrb[0].mxu0
    %8442 = vmatprep.mubr.f32.mxu0 0.0
    %8443 = vmatmul.mubr.f32.gmra.mrb[0].mxu0 %v8121
    %v8444 = vpop.f32.mrb[0].mxu0
    %v8445 = vadd.f32 %v8018, %v8444
    %v8446 = vpop.f32.mrb[0].mxu0
    %8447 = vmatprep.mubr.f32.mxu0 0.0
    %8448 = vmatmul.mubr.f32.gmra.mrb[0].mxu0 %v8124
    %v8449 = vpop.f32.mrb[0].mxu0
    %v8450 = vadd.f32 %v8018, %v8449
    %v8451 = vpop.f32.mrb[0].mxu0
    %8452 = vmatprep.mubr.f32.mxu0 0.0
    %8453 = vmatmul.mubr.f32.gmra.mrb[0].mxu0 %v8127
    %v8454 = vpop.f32.mrb[0].mxu0
    %v8455 = vadd.f32 %v8018, %v8454
    %v8456 = vpop.f32.mrb[0].mxu0
    %8457 = vmatprep.mubr.f32.mxu0 0.0
    %8458 = vmatmul.mubr.f32.gmra.mrb[0].mxu0 %v8130
    %v8459 = vpop.f32.mrb[0].mxu0
    %v8460 = vadd.f32 %v8018, %v8459
    %v8461 = vpop.f32.mrb[0].mxu0
    %8462 = vmatprep.mubr.f32.mxu0 0.0
    %8463 = vmatmul.mubr.f32.gmra.mrb[0].mxu0 %v8133
    %v8464 = vpop.f32.mrb[0].mxu0
    %v8465 = vadd.f32 %v8018, %v8464
    %v8466 = vpop.f32.mrb[0].mxu0
    %8467 = vmatprep.mubr.f32.mxu0 0.0
    %8468 = vmatmul.mubr.f32.gmra.mrb[0].mxu0 %v8136
    %v8469 = vpop.f32.mrb[0].mxu0
    %v8470 = vadd.f32 %v8018, %v8469
    %v8471 = vpop.f32.mrb[0].mxu0
    %8472 = vmatprep.mubr.f32.mxu0 0.0
    %8473 = vmatmul.mubr.f32.gmra.mrb[0].mxu0 %v8139
    %v8474 = vpop.f32.mrb[0].mxu0
    %v8475 = vadd.f32 %v8018, %v8474
    %v8476 = vpop.f32.mrb[0].mxu0
    %8477 = vmatprep.mubr.f32.mxu0 0.0
    %8478 = vmatmul.mubr.f32.gmra.mrb[0].mxu0 %v8142
    %v8479 = vpop.f32.mrb[0].mxu0
    %v8480 = vadd.f32 %v8018, %v8479
    %v8481 = vpop.f32.mrb[0].mxu0
    %8482 = vmatprep.mubr.f32.mxu0 0.0
    %8483 = vmatmul.mubr.f32.gmra.mrb[0].mxu0 %v8145
    %v8484 = vpop.f32.mrb[0].mxu0
    %v8485 = vadd.f32 %v8018, %v8484
    %v8486 = vpop.f32.mrb[0].mxu0
    %8487 = vmatprep.mubr.f32.mxu0 0.0
    %8488 = vmatmul.mubr.f32.gmra.mrb[0].mxu0 %v8148
    %v8489 = vpop.f32.mrb[0].mxu0
    %v8490 = vadd.f32 %v8018, %v8489
    %v8491 = vpop.f32.mrb[0].mxu0
    %8492 = vmatprep.mubr.f32.mxu0 0.0
    %8493 = vmatmul.mubr.f32.gmra.mrb[0].mxu0 %v8151
    %v8494 = vpop.f32.mrb[0].mxu0
    %v8495 = vadd.f32 %v8018, %v8494
    %v8496 = vpop.f32.mrb[0].mxu0
    %8497 = vmatprep.mubr.f32.mxu0 0.0
    %8498 = vmatmul.mubr.f32.gmra.mrb[0].mxu0 %v8154
    %v8499 = vpop.f32.mrb[0].mxu0
    %v8500 = vadd.f32 %v8018, %v8499
    %v8501 = vpop.f32.mrb[0].mxu0
    %8502 = vmatprep.mubr.f32.mxu0 0.0
    %8503 = vmatmul.mubr.f32.gmra.mrb[0].mxu0 %v8157
    %v8504 = vpop.f32.mrb[0].mxu0
    %v8505 = vadd.f32 %v8018, %v8504
    %v8506 = vpop.f32.mrb[0].mxu0
    %8507 = vmatprep.mubr.f32.mxu0 0.0
    %8508 = vmatmul.mubr.f32.gmra.mrb[0].mxu0 %v8160
    %v8509 = vpop.f32.mrb[0].mxu0
    %v8510 = vadd.f32 %v8018, %v8509
    %v8511 = vpop.f32.mrb[0].mxu0
    %8512 = vmatprep.mubr.f32.mxu0 0.0
    %8513 = vmatmul.mubr.f32.gmra.mrb[0].mxu0 %v8163
    %v8514 = vpop.f32.mrb[0].mxu0
    %v8515 = vadd.f32 %v8018, %v8514
    %v8516 = vpop.f32.mrb[0].mxu0
    %8517 = vmatprep.mubr.f32.mxu0 0.0
    %8518 = vmatmul.mubr.f32.gmra.mrb[0].mxu0 %v8166
    %v8519 = vpop.f32.mrb[0].mxu0
    %v8520 = vadd.f32 %v8018, %v8519
    %v8521 = vpop.f32.mrb[0].mxu0
    %8522 = vmatprep.mubr.f32.mxu0 0.0
    %8523 = vmatmul.mubr.f32.gmra.mrb[0].mxu0 %v8169
    %v8524 = vpop.f32.mrb[0].mxu0
    %v8525 = vadd.f32 %v8018, %v8524
    %v8526 = vpop.f32.mrb[0].mxu0
    %8527 = vmatprep.mubr.f32.mxu0 0.0
    %8528 = vmatmul.mubr.f32.gmra.mrb[0].mxu0 %v8172
    %v8529 = vpop.f32.mrb[0].mxu0
    %v8530 = vadd.f32 %v8018, %v8529
    %v8531 = vpop.f32.mrb[0].mxu0
    %8532 = vmatprep.mubr.f32.mxu0 0.0
    %8533 = vmatmul.mubr.f32.gmra.mrb[0].mxu0 %v8175
    %v8534 = vpop.f32.mrb[0].mxu0
    %v8535 = vadd.f32 %v8018, %v8534
    %v8536 = vpop.f32.mrb[0].mxu0
    %8537 = vmatprep.mubr.f32.mxu0 0.0
    %8538 = vmatmul.mubr.f32.gmra.mrb[0].mxu0 %v8178
    %v8539 = vpop.f32.mrb[0].mxu0
    %v8540 = vadd.f32 %v8018, %v8539
    %v8541 = vpop.f32.mrb[0].mxu0
    %8542 = vmatprep.mubr.f32.mxu0 0.0
    %8543 = vmatmul.mubr.f32.gmra.mrb[0].mxu0 %v8181
    %v8544 = vpop.f32.mrb[0].mxu0
    %v8545 = vadd.f32 %v8018, %v8544
    %v8546 = vpop.f32.mrb[0].mxu0
    %8547 = vmatprep.mubr.f32.mxu0 0.0
    %8548 = vmatmul.mubr.f32.gmra.mrb[0].mxu0 %v8184
    %v8549 = vpop.f32.mrb[0].mxu0
    %v8550 = vadd.f32 %v8018, %v8549
    %v8551 = vpop.f32.mrb[0].mxu0
    %8552 = vmatprep.mubr.f32.mxu0 0.0
    %8553 = vmatmul.mubr.f32.gmra.mrb[0].mxu0 %v8187
    %v8554 = vpop.f32.mrb[0].mxu0
    %v8555 = vadd.f32 %v8018, %v8554
    %v8556 = vpop.f32.mrb[0].mxu0
    %8557 = vmatprep.mubr.f32.mxu0 0.0
    %8558 = vmatmul.mubr.f32.gmra.mrb[0].mxu0 %v8190
    %v8559 = vpop.f32.mrb[0].mxu0
    %v8560 = vadd.f32 %v8018, %v8559
    %v8561 = vpop.f32.mrb[0].mxu0
    %8562 = vmatprep.mubr.f32.mxu0 0.0
    %8563 = vmatmul.mubr.f32.gmra.mrb[0].mxu0 %v8193
    %v8564 = vpop.f32.mrb[0].mxu0
    %v8565 = vadd.f32 %v8018, %v8564
    %v8566 = vpop.f32.mrb[0].mxu0
    %8567 = vmatprep.mubr.f32.mxu0 0.0
    %8568 = vmatmul.mubr.f32.gmra.mrb[0].mxu0 %v8196
    %v8569 = vpop.f32.mrb[0].mxu0
    %v8570 = vadd.f32 %v8018, %v8569
    %v8571 = vpop.f32.mrb[0].mxu0
    %8572 = vmatprep.mubr.f32.mxu0 0.0
    %8573 = vmatmul.mubr.f32.gmra.mrb[0].mxu0 %v8199
    %v8574 = vpop.f32.mrb[0].mxu0
    %v8575 = vadd.f32 %v8018, %v8574
    %v8576 = vpop.f32.mrb[0].mxu0
    %8577 = vmatprep.mubr.f32.mxu0 0.0
    %8578 = vmatmul.mubr.f32.gmra.mrb[0].mxu0 %v8202
    %v8579 = vpop.f32.mrb[0].mxu0
    %v8580 = vadd.f32 %v8018, %v8579
    %v8581 = vpop.f32.mrb[0].mxu0
    %8582 = vmatprep.mubr.f32.mxu0 0.0
    %8583 = vmatmul.mubr.f32.gmra.mrb[0].mxu0 %v8205
    %v8584 = vpop.f32.mrb[0].mxu0
    %v8585 = vadd.f32 %v8018, %v8584
    %v8586 = vpop.f32.mrb[0].mxu0
    %8587 = vmatprep.mubr.f32.mxu0 0.0
    %8588 = vmatmul.mubr.f32.gmra.mrb[0].mxu0 %v8208
    %v8589 = vpop.f32.mrb[0].mxu0
    %v8590 = vadd.f32 %v8018, %v8589
    %v8591 = vpop.f32.mrb[0].mxu0
    %8592 = vmatprep.mubr.f32.mxu0 0.0
    %8593 = vmatmul.mubr.f32.gmra.mrb[0].mxu0 %v8211
    %v8594 = vpop.f32.mrb[0].mxu0
    %v8595 = vadd.f32 %v8018, %v8594
    %v8596 = vpop.f32.mrb[0].mxu0
    %8597 = vdwg.mxu0
    %v8598 = vadd.f32 %v8280, %v8285
    %v8599 = vadd.f32 %v8598, %v8290
    %v8600 = vadd.f32 %v8599, %v8295
    %v8601 = vadd.f32 %v8600, %v8300
    %v8602 = vadd.f32 %v8601, %v8305
    %v8603 = vadd.f32 %v8602, %v8310
    %v8604 = vadd.f32 %v8603, %v8315
    %v8605 = vadd.f32 %v8604, %v8320
    %v8606 = vadd.f32 %v8605, %v8325
    %v8607 = vadd.f32 %v8606, %v8330
    %v8608 = vadd.f32 %v8607, %v8335
    %v8609 = vadd.f32 %v8608, %v8340
    %v8610 = vadd.f32 %v8609, %v8345
    %v8611 = vadd.f32 %v8610, %v8350
    %v8612 = vadd.f32 %v8611, %v8355
    %v8613 = vadd.f32 %v8612, %v8360
    %v8614 = vadd.f32 %v8613, %v8365
    %v8615 = vadd.f32 %v8614, %v8370
    %v8616 = vadd.f32 %v8615, %v8375
    %v8617 = vadd.f32 %v8616, %v8380
    %v8618 = vadd.f32 %v8617, %v8385
    %v8619 = vadd.f32 %v8618, %v8390
    %v8620 = vadd.f32 %v8619, %v8395
    %v8621 = vadd.f32 %v8620, %v8400
    %v8622 = vadd.f32 %v8621, %v8405
    %v8623 = vadd.f32 %v8622, %v8410
    %v8624 = vadd.f32 %v8623, %v8415
    %v8625 = vadd.f32 %v8624, %v8420
    %v8626 = vadd.f32 %v8625, %v8425
    %v8627 = vadd.f32 %v8626, %v8430
    %v8628 = vadd.f32 %v8627, %v8435
    %v8629 = vadd.f32 %v8628, %v8440
    %v8630 = vadd.f32 %v8629, %v8445
    %v8631 = vadd.f32 %v8630, %v8450
    %v8632 = vadd.f32 %v8631, %v8455
    %v8633 = vadd.f32 %v8632, %v8460
    %v8634 = vadd.f32 %v8633, %v8465
    %v8635 = vadd.f32 %v8634, %v8470
    %v8636 = vadd.f32 %v8635, %v8475
    %v8637 = vadd.f32 %v8636, %v8480
    %v8638 = vadd.f32 %v8637, %v8485
    %v8639 = vadd.f32 %v8638, %v8490
    %v8640 = vadd.f32 %v8639, %v8495
    %v8641 = vadd.f32 %v8640, %v8500
    %v8642 = vadd.f32 %v8641, %v8505
    %v8643 = vadd.f32 %v8642, %v8510
    %v8644 = vadd.f32 %v8643, %v8515
    %v8645 = vadd.f32 %v8644, %v8520
    %v8646 = vadd.f32 %v8645, %v8525
    %v8647 = vadd.f32 %v8646, %v8530
    %v8648 = vadd.f32 %v8647, %v8535
    %v8649 = vadd.f32 %v8648, %v8540
    %v8650 = vadd.f32 %v8649, %v8545
    %v8651 = vadd.f32 %v8650, %v8550
    %v8652 = vadd.f32 %v8651, %v8555
    %v8653 = vadd.f32 %v8652, %v8560
    %v8654 = vadd.f32 %v8653, %v8565
    %v8655 = vadd.f32 %v8654, %v8570
    %v8656 = vadd.f32 %v8655, %v8575
    %v8657 = vadd.f32 %v8656, %v8580
    %v8658 = vadd.f32 %v8657, %v8585
    %v8659 = vadd.f32 %v8658, %v8590
    %v8660 = vadd.f32 %v8659, %v8595
    %v8661 = vrot.slane %v8660, 4
    %v8662 = vadd.f32 %v8660, %v8661
    %v8663 = vrot.slane %v8662, 2
    %v8664 = vadd.f32 %v8662, %v8663
    %v8665 = vrot.slane %v8664, 1
    %v8666 = vadd.f32 %v8664, %v8665
    %v8667 = vmul.f32 %v8280, %v8280
    %v8668 = vmul.f32 %v8285, %v8285
    %v8669 = vmul.f32 %v8290, %v8290
    %v8670 = vmul.f32 %v8295, %v8295
    %v8671 = vmul.f32 %v8300, %v8300
    %v8672 = vmul.f32 %v8305, %v8305
    %v8673 = vmul.f32 %v8310, %v8310
    %v8674 = vmul.f32 %v8315, %v8315
    %v8675 = vmul.f32 %v8320, %v8320
    %v8676 = vmul.f32 %v8325, %v8325
    %v8677 = vmul.f32 %v8330, %v8330
    %v8678 = vmul.f32 %v8335, %v8335
    %v8679 = vmul.f32 %v8340, %v8340
    %v8680 = vmul.f32 %v8345, %v8345
    %v8681 = vmul.f32 %v8350, %v8350
    %v8682 = vmul.f32 %v8355, %v8355
    %v8683 = vmul.f32 %v8360, %v8360
    %v8684 = vmul.f32 %v8365, %v8365
    %v8685 = vmul.f32 %v8370, %v8370
    %v8686 = vmul.f32 %v8375, %v8375
    %v8687 = vmul.f32 %v8380, %v8380
    %v8688 = vmul.f32 %v8385, %v8385
    %v8689 = vmul.f32 %v8390, %v8390
    %v8690 = vmul.f32 %v8395, %v8395
    %v8691 = vmul.f32 %v8400, %v8400
    %v8692 = vmul.f32 %v8405, %v8405
    %v8693 = vmul.f32 %v8410, %v8410
    %v8694 = vmul.f32 %v8415, %v8415
    %v8695 = vmul.f32 %v8420, %v8420
    %v8696 = vmul.f32 %v8425, %v8425
    %v8697 = vmul.f32 %v8430, %v8430
    %v8698 = vmul.f32 %v8435, %v8435
    %v8699 = vmul.f32 %v8440, %v8440
    %v8700 = vmul.f32 %v8445, %v8445
    %v8701 = vmul.f32 %v8450, %v8450
    %v8702 = vmul.f32 %v8455, %v8455
    %v8703 = vmul.f32 %v8460, %v8460
    %v8704 = vmul.f32 %v8465, %v8465
    %v8705 = vmul.f32 %v8470, %v8470
    %v8706 = vmul.f32 %v8475, %v8475
    %v8707 = vmul.f32 %v8480, %v8480
    %v8708 = vmul.f32 %v8485, %v8485
    %v8709 = vmul.f32 %v8490, %v8490
    %v8710 = vmul.f32 %v8495, %v8495
    %v8711 = vmul.f32 %v8500, %v8500
    %v8712 = vmul.f32 %v8505, %v8505
    %v8713 = vmul.f32 %v8510, %v8510
    %v8714 = vmul.f32 %v8515, %v8515
    %v8715 = vmul.f32 %v8520, %v8520
    %v8716 = vmul.f32 %v8525, %v8525
    %v8717 = vmul.f32 %v8530, %v8530
    %v8718 = vmul.f32 %v8535, %v8535
    %v8719 = vmul.f32 %v8540, %v8540
    %v8720 = vmul.f32 %v8545, %v8545
    %v8721 = vmul.f32 %v8550, %v8550
    %v8722 = vmul.f32 %v8555, %v8555
    %v8723 = vmul.f32 %v8560, %v8560
    %v8724 = vmul.f32 %v8565, %v8565
    %v8725 = vmul.f32 %v8570, %v8570
    %v8726 = vmul.f32 %v8575, %v8575
    %v8727 = vmul.f32 %v8580, %v8580
    %v8728 = vmul.f32 %v8585, %v8585
    %v8729 = vmul.f32 %v8590, %v8590
    %v8730 = vmul.f32 %v8595, %v8595
    %v8731 = vadd.f32 %v8667, %v8668
    %v8732 = vadd.f32 %v8731, %v8669
    %v8733 = vadd.f32 %v8732, %v8670
    %v8734 = vadd.f32 %v8733, %v8671
    %v8735 = vadd.f32 %v8734, %v8672
    %v8736 = vadd.f32 %v8735, %v8673
    %v8737 = vadd.f32 %v8736, %v8674
    %v8738 = vadd.f32 %v8737, %v8675
    %v8739 = vadd.f32 %v8738, %v8676
    %v8740 = vadd.f32 %v8739, %v8677
    %v8741 = vadd.f32 %v8740, %v8678
    %v8742 = vadd.f32 %v8741, %v8679
    %v8743 = vadd.f32 %v8742, %v8680
    %v8744 = vadd.f32 %v8743, %v8681
    %v8745 = vadd.f32 %v8744, %v8682
    %v8746 = vadd.f32 %v8745, %v8683
    %v8747 = vadd.f32 %v8746, %v8684
    %v8748 = vadd.f32 %v8747, %v8685
    %v8749 = vadd.f32 %v8748, %v8686
    %v8750 = vadd.f32 %v8749, %v8687
    %v8751 = vadd.f32 %v8750, %v8688
    %v8752 = vadd.f32 %v8751, %v8689
    %v8753 = vadd.f32 %v8752, %v8690
    %v8754 = vadd.f32 %v8753, %v8691
    %v8755 = vadd.f32 %v8754, %v8692
    %v8756 = vadd.f32 %v8755, %v8693
    %v8757 = vadd.f32 %v8756, %v8694
    %v8758 = vadd.f32 %v8757, %v8695
    %v8759 = vadd.f32 %v8758, %v8696
    %v8760 = vadd.f32 %v8759, %v8697
    %v8761 = vadd.f32 %v8760, %v8698
    %v8762 = vadd.f32 %v8761, %v8699
    %v8763 = vadd.f32 %v8762, %v8700
    %v8764 = vadd.f32 %v8763, %v8701
    %v8765 = vadd.f32 %v8764, %v8702
    %v8766 = vadd.f32 %v8765, %v8703
    %v8767 = vadd.f32 %v8766, %v8704
    %v8768 = vadd.f32 %v8767, %v8705
    %v8769 = vadd.f32 %v8768, %v8706
    %v8770 = vadd.f32 %v8769, %v8707
    %v8771 = vadd.f32 %v8770, %v8708
    %v8772 = vadd.f32 %v8771, %v8709
    %v8773 = vadd.f32 %v8772, %v8710
    %v8774 = vadd.f32 %v8773, %v8711
    %v8775 = vadd.f32 %v8774, %v8712
    %v8776 = vadd.f32 %v8775, %v8713
    %v8777 = vadd.f32 %v8776, %v8714
    %v8778 = vadd.f32 %v8777, %v8715
    %v8779 = vadd.f32 %v8778, %v8716
    %v8780 = vadd.f32 %v8779, %v8717
    %v8781 = vadd.f32 %v8780, %v8718
    %v8782 = vadd.f32 %v8781, %v8719
    %v8783 = vadd.f32 %v8782, %v8720
    %v8784 = vadd.f32 %v8783, %v8721
    %v8785 = vadd.f32 %v8784, %v8722
    %v8786 = vadd.f32 %v8785, %v8723
    %v8787 = vadd.f32 %v8786, %v8724
    %v8788 = vadd.f32 %v8787, %v8725
    %v8789 = vadd.f32 %v8788, %v8726
    %v8790 = vadd.f32 %v8789, %v8727
    %v8791 = vadd.f32 %v8790, %v8728
    %v8792 = vadd.f32 %v8791, %v8729
    %v8793 = vadd.f32 %v8792, %v8730
    %v8794 = vrot.slane %v8793, 4
    %v8795 = vadd.f32 %v8793, %v8794
    %v8796 = vrot.slane %v8795, 2
    %v8797 = vadd.f32 %v8795, %v8796
    %v8798 = vrot.slane %v8797, 1
    %v8799 = vadd.f32 %v8797, %v8798
    %v8800 = vmul.f32 %v8666, 0.001953125
    %v8801 = vmul.f32 %v8799, 0.001953125
    %v8802 = vmul.f32 %v8800, %v8800
    %v8803 = vsub.f32 %v8801, %v8802
    %v8804 = vsub.f32 %v8280, %v8800
    %v8805 = vsub.f32 %v8285, %v8800
    %v8806 = vsub.f32 %v8290, %v8800
    %v8807 = vsub.f32 %v8295, %v8800
    %v8808 = vsub.f32 %v8300, %v8800
    %v8809 = vsub.f32 %v8305, %v8800
    %v8810 = vsub.f32 %v8310, %v8800
    %v8811 = vsub.f32 %v8315, %v8800
    %v8812 = vsub.f32 %v8320, %v8800
    %v8813 = vsub.f32 %v8325, %v8800
    %v8814 = vsub.f32 %v8330, %v8800
    %v8815 = vsub.f32 %v8335, %v8800
    %v8816 = vsub.f32 %v8340, %v8800
    %v8817 = vsub.f32 %v8345, %v8800
    %v8818 = vsub.f32 %v8350, %v8800
    %v8819 = vsub.f32 %v8355, %v8800
    %v8820 = vsub.f32 %v8360, %v8800
    %v8821 = vsub.f32 %v8365, %v8800
    %v8822 = vsub.f32 %v8370, %v8800
    %v8823 = vsub.f32 %v8375, %v8800
    %v8824 = vsub.f32 %v8380, %v8800
    %v8825 = vsub.f32 %v8385, %v8800
    %v8826 = vsub.f32 %v8390, %v8800
    %v8827 = vsub.f32 %v8395, %v8800
    %v8828 = vsub.f32 %v8400, %v8800
    %v8829 = vsub.f32 %v8405, %v8800
    %v8830 = vsub.f32 %v8410, %v8800
    %v8831 = vsub.f32 %v8415, %v8800
    %v8832 = vsub.f32 %v8420, %v8800
    %v8833 = vsub.f32 %v8425, %v8800
    %v8834 = vsub.f32 %v8430, %v8800
    %v8835 = vsub.f32 %v8435, %v8800
    %v8836 = vsub.f32 %v8440, %v8800
    %v8837 = vsub.f32 %v8445, %v8800
    %v8838 = vsub.f32 %v8450, %v8800
    %v8839 = vsub.f32 %v8455, %v8800
    %v8840 = vsub.f32 %v8460, %v8800
    %v8841 = vsub.f32 %v8465, %v8800
    %v8842 = vsub.f32 %v8470, %v8800
    %v8843 = vsub.f32 %v8475, %v8800
    %v8844 = vsub.f32 %v8480, %v8800
    %v8845 = vsub.f32 %v8485, %v8800
    %v8846 = vsub.f32 %v8490, %v8800
    %v8847 = vsub.f32 %v8495, %v8800
    %v8848 = vsub.f32 %v8500, %v8800
    %v8849 = vsub.f32 %v8505, %v8800
    %v8850 = vsub.f32 %v8510, %v8800
    %v8851 = vsub.f32 %v8515, %v8800
    %v8852 = vsub.f32 %v8520, %v8800
    %v8853 = vsub.f32 %v8525, %v8800
    %v8854 = vsub.f32 %v8530, %v8800
    %v8855 = vsub.f32 %v8535, %v8800
    %v8856 = vsub.f32 %v8540, %v8800
    %v8857 = vsub.f32 %v8545, %v8800
    %v8858 = vsub.f32 %v8550, %v8800
    %v8859 = vsub.f32 %v8555, %v8800
    %v8860 = vsub.f32 %v8560, %v8800
    %v8861 = vsub.f32 %v8565, %v8800
    %v8862 = vsub.f32 %v8570, %v8800
    %v8863 = vsub.f32 %v8575, %v8800
    %v8864 = vsub.f32 %v8580, %v8800
    %v8865 = vsub.f32 %v8585, %v8800
    %v8866 = vsub.f32 %v8590, %v8800
    %v8867 = vsub.f32 %v8595, %v8800
    %v8868 = vadd.f32 %v8803, 1e-05
    %v8869 = vrsqrt.pop %v8868
    %v8870 = vmul.f32 %v8804, %v8869
    %v8871 = vmul.f32 %v8805, %v8869
    %v8872 = vmul.f32 %v8806, %v8869
    %v8873 = vmul.f32 %v8807, %v8869
    %v8874 = vmul.f32 %v8808, %v8869
    %v8875 = vmul.f32 %v8809, %v8869
    %v8876 = vmul.f32 %v8810, %v8869
    %v8877 = vmul.f32 %v8811, %v8869
    %v8878 = vmul.f32 %v8812, %v8869
    %v8879 = vmul.f32 %v8813, %v8869
    %v8880 = vmul.f32 %v8814, %v8869
    %v8881 = vmul.f32 %v8815, %v8869
    %v8882 = vmul.f32 %v8816, %v8869
    %v8883 = vmul.f32 %v8817, %v8869
    %v8884 = vmul.f32 %v8818, %v8869
    %v8885 = vmul.f32 %v8819, %v8869
    %v8886 = vmul.f32 %v8820, %v8869
    %v8887 = vmul.f32 %v8821, %v8869
    %v8888 = vmul.f32 %v8822, %v8869
    %v8889 = vmul.f32 %v8823, %v8869
    %v8890 = vmul.f32 %v8824, %v8869
    %v8891 = vmul.f32 %v8825, %v8869
    %v8892 = vmul.f32 %v8826, %v8869
    %v8893 = vmul.f32 %v8827, %v8869
    %v8894 = vmul.f32 %v8828, %v8869
    %v8895 = vmul.f32 %v8829, %v8869
    %v8896 = vmul.f32 %v8830, %v8869
    %v8897 = vmul.f32 %v8831, %v8869
    %v8898 = vmul.f32 %v8832, %v8869
    %v8899 = vmul.f32 %v8833, %v8869
    %v8900 = vmul.f32 %v8834, %v8869
    %v8901 = vmul.f32 %v8835, %v8869
    %v8902 = vmul.f32 %v8836, %v8869
    %v8903 = vmul.f32 %v8837, %v8869
    %v8904 = vmul.f32 %v8838, %v8869
    %v8905 = vmul.f32 %v8839, %v8869
    %v8906 = vmul.f32 %v8840, %v8869
    %v8907 = vmul.f32 %v8841, %v8869
    %v8908 = vmul.f32 %v8842, %v8869
    %v8909 = vmul.f32 %v8843, %v8869
    %v8910 = vmul.f32 %v8844, %v8869
    %v8911 = vmul.f32 %v8845, %v8869
    %v8912 = vmul.f32 %v8846, %v8869
    %v8913 = vmul.f32 %v8847, %v8869
    %v8914 = vmul.f32 %v8848, %v8869
    %v8915 = vmul.f32 %v8849, %v8869
    %v8916 = vmul.f32 %v8850, %v8869
    %v8917 = vmul.f32 %v8851, %v8869
    %v8918 = vmul.f32 %v8852, %v8869
    %v8919 = vmul.f32 %v8853, %v8869
    %v8920 = vmul.f32 %v8854, %v8869
    %v8921 = vmul.f32 %v8855, %v8869
    %v8922 = vmul.f32 %v8856, %v8869
    %v8923 = vmul.f32 %v8857, %v8869
    %v8924 = vmul.f32 %v8858, %v8869
    %v8925 = vmul.f32 %v8859, %v8869
    %v8926 = vmul.f32 %v8860, %v8869
    %v8927 = vmul.f32 %v8861, %v8869
    %v8928 = vmul.f32 %v8862, %v8869
    %v8929 = vmul.f32 %v8863, %v8869
    %v8930 = vmul.f32 %v8864, %v8869
    %v8931 = vmul.f32 %v8865, %v8869
    %v8932 = vmul.f32 %v8866, %v8869
    %v8933 = vmul.f32 %v8867, %v8869
    %v8934 = vld [vmem:[%s7] sm:$0x1]
    %v8936 = vlaneseq
    %v8937 = vshrl.u32 %v8936, 7
    %v8938 = vsub.s32 0, %v8937
    %v8939 = vrot.slane %v8934, %v8938
    %v8941 = vmul.f32 %v8870, %v8939
    %v8942 = vmul.f32 %v8871, %v8939
    %v8943 = vmul.f32 %v8872, %v8939
    %v8944 = vmul.f32 %v8873, %v8939
    %v8945 = vmul.f32 %v8874, %v8939
    %v8946 = vmul.f32 %v8875, %v8939
    %v8947 = vmul.f32 %v8876, %v8939
    %v8948 = vmul.f32 %v8877, %v8939
    %v8949 = vmul.f32 %v8878, %v8939
    %v8950 = vmul.f32 %v8879, %v8939
    %v8951 = vmul.f32 %v8880, %v8939
    %v8952 = vmul.f32 %v8881, %v8939
    %v8953 = vmul.f32 %v8882, %v8939
    %v8954 = vmul.f32 %v8883, %v8939
    %v8955 = vmul.f32 %v8884, %v8939
    %v8956 = vmul.f32 %v8885, %v8939
    %v8957 = vmul.f32 %v8886, %v8939
    %v8958 = vmul.f32 %v8887, %v8939
    %v8959 = vmul.f32 %v8888, %v8939
    %v8960 = vmul.f32 %v8889, %v8939
    %v8961 = vmul.f32 %v8890, %v8939
    %v8962 = vmul.f32 %v8891, %v8939
    %v8963 = vmul.f32 %v8892, %v8939
    %v8964 = vmul.f32 %v8893, %v8939
    %v8965 = vmul.f32 %v8894, %v8939
    %v8966 = vmul.f32 %v8895, %v8939
    %v8967 = vmul.f32 %v8896, %v8939
    %v8968 = vmul.f32 %v8897, %v8939
    %v8969 = vmul.f32 %v8898, %v8939
    %v8970 = vmul.f32 %v8899, %v8939
    %v8971 = vmul.f32 %v8900, %v8939
    %v8972 = vmul.f32 %v8901, %v8939
    %v8973 = vmul.f32 %v8902, %v8939
    %v8974 = vmul.f32 %v8903, %v8939
    %v8975 = vmul.f32 %v8904, %v8939
    %v8976 = vmul.f32 %v8905, %v8939
    %v8977 = vmul.f32 %v8906, %v8939
    %v8978 = vmul.f32 %v8907, %v8939
    %v8979 = vmul.f32 %v8908, %v8939
    %v8980 = vmul.f32 %v8909, %v8939
    %v8981 = vmul.f32 %v8910, %v8939
    %v8982 = vmul.f32 %v8911, %v8939
    %v8983 = vmul.f32 %v8912, %v8939
    %v8984 = vmul.f32 %v8913, %v8939
    %v8985 = vmul.f32 %v8914, %v8939
    %v8986 = vmul.f32 %v8915, %v8939
    %v8987 = vmul.f32 %v8916, %v8939
    %v8988 = vmul.f32 %v8917, %v8939
    %v8989 = vmul.f32 %v8918, %v8939
    %v8990 = vmul.f32 %v8919, %v8939
    %v8991 = vmul.f32 %v8920, %v8939
    %v8992 = vmul.f32 %v8921, %v8939
    %v8993 = vmul.f32 %v8922, %v8939
    %v8994 = vmul.f32 %v8923, %v8939
    %v8995 = vmul.f32 %v8924, %v8939
    %v8996 = vmul.f32 %v8925, %v8939
    %v8997 = vmul.f32 %v8926, %v8939
    %v8998 = vmul.f32 %v8927, %v8939
    %v8999 = vmul.f32 %v8928, %v8939
    %v9000 = vmul.f32 %v8929, %v8939
    %v9001 = vmul.f32 %v8930, %v8939
    %v9002 = vmul.f32 %v8931, %v8939
    %v9003 = vmul.f32 %v8932, %v8939
    %v9004 = vmul.f32 %v8933, %v8939
    %v9005 = vld [vmem:[%s8] sm:$0x1]
    %v9007 = vlaneseq
    %v9008 = vshrl.u32 %v9007, 7
    %v9009 = vsub.s32 0, %v9008
    %v9010 = vrot.slane %v9005, %v9009
    %v9012 = vadd.f32 %v8941, %v9010
    %v9013 = vadd.f32 %v8942, %v9010
    %v9014 = vadd.f32 %v8943, %v9010
    %v9015 = vadd.f32 %v8944, %v9010
    %v9016 = vadd.f32 %v8945, %v9010
    %v9017 = vadd.f32 %v8946, %v9010
    %v9018 = vadd.f32 %v8947, %v9010
    %v9019 = vadd.f32 %v8948, %v9010
    %v9020 = vadd.f32 %v8949, %v9010
    %v9021 = vadd.f32 %v8950, %v9010
    %v9022 = vadd.f32 %v8951, %v9010
    %v9023 = vadd.f32 %v8952, %v9010
    %v9024 = vadd.f32 %v8953, %v9010
    %v9025 = vadd.f32 %v8954, %v9010
    %v9026 = vadd.f32 %v8955, %v9010
    %v9027 = vadd.f32 %v8956, %v9010
    %v9028 = vadd.f32 %v8957, %v9010
    %v9029 = vadd.f32 %v8958, %v9010
    %v9030 = vadd.f32 %v8959, %v9010
    %v9031 = vadd.f32 %v8960, %v9010
    %v9032 = vadd.f32 %v8961, %v9010
    %v9033 = vadd.f32 %v8962, %v9010
    %v9034 = vadd.f32 %v8963, %v9010
    %v9035 = vadd.f32 %v8964, %v9010
    %v9036 = vadd.f32 %v8965, %v9010
    %v9037 = vadd.f32 %v8966, %v9010
    %v9038 = vadd.f32 %v8967, %v9010
    %v9039 = vadd.f32 %v8968, %v9010
    %v9040 = vadd.f32 %v8969, %v9010
    %v9041 = vadd.f32 %v8970, %v9010
    %v9042 = vadd.f32 %v8971, %v9010
    %v9043 = vadd.f32 %v8972, %v9010
    %v9044 = vadd.f32 %v8973, %v9010
    %v9045 = vadd.f32 %v8974, %v9010
    %v9046 = vadd.f32 %v8975, %v9010
    %v9047 = vadd.f32 %v8976, %v9010
    %v9048 = vadd.f32 %v8977, %v9010
    %v9049 = vadd.f32 %v8978, %v9010
    %v9050 = vadd.f32 %v8979, %v9010
    %v9051 = vadd.f32 %v8980, %v9010
    %v9052 = vadd.f32 %v8981, %v9010
    %v9053 = vadd.f32 %v8982, %v9010
    %v9054 = vadd.f32 %v8983, %v9010
    %v9055 = vadd.f32 %v8984, %v9010
    %v9056 = vadd.f32 %v8985, %v9010
    %v9057 = vadd.f32 %v8986, %v9010
    %v9058 = vadd.f32 %v8987, %v9010
    %v9059 = vadd.f32 %v8988, %v9010
    %v9060 = vadd.f32 %v8989, %v9010
    %v9061 = vadd.f32 %v8990, %v9010
    %v9062 = vadd.f32 %v8991, %v9010
    %v9063 = vadd.f32 %v8992, %v9010
    %v9064 = vadd.f32 %v8993, %v9010
    %v9065 = vadd.f32 %v8994, %v9010
    %v9066 = vadd.f32 %v8995, %v9010
    %v9067 = vadd.f32 %v8996, %v9010
    %v9068 = vadd.f32 %v8997, %v9010
    %v9069 = vadd.f32 %v8998, %v9010
    %v9070 = vadd.f32 %v8999, %v9010
    %v9071 = vadd.f32 %v9000, %v9010
    %v9072 = vadd.f32 %v9001, %v9010
    %v9073 = vadd.f32 %v9002, %v9010
    %v9074 = vadd.f32 %v9003, %v9010
    %v9075 = vadd.f32 %v9004, %v9010
    %v9076 = vld [vmem:[%s938 + $0x1] sm:$0xff]
    %v9077 = vld [vmem:[%s938 + $0x9] sm:$0xff]
    %v9078 = vld [vmem:[%s938 + $0x19] sm:$0xff]
    %v9079 = vld [vmem:[%s938 + $0x21] sm:$0xff]
    %v9080 = vld [vmem:[%s938 + $0x31] sm:$0xff]
    %v9081 = vld [vmem:[%s938 + $0x39] sm:$0xff]
    %v9082 = vld [vmem:[%s938 + $0x49] sm:$0xff]
    %v9083 = vld [vmem:[%s938 + $0x51] sm:$0xff]
    %v9084 = vld [vmem:[%s938 + $0x61] sm:$0xff]
    %v9085 = vld [vmem:[%s938 + $0x69] sm:$0xff]
    %v9086 = vld [vmem:[%s938 + $0x79] sm:$0xff]
    %v9087 = vld [vmem:[%s938 + $0x81] sm:$0xff]
    %v9088 = vld [vmem:[%s938 + $0x91] sm:$0xff]
    %v9089 = vld [vmem:[%s938 + $0x99] sm:$0xff]
    %v9090 = vld [vmem:[%s938 + $0xa9] sm:$0xff]
    %v9091 = vld [vmem:[%s938 + $0xb1] sm:$0xff]
    %v9092 = vld [vmem:[%s938 + $0xc1] sm:$0xff]
    %v9093 = vld [vmem:[%s938 + $0xc9] sm:$0xff]
    %v9094 = vld [vmem:[%s938 + $0xd9] sm:$0xff]
    %v9095 = vld [vmem:[%s938 + $0xe1] sm:$0xff]
    %v9096 = vld [vmem:[%s938 + $0xf1] sm:$0xff]
    %v9097 = vld [vmem:[%s938 + $0xf9] sm:$0xff]
    %v9098 = vld [vmem:[%s938 + $0x109] sm:$0xff]
    %v9099 = vld [vmem:[%s938 + $0x111] sm:$0xff]
    %v9100 = vld [vmem:[%s938 + $0x121] sm:$0xff]
    %v9101 = vld [vmem:[%s938 + $0x129] sm:$0xff]
    %v9102 = vld [vmem:[%s938 + $0x139] sm:$0xff]
    %v9103 = vld [vmem:[%s938 + $0x141] sm:$0xff]
    %v9104 = vld [vmem:[%s938 + $0x151] sm:$0xff]
    %v9105 = vld [vmem:[%s938 + $0x159] sm:$0xff]
    %v9106 = vld [vmem:[%s938 + $0x169] sm:$0xff]
    %v9107 = vld [vmem:[%s938 + $0x171] sm:$0xff]
    %v9108 = vld [vmem:[%s938 + $0x1b1] sm:$0xff]
    %v9109 = vld [vmem:[%s938 + $0x1b9] sm:$0xff]
    %v9110 = vld [vmem:[%s938 + $0x1c9] sm:$0xff]
    %v9111 = vld [vmem:[%s938 + $0x1d1] sm:$0xff]
    %v9112 = vld [vmem:[%s938 + $0x1e1] sm:$0xff]
    %v9113 = vld [vmem:[%s938 + $0x1e9] sm:$0xff]
    %v9114 = vld [vmem:[%s938 + $0x1f9] sm:$0xff]
    %v9115 = vld [vmem:[%s938 + $0x201] sm:$0xff]
    %v9116 = vld [vmem:[%s938 + $0x211] sm:$0xff]
    %v9117 = vld [vmem:[%s938 + $0x219] sm:$0xff]
    %v9118 = vld [vmem:[%s938 + $0x229] sm:$0xff]
    %v9119 = vld [vmem:[%s938 + $0x231] sm:$0xff]
    %v9120 = vld [vmem:[%s938 + $0x241] sm:$0xff]
    %v9121 = vld [vmem:[%s938 + $0x249] sm:$0xff]
    %v9122 = vld [vmem:[%s938 + $0x259] sm:$0xff]
    %v9123 = vld [vmem:[%s938 + $0x261] sm:$0xff]
    %v9124 = vld [vmem:[%s938 + $0x271] sm:$0xff]
    %v9125 = vld [vmem:[%s938 + $0x279] sm:$0xff]
    %v9126 = vld [vmem:[%s938 + $0x289] sm:$0xff]
    %v9127 = vld [vmem:[%s938 + $0x291] sm:$0xff]
    %v9128 = vld [vmem:[%s938 + $0x2a1] sm:$0xff]
    %v9129 = vld [vmem:[%s938 + $0x2a9] sm:$0xff]
    %v9130 = vld [vmem:[%s938 + $0x2b9] sm:$0xff]
    %v9131 = vld [vmem:[%s938 + $0x2c1] sm:$0xff]
    %v9132 = vld [vmem:[%s938 + $0x2d1] sm:$0xff]
    %v9133 = vld [vmem:[%s938 + $0x2d9] sm:$0xff]
    %v9134 = vld [vmem:[%s938 + $0x2e9] sm:$0xff]
    %v9135 = vld [vmem:[%s938 + $0x2f1] sm:$0xff]
    %v9136 = vld [vmem:[%s938 + $0x301] sm:$0xff]
    %v9137 = vld [vmem:[%s938 + $0x309] sm:$0xff]
    %v9138 = vld [vmem:[%s938 + $0x319] sm:$0xff]
    %v9139 = vld [vmem:[%s938 + $0x321] sm:$0xff]
    %v9140 = vld [vmem:[%s9] sm:$0xf]
    %v9141 = vld [vmem:[%s10] sm:$0x1]
    %v9143 = vlaneseq
    %v9144 = vshrl.u32 %v9143, 7
    %v9145 = vsub.s32 0, %v9144
    %v9146 = vrot.slane %v9141, %v9145
    %v9149 = vsel %vm103, %v9076, 0
    %v9152 = vsel %vm103, %v9077, 0
    %v9155 = vsel %vm103, %v9078, 0
    %v9158 = vsel %vm103, %v9079, 0
    %v9161 = vsel %vm103, %v9080, 0
    %v9164 = vsel %vm103, %v9081, 0
    %v9167 = vsel %vm103, %v9082, 0
    %v9170 = vsel %vm103, %v9083, 0
    %v9173 = vsel %vm103, %v9084, 0
    %v9176 = vsel %vm103, %v9085, 0
    %v9179 = vsel %vm103, %v9086, 0
    %v9182 = vsel %vm103, %v9087, 0
    %v9185 = vsel %vm103, %v9088, 0
    %v9188 = vsel %vm103, %v9089, 0
    %v9191 = vsel %vm103, %v9090, 0
    %v9194 = vsel %vm103, %v9091, 0
    %v9197 = vsel %vm103, %v9092, 0
    %v9200 = vsel %vm103, %v9093, 0
    %v9203 = vsel %vm103, %v9094, 0
    %v9206 = vsel %vm103, %v9095, 0
    %v9209 = vsel %vm103, %v9096, 0
    %v9212 = vsel %vm103, %v9097, 0
    %v9215 = vsel %vm103, %v9098, 0
    %v9218 = vsel %vm103, %v9099, 0
    %v9221 = vsel %vm103, %v9100, 0
    %v9224 = vsel %vm103, %v9101, 0
    %v9227 = vsel %vm103, %v9102, 0
    %v9230 = vsel %vm103, %v9103, 0
    %v9233 = vsel %vm103, %v9104, 0
    %v9236 = vsel %vm103, %v9105, 0
    %v9239 = vsel %vm103, %v9106, 0
    %v9242 = vsel %vm103, %v9107, 0
    %v9245 = vsel %vm103, %v9108, 0
    %v9248 = vsel %vm103, %v9109, 0
    %v9251 = vsel %vm103, %v9110, 0
    %v9254 = vsel %vm103, %v9111, 0
    %v9257 = vsel %vm103, %v9112, 0
    %v9260 = vsel %vm103, %v9113, 0
    %v9263 = vsel %vm103, %v9114, 0
    %v9266 = vsel %vm103, %v9115, 0
    %v9269 = vsel %vm103, %v9116, 0
    %v9272 = vsel %vm103, %v9117, 0
    %v9275 = vsel %vm103, %v9118, 0
    %v9278 = vsel %vm103, %v9119, 0
    %v9281 = vsel %vm103, %v9120, 0
    %v9284 = vsel %vm103, %v9121, 0
    %v9287 = vsel %vm103, %v9122, 0
    %v9290 = vsel %vm103, %v9123, 0
    %v9293 = vsel %vm103, %v9124, 0
    %v9296 = vsel %vm103, %v9125, 0
    %v9299 = vsel %vm103, %v9126, 0
    %v9302 = vsel %vm103, %v9127, 0
    %v9305 = vsel %vm103, %v9128, 0
    %v9308 = vsel %vm103, %v9129, 0
    %v9311 = vsel %vm103, %v9130, 0
    %v9314 = vsel %vm103, %v9131, 0
    %v9317 = vsel %vm103, %v9132, 0
    %v9320 = vsel %vm103, %v9133, 0
    %v9323 = vsel %vm103, %v9134, 0
    %v9326 = vsel %vm103, %v9135, 0
    %v9329 = vsel %vm103, %v9136, 0
    %v9332 = vsel %vm103, %v9137, 0
    %v9335 = vsel %vm103, %v9138, 0
    %v9338 = vsel %vm103, %v9139, 0
    %v9341 = vsel %vm3519, %v9140, 0
    %9343 = vmatprep.subr.mxu0 0.0
    %9344 = vmatpush1.msra.mxu0 %v9341
    %9345 = vmatprep.subr.mxu0 0.0
    %9346 = vmatpush1.msra.mxu0 0.0
    %9347 = vmatprep.subr.mxu0 0.0
    %9348 = vmatpush1.msra.mxu0 0.0
    %9349 = vmatprep.subr.mxu0 0.0
    %9350 = vmatpush1.msra.mxu0 0.0
    %9351 = vmatprep.subr.mxu0 0.0
    %9352 = vmatpush1.msra.mxu0 0.0
    %9353 = vmatprep.subr.mxu0 0.0
    %9354 = vmatpush1.msra.mxu0 0.0
    %9355 = vmatprep.subr.mxu0 0.0
    %9356 = vmatpush1.msra.mxu0 0.0
    %9357 = vmatprep.subr.mxu0 0.0
    %9358 = vmatpush1.msra.mxu0 0.0
    %9359 = vmatprep.subr.mxu0 0.0
    %9360 = vmatpush1.msra.mxu0 0.0
    %9361 = vmatprep.subr.mxu0 0.0
    %9362 = vmatpush1.msra.mxu0 0.0
    %9363 = vmatprep.subr.mxu0 0.0
    %9364 = vmatpush1.msra.mxu0 0.0
    %9365 = vmatprep.subr.mxu0 0.0
    %9366 = vmatpush1.msra.mxu0 0.0
    %9367 = vmatprep.subr.mxu0 0.0
    %9368 = vmatpush1.msra.mxu0 0.0
    %9369 = vmatprep.subr.mxu0 0.0
    %9370 = vmatpush1.msra.mxu0 0.0
    %9371 = vmatprep.subr.mxu0 0.0
    %9372 = vmatpush1.msra.mxu0 0.0
    %9373 = vmatprep.subr.mxu0 0.0
    %9374 = vmatpush1.msra.mxu0 0.0
    %9375 = vmatprep.subr.mxu0 0.0
    %9376 = vmatpush1.msra.mxu0 0.0
    %9377 = vmatprep.subr.mxu0 0.0
    %9378 = vmatpush1.msra.mxu0 0.0
    %9379 = vmatprep.subr.mxu0 0.0
    %9380 = vmatpush1.msra.mxu0 0.0
    %9381 = vmatprep.subr.mxu0 0.0
    %9382 = vmatpush1.msra.mxu0 0.0
    %9383 = vmatprep.subr.mxu0 0.0
    %9384 = vmatpush1.msra.mxu0 0.0
    %9385 = vmatprep.subr.mxu0 0.0
    %9386 = vmatpush1.msra.mxu0 0.0
    %9387 = vmatprep.subr.mxu0 0.0
    %9388 = vmatpush1.msra.mxu0 0.0
    %9389 = vmatprep.subr.mxu0 0.0
    %9390 = vmatpush1.msra.mxu0 0.0
    %9391 = vmatprep.subr.mxu0 0.0
    %9392 = vmatpush1.msra.mxu0 0.0
    %9393 = vmatprep.subr.mxu0 0.0
    %9394 = vmatpush1.msra.mxu0 0.0
    %9395 = vmatprep.subr.mxu0 0.0
    %9396 = vmatpush1.msra.mxu0 0.0
    %9397 = vmatprep.subr.mxu0 0.0
    %9398 = vmatpush1.msra.mxu0 0.0
    %9399 = vmatprep.subr.mxu0 0.0
    %9400 = vmatpush1.msra.mxu0 0.0
    %9401 = vmatprep.subr.mxu0 0.0
    %9402 = vmatpush1.msra.mxu0 0.0
    %9403 = vmatprep.subr.mxu0 0.0
    %9404 = vmatpush1.msra.mxu0 0.0
    %9405 = vmatprep.subr.mxu0 0.0
    %9406 = vmatpush1.msra.mxu0 0.0
    %9407 = vmatprep.mubr.f32.mxu0 0.0
    %9408 = vmatmul.mubr.f32.gmra.mrb[0].mxu0 %v9149
    %v9409 = vpop.f32.mrb[0].mxu0
    %v9410 = vadd.f32 %v9146, %v9409
    %v9411 = vpop.f32.mrb[0].mxu0
    %9412 = vmatprep.mubr.f32.mxu0 0.0
    %9413 = vmatmul.mubr.f32.gmra.mrb[0].mxu0 %v9152
    %v9414 = vpop.f32.mrb[0].mxu0
    %v9415 = vadd.f32 %v9146, %v9414
    %v9416 = vpop.f32.mrb[0].mxu0
    %9417 = vmatprep.mubr.f32.mxu0 0.0
    %9418 = vmatmul.mubr.f32.gmra.mrb[0].mxu0 %v9155
    %v9419 = vpop.f32.mrb[0].mxu0
    %v9420 = vadd.f32 %v9146, %v9419
    %v9421 = vpop.f32.mrb[0].mxu0
    %9422 = vmatprep.mubr.f32.mxu0 0.0
    %9423 = vmatmul.mubr.f32.gmra.mrb[0].mxu0 %v9158
    %v9424 = vpop.f32.mrb[0].mxu0
    %v9425 = vadd.f32 %v9146, %v9424
    %v9426 = vpop.f32.mrb[0].mxu0
    %9427 = vmatprep.mubr.f32.mxu0 0.0
    %9428 = vmatmul.mubr.f32.gmra.mrb[0].mxu0 %v9161
    %v9429 = vpop.f32.mrb[0].mxu0
    %v9430 = vadd.f32 %v9146, %v9429
    %v9431 = vpop.f32.mrb[0].mxu0
    %9432 = vmatprep.mubr.f32.mxu0 0.0
    %9433 = vmatmul.mubr.f32.gmra.mrb[0].mxu0 %v9164
    %v9434 = vpop.f32.mrb[0].mxu0
    %v9435 = vadd.f32 %v9146, %v9434
    %v9436 = vpop.f32.mrb[0].mxu0
    %9437 = vmatprep.mubr.f32.mxu0 0.0
    %9438 = vmatmul.mubr.f32.gmra.mrb[0].mxu0 %v9167
    %v9439 = vpop.f32.mrb[0].mxu0
    %v9440 = vadd.f32 %v9146, %v9439
    %v9441 = vpop.f32.mrb[0].mxu0
    %9442 = vmatprep.mubr.f32.mxu0 0.0
    %9443 = vmatmul.mubr.f32.gmra.mrb[0].mxu0 %v9170
    %v9444 = vpop.f32.mrb[0].mxu0
    %v9445 = vadd.f32 %v9146, %v9444
    %v9446 = vpop.f32.mrb[0].mxu0
    %9447 = vmatprep.mubr.f32.mxu0 0.0
    %9448 = vmatmul.mubr.f32.gmra.mrb[0].mxu0 %v9173
    %v9449 = vpop.f32.mrb[0].mxu0
    %v9450 = vadd.f32 %v9146, %v9449
    %v9451 = vpop.f32.mrb[0].mxu0
    %9452 = vmatprep.mubr.f32.mxu0 0.0
    %9453 = vmatmul.mubr.f32.gmra.mrb[0].mxu0 %v9176
    %v9454 = vpop.f32.mrb[0].mxu0
    %v9455 = vadd.f32 %v9146, %v9454
    %v9456 = vpop.f32.mrb[0].mxu0
    %9457 = vmatprep.mubr.f32.mxu0 0.0
    %9458 = vmatmul.mubr.f32.gmra.mrb[0].mxu0 %v9179
    %v9459 = vpop.f32.mrb[0].mxu0
    %v9460 = vadd.f32 %v9146, %v9459
    %v9461 = vpop.f32.mrb[0].mxu0
    %9462 = vmatprep.mubr.f32.mxu0 0.0
    %9463 = vmatmul.mubr.f32.gmra.mrb[0].mxu0 %v9182
    %v9464 = vpop.f32.mrb[0].mxu0
    %v9465 = vadd.f32 %v9146, %v9464
    %v9466 = vpop.f32.mrb[0].mxu0
    %9467 = vmatprep.mubr.f32.mxu0 0.0
    %9468 = vmatmul.mubr.f32.gmra.mrb[0].mxu0 %v9185
    %v9469 = vpop.f32.mrb[0].mxu0
    %v9470 = vadd.f32 %v9146, %v9469
    %v9471 = vpop.f32.mrb[0].mxu0
    %9472 = vmatprep.mubr.f32.mxu0 0.0
    %9473 = vmatmul.mubr.f32.gmra.mrb[0].mxu0 %v9188
    %v9474 = vpop.f32.mrb[0].mxu0
    %v9475 = vadd.f32 %v9146, %v9474
    %v9476 = vpop.f32.mrb[0].mxu0
    %9477 = vmatprep.mubr.f32.mxu0 0.0
    %9478 = vmatmul.mubr.f32.gmra.mrb[0].mxu0 %v9191
    %v9479 = vpop.f32.mrb[0].mxu0
    %v9480 = vadd.f32 %v9146, %v9479
    %v9481 = vpop.f32.mrb[0].mxu0
    %9482 = vmatprep.mubr.f32.mxu0 0.0
    %9483 = vmatmul.mubr.f32.gmra.mrb[0].mxu0 %v9194
    %v9484 = vpop.f32.mrb[0].mxu0
    %v9485 = vadd.f32 %v9146, %v9484
    %v9486 = vpop.f32.mrb[0].mxu0
    %9487 = vmatprep.mubr.f32.mxu0 0.0
    %9488 = vmatmul.mubr.f32.gmra.mrb[0].mxu0 %v9197
    %v9489 = vpop.f32.mrb[0].mxu0
    %v9490 = vadd.f32 %v9146, %v9489
    %v9491 = vpop.f32.mrb[0].mxu0
    %9492 = vmatprep.mubr.f32.mxu0 0.0
    %9493 = vmatmul.mubr.f32.gmra.mrb[0].mxu0 %v9200
    %v9494 = vpop.f32.mrb[0].mxu0
    %v9495 = vadd.f32 %v9146, %v9494
    %v9496 = vpop.f32.mrb[0].mxu0
    %9497 = vmatprep.mubr.f32.mxu0 0.0
    %9498 = vmatmul.mubr.f32.gmra.mrb[0].mxu0 %v9203
    %v9499 = vpop.f32.mrb[0].mxu0
    %v9500 = vadd.f32 %v9146, %v9499
    %v9501 = vpop.f32.mrb[0].mxu0
    %9502 = vmatprep.mubr.f32.mxu0 0.0
    %9503 = vmatmul.mubr.f32.gmra.mrb[0].mxu0 %v9206
    %v9504 = vpop.f32.mrb[0].mxu0
    %v9505 = vadd.f32 %v9146, %v9504
    %v9506 = vpop.f32.mrb[0].mxu0
    %9507 = vmatprep.mubr.f32.mxu0 0.0
    %9508 = vmatmul.mubr.f32.gmra.mrb[0].mxu0 %v9209
    %v9509 = vpop.f32.mrb[0].mxu0
    %v9510 = vadd.f32 %v9146, %v9509
    %v9511 = vpop.f32.mrb[0].mxu0
    %9512 = vmatprep.mubr.f32.mxu0 0.0
    %9513 = vmatmul.mubr.f32.gmra.mrb[0].mxu0 %v9212
    %v9514 = vpop.f32.mrb[0].mxu0
    %v9515 = vadd.f32 %v9146, %v9514
    %v9516 = vpop.f32.mrb[0].mxu0
    %9517 = vmatprep.mubr.f32.mxu0 0.0
    %9518 = vmatmul.mubr.f32.gmra.mrb[0].mxu0 %v9215
    %v9519 = vpop.f32.mrb[0].mxu0
    %v9520 = vadd.f32 %v9146, %v9519
    %v9521 = vpop.f32.mrb[0].mxu0
    %9522 = vmatprep.mubr.f32.mxu0 0.0
    %9523 = vmatmul.mubr.f32.gmra.mrb[0].mxu0 %v9218
    %v9524 = vpop.f32.mrb[0].mxu0
    %v9525 = vadd.f32 %v9146, %v9524
    %v9526 = vpop.f32.mrb[0].mxu0
    %9527 = vmatprep.mubr.f32.mxu0 0.0
    %9528 = vmatmul.mubr.f32.gmra.mrb[0].mxu0 %v9221
    %v9529 = vpop.f32.mrb[0].mxu0
    %v9530 = vadd.f32 %v9146, %v9529
    %v9531 = vpop.f32.mrb[0].mxu0
    %9532 = vmatprep.mubr.f32.mxu0 0.0
    %9533 = vmatmul.mubr.f32.gmra.mrb[0].mxu0 %v9224
    %v9534 = vpop.f32.mrb[0].mxu0
    %v9535 = vadd.f32 %v9146, %v9534
    %v9536 = vpop.f32.mrb[0].mxu0
    %9537 = vmatprep.mubr.f32.mxu0 0.0
    %9538 = vmatmul.mubr.f32.gmra.mrb[0].mxu0 %v9227
    %v9539 = vpop.f32.mrb[0].mxu0
    %v9540 = vadd.f32 %v9146, %v9539
    %v9541 = vpop.f32.mrb[0].mxu0
    %9542 = vmatprep.mubr.f32.mxu0 0.0
    %9543 = vmatmul.mubr.f32.gmra.mrb[0].mxu0 %v9230
    %v9544 = vpop.f32.mrb[0].mxu0
    %v9545 = vadd.f32 %v9146, %v9544
    %v9546 = vpop.f32.mrb[0].mxu0
    %9547 = vmatprep.mubr.f32.mxu0 0.0
    %9548 = vmatmul.mubr.f32.gmra.mrb[0].mxu0 %v9233
    %v9549 = vpop.f32.mrb[0].mxu0
    %v9550 = vadd.f32 %v9146, %v9549
    %v9551 = vpop.f32.mrb[0].mxu0
    %9552 = vmatprep.mubr.f32.mxu0 0.0
    %9553 = vmatmul.mubr.f32.gmra.mrb[0].mxu0 %v9236
    %v9554 = vpop.f32.mrb[0].mxu0
    %v9555 = vadd.f32 %v9146, %v9554
    %v9556 = vpop.f32.mrb[0].mxu0
    %9557 = vmatprep.mubr.f32.mxu0 0.0
    %9558 = vmatmul.mubr.f32.gmra.mrb[0].mxu0 %v9239
    %v9559 = vpop.f32.mrb[0].mxu0
    %v9560 = vadd.f32 %v9146, %v9559
    %v9561 = vpop.f32.mrb[0].mxu0
    %9562 = vmatprep.mubr.f32.mxu0 0.0
    %9563 = vmatmul.mubr.f32.gmra.mrb[0].mxu0 %v9242
    %v9564 = vpop.f32.mrb[0].mxu0
    %v9565 = vadd.f32 %v9146, %v9564
    %v9566 = vpop.f32.mrb[0].mxu0
    %9567 = vmatprep.mubr.f32.mxu0 0.0
    %9568 = vmatmul.mubr.f32.gmra.mrb[0].mxu0 %v9245
    %v9569 = vpop.f32.mrb[0].mxu0
    %v9570 = vadd.f32 %v9146, %v9569
    %v9571 = vpop.f32.mrb[0].mxu0
    %9572 = vmatprep.mubr.f32.mxu0 0.0
    %9573 = vmatmul.mubr.f32.gmra.mrb[0].mxu0 %v9248
    %v9574 = vpop.f32.mrb[0].mxu0
    %v9575 = vadd.f32 %v9146, %v9574
    %v9576 = vpop.f32.mrb[0].mxu0
    %9577 = vmatprep.mubr.f32.mxu0 0.0
    %9578 = vmatmul.mubr.f32.gmra.mrb[0].mxu0 %v9251
    %v9579 = vpop.f32.mrb[0].mxu0
    %v9580 = vadd.f32 %v9146, %v9579
    %v9581 = vpop.f32.mrb[0].mxu0
    %9582 = vmatprep.mubr.f32.mxu0 0.0
    %9583 = vmatmul.mubr.f32.gmra.mrb[0].mxu0 %v9254
    %v9584 = vpop.f32.mrb[0].mxu0
    %v9585 = vadd.f32 %v9146, %v9584
    %v9586 = vpop.f32.mrb[0].mxu0
    %9587 = vmatprep.mubr.f32.mxu0 0.0
    %9588 = vmatmul.mubr.f32.gmra.mrb[0].mxu0 %v9257
    %v9589 = vpop.f32.mrb[0].mxu0
    %v9590 = vadd.f32 %v9146, %v9589
    %v9591 = vpop.f32.mrb[0].mxu0
    %9592 = vmatprep.mubr.f32.mxu0 0.0
    %9593 = vmatmul.mubr.f32.gmra.mrb[0].mxu0 %v9260
    %v9594 = vpop.f32.mrb[0].mxu0
    %v9595 = vadd.f32 %v9146, %v9594
    %v9596 = vpop.f32.mrb[0].mxu0
    %9597 = vmatprep.mubr.f32.mxu0 0.0
    %9598 = vmatmul.mubr.f32.gmra.mrb[0].mxu0 %v9263
    %v9599 = vpop.f32.mrb[0].mxu0
    %v9600 = vadd.f32 %v9146, %v9599
    %v9601 = vpop.f32.mrb[0].mxu0
    %9602 = vmatprep.mubr.f32.mxu0 0.0
    %9603 = vmatmul.mubr.f32.gmra.mrb[0].mxu0 %v9266
    %v9604 = vpop.f32.mrb[0].mxu0
    %v9605 = vadd.f32 %v9146, %v9604
    %v9606 = vpop.f32.mrb[0].mxu0
    %9607 = vmatprep.mubr.f32.mxu0 0.0
    %9608 = vmatmul.mubr.f32.gmra.mrb[0].mxu0 %v9269
    %v9609 = vpop.f32.mrb[0].mxu0
    %v9610 = vadd.f32 %v9146, %v9609
    %v9611 = vpop.f32.mrb[0].mxu0
    %9612 = vmatprep.mubr.f32.mxu0 0.0
    %9613 = vmatmul.mubr.f32.gmra.mrb[0].mxu0 %v9272
    %v9614 = vpop.f32.mrb[0].mxu0
    %v9615 = vadd.f32 %v9146, %v9614
    %v9616 = vpop.f32.mrb[0].mxu0
    %9617 = vmatprep.mubr.f32.mxu0 0.0
    %9618 = vmatmul.mubr.f32.gmra.mrb[0].mxu0 %v9275
    %v9619 = vpop.f32.mrb[0].mxu0
    %v9620 = vadd.f32 %v9146, %v9619
    %v9621 = vpop.f32.mrb[0].mxu0
    %9622 = vmatprep.mubr.f32.mxu0 0.0
    %9623 = vmatmul.mubr.f32.gmra.mrb[0].mxu0 %v9278
    %v9624 = vpop.f32.mrb[0].mxu0
    %v9625 = vadd.f32 %v9146, %v9624
    %v9626 = vpop.f32.mrb[0].mxu0
    %9627 = vmatprep.mubr.f32.mxu0 0.0
    %9628 = vmatmul.mubr.f32.gmra.mrb[0].mxu0 %v9281
    %v9629 = vpop.f32.mrb[0].mxu0
    %v9630 = vadd.f32 %v9146, %v9629
    %v9631 = vpop.f32.mrb[0].mxu0
    %9632 = vmatprep.mubr.f32.mxu0 0.0
    %9633 = vmatmul.mubr.f32.gmra.mrb[0].mxu0 %v9284
    %v9634 = vpop.f32.mrb[0].mxu0
    %v9635 = vadd.f32 %v9146, %v9634
    %v9636 = vpop.f32.mrb[0].mxu0
    %9637 = vmatprep.mubr.f32.mxu0 0.0
    %9638 = vmatmul.mubr.f32.gmra.mrb[0].mxu0 %v9287
    %v9639 = vpop.f32.mrb[0].mxu0
    %v9640 = vadd.f32 %v9146, %v9639
    %v9641 = vpop.f32.mrb[0].mxu0
    %9642 = vmatprep.mubr.f32.mxu0 0.0
    %9643 = vmatmul.mubr.f32.gmra.mrb[0].mxu0 %v9290
    %v9644 = vpop.f32.mrb[0].mxu0
    %v9645 = vadd.f32 %v9146, %v9644
    %v9646 = vpop.f32.mrb[0].mxu0
    %9647 = vmatprep.mubr.f32.mxu0 0.0
    %9648 = vmatmul.mubr.f32.gmra.mrb[0].mxu0 %v9293
    %v9649 = vpop.f32.mrb[0].mxu0
    %v9650 = vadd.f32 %v9146, %v9649
    %v9651 = vpop.f32.mrb[0].mxu0
    %9652 = vmatprep.mubr.f32.mxu0 0.0
    %9653 = vmatmul.mubr.f32.gmra.mrb[0].mxu0 %v9296
    %v9654 = vpop.f32.mrb[0].mxu0
    %v9655 = vadd.f32 %v9146, %v9654
    %v9656 = vpop.f32.mrb[0].mxu0
    %9657 = vmatprep.mubr.f32.mxu0 0.0
    %9658 = vmatmul.mubr.f32.gmra.mrb[0].mxu0 %v9299
    %v9659 = vpop.f32.mrb[0].mxu0
    %v9660 = vadd.f32 %v9146, %v9659
    %v9661 = vpop.f32.mrb[0].mxu0
    %9662 = vmatprep.mubr.f32.mxu0 0.0
    %9663 = vmatmul.mubr.f32.gmra.mrb[0].mxu0 %v9302
    %v9664 = vpop.f32.mrb[0].mxu0
    %v9665 = vadd.f32 %v9146, %v9664
    %v9666 = vpop.f32.mrb[0].mxu0
    %9667 = vmatprep.mubr.f32.mxu0 0.0
    %9668 = vmatmul.mubr.f32.gmra.mrb[0].mxu0 %v9305
    %v9669 = vpop.f32.mrb[0].mxu0
    %v9670 = vadd.f32 %v9146, %v9669
    %v9671 = vpop.f32.mrb[0].mxu0
    %9672 = vmatprep.mubr.f32.mxu0 0.0
    %9673 = vmatmul.mubr.f32.gmra.mrb[0].mxu0 %v9308
    %v9674 = vpop.f32.mrb[0].mxu0
    %v9675 = vadd.f32 %v9146, %v9674
    %v9676 = vpop.f32.mrb[0].mxu0
    %9677 = vmatprep.mubr.f32.mxu0 0.0
    %9678 = vmatmul.mubr.f32.gmra.mrb[0].mxu0 %v9311
    %v9679 = vpop.f32.mrb[0].mxu0
    %v9680 = vadd.f32 %v9146, %v9679
    %v9681 = vpop.f32.mrb[0].mxu0
    %9682 = vmatprep.mubr.f32.mxu0 0.0
    %9683 = vmatmul.mubr.f32.gmra.mrb[0].mxu0 %v9314
    %v9684 = vpop.f32.mrb[0].mxu0
    %v9685 = vadd.f32 %v9146, %v9684
    %v9686 = vpop.f32.mrb[0].mxu0
    %9687 = vmatprep.mubr.f32.mxu0 0.0
    %9688 = vmatmul.mubr.f32.gmra.mrb[0].mxu0 %v9317
    %v9689 = vpop.f32.mrb[0].mxu0
    %v9690 = vadd.f32 %v9146, %v9689
    %v9691 = vpop.f32.mrb[0].mxu0
    %9692 = vmatprep.mubr.f32.mxu0 0.0
    %9693 = vmatmul.mubr.f32.gmra.mrb[0].mxu0 %v9320
    %v9694 = vpop.f32.mrb[0].mxu0
    %v9695 = vadd.f32 %v9146, %v9694
    %v9696 = vpop.f32.mrb[0].mxu0
    %9697 = vmatprep.mubr.f32.mxu0 0.0
    %9698 = vmatmul.mubr.f32.gmra.mrb[0].mxu0 %v9323
    %v9699 = vpop.f32.mrb[0].mxu0
    %v9700 = vadd.f32 %v9146, %v9699
    %v9701 = vpop.f32.mrb[0].mxu0
    %9702 = vmatprep.mubr.f32.mxu0 0.0
    %9703 = vmatmul.mubr.f32.gmra.mrb[0].mxu0 %v9326
    %v9704 = vpop.f32.mrb[0].mxu0
    %v9705 = vadd.f32 %v9146, %v9704
    %v9706 = vpop.f32.mrb[0].mxu0
    %9707 = vmatprep.mubr.f32.mxu0 0.0
    %9708 = vmatmul.mubr.f32.gmra.mrb[0].mxu0 %v9329
    %v9709 = vpop.f32.mrb[0].mxu0
    %v9710 = vadd.f32 %v9146, %v9709
    %v9711 = vpop.f32.mrb[0].mxu0
    %9712 = vmatprep.mubr.f32.mxu0 0.0
    %9713 = vmatmul.mubr.f32.gmra.mrb[0].mxu0 %v9332
    %v9714 = vpop.f32.mrb[0].mxu0
    %v9715 = vadd.f32 %v9146, %v9714
    %v9716 = vpop.f32.mrb[0].mxu0
    %9717 = vmatprep.mubr.f32.mxu0 0.0
    %9718 = vmatmul.mubr.f32.gmra.mrb[0].mxu0 %v9335
    %v9719 = vpop.f32.mrb[0].mxu0
    %v9720 = vadd.f32 %v9146, %v9719
    %v9721 = vpop.f32.mrb[0].mxu0
    %9722 = vmatprep.mubr.f32.mxu0 0.0
    %9723 = vmatmul.mubr.f32.gmra.mrb[0].mxu0 %v9338
    %v9724 = vpop.f32.mrb[0].mxu0
    %v9725 = vadd.f32 %v9146, %v9724
    %v9726 = vpop.f32.mrb[0].mxu0
    %9727 = vdwg.mxu0
    %v9728 = vadd.f32 %v9012, %v9410
    %v9729 = vadd.f32 %v9013, %v9415
    %v9730 = vadd.f32 %v9014, %v9420
    %v9731 = vadd.f32 %v9015, %v9425
    %v9732 = vadd.f32 %v9016, %v9430
    %v9733 = vadd.f32 %v9017, %v9435
    %v9734 = vadd.f32 %v9018, %v9440
    %v9735 = vadd.f32 %v9019, %v9445
    %v9736 = vadd.f32 %v9020, %v9450
    %v9737 = vadd.f32 %v9021, %v9455
    %v9738 = vadd.f32 %v9022, %v9460
    %v9739 = vadd.f32 %v9023, %v9465
    %v9740 = vadd.f32 %v9024, %v9470
    %v9741 = vadd.f32 %v9025, %v9475
    %v9742 = vadd.f32 %v9026, %v9480
    %v9743 = vadd.f32 %v9027, %v9485
    %v9744 = vadd.f32 %v9028, %v9490
    %v9745 = vadd.f32 %v9029, %v9495
    %v9746 = vadd.f32 %v9030, %v9500
    %v9747 = vadd.f32 %v9031, %v9505
    %v9748 = vadd.f32 %v9032, %v9510
    %v9749 = vadd.f32 %v9033, %v9515
    %v9750 = vadd.f32 %v9034, %v9520
    %v9751 = vadd.f32 %v9035, %v9525
    %v9752 = vadd.f32 %v9036, %v9530
    %v9753 = vadd.f32 %v9037, %v9535
    %v9754 = vadd.f32 %v9038, %v9540
    %v9755 = vadd.f32 %v9039, %v9545
    %v9756 = vadd.f32 %v9040, %v9550
    %v9757 = vadd.f32 %v9041, %v9555
    %v9758 = vadd.f32 %v9042, %v9560
    %v9759 = vadd.f32 %v9043, %v9565
    %v9760 = vadd.f32 %v9044, %v9570
    %v9761 = vadd.f32 %v9045, %v9575
    %v9762 = vadd.f32 %v9046, %v9580
    %v9763 = vadd.f32 %v9047, %v9585
    %v9764 = vadd.f32 %v9048, %v9590
    %v9765 = vadd.f32 %v9049, %v9595
    %v9766 = vadd.f32 %v9050, %v9600
    %v9767 = vadd.f32 %v9051, %v9605
    %v9768 = vadd.f32 %v9052, %v9610
    %v9769 = vadd.f32 %v9053, %v9615
    %v9770 = vadd.f32 %v9054, %v9620
    %v9771 = vadd.f32 %v9055, %v9625
    %v9772 = vadd.f32 %v9056, %v9630
    %v9773 = vadd.f32 %v9057, %v9635
    %v9774 = vadd.f32 %v9058, %v9640
    %v9775 = vadd.f32 %v9059, %v9645
    %v9776 = vadd.f32 %v9060, %v9650
    %v9777 = vadd.f32 %v9061, %v9655
    %v9778 = vadd.f32 %v9062, %v9660
    %v9779 = vadd.f32 %v9063, %v9665
    %v9780 = vadd.f32 %v9064, %v9670
    %v9781 = vadd.f32 %v9065, %v9675
    %v9782 = vadd.f32 %v9066, %v9680
    %v9783 = vadd.f32 %v9067, %v9685
    %v9784 = vadd.f32 %v9068, %v9690
    %v9785 = vadd.f32 %v9069, %v9695
    %v9786 = vadd.f32 %v9070, %v9700
    %v9787 = vadd.f32 %v9071, %v9705
    %v9788 = vadd.f32 %v9072, %v9710
    %v9789 = vadd.f32 %v9073, %v9715
    %v9790 = vadd.f32 %v9074, %v9720
    %v9791 = vadd.f32 %v9075, %v9725
    %v9792 = vmax.f32 %v9728, 0.0
    %v9793 = vmax.f32 %v9729, 0.0
    %v9794 = vmax.f32 %v9730, 0.0
    %v9795 = vmax.f32 %v9731, 0.0
    %v9796 = vmax.f32 %v9732, 0.0
    %v9797 = vmax.f32 %v9733, 0.0
    %v9798 = vmax.f32 %v9734, 0.0
    %v9799 = vmax.f32 %v9735, 0.0
    %v9800 = vmax.f32 %v9736, 0.0
    %v9801 = vmax.f32 %v9737, 0.0
    %v9802 = vmax.f32 %v9738, 0.0
    %v9803 = vmax.f32 %v9739, 0.0
    %v9804 = vmax.f32 %v9740, 0.0
    %v9805 = vmax.f32 %v9741, 0.0
    %v9806 = vmax.f32 %v9742, 0.0
    %v9807 = vmax.f32 %v9743, 0.0
    %v9808 = vmax.f32 %v9744, 0.0
    %v9809 = vmax.f32 %v9745, 0.0
    %v9810 = vmax.f32 %v9746, 0.0
    %v9811 = vmax.f32 %v9747, 0.0
    %v9812 = vmax.f32 %v9748, 0.0
    %v9813 = vmax.f32 %v9749, 0.0
    %v9814 = vmax.f32 %v9750, 0.0
    %v9815 = vmax.f32 %v9751, 0.0
    %v9816 = vmax.f32 %v9752, 0.0
    %v9817 = vmax.f32 %v9753, 0.0
    %v9818 = vmax.f32 %v9754, 0.0
    %v9819 = vmax.f32 %v9755, 0.0
    %v9820 = vmax.f32 %v9756, 0.0
    %v9821 = vmax.f32 %v9757, 0.0
    %v9822 = vmax.f32 %v9758, 0.0
    %v9823 = vmax.f32 %v9759, 0.0
    %v9824 = vmax.f32 %v9760, 0.0
    %v9825 = vmax.f32 %v9761, 0.0
    %v9826 = vmax.f32 %v9762, 0.0
    %v9827 = vmax.f32 %v9763, 0.0
    %v9828 = vmax.f32 %v9764, 0.0
    %v9829 = vmax.f32 %v9765, 0.0
    %v9830 = vmax.f32 %v9766, 0.0
    %v9831 = vmax.f32 %v9767, 0.0
    %v9832 = vmax.f32 %v9768, 0.0
    %v9833 = vmax.f32 %v9769, 0.0
    %v9834 = vmax.f32 %v9770, 0.0
    %v9835 = vmax.f32 %v9771, 0.0
    %v9836 = vmax.f32 %v9772, 0.0
    %v9837 = vmax.f32 %v9773, 0.0
    %v9838 = vmax.f32 %v9774, 0.0
    %v9839 = vmax.f32 %v9775, 0.0
    %v9840 = vmax.f32 %v9776, 0.0
    %v9841 = vmax.f32 %v9777, 0.0
    %v9842 = vmax.f32 %v9778, 0.0
    %v9843 = vmax.f32 %v9779, 0.0
    %v9844 = vmax.f32 %v9780, 0.0
    %v9845 = vmax.f32 %v9781, 0.0
    %v9846 = vmax.f32 %v9782, 0.0
    %v9847 = vmax.f32 %v9783, 0.0
    %v9848 = vmax.f32 %v9784, 0.0
    %v9849 = vmax.f32 %v9785, 0.0
    %v9850 = vmax.f32 %v9786, 0.0
    %v9851 = vmax.f32 %v9787, 0.0
    %v9852 = vmax.f32 %v9788, 0.0
    %v9853 = vmax.f32 %v9789, 0.0
    %v9854 = vmax.f32 %v9790, 0.0
    %v9855 = vmax.f32 %v9791, 0.0
    %9856 = vst [vmem:[#allocation5] sm:$0xff] %v9792
    %9857 = vst [vmem:[#allocation5 + $0x8] sm:$0xff] %v9793
    %9858 = vst [vmem:[#allocation5 + $0x10] sm:$0xff] %v9794
    %9859 = vst [vmem:[#allocation5 + $0x18] sm:$0xff] %v9795
    %9860 = vst [vmem:[#allocation5 + $0x20] sm:$0xff] %v9796
    %9861 = vst [vmem:[#allocation5 + $0x28] sm:$0xff] %v9797
    %9862 = vst [vmem:[#allocation5 + $0x30] sm:$0xff] %v9798
    %9863 = vst [vmem:[#allocation5 + $0x38] sm:$0xff] %v9799
    %9864 = vst [vmem:[#allocation5 + $0x40] sm:$0xff] %v9800
    %9865 = vst [vmem:[#allocation5 + $0x48] sm:$0xff] %v9801
    %9866 = vst [vmem:[#allocation5 + $0x50] sm:$0xff] %v9802
    %9867 = vst [vmem:[#allocation5 + $0x58] sm:$0xff] %v9803
    %9868 = vst [vmem:[#allocation5 + $0x60] sm:$0xff] %v9804
    %9869 = vst [vmem:[#allocation5 + $0x68] sm:$0xff] %v9805
    %9870 = vst [vmem:[#allocation5 + $0x70] sm:$0xff] %v9806
    %9871 = vst [vmem:[#allocation5 + $0x78] sm:$0xff] %v9807
    %9872 = vst [vmem:[#allocation5 + $0x80] sm:$0xff] %v9808
    %9873 = vst [vmem:[#allocation5 + $0x88] sm:$0xff] %v9809
    %9874 = vst [vmem:[#allocation5 + $0x90] sm:$0xff] %v9810
    %9875 = vst [vmem:[#allocation5 + $0x98] sm:$0xff] %v9811
    %9876 = vst [vmem:[#allocation5 + $0xa0] sm:$0xff] %v9812
    %9877 = vst [vmem:[#allocation5 + $0xa8] sm:$0xff] %v9813
    %9878 = vst [vmem:[#allocation5 + $0xb0] sm:$0xff] %v9814
    %9879 = vst [vmem:[#allocation5 + $0xb8] sm:$0xff] %v9815
    %9880 = vst [vmem:[#allocation5 + $0xc0] sm:$0xff] %v9816
    %9881 = vst [vmem:[#allocation5 + $0xc8] sm:$0xff] %v9817
    %9882 = vst [vmem:[#allocation5 + $0xd0] sm:$0xff] %v9818
    %9883 = vst [vmem:[#allocation5 + $0xd8] sm:$0xff] %v9819
    %9884 = vst [vmem:[#allocation5 + $0xe0] sm:$0xff] %v9820
    %9885 = vst [vmem:[#allocation5 + $0xe8] sm:$0xff] %v9821
    %9886 = vst [vmem:[#allocation5 + $0xf0] sm:$0xff] %v9822
    %9887 = vst [vmem:[#allocation5 + $0xf8] sm:$0xff] %v9823
    %9888 = vst [vmem:[#allocation5 + $0x100] sm:$0xff] %v9824
    %9889 = vst [vmem:[#allocation5 + $0x108] sm:$0xff] %v9825
    %9890 = vst [vmem:[#allocation5 + $0x110] sm:$0xff] %v9826
    %9891 = vst [vmem:[#allocation5 + $0x118] sm:$0xff] %v9827
    %9892 = vst [vmem:[#allocation5 + $0x120] sm:$0xff] %v9828
    %9893 = vst [vmem:[#allocation5 + $0x128] sm:$0xff] %v9829
    %9894 = vst [vmem:[#allocation5 + $0x130] sm:$0xff] %v9830
    %9895 = vst [vmem:[#allocation5 + $0x138] sm:$0xff] %v9831
    %9896 = vst [vmem:[#allocation5 + $0x140] sm:$0xff] %v9832
    %9897 = vst [vmem:[#allocation5 + $0x148] sm:$0xff] %v9833
    %9898 = vst [vmem:[#allocation5 + $0x150] sm:$0xff] %v9834
    %9899 = vst [vmem:[#allocation5 + $0x158] sm:$0xff] %v9835
    %9900 = vst [vmem:[#allocation5 + $0x160] sm:$0xff] %v9836
    %9901 = vst [vmem:[#allocation5 + $0x168] sm:$0xff] %v9837
    %9902 = vst [vmem:[#allocation5 + $0x170] sm:$0xff] %v9838
    %9903 = vst [vmem:[#allocation5 + $0x178] sm:$0xff] %v9839
    %9904 = vst [vmem:[#allocation5 + $0x180] sm:$0xff] %v9840
    %9905 = vst [vmem:[#allocation5 + $0x188] sm:$0xff] %v9841
    %9906 = vst [vmem:[#allocation5 + $0x190] sm:$0xff] %v9842
    %9907 = vst [vmem:[#allocation5 + $0x198] sm:$0xff] %v9843
    %9908 = vst [vmem:[#allocation5 + $0x1a0] sm:$0xff] %v9844
    %9909 = vst [vmem:[#allocation5 + $0x1a8] sm:$0xff] %v9845
    %9910 = vst [vmem:[#allocation5 + $0x1b0] sm:$0xff] %v9846
    %9911 = vst [vmem:[#allocation5 + $0x1b8] sm:$0xff] %v9847
    %9912 = vst [vmem:[#allocation5 + $0x1c0] sm:$0xff] %v9848
    %9913 = vst [vmem:[#allocation5 + $0x1c8] sm:$0xff] %v9849
    %9914 = vst [vmem:[#allocation5 + $0x1d0] sm:$0xff] %v9850
    %9915 = vst [vmem:[#allocation5 + $0x1d8] sm:$0xff] %v9851
    %9916 = vst [vmem:[#allocation5 + $0x1e0] sm:$0xff] %v9852
    %9917 = vst [vmem:[#allocation5 + $0x1e8] sm:$0xff] %v9853
    %9918 = vst [vmem:[#allocation5 + $0x1f0] sm:$0xff] %v9854
    %9919 = vst [vmem:[#allocation5 + $0x1f8] sm:$0xff] %v9855
    // Predicated region
    $region46: #{tpu_custom_call.1} parent=1 // pred_check
      _
    $region47: #{tpu_custom_call.1} parent=1 // pred_check_branch
      %9921 = sbr.rel (0) target = $region49
    $region48: #{tpu_custom_call.1} parent=1 // pred_region
      %s9923 = ssub.s32 8192, 8192
      %9924 = vsyncadd [#allocation6], %s9923
      %s9925 = sshll.u32 [#allocation5], 4
      %s9926 = int_to_ptr.vmem [resolvable:$true] %s9925
      %9931 = dma.vmem_to_hbm [thread:$0]  %s9926, 8192, %s11, [#allocation6], 128, 128, 8
    $region49: #{tpu_custom_call.1} parent=1 // pred_fallthru
      _
    // Predicated region
    $region50: #{tpu_custom_call.1} parent=1 // pred_check
      _
    $region51: #{tpu_custom_call.1} parent=1 // pred_check_branch
      %9933 = sbr.rel (0) target = $region53
    $region52: #{tpu_custom_call.1} parent=1 // pred_region
      %9934 = dma.done [#allocation6], 8192
    $region53: #{tpu_custom_call.1} parent=1 // pred_fallthru
      _
    %9935 = vsyncpa [#allocation6], 1

</llo_original>
